<compile_context>
chip_gen: v5e
topology: v5e:2x2
jax: 0.10.0
libtpu: 0.0.40
codegen_flags: <defaults>
</compile_context>

<pallas_src>
import math
from functools import partial

import jax
import jax.numpy as jnp
from jax.experimental import pallas as pl
from jax.experimental.pallas import tpu as pltpu

F32 = jnp.float32
_SQRT1_2 = 1.0 / math.sqrt(2.0)
_TWO_PI = 2.0 * math.pi


# ---------------------------------------------------------------------------
# In-kernel helpers (traced inside Pallas kernels only)
# ---------------------------------------------------------------------------
def _gelu(x):
    # exact-erf GELU (PyTorch nn.GELU default)
    return 0.5 * x * (1.0 + jax.lax.erf(x * _SQRT1_2))


def _layernorm(x, w, b, eps):
    mu = jnp.mean(x, axis=-1, keepdims=True)
    xc = x - mu
    var = jnp.mean(xc * xc, axis=-1, keepdims=True)
    return xc * jax.lax.rsqrt(var + eps) * w + b


def _pe_encode(coords01, gauss2, num_pos_feats):
    """Random-Fourier positional encoding.

    coords01: (M, 2) in [0, 1]; gauss2 = concat([gauss, gauss], axis=1): (2, 2F).
    Equivalent to concat([sin(2pi * c@g), cos(2pi * c@g)], -1), but uses VPU FMAs
    instead of a K=2 MXU matmul and a lane-select instead of a concatenate.
    """
    c = 2.0 * coords01 - 1.0
    t = c[:, 0:1] * gauss2[0:1, :] + c[:, 1:2] * gauss2[1:2, :]   # (M, 2F)
    t = _TWO_PI * t
    lane = jax.lax.broadcasted_iota(jnp.int32, t.shape, 1)
    return jnp.where(lane < num_pos_feats, jnp.sin(t), jnp.cos(t))


def _mha(q, k, v, wo, bo, num_heads):
    """All heads in one trace (unrolled); fold head outputs into out-projection."""
    D = q.shape[1]
    hd = D // num_heads
    scale = 1.0 / math.sqrt(hd)
    acc = None
    for h in range(num_heads):
        lo, hi = h * hd, (h + 1) * hd
        s = jax.lax.dot_general(q[:, lo:hi], k[:, lo:hi],
                                (((1,), (1,)), ((), ())),
                                preferred_element_type=F32) * scale      # (Nq, Nk)
        m = jnp.max(s, axis=-1, keepdims=True)
        p = jnp.exp(s - m)
        p = p * pl.reciprocal(jnp.sum(p, axis=-1, keepdims=True), approx=True)
        oh = jnp.dot(p, v[:, lo:hi], preferred_element_type=F32)          # (Nq, hd)
        contrib = jnp.dot(oh, wo[lo:hi, :], preferred_element_type=F32)   # (Nq, E)
        acc = contrib if acc is None else acc + contrib
    return acc + bo


# ---------------------------------------------------------------------------
# Fused point-prompt kernel: PE + TwoWayAttentionBlock + label embeddings
# ---------------------------------------------------------------------------
def _prompt_block_kernel(
    # per-batch inputs
    pts_ref, lab_ref,
    # shared inputs
    grid_ref, gauss2_ref, feat_ref,
    sa_wqk_ref, sa_bqk_ref, sa_wv_ref, sa_bv_ref, sa_wo_ref, sa_bo_ref,
    c_wq_ref, c_bq_ref, c_wk_ref, c_bk_ref, c_wv_ref, c_bv_ref, c_wo_ref, c_bo_ref,
    nw_ref, nb_ref,
    mlp_w1_ref, mlp_b1_ref, mlp_w2_ref, mlp_b2_ref,
    spec_ref,
    # output
    out_ref,
    *, num_heads, num_pos_feats):
    E = feat_ref.shape[1]
    gauss2 = gauss2_ref[...]
    nw = nw_ref[...]
    nb = nb_ref[...]
    spec = spec_ref[...]

    q_pe = _pe_encode(pts_ref[0], gauss2, num_pos_feats)       # (N, E)  point PE
    k_pe = _pe_encode(grid_ref[...], gauss2, num_pos_feats)    # (HW, E) dense PE
    keys = feat_ref[...]                                       # (HW, E) image emb
    queries = q_pe                                             # queries == query_pe

    def ln(x, i):
        return _layernorm(x, nw[i:i + 1, :], nb[i:i + 1, :], 1e-5)

    # ---- self-attention (q/k projections fused into one matmul) -------------
    x = queries + q_pe
    qk = jnp.dot(x, sa_wqk_ref[...], preferred_element_type=F32) + sa_bqk_ref[...]
    sv = jnp.dot(queries, sa_wv_ref[...], preferred_element_type=F32) + sa_bv_ref[...]
    attn = _mha(qk[:, :E], qk[:, E:], sv, sa_wo_ref[...], sa_bo_ref[...], num_heads)
    queries = ln(queries + attn, 0)

    # ---- cross-attention: tokens -> image (downsampled internal dim) --------
    q = jnp.dot(queries + q_pe, c_wq_ref[...], preferred_element_type=F32) + c_bq_ref[...]
    k = jnp.dot(keys + k_pe, c_wk_ref[...], preferred_element_type=F32) + c_bk_ref[...]
    v = jnp.dot(keys, c_wv_ref[...], preferred_element_type=F32) + c_bv_ref[...]
    attn = _mha(q, k, v, c_wo_ref[...], c_bo_ref[...], num_heads)
    queries = ln(queries + attn, 1)

    # ---- MLP (lin -> exact-erf GELU -> lin), fused ---------------------------
    hmid = jnp.dot(queries, mlp_w1_ref[...], preferred_element_type=F32) + mlp_b1_ref[...]
    hmid = _gelu(hmid)
    mlp_out = jnp.dot(hmid, mlp_w2_ref[...], preferred_element_type=F32) + mlp_b2_ref[...]
    queries = ln(queries + mlp_out, 2)

    # NOTE: the final cross-attention (image -> tokens) + norm4 only modify
    # `keys`, which PromptEncoder.forward discards -> skipped on purpose.

    out = q_pe + queries                                       # point_embedding + queries

    # label-dependent embeddings (labels: -1 pad, 0 background, 1 foreground)
    lab = lab_ref[0]                                           # (N, 1)
    is_neg = (lab == -1.0).astype(F32)
    is_bg = (lab == 0.0).astype(F32)
    is_fg = (lab == 1.0).astype(F32)
    out = (1.0 - is_neg) * out + is_neg * spec[0:1, :]
    out = out + is_bg * spec[1:2, :] + is_fg * spec[2:3, :]
    out_ref[0] = out


# ---------------------------------------------------------------------------
# Fused mask-downscaling kernels
# ---------------------------------------------------------------------------
def _mask_stage1_kernel(patch_ref, w_ref, b_ref, lnw_ref, lnb_ref, out_ref):
    x = patch_ref[0]                                                       # (P1, 4)
    y = jnp.dot(x, w_ref[...], preferred_element_type=F32) + b_ref[...]
    y = _layernorm(y, lnw_ref[...], lnb_ref[...], 1e-6)                    # LayerNorm2d
    out_ref[0] = _gelu(y)


def _mask_stage2_kernel(patch_ref, w2_ref, b2_ref, lnw_ref, lnb_ref,
                        w3_ref, b3_ref, out_ref):
    x = patch_ref[0]                                                       # (P2, C1*4)
    y = jnp.dot(x, w2_ref[...], preferred_element_type=F32) + b2_ref[...]
    y = _layernorm(y, lnw_ref[...], lnb_ref[...], 1e-6)
    y = _gelu(y)
    y = jnp.dot(y, w3_ref[...], preferred_element_type=F32) + b3_ref[...]  # 1x1 conv
    out_ref[0] = y


# ---------------------------------------------------------------------------
# Box corner PE kernel (only used when boxes are provided)
# ---------------------------------------------------------------------------
def _box_kernel(coords_ref, gauss2_ref, corner_ref, out_ref, *, num_pos_feats):
    pe = _pe_encode(coords_ref[0], gauss2_ref[...], num_pos_feats)         # (2, E)
    out_ref[0] = pe + corner_ref[...]


# ---------------------------------------------------------------------------
# Wrappers / glue
# ---------------------------------------------------------------------------
def _full_spec(shape):
    n = len(shape)
    return pl.BlockSpec(shape, lambda *args, _n=n: (0,) * _n)


def _row(v):
    return v.reshape(1, -1).astype(F32)


def embed_points(p, coords, labels, feature, image_embedding_size,
                 input_image_size, embed_dim, num_heads, pad=True):
    B = coords.shape[0]
    pts = coords.astype(F32) + 0.5
    lab = labels.astype(F32)
    if pad:
        pts = jnp.concatenate([pts, jnp.zeros((B, 1, 2), F32)], axis=1)
        lab = jnp.concatenate([lab, -jnp.ones((B, 1), F32)], axis=1)
    N = pts.shape[1]
    Hin, Win = input_image_size
    pts01 = pts / jnp.array([Win, Hin], F32)                   # x/W, y/H
    lab = lab.reshape(B, N, 1)

    h, w = image_embedding_size
    HW = h * w
    yy = jnp.broadcast_to(((jnp.arange(h, dtype=F32) + 0.5) / h)[:, None], (h, w))
    xx = jnp.broadcast_to(((jnp.arange(w, dtype=F32) + 0.5) / w)[None, :], (h, w))
    grid01 = jnp.stack([xx, yy], axis=-1).reshape(HW, 2)

    feat = feature.reshape(embed_dim, HW).T.astype(F32)        # keys (HW, E)

    F_ = p["pe_gauss"].shape[1]
    gauss2 = jnp.concatenate([p["pe_gauss"], p["pe_gauss"]], axis=1).astype(F32)

    sa = p["self_attn"]
    ca = p["cross_t2i"]
    sa_wqk = jnp.concatenate([sa["wq"], sa["wk"]], axis=1).astype(F32)     # (E, 2E)
    sa_bqk = jnp.concatenate([sa["bq"], sa["bk"]], axis=0).reshape(1, -1).astype(F32)
    nw = jnp.stack([p["norm1_w"], p["norm2_w"], p["norm3_w"]]).astype(F32)  # (3, E)
    nb = jnp.stack([p["norm1_b"], p["norm2_b"], p["norm3_b"]]).astype(F32)
    spec = jnp.stack([p["not_a_point"], p["point_embed"][0],
                      p["point_embed"][1]]).astype(F32)                     # (3, E)

    shared = [
        grid01, gauss2, feat,
        sa_wqk, sa_bqk, sa["wv"].astype(F32), _row(sa["bv"]),
        sa["wo"].astype(F32), _row(sa["bo"]),
        ca["wq"].astype(F32), _row(ca["bq"]), ca["wk"].astype(F32), _row(ca["bk"]),
        ca["wv"].astype(F32), _row(ca["bv"]), ca["wo"].astype(F32), _row(ca["bo"]),
        nw, nb,
        p["mlp_w1"].astype(F32), _row(p["mlp_b1"]),
        p["mlp_w2"].astype(F32), _row(p["mlp_b2"]),
        spec,
    ]

    in_specs = [
        pl.BlockSpec((1, N, 2), lambda b: (b, 0, 0)),
        pl.BlockSpec((1, N, 1), lambda b: (b, 0, 0)),
    ] + [_full_spec(a.shape) for a in shared]

    return pl.pallas_call(
        partial(_prompt_block_kernel, num_heads=num_heads, num_pos_feats=F_),
        out_shape=jax.ShapeDtypeStruct((B, N, embed_dim), F32),
        grid=(B,),
        in_specs=in_specs,
        out_specs=pl.BlockSpec((1, N, embed_dim), lambda b: (b, 0, 0)),
        compiler_params=pltpu.CompilerParams(dimension_semantics=("parallel",)),
    )(pts01, lab, *shared)


def _extract_2x2_patches(x):
    """x: (B, H, W, C) -> (B, (H/2)*(W/2), C*4); flatten order (c, kh, kw) matches
    the PyTorch conv weight (Cout, Cin, kh, kw) flattening."""
    B, H, W, C = x.shape
    Ho, Wo = H // 2, W // 2
    pch = x.reshape(B, Ho, 2, Wo, 2, C).transpose(0, 1, 3, 5, 2, 4)
    return pch.reshape(B, Ho * Wo, C * 4), (Ho, Wo)


def embed_masks(p, masks, embed_dim):
    B = masks.shape[0]
    x = masks.transpose(0, 2, 3, 1).astype(F32)                     # NHWC, C=1

    patches1, (H1, W1) = _extract_2x2_patches(x)                    # (B, P1, 4)
    C1 = p["conv1_w"].shape[0]
    P1, K1 = patches1.shape[1], patches1.shape[2]
    w1 = p["conv1_w"].reshape(C1, -1).T.astype(F32)                 # (4, C1)
    s1_in = [w1, _row(p["conv1_b"]), _row(p["ln1_w"]), _row(p["ln1_b"])]
    y1 = pl.pallas_call(
        _mask_stage1_kernel,
        out_shape=jax.ShapeDtypeStruct((B, P1, C1), F32),
        grid=(B,),
        in_specs=[pl.BlockSpec((1, P1, K1), lambda b: (b, 0, 0))]
                 + [_full_spec(a.shape) for a in s1_in],
        out_specs=pl.BlockSpec((1, P1, C1), lambda b: (b, 0, 0)),
        compiler_params=pltpu.CompilerParams(dimension_semantics=("parallel",)),
    )(patches1, *s1_in)

    patches2, (H2, W2) = _extract_2x2_patches(y1.reshape(B, H1, W1, C1))
    C2 = p["conv2_w"].shape[0]
    P2, K2 = patches2.shape[1], patches2.shape[2]
    w2 = p["conv2_w"].reshape(C2, -1).T.astype(F32)                 # (C1*4, C2)
    w3 = p["conv3_w"].reshape(embed_dim, -1).T.astype(F32)          # (C2, E) 1x1 conv
    s2_in = [w2, _row(p["conv2_b"]), _row(p["ln2_w"]), _row(p["ln2_b"]),
             w3, _row(p["conv3_b"])]
    y2 = pl.pallas_call(
        _mask_stage2_kernel,
        out_shape=jax.ShapeDtypeStruct((B, P2, embed_dim), F32),
        grid=(B,),
        in_specs=[pl.BlockSpec((1, P2, K2), lambda b: (b, 0, 0))]
                 + [_full_spec(a.shape) for a in s2_in],
        out_specs=pl.BlockSpec((1, P2, embed_dim), lambda b: (b, 0, 0)),
        compiler_params=pltpu.CompilerParams(dimension_semantics=("parallel",)),
    )(patches2, *s2_in)

    return y2.reshape(B, H2, W2, embed_dim).transpose(0, 3, 1, 2)   # NCHW


def embed_boxes(p, boxes, input_image_size, embed_dim):
    Hin, Win = input_image_size
    coords = (boxes.astype(F32) + 0.5).reshape(-1, 2, 2) / jnp.array([Win, Hin], F32)
    n = coords.shape[0]
    F_ = p["pe_gauss"].shape[1]
    gauss2 = jnp.concatenate([p["pe_gauss"], p["pe_gauss"]], axis=1).astype(F32)
    corner = jnp.stack([p["point_embed"][2], p["point_embed"][3]]).astype(F32)
    return pl.pallas_call(
        partial(_box_kernel, num_pos_feats=F_),
        out_shape=jax.ShapeDtypeStruct((n, 2, embed_dim), F32),
        grid=(n,),
        in_specs=[pl.BlockSpec((1, 2, 2), lambda i: (i, 0, 0)),
                  _full_spec(gauss2.shape), _full_spec(corner.shape)],
        out_specs=pl.BlockSpec((1, 2, embed_dim), lambda i: (i, 0, 0)),
        compiler_params=pltpu.CompilerParams(dimension_semantics=("parallel",)),
    )(coords, gauss2, corner)


def prompt_encoder_forward(p, feature, coords, labels, masks,
                           image_embedding_size, input_image_size,
                           embed_dim, num_heads, boxes=None):
    bs = coords.shape[0]
    sparse = embed_points(p, coords, labels, feature, image_embedding_size,
                          input_image_size, embed_dim, num_heads,
                          pad=(boxes is None))
    if boxes is not None:
        sparse = jnp.concatenate(
            [sparse, embed_boxes(p, boxes, input_image_size, embed_dim)], axis=1)
    if masks is not None:
        dense = embed_masks(p, masks, embed_dim)
    else:
        h, w = image_embedding_size
        dense = jnp.broadcast_to(p["no_mask"].reshape(1, embed_dim, 1, 1),
                                 (bs, embed_dim, h, w))
    return sparse, dense


# ---------------------------------------------------------------------------
# Deterministic parameter initialization (synthetic, matches module shapes)
# ---------------------------------------------------------------------------
def init_params(key, embed_dim, mask_in_chans, mlp_dim, num_heads, dsr):
    keys = iter(jax.random.split(key, 64))

    def nrm(shape, s=0.02):
        return s * jax.random.normal(next(keys), shape, F32)

    mic = mask_in_chans
    p = {
        "pe_gauss": jax.random.normal(next(keys), (2, embed_dim // 2), F32),
        "point_embed": nrm((4, embed_dim), 1.0),        # 4 x nn.Embedding(1, E)
        "not_a_point": nrm((embed_dim,), 1.0),
        "no_mask": nrm((embed_dim,), 1.0),
        "conv1_w": nrm((mic // 4, 1, 2, 2)), "conv1_b": nrm((mic // 4,)),
        "ln1_w": jnp.ones((mic // 4,)), "ln1_b": jnp.zeros((mic // 4,)),
        "conv2_w": nrm((mic, mic // 4, 2, 2)), "conv2_b": nrm((mic,)),
        "ln2_w": jnp.ones((mic,)), "ln2_b": jnp.zeros((mic,)),
        "conv3_w": nrm((embed_dim, mic, 1, 1)), "conv3_b": nrm((embed_dim,)),
        "mlp_w1": nrm((embed_dim, mlp_dim)), "mlp_b1": nrm((mlp_dim,)),
        "mlp_w2": nrm((mlp_dim, embed_dim)), "mlp_b2": nrm((embed_dim,)),
    }
    for i in (1, 2, 3, 4):
        p[f"norm{i}_w"] = jnp.ones((embed_dim,))
        p[f"norm{i}_b"] = jnp.zeros((embed_dim,))

    def attn_params(internal):
        return dict(
            wq=nrm((embed_dim, internal)), bq=nrm((internal,)),
            wk=nrm((embed_dim, internal)), bk=nrm((internal,)),
            wv=nrm((embed_dim, internal)), bv=nrm((internal,)),
            wo=nrm((internal, embed_dim)), bo=nrm((embed_dim,)),
        )

    p["self_attn"] = attn_params(embed_dim)              # downsample_rate=1
    p["cross_t2i"] = attn_params(embed_dim // dsr)
    p["cross_i2t"] = attn_params(embed_dim // dsr)       # unused (keys discarded)
    return p


# ---------------------------------------------------------------------------
if __name__ == "__main__":
    EMBED_DIM = 32
    IMAGE_EMB_SIZE = (8, 8)
    INPUT_IMG_SIZE = (32, 32)
    MASK_IN_CHANS = 16
    MLP_DIM = 2048          # fixed inside the module
    NUM_HEADS = 8
    DSR = 2

    root = jax.random.PRNGKey(0)
    kp, kc, kf, km = jax.random.split(root, 4)

    params = init_params(kp, EMBED_DIM, MASK_IN_CHANS, MLP_DIM, NUM_HEADS, DSR)

    # inputs (batch 1; the reference builds keys with batch 1)
    coords = jax.random.uniform(kc, (1, 3, 2), F32) * 31.0        # point coords
    labels = jnp.array([[1.0, 0.0, 1.0]], F32)                    # point labels
    feature = 0.1 * jax.random.normal(kf, (EMBED_DIM,) + IMAGE_EMB_SIZE, F32)
    mask_input_size = (4 * IMAGE_EMB_SIZE[0], 4 * IMAGE_EMB_SIZE[1])
    masks = jax.random.normal(km, (1, 1) + mask_input_size, F32)

    fwd = jax.jit(partial(prompt_encoder_forward,
                          image_embedding_size=IMAGE_EMB_SIZE,
                          input_image_size=INPUT_IMG_SIZE,
                          embed_dim=EMBED_DIM,
                          num_heads=NUM_HEADS,
                          boxes=None))

    sparse, dense = fwd(params, feature, coords, labels, masks)
    jax.block_until_ready(sparse)
    jax.block_until_ready(dense)

    assert sparse.shape == (1, 4, EMBED_DIM)                      # 3 pts + pad
    assert dense.shape == (1, EMBED_DIM) + IMAGE_EMB_SIZE         # NCHW
    assert bool(jnp.all(jnp.isfinite(sparse))) and bool(jnp.all(jnp.isfinite(dense)))
    print("KERNEL_OK")
</pallas_src>

<mosaic_0001>
module attributes {stable_mosaic.version = 11 : i64} {
  func.func @_mask_stage2_kernel(%arg0: i32, %arg1: memref<1x64x16xf32, #tpu.memory_space<vmem>>, %arg2: memref<16x16xf32, #tpu.memory_space<vmem>>, %arg3: memref<1x16xf32, #tpu.memory_space<vmem>>, %arg4: memref<1x16xf32, #tpu.memory_space<vmem>>, %arg5: memref<1x16xf32, #tpu.memory_space<vmem>>, %arg6: memref<16x32xf32, #tpu.memory_space<vmem>>, %arg7: memref<1x32xf32, #tpu.memory_space<vmem>>, %arg8: memref<1x64x32xf32, #tpu.memory_space<vmem>>) attributes {dimension_semantics = [#tpu.dimension_semantics<parallel>], iteration_bounds = array<i64: 1>, scalar_prefetch = 0 : i64, scratch_operands = 0 : i64, tpu.core_type = #tpu.core_type<tc>, window_params = [{transform_indices = @transform_0, window_bounds = array<i64: 1, 64, 16>}, {pipeline_mode = #tpu.pipeline_mode<synchronous>, transform_indices = @transform_1, window_bounds = array<i64: 16, 16>}, {pipeline_mode = #tpu.pipeline_mode<synchronous>, transform_indices = @transform_2, window_bounds = array<i64: 1, 16>}, {pipeline_mode = #tpu.pipeline_mode<synchronous>, transform_indices = @transform_3, window_bounds = array<i64: 1, 16>}, {pipeline_mode = #tpu.pipeline_mode<synchronous>, transform_indices = @transform_4, window_bounds = array<i64: 1, 16>}, {pipeline_mode = #tpu.pipeline_mode<synchronous>, transform_indices = @transform_5, window_bounds = array<i64: 16, 32>}, {pipeline_mode = #tpu.pipeline_mode<synchronous>, transform_indices = @transform_6, window_bounds = array<i64: 1, 32>}, {transform_indices = @transform_7, window_bounds = array<i64: 1, 64, 32>}]} {
    %c0 = arith.constant 0 : index
    %c0_0 = arith.constant 0 : index
    %c0_1 = arith.constant 0 : index
    %0 = vector.load %arg1[%c0, %c0_0, %c0_1] : memref<1x64x16xf32, #tpu.memory_space<vmem>>, vector<1x64x16xf32>
    %1 = vector.shape_cast %0 : vector<1x64x16xf32> to vector<64x16xf32>
    %c0_2 = arith.constant 0 : index
    %c0_3 = arith.constant 0 : index
    %2 = vector.load %arg2[%c0_2, %c0_3] : memref<16x16xf32, #tpu.memory_space<vmem>>, vector<16x16xf32>
    %cst = arith.constant dense<0.000000e+00> : vector<64x16xf32>
    %3 = tpu.matmul %1, %2, %cst {dimension_numbers = #tpu.dot_dimension_numbers<[1], [0], [0], [1], [0, 0, 1, 1], [], []>} : vector<64x16xf32>, vector<16x16xf32>, vector<64x16xf32> -> vector<64x16xf32>
    %c0_4 = arith.constant 0 : index
    %c0_5 = arith.constant 0 : index
    %4 = vector.load %arg3[%c0_4, %c0_5] : memref<1x16xf32, #tpu.memory_space<vmem>>, vector<1x16xf32>
    %5 = vector.broadcast %4 : vector<1x16xf32> to vector<64x16xf32>
    %6 = arith.addf %3, %5 : vector<64x16xf32>
    %c0_6 = arith.constant 0 : index
    %c0_7 = arith.constant 0 : index
    %7 = vector.load %arg4[%c0_6, %c0_7] : memref<1x16xf32, #tpu.memory_space<vmem>>, vector<1x16xf32>
    %c0_8 = arith.constant 0 : index
    %c0_9 = arith.constant 0 : index
    %8 = vector.load %arg5[%c0_8, %c0_9] : memref<1x16xf32, #tpu.memory_space<vmem>>, vector<1x16xf32>
    %cst_10 = arith.constant dense<0.000000e+00> : vector<64xf32>
    %9 = vector.multi_reduction <add>, %6, %cst_10 [1] : vector<64x16xf32> to vector<64xf32>
    %10 = vector.shape_cast %9 : vector<64xf32> to vector<64x1xf32>
    %cst_11 = arith.constant 1.600000e+01 : f32
    %11 = vector.broadcast %cst_11 : f32 to vector<64x1xf32>
    %12 = arith.divf %10, %11 : vector<64x1xf32>
    %13 = vector.broadcast %12 : vector<64x1xf32> to vector<64x16xf32>
    %14 = arith.subf %6, %13 : vector<64x16xf32>
    %15 = arith.mulf %14, %14 : vector<64x16xf32>
    %cst_12 = arith.constant dense<0.000000e+00> : vector<64xf32>
    %16 = vector.multi_reduction <add>, %15, %cst_12 [1] : vector<64x16xf32> to vector<64xf32>
    %17 = vector.shape_cast %16 : vector<64xf32> to vector<64x1xf32>
    %cst_13 = arith.constant 1.600000e+01 : f32
    %18 = vector.broadcast %cst_13 : f32 to vector<64x1xf32>
    %19 = arith.divf %17, %18 : vector<64x1xf32>
    %cst_14 = arith.constant 9.99999997E-7 : f32
    %20 = vector.broadcast %cst_14 : f32 to vector<64x1xf32>
    %21 = arith.addf %19, %20 : vector<64x1xf32>
    %22 = math.rsqrt %21 : vector<64x1xf32>
    %23 = vector.broadcast %22 : vector<64x1xf32> to vector<64x16xf32>
    %24 = arith.mulf %14, %23 : vector<64x16xf32>
    %25 = vector.broadcast %7 : vector<1x16xf32> to vector<64x16xf32>
    %26 = arith.mulf %24, %25 : vector<64x16xf32>
    %27 = vector.broadcast %8 : vector<1x16xf32> to vector<64x16xf32>
    %28 = arith.addf %26, %27 : vector<64x16xf32>
    %cst_15 = arith.constant 5.000000e-01 : f32
    %29 = vector.broadcast %cst_15 : f32 to vector<64x16xf32>
    %30 = arith.mulf %29, %28 : vector<64x16xf32>
    %cst_16 = arith.constant 0.707106769 : f32
    %31 = vector.broadcast %cst_16 : f32 to vector<64x16xf32>
    %32 = arith.mulf %28, %31 : vector<64x16xf32>
    %33 = math.erf %32 : vector<64x16xf32>
    %cst_17 = arith.constant 1.000000e+00 : f32
    %34 = vector.broadcast %cst_17 : f32 to vector<64x16xf32>
    %35 = arith.addf %34, %33 : vector<64x16xf32>
    %36 = arith.mulf %30, %35 : vector<64x16xf32>
    %c0_18 = arith.constant 0 : index
    %c0_19 = arith.constant 0 : index
    %37 = vector.load %arg6[%c0_18, %c0_19] : memref<16x32xf32, #tpu.memory_space<vmem>>, vector<16x32xf32>
    %cst_20 = arith.constant dense<0.000000e+00> : vector<64x32xf32>
    %38 = tpu.matmul %36, %37, %cst_20 {dimension_numbers = #tpu.dot_dimension_numbers<[1], [0], [0], [1], [0, 0, 1, 1], [], []>} : vector<64x16xf32>, vector<16x32xf32>, vector<64x32xf32> -> vector<64x32xf32>
    %c0_21 = arith.constant 0 : index
    %c0_22 = arith.constant 0 : index
    %39 = vector.load %arg7[%c0_21, %c0_22] : memref<1x32xf32, #tpu.memory_space<vmem>>, vector<1x32xf32>
    %40 = vector.broadcast %39 : vector<1x32xf32> to vector<64x32xf32>
    %41 = arith.addf %38, %40 : vector<64x32xf32>
    %c0_23 = arith.constant 0 : index
    %c0_24 = arith.constant 0 : index
    %c0_25 = arith.constant 0 : index
    %42 = vector.load %arg8[%c0_23, %c0_24, %c0_25] : memref<1x64x32xf32, #tpu.memory_space<vmem>>, vector<1x64x32xf32>
    %43 = vector.shape_cast %42 : vector<1x64x32xf32> to vector<64x32xf32>
    %44 = vector.shape_cast %41 : vector<64x32xf32> to vector<1x64x32xf32>
    tpu.vector_store %arg8[%c0_23, %c0_24, %c0_25], %44 {strides = array<i32>} : memref<1x64x32xf32, #tpu.memory_space<vmem>>, vector<1x64x32xf32>,
    return
  }
  func.func @transform_0(%arg0: i32) -> (i32, i32, i32) {
    %c0_i32 = arith.constant 0 : i32
    %c0_i32_0 = arith.constant 0 : i32
    %c0_i32_1 = arith.constant 0 : i32
    return %arg0, %c0_i32, %c0_i32_0 : i32, i32, i32
  }
  func.func @transform_1(%arg0: i32) -> (i32, i32) {
    %c0_i32 = arith.constant 0 : i32
    %c0_i32_0 = arith.constant 0 : i32
    %c0_i32_1 = arith.constant 0 : i32
    return %c0_i32, %c0_i32_0 : i32, i32
  }
  func.func @transform_2(%arg0: i32) -> (i32, i32) {
    %c0_i32 = arith.constant 0 : i32
    %c0_i32_0 = arith.constant 0 : i32
    %c0_i32_1 = arith.constant 0 : i32
    return %c0_i32, %c0_i32_0 : i32, i32
  }
  func.func @transform_3(%arg0: i32) -> (i32, i32) {
    %c0_i32 = arith.constant 0 : i32
    %c0_i32_0 = arith.constant 0 : i32
    %c0_i32_1 = arith.constant 0 : i32
    return %c0_i32, %c0_i32_0 : i32, i32
  }
  func.func @transform_4(%arg0: i32) -> (i32, i32) {
    %c0_i32 = arith.constant 0 : i32
    %c0_i32_0 = arith.constant 0 : i32
    %c0_i32_1 = arith.constant 0 : i32
    return %c0_i32, %c0_i32_0 : i32, i32
  }
  func.func @transform_5(%arg0: i32) -> (i32, i32) {
    %c0_i32 = arith.constant 0 : i32
    %c0_i32_0 = arith.constant 0 : i32
    %c0_i32_1 = arith.constant 0 : i32
    return %c0_i32, %c0_i32_0 : i32, i32
  }
  func.func @transform_6(%arg0: i32) -> (i32, i32) {
    %c0_i32 = arith.constant 0 : i32
    %c0_i32_0 = arith.constant 0 : i32
    %c0_i32_1 = arith.constant 0 : i32
    return %c0_i32, %c0_i32_0 : i32, i32
  }
  func.func @transform_7(%arg0: i32) -> (i32, i32, i32) {
    %c0_i32 = arith.constant 0 : i32
    %c0_i32_0 = arith.constant 0 : i32
    %c0_i32_1 = arith.constant 0 : i32
    return %arg0, %c0_i32, %c0_i32_0 : i32, i32, i32
  }
}

module attributes {stable_mosaic.version = 11 : i64} {
  func.func @_prompt_block_kernel(%arg0: i32, %arg1: memref<1x4x2xf32, #tpu.memory_space<vmem>>, %arg2: memref<1x4x1xf32, #tpu.memory_space<vmem>>, %arg3: memref<64x2xf32, #tpu.memory_space<vmem>>, %arg4: memref<2x32xf32, #tpu.memory_space<vmem>>, %arg5: memref<64x32xf32, #tpu.memory_space<vmem>>, %arg6: memref<32x64xf32, #tpu.memory_space<vmem>>, %arg7: memref<1x64xf32, #tpu.memory_space<vmem>>, %arg8: memref<32x32xf32, #tpu.memory_space<vmem>>, %arg9: memref<1x32xf32, #tpu.memory_space<vmem>>, %arg10: memref<32x32xf32, #tpu.memory_space<vmem>>, %arg11: memref<1x32xf32, #tpu.memory_space<vmem>>, %arg12: memref<32x16xf32, #tpu.memory_space<vmem>>, %arg13: memref<1x16xf32, #tpu.memory_space<vmem>>, %arg14: memref<32x16xf32, #tpu.memory_space<vmem>>, %arg15: memref<1x16xf32, #tpu.memory_space<vmem>>, %arg16: memref<32x16xf32, #tpu.memory_space<vmem>>, %arg17: memref<1x16xf32, #tpu.memory_space<vmem>>, %arg18: memref<16x32xf32, #tpu.memory_space<vmem>>, %arg19: memref<1x32xf32, #tpu.memory_space<vmem>>, %arg20: memref<3x32xf32, #tpu.memory_space<vmem>>, %arg21: memref<3x32xf32, #tpu.memory_space<vmem>>, %arg22: memref<32x2048xf32, #tpu.memory_space<vmem>>, %arg23: memref<1x2048xf32, #tpu.memory_space<vmem>>, %arg24: memref<2048x32xf32, #tpu.memory_space<vmem>>, %arg25: memref<1x32xf32, #tpu.memory_space<vmem>>, %arg26: memref<3x32xf32, #tpu.memory_space<vmem>>, %arg27: memref<1x4x32xf32, #tpu.memory_space<vmem>>) attributes {dimension_semantics = [#tpu.dimension_semantics<parallel>], iteration_bounds = array<i64: 1>, scalar_prefetch = 0 : i64, scratch_operands = 0 : i64, tpu.core_type = #tpu.core_type<tc>, window_params = [{transform_indices = @transform_0, window_bounds = array<i64: 1, 4, 2>}, {transform_indices = @transform_1, window_bounds = array<i64: 1, 4, 1>}, {pipeline_mode = #tpu.pipeline_mode<synchronous>, transform_indices = @transform_2, window_bounds = array<i64: 64, 2>}, {pipeline_mode = #tpu.pipeline_mode<synchronous>, transform_indices = @transform_3, window_bounds = array<i64: 2, 32>}, {pipeline_mode = #tpu.pipeline_mode<synchronous>, transform_indices = @transform_4, window_bounds = array<i64: 64, 32>}, {pipeline_mode = #tpu.pipeline_mode<synchronous>, transform_indices = @transform_5, window_bounds = array<i64: 32, 64>}, {pipeline_mode = #tpu.pipeline_mode<synchronous>, transform_indices = @transform_6, window_bounds = array<i64: 1, 64>}, {pipeline_mode = #tpu.pipeline_mode<synchronous>, transform_indices = @transform_7, window_bounds = array<i64: 32, 32>}, {pipeline_mode = #tpu.pipeline_mode<synchronous>, transform_indices = @transform_8, window_bounds = array<i64: 1, 32>}, {pipeline_mode = #tpu.pipeline_mode<synchronous>, transform_indices = @transform_9, window_bounds = array<i64: 32, 32>}, {pipeline_mode = #tpu.pipeline_mode<synchronous>, transform_indices = @transform_10, window_bounds = array<i64: 1, 32>}, {pipeline_mode = #tpu.pipeline_mode<synchronous>, transform_indices = @transform_11, window_bounds = array<i64: 32, 16>}, {pipeline_mode = #tpu.pipeline_mode<synchronous>, transform_indices = @transform_12, window_bounds = array<i64: 1, 16>}, {pipeline_mode = #tpu.pipeline_mode<synchronous>, transform_indices = @transform_13, window_bounds = array<i64: 32, 16>}, {pipeline_mode = #tpu.pipeline_mode<synchronous>, transform_indices = @transform_14, window_bounds = array<i64: 1, 16>}, {pipeline_mode = #tpu.pipeline_mode<synchronous>, transform_indices = @transform_15, window_bounds = array<i64: 32, 16>}, {pipeline_mode = #tpu.pipeline_mode<synchronous>, transform_indices = @transform_16, window_bounds = array<i64: 1, 16>}, {pipeline_mode = #tpu.pipeline_mode<synchronous>, transform_indices = @transform_17, window_bounds = array<i64: 16, 32>}, {pipeline_mode = #tpu.pipeline_mode<synchronous>, transform_indices = @transform_18, window_bounds = array<i64: 1, 32>}, {pipeline_mode = #tpu.pipeline_mode<synchronous>, transform_indices = @transform_19, window_bounds = array<i64: 3, 32>}, {pipeline_mode = #tpu.pipeline_mode<synchronous>, transform_indices = @transform_20, window_bounds = array<i64: 3, 32>}, {pipeline_mode = #tpu.pipeline_mode<synchronous>, transform_indices = @transform_21, window_bounds = array<i64: 32, 2048>}, {pipeline_mode = #tpu.pipeline_mode<synchronous>, transform_indices = @transform_22, window_bounds = array<i64: 1, 2048>}, {pipeline_mode = #tpu.pipeline_mode<synchronous>, transform_indices = @transform_23, window_bounds = array<i64: 2048, 32>}, {pipeline_mode = #tpu.pipeline_mode<synchronous>, transform_indices = @transform_24, window_bounds = array<i64: 1, 32>}, {pipeline_mode = #tpu.pipeline_mode<synchronous>, transform_indices = @transform_25, window_bounds = array<i64: 3, 32>}, {transform_indices = @transform_26, window_bounds = array<i64: 1, 4, 32>}]} {
    %c0 = arith.constant 0 : index
    %c0_0 = arith.constant 0 : index
    %0 = vector.load %arg4[%c0, %c0_0] : memref<2x32xf32, #tpu.memory_space<vmem>>, vector<2x32xf32>
    %c0_1 = arith.constant 0 : index
    %c0_2 = arith.constant 0 : index
    %1 = vector.load %arg20[%c0_1, %c0_2] : memref<3x32xf32, #tpu.memory_space<vmem>>, vector<3x32xf32>
    %c0_3 = arith.constant 0 : index
    %c0_4 = arith.constant 0 : index
    %2 = vector.load %arg21[%c0_3, %c0_4] : memref<3x32xf32, #tpu.memory_space<vmem>>, vector<3x32xf32>
    %c0_5 = arith.constant 0 : index
    %c0_6 = arith.constant 0 : index
    %3 = vector.load %arg26[%c0_5, %c0_6] : memref<3x32xf32, #tpu.memory_space<vmem>>, vector<3x32xf32>
    %c0_7 = arith.constant 0 : index
    %c0_8 = arith.constant 0 : index
    %c0_9 = arith.constant 0 : index
    %4 = vector.load %arg1[%c0_7, %c0_8, %c0_9] : memref<1x4x2xf32, #tpu.memory_space<vmem>>, vector<1x4x2xf32>
    %5 = vector.shape_cast %4 : vector<1x4x2xf32> to vector<4x2xf32>
    %cst = arith.constant 2.000000e+00 : f32
    %6 = vector.broadcast %cst : f32 to vector<4x2xf32>
    %7 = arith.mulf %6, %5 : vector<4x2xf32>
    %cst_10 = arith.constant 1.000000e+00 : f32
    %8 = vector.broadcast %cst_10 : f32 to vector<4x2xf32>
    %9 = arith.subf %7, %8 : vector<4x2xf32>
    %10 = vector.extract_strided_slice %9 {offsets = [0, 0], sizes = [4, 1], strides = [1, 1]} : vector<4x2xf32> to vector<4x1xf32>
    %11 = vector.extract_strided_slice %0 {offsets = [0, 0], sizes = [1, 32], strides = [1, 1]} : vector<2x32xf32> to vector<1x32xf32>
    %12 = vector.broadcast %10 : vector<4x1xf32> to vector<4x32xf32>
    %13 = vector.broadcast %11 : vector<1x32xf32> to vector<4x32xf32>
    %14 = arith.mulf %12, %13 : vector<4x32xf32>
    %15 = vector.extract_strided_slice %9 {offsets = [0, 1], sizes = [4, 1], strides = [1, 1]} : vector<4x2xf32> to vector<4x1xf32>
    %16 = vector.extract_strided_slice %0 {offsets = [1, 0], sizes = [1, 32], strides = [1, 1]} : vector<2x32xf32> to vector<1x32xf32>
    %17 = vector.broadcast %15 : vector<4x1xf32> to vector<4x32xf32>
    %18 = vector.broadcast %16 : vector<1x32xf32> to vector<4x32xf32>
    %19 = arith.mulf %17, %18 : vector<4x32xf32>
    %20 = arith.addf %14, %19 : vector<4x32xf32>
    %cst_11 = arith.constant 6.28318548 : f32
    %21 = vector.broadcast %cst_11 : f32 to vector<4x32xf32>
    %22 = arith.mulf %21, %20 : vector<4x32xf32>
    %23 = tpu.iota {dimensions = array<i32: 1>} : vector<4x32xi32>
    %c16_i32 = arith.constant 16 : i32
    %24 = vector.broadcast %c16_i32 : i32 to vector<4x32xi32>
    %25 = arith.cmpi slt, %23, %24 : vector<4x32xi32>
    %26 = math.sin %22 : vector<4x32xf32>
    %27 = math.cos %22 : vector<4x32xf32>
    %28 = arith.select %25, %26, %27 : vector<4x32xi1>, vector<4x32xf32>
    %c0_12 = arith.constant 0 : index
    %c0_13 = arith.constant 0 : index
    %29 = vector.load %arg3[%c0_12, %c0_13] : memref<64x2xf32, #tpu.memory_space<vmem>>, vector<64x2xf32>
    %cst_14 = arith.constant 2.000000e+00 : f32
    %30 = vector.broadcast %cst_14 : f32 to vector<64x2xf32>
    %31 = arith.mulf %30, %29 : vector<64x2xf32>
    %cst_15 = arith.constant 1.000000e+00 : f32
    %32 = vector.broadcast %cst_15 : f32 to vector<64x2xf32>
    %33 = arith.subf %31, %32 : vector<64x2xf32>
    %34 = vector.extract_strided_slice %33 {offsets = [0, 0], sizes = [64, 1], strides = [1, 1]} : vector<64x2xf32> to vector<64x1xf32>
    %35 = vector.extract_strided_slice %0 {offsets = [0, 0], sizes = [1, 32], strides = [1, 1]} : vector<2x32xf32> to vector<1x32xf32>
    %36 = vector.broadcast %34 : vector<64x1xf32> to vector<64x32xf32>
    %37 = vector.broadcast %35 : vector<1x32xf32> to vector<64x32xf32>
    %38 = arith.mulf %36, %37 : vector<64x32xf32>
    %39 = vector.extract_strided_slice %33 {offsets = [0, 1], sizes = [64, 1], strides = [1, 1]} : vector<64x2xf32> to vector<64x1xf32>
    %40 = vector.extract_strided_slice %0 {offsets = [1, 0], sizes = [1, 32], strides = [1, 1]} : vector<2x32xf32> to vector<1x32xf32>
    %41 = vector.broadcast %39 : vector<64x1xf32> to vector<64x32xf32>
    %42 = vector.broadcast %40 : vector<1x32xf32> to vector<64x32xf32>
    %43 = arith.mulf %41, %42 : vector<64x32xf32>
    %44 = arith.addf %38, %43 : vector<64x32xf32>
    %cst_16 = arith.constant 6.28318548 : f32
    %45 = vector.broadcast %cst_16 : f32 to vector<64x32xf32>
    %46 = arith.mulf %45, %44 : vector<64x32xf32>
    %47 = tpu.iota {dimensions = array<i32: 1>} : vector<64x32xi32>
    %c16_i32_17 = arith.constant 16 : i32
    %48 = vector.broadcast %c16_i32_17 : i32 to vector<64x32xi32>
    %49 = arith.cmpi slt, %47, %48 : vector<64x32xi32>
    %50 = math.sin %46 : vector<64x32xf32>
    %51 = math.cos %46 : vector<64x32xf32>
    %52 = arith.select %49, %50, %51 : vector<64x32xi1>, vector<64x32xf32>
    %c0_18 = arith.constant 0 : index
    %c0_19 = arith.constant 0 : index
    %53 = vector.load %arg5[%c0_18, %c0_19] : memref<64x32xf32, #tpu.memory_space<vmem>>, vector<64x32xf32>
    %54 = arith.addf %28, %28 : vector<4x32xf32>
    %c0_20 = arith.constant 0 : index
    %c0_21 = arith.constant 0 : index
    %55 = vector.load %arg6[%c0_20, %c0_21] : memref<32x64xf32, #tpu.memory_space<vmem>>, vector<32x64xf32>
    %cst_22 = arith.constant dense<0.000000e+00> : vector<4x64xf32>
    %56 = tpu.matmul %54, %55, %cst_22 {dimension_numbers = #tpu.dot_dimension_numbers<[1], [0], [0], [1], [0, 0, 1, 1], [], []>} : vector<4x32xf32>, vector<32x64xf32>, vector<4x64xf32> -> vector<4x64xf32>
    %c0_23 = arith.constant 0 : index
    %c0_24 = arith.constant 0 : index
    %57 = vector.load %arg7[%c0_23, %c0_24] : memref<1x64xf32, #tpu.memory_space<vmem>>, vector<1x64xf32>
    %58 = vector.broadcast %57 : vector<1x64xf32> to vector<4x64xf32>
    %59 = arith.addf %56, %58 : vector<4x64xf32>
    %c0_25 = arith.constant 0 : index
    %c0_26 = arith.constant 0 : index
    %60 = vector.load %arg8[%c0_25, %c0_26] : memref<32x32xf32, #tpu.memory_space<vmem>>, vector<32x32xf32>
    %cst_27 = arith.constant dense<0.000000e+00> : vector<4x32xf32>
    %61 = tpu.matmul %28, %60, %cst_27 {dimension_numbers = #tpu.dot_dimension_numbers<[1], [0], [0], [1], [0, 0, 1, 1], [], []>} : vector<4x32xf32>, vector<32x32xf32>, vector<4x32xf32> -> vector<4x32xf32>
    %c0_28 = arith.constant 0 : index
    %c0_29 = arith.constant 0 : index
    %62 = vector.load %arg9[%c0_28, %c0_29] : memref<1x32xf32, #tpu.memory_space<vmem>>, vector<1x32xf32>
    %63 = vector.broadcast %62 : vector<1x32xf32> to vector<4x32xf32>
    %64 = arith.addf %61, %63 : vector<4x32xf32>
    %65 = vector.extract_strided_slice %59 {offsets = [0, 0], sizes = [4, 32], strides = [1, 1]} : vector<4x64xf32> to vector<4x32xf32>
    %66 = vector.extract_strided_slice %59 {offsets = [0, 32], sizes = [4, 32], strides = [1, 1]} : vector<4x64xf32> to vector<4x32xf32>
    %c0_30 = arith.constant 0 : index
    %c0_31 = arith.constant 0 : index
    %67 = vector.load %arg10[%c0_30, %c0_31] : memref<32x32xf32, #tpu.memory_space<vmem>>, vector<32x32xf32>
    %c0_32 = arith.constant 0 : index
    %c0_33 = arith.constant 0 : index
    %68 = vector.load %arg11[%c0_32, %c0_33] : memref<1x32xf32, #tpu.memory_space<vmem>>, vector<1x32xf32>
    %69 = vector.extract_strided_slice %65 {offsets = [0, 0], sizes = [4, 4], strides = [1, 1]} : vector<4x32xf32> to vector<4x4xf32>
    %70 = vector.extract_strided_slice %66 {offsets = [0, 0], sizes = [4, 4], strides = [1, 1]} : vector<4x32xf32> to vector<4x4xf32>
    %cst_34 = arith.constant dense<0.000000e+00> : vector<4x4xf32>
    %71 = tpu.matmul %69, %70, %cst_34 {dimension_numbers = #tpu.dot_dimension_numbers<[1], [1], [0], [0], [0, 0, 1, 0], [], []>} : vector<4x4xf32>, vector<4x4xf32>, vector<4x4xf32> -> vector<4x4xf32>
    %cst_35 = arith.constant 5.000000e-01 : f32
    %72 = vector.broadcast %cst_35 : f32 to vector<4x4xf32>
    %73 = arith.mulf %71, %72 : vector<4x4xf32>
    %cst_36 = arith.constant dense<0xFF800000> : vector<4xf32>
    %74 = vector.multi_reduction <maximumf>, %73, %cst_36 [1] : vector<4x4xf32> to vector<4xf32>
    %75 = vector.shape_cast %74 : vector<4xf32> to vector<4x1xf32>
    %76 = vector.broadcast %75 : vector<4x1xf32> to vector<4x4xf32>
    %77 = arith.subf %73, %76 : vector<4x4xf32>
    %78 = math.exp %77 : vector<4x4xf32>
    %cst_37 = arith.constant dense<0.000000e+00> : vector<4xf32>
    %79 = vector.multi_reduction <add>, %78, %cst_37 [1] : vector<4x4xf32> to vector<4xf32>
    %80 = vector.shape_cast %79 : vector<4xf32> to vector<4x1xf32>
    %81 = tpu.reciprocal %80 {approx = true} : vector<4x1xf32> -> vector<4x1xf32>
    %82 = vector.broadcast %81 : vector<4x1xf32> to vector<4x4xf32>
    %83 = arith.mulf %78, %82 : vector<4x4xf32>
    %84 = vector.extract_strided_slice %64 {offsets = [0, 0], sizes = [4, 4], strides = [1, 1]} : vector<4x32xf32> to vector<4x4xf32>
    %cst_38 = arith.constant dense<0.000000e+00> : vector<4x4xf32>
    %85 = tpu.matmul %83, %84, %cst_38 {dimension_numbers = #tpu.dot_dimension_numbers<[1], [0], [0], [1], [0, 0, 1, 1], [], []>} : vector<4x4xf32>, vector<4x4xf32>, vector<4x4xf32> -> vector<4x4xf32>
    %86 = vector.extract_strided_slice %67 {offsets = [0, 0], sizes = [4, 32], strides = [1, 1]} : vector<32x32xf32> to vector<4x32xf32>
    %cst_39 = arith.constant dense<0.000000e+00> : vector<4x32xf32>
    %87 = tpu.matmul %85, %86, %cst_39 {dimension_numbers = #tpu.dot_dimension_numbers<[1], [0], [0], [1], [0, 0, 1, 1], [], []>} : vector<4x4xf32>, vector<4x32xf32>, vector<4x32xf32> -> vector<4x32xf32>
    %88 = vector.extract_strided_slice %65 {offsets = [0, 4], sizes = [4, 4], strides = [1, 1]} : vector<4x32xf32> to vector<4x4xf32>
    %89 = vector.extract_strided_slice %66 {offsets = [0, 4], sizes = [4, 4], strides = [1, 1]} : vector<4x32xf32> to vector<4x4xf32>
    %cst_40 = arith.constant dense<0.000000e+00> : vector<4x4xf32>
    %90 = tpu.matmul %88, %89, %cst_40 {dimension_numbers = #tpu.dot_dimension_numbers<[1], [1], [0], [0], [0, 0, 1, 0], [], []>} : vector<4x4xf32>, vector<4x4xf32>, vector<4x4xf32> -> vector<4x4xf32>
    %cst_41 = arith.constant 5.000000e-01 : f32
    %91 = vector.broadcast %cst_41 : f32 to vector<4x4xf32>
    %92 = arith.mulf %90, %91 : vector<4x4xf32>
    %cst_42 = arith.constant dense<0xFF800000> : vector<4xf32>
    %93 = vector.multi_reduction <maximumf>, %92, %cst_42 [1] : vector<4x4xf32> to vector<4xf32>
    %94 = vector.shape_cast %93 : vector<4xf32> to vector<4x1xf32>
    %95 = vector.broadcast %94 : vector<4x1xf32> to vector<4x4xf32>
    %96 = arith.subf %92, %95 : vector<4x4xf32>
    %97 = math.exp %96 : vector<4x4xf32>
    %cst_43 = arith.constant dense<0.000000e+00> : vector<4xf32>
    %98 = vector.multi_reduction <add>, %97, %cst_43 [1] : vector<4x4xf32> to vector<4xf32>
    %99 = vector.shape_cast %98 : vector<4xf32> to vector<4x1xf32>
    %100 = tpu.reciprocal %99 {approx = true} : vector<4x1xf32> -> vector<4x1xf32>
    %101 = vector.broadcast %100 : vector<4x1xf32> to vector<4x4xf32>
    %102 = arith.mulf %97, %101 : vector<4x4xf32>
    %103 = vector.extract_strided_slice %64 {offsets = [0, 4], sizes = [4, 4], strides = [1, 1]} : vector<4x32xf32> to vector<4x4xf32>
    %cst_44 = arith.constant dense<0.000000e+00> : vector<4x4xf32>
    %104 = tpu.matmul %102, %103, %cst_44 {dimension_numbers = #tpu.dot_dimension_numbers<[1], [0], [0], [1], [0, 0, 1, 1], [], []>} : vector<4x4xf32>, vector<4x4xf32>, vector<4x4xf32> -> vector<4x4xf32>
    %105 = vector.extract_strided_slice %67 {offsets = [4, 0], sizes = [4, 32], strides = [1, 1]} : vector<32x32xf32> to vector<4x32xf32>
    %cst_45 = arith.constant dense<0.000000e+00> : vector<4x32xf32>
    %106 = tpu.matmul %104, %105, %cst_45 {dimension_numbers = #tpu.dot_dimension_numbers<[1], [0], [0], [1], [0, 0, 1, 1], [], []>} : vector<4x4xf32>, vector<4x32xf32>, vector<4x32xf32> -> vector<4x32xf32>
    %107 = arith.addf %87, %106 : vector<4x32xf32>
    %108 = vector.extract_strided_slice %65 {offsets = [0, 8], sizes = [4, 4], strides = [1, 1]} : vector<4x32xf32> to vector<4x4xf32>
    %109 = vector.extract_strided_slice %66 {offsets = [0, 8], sizes = [4, 4], strides = [1, 1]} : vector<4x32xf32> to vector<4x4xf32>
    %cst_46 = arith.constant dense<0.000000e+00> : vector<4x4xf32>
    %110 = tpu.matmul %108, %109, %cst_46 {dimension_numbers = #tpu.dot_dimension_numbers<[1], [1], [0], [0], [0, 0, 1, 0], [], []>} : vector<4x4xf32>, vector<4x4xf32>, vector<4x4xf32> -> vector<4x4xf32>
    %cst_47 = arith.constant 5.000000e-01 : f32
    %111 = vector.broadcast %cst_47 : f32 to vector<4x4xf32>
    %112 = arith.mulf %110, %111 : vector<4x4xf32>
    %cst_48 = arith.constant dense<0xFF800000> : vector<4xf32>
    %113 = vector.multi_reduction <maximumf>, %112, %cst_48 [1] : vector<4x4xf32> to vector<4xf32>
    %114 = vector.shape_cast %113 : vector<4xf32> to vector<4x1xf32>
    %115 = vector.broadcast %114 : vector<4x1xf32> to vector<4x4xf32>
    %116 = arith.subf %112, %115 : vector<4x4xf32>
    %117 = math.exp %116 : vector<4x4xf32>
    %cst_49 = arith.constant dense<0.000000e+00> : vector<4xf32>
    %118 = vector.multi_reduction <add>, %117, %cst_49 [1] : vector<4x4xf32> to vector<4xf32>
    %119 = vector.shape_cast %118 : vector<4xf32> to vector<4x1xf32>
    %120 = tpu.reciprocal %119 {approx = true} : vector<4x1xf32> -> vector<4x1xf32>
    %121 = vector.broadcast %120 : vector<4x1xf32> to vector<4x4xf32>
    %122 = arith.mulf %117, %121 : vector<4x4xf32>
    %123 = vector.extract_strided_slice %64 {offsets = [0, 8], sizes = [4, 4], strides = [1, 1]} : vector<4x32xf32> to vector<4x4xf32>
    %cst_50 = arith.constant dense<0.000000e+00> : vector<4x4xf32>
    %124 = tpu.matmul %122, %123, %cst_50 {dimension_numbers = #tpu.dot_dimension_numbers<[1], [0], [0], [1], [0, 0, 1, 1], [], []>} : vector<4x4xf32>, vector<4x4xf32>, vector<4x4xf32> -> vector<4x4xf32>
    %125 = vector.extract_strided_slice %67 {offsets = [8, 0], sizes = [4, 32], strides = [1, 1]} : vector<32x32xf32> to vector<4x32xf32>
    %cst_51 = arith.constant dense<0.000000e+00> : vector<4x32xf32>
    %126 = tpu.matmul %124, %125, %cst_51 {dimension_numbers = #tpu.dot_dimension_numbers<[1], [0], [0], [1], [0, 0, 1, 1], [], []>} : vector<4x4xf32>, vector<4x32xf32>, vector<4x32xf32> -> vector<4x32xf32>
    %127 = arith.addf %107, %126 : vector<4x32xf32>
    %128 = vector.extract_strided_slice %65 {offsets = [0, 12], sizes = [4, 4], strides = [1, 1]} : vector<4x32xf32> to vector<4x4xf32>
    %129 = vector.extract_strided_slice %66 {offsets = [0, 12], sizes = [4, 4], strides = [1, 1]} : vector<4x32xf32> to vector<4x4xf32>
    %cst_52 = arith.constant dense<0.000000e+00> : vector<4x4xf32>
    %130 = tpu.matmul %128, %129, %cst_52 {dimension_numbers = #tpu.dot_dimension_numbers<[1], [1], [0], [0], [0, 0, 1, 0], [], []>} : vector<4x4xf32>, vector<4x4xf32>, vector<4x4xf32> -> vector<4x4xf32>
    %cst_53 = arith.constant 5.000000e-01 : f32
    %131 = vector.broadcast %cst_53 : f32 to vector<4x4xf32>
    %132 = arith.mulf %130, %131 : vector<4x4xf32>
    %cst_54 = arith.constant dense<0xFF800000> : vector<4xf32>
    %133 = vector.multi_reduction <maximumf>, %132, %cst_54 [1] : vector<4x4xf32> to vector<4xf32>
    %134 = vector.shape_cast %133 : vector<4xf32> to vector<4x1xf32>
    %135 = vector.broadcast %134 : vector<4x1xf32> to vector<4x4xf32>
    %136 = arith.subf %132, %135 : vector<4x4xf32>
    %137 = math.exp %136 : vector<4x4xf32>
    %cst_55 = arith.constant dense<0.000000e+00> : vector<4xf32>
    %138 = vector.multi_reduction <add>, %137, %cst_55 [1] : vector<4x4xf32> to vector<4xf32>
    %139 = vector.shape_cast %138 : vector<4xf32> to vector<4x1xf32>
    %140 = tpu.reciprocal %139 {approx = true} : vector<4x1xf32> -> vector<4x1xf32>
    %141 = vector.broadcast %140 : vector<4x1xf32> to vector<4x4xf32>
    %142 = arith.mulf %137, %141 : vector<4x4xf32>
    %143 = vector.extract_strided_slice %64 {offsets = [0, 12], sizes = [4, 4], strides = [1, 1]} : vector<4x32xf32> to vector<4x4xf32>
    %cst_56 = arith.constant dense<0.000000e+00> : vector<4x4xf32>
    %144 = tpu.matmul %142, %143, %cst_56 {dimension_numbers = #tpu.dot_dimension_numbers<[1], [0], [0], [1], [0, 0, 1, 1], [], []>} : vector<4x4xf32>, vector<4x4xf32>, vector<4x4xf32> -> vector<4x4xf32>
    %145 = vector.extract_strided_slice %67 {offsets = [12, 0], sizes = [4, 32], strides = [1, 1]} : vector<32x32xf32> to vector<4x32xf32>
    %cst_57 = arith.constant dense<0.000000e+00> : vector<4x32xf32>
    %146 = tpu.matmul %144, %145, %cst_57 {dimension_numbers = #tpu.dot_dimension_numbers<[1], [0], [0], [1], [0, 0, 1, 1], [], []>} : vector<4x4xf32>, vector<4x32xf32>, vector<4x32xf32> -> vector<4x32xf32>
    %147 = arith.addf %127, %146 : vector<4x32xf32>
    %148 = vector.extract_strided_slice %65 {offsets = [0, 16], sizes = [4, 4], strides = [1, 1]} : vector<4x32xf32> to vector<4x4xf32>
    %149 = vector.extract_strided_slice %66 {offsets = [0, 16], sizes = [4, 4], strides = [1, 1]} : vector<4x32xf32> to vector<4x4xf32>
    %cst_58 = arith.constant dense<0.000000e+00> : vector<4x4xf32>
    %150 = tpu.matmul %148, %149, %cst_58 {dimension_numbers = #tpu.dot_dimension_numbers<[1], [1], [0], [0], [0, 0, 1, 0], [], []>} : vector<4x4xf32>, vector<4x4xf32>, vector<4x4xf32> -> vector<4x4xf32>
    %cst_59 = arith.constant 5.000000e-01 : f32
    %151 = vector.broadcast %cst_59 : f32 to vector<4x4xf32>
    %152 = arith.mulf %150, %151 : vector<4x4xf32>
    %cst_60 = arith.constant dense<0xFF800000> : vector<4xf32>
    %153 = vector.multi_reduction <maximumf>, %152, %cst_60 [1] : vector<4x4xf32> to vector<4xf32>
    %154 = vector.shape_cast %153 : vector<4xf32> to vector<4x1xf32>
    %155 = vector.broadcast %154 : vector<4x1xf32> to vector<4x4xf32>
    %156 = arith.subf %152, %155 : vector<4x4xf32>
    %157 = math.exp %156 : vector<4x4xf32>
    %cst_61 = arith.constant dense<0.000000e+00> : vector<4xf32>
    %158 = vector.multi_reduction <add>, %157, %cst_61 [1] : vector<4x4xf32> to vector<4xf32>
    %159 = vector.shape_cast %158 : vector<4xf32> to vector<4x1xf32>
    %160 = tpu.reciprocal %159 {approx = true} : vector<4x1xf32> -> vector<4x1xf32>
    %161 = vector.broadcast %160 : vector<4x1xf32> to vector<4x4xf32>
    %162 = arith.mulf %157, %161 : vector<4x4xf32>
    %163 = vector.extract_strided_slice %64 {offsets = [0, 16], sizes = [4, 4], strides = [1, 1]} : vector<4x32xf32> to vector<4x4xf32>
    %cst_62 = arith.constant dense<0.000000e+00> : vector<4x4xf32>
    %164 = tpu.matmul %162, %163, %cst_62 {dimension_numbers = #tpu.dot_dimension_numbers<[1], [0], [0], [1], [0, 0, 1, 1], [], []>} : vector<4x4xf32>, vector<4x4xf32>, vector<4x4xf32> -> vector<4x4xf32>
    %165 = vector.extract_strided_slice %67 {offsets = [16, 0], sizes = [4, 32], strides = [1, 1]} : vector<32x32xf32> to vector<4x32xf32>
    %cst_63 = arith.constant dense<0.000000e+00> : vector<4x32xf32>
    %166 = tpu.matmul %164, %165, %cst_63 {dimension_numbers = #tpu.dot_dimension_numbers<[1], [0], [0], [1], [0, 0, 1, 1], [], []>} : vector<4x4xf32>, vector<4x32xf32>, vector<4x32xf32> -> vector<4x32xf32>
    %167 = arith.addf %147, %166 : vector<4x32xf32>
    %168 = vector.extract_strided_slice %65 {offsets = [0, 20], sizes = [4, 4], strides = [1, 1]} : vector<4x32xf32> to vector<4x4xf32>
    %169 = vector.extract_strided_slice %66 {offsets = [0, 20], sizes = [4, 4], strides = [1, 1]} : vector<4x32xf32> to vector<4x4xf32>
    %cst_64 = arith.constant dense<0.000000e+00> : vector<4x4xf32>
    %170 = tpu.matmul %168, %169, %cst_64 {dimension_numbers = #tpu.dot_dimension_numbers<[1], [1], [0], [0], [0, 0, 1, 0], [], []>} : vector<4x4xf32>, vector<4x4xf32>, vector<4x4xf32> -> vector<4x4xf32>
    %cst_65 = arith.constant 5.000000e-01 : f32
    %171 = vector.broadcast %cst_65 : f32 to vector<4x4xf32>
    %172 = arith.mulf %170, %171 : vector<4x4xf32>
    %cst_66 = arith.constant dense<0xFF800000> : vector<4xf32>
    %173 = vector.multi_reduction <maximumf>, %172, %cst_66 [1] : vector<4x4xf32> to vector<4xf32>
    %174 = vector.shape_cast %173 : vector<4xf32> to vector<4x1xf32>
    %175 = vector.broadcast %174 : vector<4x1xf32> to vector<4x4xf32>
    %176 = arith.subf %172, %175 : vector<4x4xf32>
    %177 = math.exp %176 : vector<4x4xf32>
    %cst_67 = arith.constant dense<0.000000e+00> : vector<4xf32>
    %178 = vector.multi_reduction <add>, %177, %cst_67 [1] : vector<4x4xf32> to vector<4xf32>
    %179 = vector.shape_cast %178 : vector<4xf32> to vector<4x1xf32>
    %180 = tpu.reciprocal %179 {approx = true} : vector<4x1xf32> -> vector<4x1xf32>
    %181 = vector.broadcast %180 : vector<4x1xf32> to vector<4x4xf32>
    %182 = arith.mulf %177, %181 : vector<4x4xf32>
    %183 = vector.extract_strided_slice %64 {offsets = [0, 20], sizes = [4, 4], strides = [1, 1]} : vector<4x32xf32> to vector<4x4xf32>
    %cst_68 = arith.constant dense<0.000000e+00> : vector<4x4xf32>
    %184 = tpu.matmul %182, %183, %cst_68 {dimension_numbers = #tpu.dot_dimension_numbers<[1], [0], [0], [1], [0, 0, 1, 1], [], []>} : vector<4x4xf32>, vector<4x4xf32>, vector<4x4xf32> -> vector<4x4xf32>
    %185 = vector.extract_strided_slice %67 {offsets = [20, 0], sizes = [4, 32], strides = [1, 1]} : vector<32x32xf32> to vector<4x32xf32>
    %cst_69 = arith.constant dense<0.000000e+00> : vector<4x32xf32>
    %186 = tpu.matmul %184, %185, %cst_69 {dimension_numbers = #tpu.dot_dimension_numbers<[1], [0], [0], [1], [0, 0, 1, 1], [], []>} : vector<4x4xf32>, vector<4x32xf32>, vector<4x32xf32> -> vector<4x32xf32>
    %187 = arith.addf %167, %186 : vector<4x32xf32>
    %188 = vector.extract_strided_slice %65 {offsets = [0, 24], sizes = [4, 4], strides = [1, 1]} : vector<4x32xf32> to vector<4x4xf32>
    %189 = vector.extract_strided_slice %66 {offsets = [0, 24], sizes = [4, 4], strides = [1, 1]} : vector<4x32xf32> to vector<4x4xf32>
    %cst_70 = arith.constant dense<0.000000e+00> : vector<4x4xf32>
    %190 = tpu.matmul %188, %189, %cst_70 {dimension_numbers = #tpu.dot_dimension_numbers<[1], [1], [0], [0], [0, 0, 1, 0], [], []>} : vector<4x4xf32>, vector<4x4xf32>, vector<4x4xf32> -> vector<4x4xf32>
    %cst_71 = arith.constant 5.000000e-01 : f32
    %191 = vector.broadcast %cst_71 : f32 to vector<4x4xf32>
    %192 = arith.mulf %190, %191 : vector<4x4xf32>
    %cst_72 = arith.constant dense<0xFF800000> : vector<4xf32>
    %193 = vector.multi_reduction <maximumf>, %192, %cst_72 [1] : vector<4x4xf32> to vector<4xf32>
    %194 = vector.shape_cast %193 : vector<4xf32> to vector<4x1xf32>
    %195 = vector.broadcast %194 : vector<4x1xf32> to vector<4x4xf32>
    %196 = arith.subf %192, %195 : vector<4x4xf32>
    %197 = math.exp %196 : vector<4x4xf32>
    %cst_73 = arith.constant dense<0.000000e+00> : vector<4xf32>
    %198 = vector.multi_reduction <add>, %197, %cst_73 [1] : vector<4x4xf32> to vector<4xf32>
    %199 = vector.shape_cast %198 : vector<4xf32> to vector<4x1xf32>
    %200 = tpu.reciprocal %199 {approx = true} : vector<4x1xf32> -> vector<4x1xf32>
    %201 = vector.broadcast %200 : vector<4x1xf32> to vector<4x4xf32>
    %202 = arith.mulf %197, %201 : vector<4x4xf32>
    %203 = vector.extract_strided_slice %64 {offsets = [0, 24], sizes = [4, 4], strides = [1, 1]} : vector<4x32xf32> to vector<4x4xf32>
    %cst_74 = arith.constant dense<0.000000e+00> : vector<4x4xf32>
    %204 = tpu.matmul %202, %203, %cst_74 {dimension_numbers = #tpu.dot_dimension_numbers<[1], [0], [0], [1], [0, 0, 1, 1], [], []>} : vector<4x4xf32>, vector<4x4xf32>, vector<4x4xf32> -> vector<4x4xf32>
    %205 = vector.extract_strided_slice %67 {offsets = [24, 0], sizes = [4, 32], strides = [1, 1]} : vector<32x32xf32> to vector<4x32xf32>
    %cst_75 = arith.constant dense<0.000000e+00> : vector<4x32xf32>
    %206 = tpu.matmul %204, %205, %cst_75 {dimension_numbers = #tpu.dot_dimension_numbers<[1], [0], [0], [1], [0, 0, 1, 1], [], []>} : vector<4x4xf32>, vector<4x32xf32>, vector<4x32xf32> -> vector<4x32xf32>
    %207 = arith.addf %187, %206 : vector<4x32xf32>
    %208 = vector.extract_strided_slice %65 {offsets = [0, 28], sizes = [4, 4], strides = [1, 1]} : vector<4x32xf32> to vector<4x4xf32>
    %209 = vector.extract_strided_slice %66 {offsets = [0, 28], sizes = [4, 4], strides = [1, 1]} : vector<4x32xf32> to vector<4x4xf32>
    %cst_76 = arith.constant dense<0.000000e+00> : vector<4x4xf32>
    %210 = tpu.matmul %208, %209, %cst_76 {dimension_numbers = #tpu.dot_dimension_numbers<[1], [1], [0], [0], [0, 0, 1, 0], [], []>} : vector<4x4xf32>, vector<4x4xf32>, vector<4x4xf32> -> vector<4x4xf32>
    %cst_77 = arith.constant 5.000000e-01 : f32
    %211 = vector.broadcast %cst_77 : f32 to vector<4x4xf32>
    %212 = arith.mulf %210, %211 : vector<4x4xf32>
    %cst_78 = arith.constant dense<0xFF800000> : vector<4xf32>
    %213 = vector.multi_reduction <maximumf>, %212, %cst_78 [1] : vector<4x4xf32> to vector<4xf32>
    %214 = vector.shape_cast %213 : vector<4xf32> to vector<4x1xf32>
    %215 = vector.broadcast %214 : vector<4x1xf32> to vector<4x4xf32>
    %216 = arith.subf %212, %215 : vector<4x4xf32>
    %217 = math.exp %216 : vector<4x4xf32>
    %cst_79 = arith.constant dense<0.000000e+00> : vector<4xf32>
    %218 = vector.multi_reduction <add>, %217, %cst_79 [1] : vector<4x4xf32> to vector<4xf32>
    %219 = vector.shape_cast %218 : vector<4xf32> to vector<4x1xf32>
    %220 = tpu.reciprocal %219 {approx = true} : vector<4x1xf32> -> vector<4x1xf32>
    %221 = vector.broadcast %220 : vector<4x1xf32> to vector<4x4xf32>
    %222 = arith.mulf %217, %221 : vector<4x4xf32>
    %223 = vector.extract_strided_slice %64 {offsets = [0, 28], sizes = [4, 4], strides = [1, 1]} : vector<4x32xf32> to vector<4x4xf32>
    %cst_80 = arith.constant dense<0.000000e+00> : vector<4x4xf32>
    %224 = tpu.matmul %222, %223, %cst_80 {dimension_numbers = #tpu.dot_dimension_numbers<[1], [0], [0], [1], [0, 0, 1, 1], [], []>} : vector<4x4xf32>, vector<4x4xf32>, vector<4x4xf32> -> vector<4x4xf32>
    %225 = vector.extract_strided_slice %67 {offsets = [28, 0], sizes = [4, 32], strides = [1, 1]} : vector<32x32xf32> to vector<4x32xf32>
    %cst_81 = arith.constant dense<0.000000e+00> : vector<4x32xf32>
    %226 = tpu.matmul %224, %225, %cst_81 {dimension_numbers = #tpu.dot_dimension_numbers<[1], [0], [0], [1], [0, 0, 1, 1], [], []>} : vector<4x4xf32>, vector<4x32xf32>, vector<4x32xf32> -> vector<4x32xf32>
    %227 = arith.addf %207, %226 : vector<4x32xf32>
    %228 = vector.broadcast %68 : vector<1x32xf32> to vector<4x32xf32>
    %229 = arith.addf %227, %228 : vector<4x32xf32>
    %230 = arith.addf %28, %229 : vector<4x32xf32>
    %231 = vector.extract_strided_slice %1 {offsets = [0, 0], sizes = [1, 32], strides = [1, 1]} : vector<3x32xf32> to vector<1x32xf32>
    %232 = vector.extract_strided_slice %2 {offsets = [0, 0], sizes = [1, 32], strides = [1, 1]} : vector<3x32xf32> to vector<1x32xf32>
    %cst_82 = arith.constant dense<0.000000e+00> : vector<4xf32>
    %233 = vector.multi_reduction <add>, %230, %cst_82 [1] : vector<4x32xf32> to vector<4xf32>
    %234 = vector.shape_cast %233 : vector<4xf32> to vector<4x1xf32>
    %cst_83 = arith.constant 3.200000e+01 : f32
    %235 = vector.broadcast %cst_83 : f32 to vector<4x1xf32>
    %236 = arith.divf %234, %235 : vector<4x1xf32>
    %237 = vector.broadcast %236 : vector<4x1xf32> to vector<4x32xf32>
    %238 = arith.subf %230, %237 : vector<4x32xf32>
    %239 = arith.mulf %238, %238 : vector<4x32xf32>
    %cst_84 = arith.constant dense<0.000000e+00> : vector<4xf32>
    %240 = vector.multi_reduction <add>, %239, %cst_84 [1] : vector<4x32xf32> to vector<4xf32>
    %241 = vector.shape_cast %240 : vector<4xf32> to vector<4x1xf32>
    %cst_85 = arith.constant 3.200000e+01 : f32
    %242 = vector.broadcast %cst_85 : f32 to vector<4x1xf32>
    %243 = arith.divf %241, %242 : vector<4x1xf32>
    %cst_86 = arith.constant 9.99999974E-6 : f32
    %244 = vector.broadcast %cst_86 : f32 to vector<4x1xf32>
    %245 = arith.addf %243, %244 : vector<4x1xf32>
    %246 = math.rsqrt %245 : vector<4x1xf32>
    %247 = vector.broadcast %246 : vector<4x1xf32> to vector<4x32xf32>
    %248 = arith.mulf %238, %247 : vector<4x32xf32>
    %249 = vector.broadcast %231 : vector<1x32xf32> to vector<4x32xf32>
    %250 = arith.mulf %248, %249 : vector<4x32xf32>
    %251 = vector.broadcast %232 : vector<1x32xf32> to vector<4x32xf32>
    %252 = arith.addf %250, %251 : vector<4x32xf32>
    %253 = arith.addf %252, %28 : vector<4x32xf32>
    %c0_87 = arith.constant 0 : index
    %c0_88 = arith.constant 0 : index
    %254 = vector.load %arg12[%c0_87, %c0_88] : memref<32x16xf32, #tpu.memory_space<vmem>>, vector<32x16xf32>
    %cst_89 = arith.constant dense<0.000000e+00> : vector<4x16xf32>
    %255 = tpu.matmul %253, %254, %cst_89 {dimension_numbers = #tpu.dot_dimension_numbers<[1], [0], [0], [1], [0, 0, 1, 1], [], []>} : vector<4x32xf32>, vector<32x16xf32>, vector<4x16xf32> -> vector<4x16xf32>
    %c0_90 = arith.constant 0 : index
    %c0_91 = arith.constant 0 : index
    %256 = vector.load %arg13[%c0_90, %c0_91] : memref<1x16xf32, #tpu.memory_space<vmem>>, vector<1x16xf32>
    %257 = vector.broadcast %256 : vector<1x16xf32> to vector<4x16xf32>
    %258 = arith.addf %255, %257 : vector<4x16xf32>
    %259 = arith.addf %53, %52 : vector<64x32xf32>
    %c0_92 = arith.constant 0 : index
    %c0_93 = arith.constant 0 : index
    %260 = vector.load %arg14[%c0_92, %c0_93] : memref<32x16xf32, #tpu.memory_space<vmem>>, vector<32x16xf32>
    %cst_94 = arith.constant dense<0.000000e+00> : vector<64x16xf32>
    %261 = tpu.matmul %259, %260, %cst_94 {dimension_numbers = #tpu.dot_dimension_numbers<[1], [0], [0], [1], [0, 0, 1, 1], [], []>} : vector<64x32xf32>, vector<32x16xf32>, vector<64x16xf32> -> vector<64x16xf32>
    %c0_95 = arith.constant 0 : index
    %c0_96 = arith.constant 0 : index
    %262 = vector.load %arg15[%c0_95, %c0_96] : memref<1x16xf32, #tpu.memory_space<vmem>>, vector<1x16xf32>
    %263 = vector.broadcast %262 : vector<1x16xf32> to vector<64x16xf32>
    %264 = arith.addf %261, %263 : vector<64x16xf32>
    %c0_97 = arith.constant 0 : index
    %c0_98 = arith.constant 0 : index
    %265 = vector.load %arg16[%c0_97, %c0_98] : memref<32x16xf32, #tpu.memory_space<vmem>>, vector<32x16xf32>
    %cst_99 = arith.constant dense<0.000000e+00> : vector<64x16xf32>
    %266 = tpu.matmul %53, %265, %cst_99 {dimension_numbers = #tpu.dot_dimension_numbers<[1], [0], [0], [1], [0, 0, 1, 1], [], []>} : vector<64x32xf32>, vector<32x16xf32>, vector<64x16xf32> -> vector<64x16xf32>
    %c0_100 = arith.constant 0 : index
    %c0_101 = arith.constant 0 : index
    %267 = vector.load %arg17[%c0_100, %c0_101] : memref<1x16xf32, #tpu.memory_space<vmem>>, vector<1x16xf32>
    %268 = vector.broadcast %267 : vector<1x16xf32> to vector<64x16xf32>
    %269 = arith.addf %266, %268 : vector<64x16xf32>
    %c0_102 = arith.constant 0 : index
    %c0_103 = arith.constant 0 : index
    %270 = vector.load %arg18[%c0_102, %c0_103] : memref<16x32xf32, #tpu.memory_space<vmem>>, vector<16x32xf32>
    %c0_104 = arith.constant 0 : index
    %c0_105 = arith.constant 0 : index
    %271 = vector.load %arg19[%c0_104, %c0_105] : memref<1x32xf32, #tpu.memory_space<vmem>>, vector<1x32xf32>
    %272 = vector.extract_strided_slice %258 {offsets = [0, 0], sizes = [4, 2], strides = [1, 1]} : vector<4x16xf32> to vector<4x2xf32>
    %273 = vector.extract_strided_slice %264 {offsets = [0, 0], sizes = [64, 2], strides = [1, 1]} : vector<64x16xf32> to vector<64x2xf32>
    %cst_106 = arith.constant dense<0.000000e+00> : vector<4x64xf32>
    %274 = tpu.matmul %272, %273, %cst_106 {dimension_numbers = #tpu.dot_dimension_numbers<[1], [1], [0], [0], [0, 0, 1, 0], [], []>} : vector<4x2xf32>, vector<64x2xf32>, vector<4x64xf32> -> vector<4x64xf32>
    %cst_107 = arith.constant 0.707106769 : f32
    %275 = vector.broadcast %cst_107 : f32 to vector<4x64xf32>
    %276 = arith.mulf %274, %275 : vector<4x64xf32>
    %cst_108 = arith.constant dense<0xFF800000> : vector<4xf32>
    %277 = vector.multi_reduction <maximumf>, %276, %cst_108 [1] : vector<4x64xf32> to vector<4xf32>
    %278 = vector.shape_cast %277 : vector<4xf32> to vector<4x1xf32>
    %279 = vector.broadcast %278 : vector<4x1xf32> to vector<4x64xf32>
    %280 = arith.subf %276, %279 : vector<4x64xf32>
    %281 = math.exp %280 : vector<4x64xf32>
    %cst_109 = arith.constant dense<0.000000e+00> : vector<4xf32>
    %282 = vector.multi_reduction <add>, %281, %cst_109 [1] : vector<4x64xf32> to vector<4xf32>
    %283 = vector.shape_cast %282 : vector<4xf32> to vector<4x1xf32>
    %284 = tpu.reciprocal %283 {approx = true} : vector<4x1xf32> -> vector<4x1xf32>
    %285 = vector.broadcast %284 : vector<4x1xf32> to vector<4x64xf32>
    %286 = arith.mulf %281, %285 : vector<4x64xf32>
    %287 = vector.extract_strided_slice %269 {offsets = [0, 0], sizes = [64, 2], strides = [1, 1]} : vector<64x16xf32> to vector<64x2xf32>
    %cst_110 = arith.constant dense<0.000000e+00> : vector<4x2xf32>
    %288 = tpu.matmul %286, %287, %cst_110 {dimension_numbers = #tpu.dot_dimension_numbers<[1], [0], [0], [1], [0, 0, 1, 1], [], []>} : vector<4x64xf32>, vector<64x2xf32>, vector<4x2xf32> -> vector<4x2xf32>
    %289 = vector.extract_strided_slice %270 {offsets = [0, 0], sizes = [2, 32], strides = [1, 1]} : vector<16x32xf32> to vector<2x32xf32>
    %cst_111 = arith.constant dense<0.000000e+00> : vector<4x32xf32>
    %290 = tpu.matmul %288, %289, %cst_111 {dimension_numbers = #tpu.dot_dimension_numbers<[1], [0], [0], [1], [0, 0, 1, 1], [], []>} : vector<4x2xf32>, vector<2x32xf32>, vector<4x32xf32> -> vector<4x32xf32>
    %291 = vector.extract_strided_slice %258 {offsets = [0, 2], sizes = [4, 2], strides = [1, 1]} : vector<4x16xf32> to vector<4x2xf32>
    %292 = vector.extract_strided_slice %264 {offsets = [0, 2], sizes = [64, 2], strides = [1, 1]} : vector<64x16xf32> to vector<64x2xf32>
    %cst_112 = arith.constant dense<0.000000e+00> : vector<4x64xf32>
    %293 = tpu.matmul %291, %292, %cst_112 {dimension_numbers = #tpu.dot_dimension_numbers<[1], [1], [0], [0], [0, 0, 1, 0], [], []>} : vector<4x2xf32>, vector<64x2xf32>, vector<4x64xf32> -> vector<4x64xf32>
    %cst_113 = arith.constant 0.707106769 : f32
    %294 = vector.broadcast %cst_113 : f32 to vector<4x64xf32>
    %295 = arith.mulf %293, %294 : vector<4x64xf32>
    %cst_114 = arith.constant dense<0xFF800000> : vector<4xf32>
    %296 = vector.multi_reduction <maximumf>, %295, %cst_114 [1] : vector<4x64xf32> to vector<4xf32>
    %297 = vector.shape_cast %296 : vector<4xf32> to vector<4x1xf32>
    %298 = vector.broadcast %297 : vector<4x1xf32> to vector<4x64xf32>
    %299 = arith.subf %295, %298 : vector<4x64xf32>
    %300 = math.exp %299 : vector<4x64xf32>
    %cst_115 = arith.constant dense<0.000000e+00> : vector<4xf32>
    %301 = vector.multi_reduction <add>, %300, %cst_115 [1] : vector<4x64xf32> to vector<4xf32>
    %302 = vector.shape_cast %301 : vector<4xf32> to vector<4x1xf32>
    %303 = tpu.reciprocal %302 {approx = true} : vector<4x1xf32> -> vector<4x1xf32>
    %304 = vector.broadcast %303 : vector<4x1xf32> to vector<4x64xf32>
    %305 = arith.mulf %300, %304 : vector<4x64xf32>
    %306 = vector.extract_strided_slice %269 {offsets = [0, 2], sizes = [64, 2], strides = [1, 1]} : vector<64x16xf32> to vector<64x2xf32>
    %cst_116 = arith.constant dense<0.000000e+00> : vector<4x2xf32>
    %307 = tpu.matmul %305, %306, %cst_116 {dimension_numbers = #tpu.dot_dimension_numbers<[1], [0], [0], [1], [0, 0, 1, 1], [], []>} : vector<4x64xf32>, vector<64x2xf32>, vector<4x2xf32> -> vector<4x2xf32>
    %308 = vector.extract_strided_slice %270 {offsets = [2, 0], sizes = [2, 32], strides = [1, 1]} : vector<16x32xf32> to vector<2x32xf32>
    %cst_117 = arith.constant dense<0.000000e+00> : vector<4x32xf32>
    %309 = tpu.matmul %307, %308, %cst_117 {dimension_numbers = #tpu.dot_dimension_numbers<[1], [0], [0], [1], [0, 0, 1, 1], [], []>} : vector<4x2xf32>, vector<2x32xf32>, vector<4x32xf32> -> vector<4x32xf32>
    %310 = arith.addf %290, %309 : vector<4x32xf32>
    %311 = vector.extract_strided_slice %258 {offsets = [0, 4], sizes = [4, 2], strides = [1, 1]} : vector<4x16xf32> to vector<4x2xf32>
    %312 = vector.extract_strided_slice %264 {offsets = [0, 4], sizes = [64, 2], strides = [1, 1]} : vector<64x16xf32> to vector<64x2xf32>
    %cst_118 = arith.constant dense<0.000000e+00> : vector<4x64xf32>
    %313 = tpu.matmul %311, %312, %cst_118 {dimension_numbers = #tpu.dot_dimension_numbers<[1], [1], [0], [0], [0, 0, 1, 0], [], []>} : vector<4x2xf32>, vector<64x2xf32>, vector<4x64xf32> -> vector<4x64xf32>
    %cst_119 = arith.constant 0.707106769 : f32
    %314 = vector.broadcast %cst_119 : f32 to vector<4x64xf32>
    %315 = arith.mulf %313, %314 : vector<4x64xf32>
    %cst_120 = arith.constant dense<0xFF800000> : vector<4xf32>
    %316 = vector.multi_reduction <maximumf>, %315, %cst_120 [1] : vector<4x64xf32> to vector<4xf32>
    %317 = vector.shape_cast %316 : vector<4xf32> to vector<4x1xf32>
    %318 = vector.broadcast %317 : vector<4x1xf32> to vector<4x64xf32>
    %319 = arith.subf %315, %318 : vector<4x64xf32>
    %320 = math.exp %319 : vector<4x64xf32>
    %cst_121 = arith.constant dense<0.000000e+00> : vector<4xf32>
    %321 = vector.multi_reduction <add>, %320, %cst_121 [1] : vector<4x64xf32> to vector<4xf32>
    %322 = vector.shape_cast %321 : vector<4xf32> to vector<4x1xf32>
    %323 = tpu.reciprocal %322 {approx = true} : vector<4x1xf32> -> vector<4x1xf32>
    %324 = vector.broadcast %323 : vector<4x1xf32> to vector<4x64xf32>
    %325 = arith.mulf %320, %324 : vector<4x64xf32>
    %326 = vector.extract_strided_slice %269 {offsets = [0, 4], sizes = [64, 2], strides = [1, 1]} : vector<64x16xf32> to vector<64x2xf32>
    %cst_122 = arith.constant dense<0.000000e+00> : vector<4x2xf32>
    %327 = tpu.matmul %325, %326, %cst_122 {dimension_numbers = #tpu.dot_dimension_numbers<[1], [0], [0], [1], [0, 0, 1, 1], [], []>} : vector<4x64xf32>, vector<64x2xf32>, vector<4x2xf32> -> vector<4x2xf32>
    %328 = vector.extract_strided_slice %270 {offsets = [4, 0], sizes = [2, 32], strides = [1, 1]} : vector<16x32xf32> to vector<2x32xf32>
    %cst_123 = arith.constant dense<0.000000e+00> : vector<4x32xf32>
    %329 = tpu.matmul %327, %328, %cst_123 {dimension_numbers = #tpu.dot_dimension_numbers<[1], [0], [0], [1], [0, 0, 1, 1], [], []>} : vector<4x2xf32>, vector<2x32xf32>, vector<4x32xf32> -> vector<4x32xf32>
    %330 = arith.addf %310, %329 : vector<4x32xf32>
    %331 = vector.extract_strided_slice %258 {offsets = [0, 6], sizes = [4, 2], strides = [1, 1]} : vector<4x16xf32> to vector<4x2xf32>
    %332 = vector.extract_strided_slice %264 {offsets = [0, 6], sizes = [64, 2], strides = [1, 1]} : vector<64x16xf32> to vector<64x2xf32>
    %cst_124 = arith.constant dense<0.000000e+00> : vector<4x64xf32>
    %333 = tpu.matmul %331, %332, %cst_124 {dimension_numbers = #tpu.dot_dimension_numbers<[1], [1], [0], [0], [0, 0, 1, 0], [], []>} : vector<4x2xf32>, vector<64x2xf32>, vector<4x64xf32> -> vector<4x64xf32>
    %cst_125 = arith.constant 0.707106769 : f32
    %334 = vector.broadcast %cst_125 : f32 to vector<4x64xf32>
    %335 = arith.mulf %333, %334 : vector<4x64xf32>
    %cst_126 = arith.constant dense<0xFF800000> : vector<4xf32>
    %336 = vector.multi_reduction <maximumf>, %335, %cst_126 [1] : vector<4x64xf32> to vector<4xf32>
    %337 = vector.shape_cast %336 : vector<4xf32> to vector<4x1xf32>
    %338 = vector.broadcast %337 : vector<4x1xf32> to vector<4x64xf32>
    %339 = arith.subf %335, %338 : vector<4x64xf32>
    %340 = math.exp %339 : vector<4x64xf32>
    %cst_127 = arith.constant dense<0.000000e+00> : vector<4xf32>
    %341 = vector.multi_reduction <add>, %340, %cst_127 [1] : vector<4x64xf32> to vector<4xf32>
    %342 = vector.shape_cast %341 : vector<4xf32> to vector<4x1xf32>
    %343 = tpu.reciprocal %342 {approx = true} : vector<4x1xf32> -> vector<4x1xf32>
    %344 = vector.broadcast %343 : vector<4x1xf32> to vector<4x64xf32>
    %345 = arith.mulf %340, %344 : vector<4x64xf32>
    %346 = vector.extract_strided_slice %269 {offsets = [0, 6], sizes = [64, 2], strides = [1, 1]} : vector<64x16xf32> to vector<64x2xf32>
    %cst_128 = arith.constant dense<0.000000e+00> : vector<4x2xf32>
    %347 = tpu.matmul %345, %346, %cst_128 {dimension_numbers = #tpu.dot_dimension_numbers<[1], [0], [0], [1], [0, 0, 1, 1], [], []>} : vector<4x64xf32>, vector<64x2xf32>, vector<4x2xf32> -> vector<4x2xf32>
    %348 = vector.extract_strided_slice %270 {offsets = [6, 0], sizes = [2, 32], strides = [1, 1]} : vector<16x32xf32> to vector<2x32xf32>
    %cst_129 = arith.constant dense<0.000000e+00> : vector<4x32xf32>
    %349 = tpu.matmul %347, %348, %cst_129 {dimension_numbers = #tpu.dot_dimension_numbers<[1], [0], [0], [1], [0, 0, 1, 1], [], []>} : vector<4x2xf32>, vector<2x32xf32>, vector<4x32xf32> -> vector<4x32xf32>
    %350 = arith.addf %330, %349 : vector<4x32xf32>
    %351 = vector.extract_strided_slice %258 {offsets = [0, 8], sizes = [4, 2], strides = [1, 1]} : vector<4x16xf32> to vector<4x2xf32>
    %352 = vector.extract_strided_slice %264 {offsets = [0, 8], sizes = [64, 2], strides = [1, 1]} : vector<64x16xf32> to vector<64x2xf32>
    %cst_130 = arith.constant dense<0.000000e+00> : vector<4x64xf32>
    %353 = tpu.matmul %351, %352, %cst_130 {dimension_numbers = #tpu.dot_dimension_numbers<[1], [1], [0], [0], [0, 0, 1, 0], [], []>} : vector<4x2xf32>, vector<64x2xf32>, vector<4x64xf32> -> vector<4x64xf32>
    %cst_131 = arith.constant 0.707106769 : f32
    %354 = vector.broadcast %cst_131 : f32 to vector<4x64xf32>
    %355 = arith.mulf %353, %354 : vector<4x64xf32>
    %cst_132 = arith.constant dense<0xFF800000> : vector<4xf32>
    %356 = vector.multi_reduction <maximumf>, %355, %cst_132 [1] : vector<4x64xf32> to vector<4xf32>
    %357 = vector.shape_cast %356 : vector<4xf32> to vector<4x1xf32>
    %358 = vector.broadcast %357 : vector<4x1xf32> to vector<4x64xf32>
    %359 = arith.subf %355, %358 : vector<4x64xf32>
    %360 = math.exp %359 : vector<4x64xf32>
    %cst_133 = arith.constant dense<0.000000e+00> : vector<4xf32>
    %361 = vector.multi_reduction <add>, %360, %cst_133 [1] : vector<4x64xf32> to vector<4xf32>
    %362 = vector.shape_cast %361 : vector<4xf32> to vector<4x1xf32>
    %363 = tpu.reciprocal %362 {approx = true} : vector<4x1xf32> -> vector<4x1xf32>
    %364 = vector.broadcast %363 : vector<4x1xf32> to vector<4x64xf32>
    %365 = arith.mulf %360, %364 : vector<4x64xf32>
    %366 = vector.extract_strided_slice %269 {offsets = [0, 8], sizes = [64, 2], strides = [1, 1]} : vector<64x16xf32> to vector<64x2xf32>
    %cst_134 = arith.constant dense<0.000000e+00> : vector<4x2xf32>
    %367 = tpu.matmul %365, %366, %cst_134 {dimension_numbers = #tpu.dot_dimension_numbers<[1], [0], [0], [1], [0, 0, 1, 1], [], []>} : vector<4x64xf32>, vector<64x2xf32>, vector<4x2xf32> -> vector<4x2xf32>
    %368 = vector.extract_strided_slice %270 {offsets = [8, 0], sizes = [2, 32], strides = [1, 1]} : vector<16x32xf32> to vector<2x32xf32>
    %cst_135 = arith.constant dense<0.000000e+00> : vector<4x32xf32>
    %369 = tpu.matmul %367, %368, %cst_135 {dimension_numbers = #tpu.dot_dimension_numbers<[1], [0], [0], [1], [0, 0, 1, 1], [], []>} : vector<4x2xf32>, vector<2x32xf32>, vector<4x32xf32> -> vector<4x32xf32>
    %370 = arith.addf %350, %369 : vector<4x32xf32>
    %371 = vector.extract_strided_slice %258 {offsets = [0, 10], sizes = [4, 2], strides = [1, 1]} : vector<4x16xf32> to vector<4x2xf32>
    %372 = vector.extract_strided_slice %264 {offsets = [0, 10], sizes = [64, 2], strides = [1, 1]} : vector<64x16xf32> to vector<64x2xf32>
    %cst_136 = arith.constant dense<0.000000e+00> : vector<4x64xf32>
    %373 = tpu.matmul %371, %372, %cst_136 {dimension_numbers = #tpu.dot_dimension_numbers<[1], [1], [0], [0], [0, 0, 1, 0], [], []>} : vector<4x2xf32>, vector<64x2xf32>, vector<4x64xf32> -> vector<4x64xf32>
    %cst_137 = arith.constant 0.707106769 : f32
    %374 = vector.broadcast %cst_137 : f32 to vector<4x64xf32>
    %375 = arith.mulf %373, %374 : vector<4x64xf32>
    %cst_138 = arith.constant dense<0xFF800000> : vector<4xf32>
    %376 = vector.multi_reduction <maximumf>, %375, %cst_138 [1] : vector<4x64xf32> to vector<4xf32>
    %377 = vector.shape_cast %376 : vector<4xf32> to vector<4x1xf32>
    %378 = vector.broadcast %377 : vector<4x1xf32> to vector<4x64xf32>
    %379 = arith.subf %375, %378 : vector<4x64xf32>
    %380 = math.exp %379 : vector<4x64xf32>
    %cst_139 = arith.constant dense<0.000000e+00> : vector<4xf32>
    %381 = vector.multi_reduction <add>, %380, %cst_139 [1] : vector<4x64xf32> to vector<4xf32>
    %382 = vector.shape_cast %381 : vector<4xf32> to vector<4x1xf32>
    %383 = tpu.reciprocal %382 {approx = true} : vector<4x1xf32> -> vector<4x1xf32>
    %384 = vector.broadcast %383 : vector<4x1xf32> to vector<4x64xf32>
    %385 = arith.mulf %380, %384 : vector<4x64xf32>
    %386 = vector.extract_strided_slice %269 {offsets = [0, 10], sizes = [64, 2], strides = [1, 1]} : vector<64x16xf32> to vector<64x2xf32>
    %cst_140 = arith.constant dense<0.000000e+00> : vector<4x2xf32>
    %387 = tpu.matmul %385, %386, %cst_140 {dimension_numbers = #tpu.dot_dimension_numbers<[1], [0], [0], [1], [0, 0, 1, 1], [], []>} : vector<4x64xf32>, vector<64x2xf32>, vector<4x2xf32> -> vector<4x2xf32>
    %388 = vector.extract_strided_slice %270 {offsets = [10, 0], sizes = [2, 32], strides = [1, 1]} : vector<16x32xf32> to vector<2x32xf32>
    %cst_141 = arith.constant dense<0.000000e+00> : vector<4x32xf32>
    %389 = tpu.matmul %387, %388, %cst_141 {dimension_numbers = #tpu.dot_dimension_numbers<[1], [0], [0], [1], [0, 0, 1, 1], [], []>} : vector<4x2xf32>, vector<2x32xf32>, vector<4x32xf32> -> vector<4x32xf32>
    %390 = arith.addf %370, %389 : vector<4x32xf32>
    %391 = vector.extract_strided_slice %258 {offsets = [0, 12], sizes = [4, 2], strides = [1, 1]} : vector<4x16xf32> to vector<4x2xf32>
    %392 = vector.extract_strided_slice %264 {offsets = [0, 12], sizes = [64, 2], strides = [1, 1]} : vector<64x16xf32> to vector<64x2xf32>
    %cst_142 = arith.constant dense<0.000000e+00> : vector<4x64xf32>
    %393 = tpu.matmul %391, %392, %cst_142 {dimension_numbers = #tpu.dot_dimension_numbers<[1], [1], [0], [0], [0, 0, 1, 0], [], []>} : vector<4x2xf32>, vector<64x2xf32>, vector<4x64xf32> -> vector<4x64xf32>
    %cst_143 = arith.constant 0.707106769 : f32
    %394 = vector.broadcast %cst_143 : f32 to vector<4x64xf32>
    %395 = arith.mulf %393, %394 : vector<4x64xf32>
    %cst_144 = arith.constant dense<0xFF800000> : vector<4xf32>
    %396 = vector.multi_reduction <maximumf>, %395, %cst_144 [1] : vector<4x64xf32> to vector<4xf32>
    %397 = vector.shape_cast %396 : vector<4xf32> to vector<4x1xf32>
    %398 = vector.broadcast %397 : vector<4x1xf32> to vector<4x64xf32>
    %399 = arith.subf %395, %398 : vector<4x64xf32>
    %400 = math.exp %399 : vector<4x64xf32>
    %cst_145 = arith.constant dense<0.000000e+00> : vector<4xf32>
    %401 = vector.multi_reduction <add>, %400, %cst_145 [1] : vector<4x64xf32> to vector<4xf32>
    %402 = vector.shape_cast %401 : vector<4xf32> to vector<4x1xf32>
    %403 = tpu.reciprocal %402 {approx = true} : vector<4x1xf32> -> vector<4x1xf32>
    %404 = vector.broadcast %403 : vector<4x1xf32> to vector<4x64xf32>
    %405 = arith.mulf %400, %404 : vector<4x64xf32>
    %406 = vector.extract_strided_slice %269 {offsets = [0, 12], sizes = [64, 2], strides = [1, 1]} : vector<64x16xf32> to vector<64x2xf32>
    %cst_146 = arith.constant dense<0.000000e+00> : vector<4x2xf32>
    %407 = tpu.matmul %405, %406, %cst_146 {dimension_numbers = #tpu.dot_dimension_numbers<[1], [0], [0], [1], [0, 0, 1, 1], [], []>} : vector<4x64xf32>, vector<64x2xf32>, vector<4x2xf32> -> vector<4x2xf32>
    %408 = vector.extract_strided_slice %270 {offsets = [12, 0], sizes = [2, 32], strides = [1, 1]} : vector<16x32xf32> to vector<2x32xf32>
    %cst_147 = arith.constant dense<0.000000e+00> : vector<4x32xf32>
    %409 = tpu.matmul %407, %408, %cst_147 {dimension_numbers = #tpu.dot_dimension_numbers<[1], [0], [0], [1], [0, 0, 1, 1], [], []>} : vector<4x2xf32>, vector<2x32xf32>, vector<4x32xf32> -> vector<4x32xf32>
    %410 = arith.addf %390, %409 : vector<4x32xf32>
    %411 = vector.extract_strided_slice %258 {offsets = [0, 14], sizes = [4, 2], strides = [1, 1]} : vector<4x16xf32> to vector<4x2xf32>
    %412 = vector.extract_strided_slice %264 {offsets = [0, 14], sizes = [64, 2], strides = [1, 1]} : vector<64x16xf32> to vector<64x2xf32>
    %cst_148 = arith.constant dense<0.000000e+00> : vector<4x64xf32>
    %413 = tpu.matmul %411, %412, %cst_148 {dimension_numbers = #tpu.dot_dimension_numbers<[1], [1], [0], [0], [0, 0, 1, 0], [], []>} : vector<4x2xf32>, vector<64x2xf32>, vector<4x64xf32> -> vector<4x64xf32>
    %cst_149 = arith.constant 0.707106769 : f32
    %414 = vector.broadcast %cst_149 : f32 to vector<4x64xf32>
    %415 = arith.mulf %413, %414 : vector<4x64xf32>
    %cst_150 = arith.constant dense<0xFF800000> : vector<4xf32>
    %416 = vector.multi_reduction <maximumf>, %415, %cst_150 [1] : vector<4x64xf32> to vector<4xf32>
    %417 = vector.shape_cast %416 : vector<4xf32> to vector<4x1xf32>
    %418 = vector.broadcast %417 : vector<4x1xf32> to vector<4x64xf32>
    %419 = arith.subf %415, %418 : vector<4x64xf32>
    %420 = math.exp %419 : vector<4x64xf32>
    %cst_151 = arith.constant dense<0.000000e+00> : vector<4xf32>
    %421 = vector.multi_reduction <add>, %420, %cst_151 [1] : vector<4x64xf32> to vector<4xf32>
    %422 = vector.shape_cast %421 : vector<4xf32> to vector<4x1xf32>
    %423 = tpu.reciprocal %422 {approx = true} : vector<4x1xf32> -> vector<4x1xf32>
    %424 = vector.broadcast %423 : vector<4x1xf32> to vector<4x64xf32>
    %425 = arith.mulf %420, %424 : vector<4x64xf32>
    %426 = vector.extract_strided_slice %269 {offsets = [0, 14], sizes = [64, 2], strides = [1, 1]} : vector<64x16xf32> to vector<64x2xf32>
    %cst_152 = arith.constant dense<0.000000e+00> : vector<4x2xf32>
    %427 = tpu.matmul %425, %426, %cst_152 {dimension_numbers = #tpu.dot_dimension_numbers<[1], [0], [0], [1], [0, 0, 1, 1], [], []>} : vector<4x64xf32>, vector<64x2xf32>, vector<4x2xf32> -> vector<4x2xf32>
    %428 = vector.extract_strided_slice %270 {offsets = [14, 0], sizes = [2, 32], strides = [1, 1]} : vector<16x32xf32> to vector<2x32xf32>
    %cst_153 = arith.constant dense<0.000000e+00> : vector<4x32xf32>
    %429 = tpu.matmul %427, %428, %cst_153 {dimension_numbers = #tpu.dot_dimension_numbers<[1], [0], [0], [1], [0, 0, 1, 1], [], []>} : vector<4x2xf32>, vector<2x32xf32>, vector<4x32xf32> -> vector<4x32xf32>
    %430 = arith.addf %410, %429 : vector<4x32xf32>
    %431 = vector.broadcast %271 : vector<1x32xf32> to vector<4x32xf32>
    %432 = arith.addf %430, %431 : vector<4x32xf32>
    %433 = arith.addf %252, %432 : vector<4x32xf32>
    %434 = vector.extract_strided_slice %1 {offsets = [1, 0], sizes = [1, 32], strides = [1, 1]} : vector<3x32xf32> to vector<1x32xf32>
    %435 = vector.extract_strided_slice %2 {offsets = [1, 0], sizes = [1, 32], strides = [1, 1]} : vector<3x32xf32> to vector<1x32xf32>
    %cst_154 = arith.constant dense<0.000000e+00> : vector<4xf32>
    %436 = vector.multi_reduction <add>, %433, %cst_154 [1] : vector<4x32xf32> to vector<4xf32>
    %437 = vector.shape_cast %436 : vector<4xf32> to vector<4x1xf32>
    %cst_155 = arith.constant 3.200000e+01 : f32
    %438 = vector.broadcast %cst_155 : f32 to vector<4x1xf32>
    %439 = arith.divf %437, %438 : vector<4x1xf32>
    %440 = vector.broadcast %439 : vector<4x1xf32> to vector<4x32xf32>
    %441 = arith.subf %433, %440 : vector<4x32xf32>
    %442 = arith.mulf %441, %441 : vector<4x32xf32>
    %cst_156 = arith.constant dense<0.000000e+00> : vector<4xf32>
    %443 = vector.multi_reduction <add>, %442, %cst_156 [1] : vector<4x32xf32> to vector<4xf32>
    %444 = vector.shape_cast %443 : vector<4xf32> to vector<4x1xf32>
    %cst_157 = arith.constant 3.200000e+01 : f32
    %445 = vector.broadcast %cst_157 : f32 to vector<4x1xf32>
    %446 = arith.divf %444, %445 : vector<4x1xf32>
    %cst_158 = arith.constant 9.99999974E-6 : f32
    %447 = vector.broadcast %cst_158 : f32 to vector<4x1xf32>
    %448 = arith.addf %446, %447 : vector<4x1xf32>
    %449 = math.rsqrt %448 : vector<4x1xf32>
    %450 = vector.broadcast %449 : vector<4x1xf32> to vector<4x32xf32>
    %451 = arith.mulf %441, %450 : vector<4x32xf32>
    %452 = vector.broadcast %434 : vector<1x32xf32> to vector<4x32xf32>
    %453 = arith.mulf %451, %452 : vector<4x32xf32>
    %454 = vector.broadcast %435 : vector<1x32xf32> to vector<4x32xf32>
    %455 = arith.addf %453, %454 : vector<4x32xf32>
    %c0_159 = arith.constant 0 : index
    %c0_160 = arith.constant 0 : index
    %456 = vector.load %arg22[%c0_159, %c0_160] : memref<32x2048xf32, #tpu.memory_space<vmem>>, vector<32x2048xf32>
    %cst_161 = arith.constant dense<0.000000e+00> : vector<4x2048xf32>
    %457 = tpu.matmul %455, %456, %cst_161 {dimension_numbers = #tpu.dot_dimension_numbers<[1], [0], [0], [1], [0, 0, 1, 1], [], []>} : vector<4x32xf32>, vector<32x2048xf32>, vector<4x2048xf32> -> vector<4x2048xf32>
    %c0_162 = arith.constant 0 : index
    %c0_163 = arith.constant 0 : index
    %458 = vector.load %arg23[%c0_162, %c0_163] : memref<1x2048xf32, #tpu.memory_space<vmem>>, vector<1x2048xf32>
    %459 = vector.broadcast %458 : vector<1x2048xf32> to vector<4x2048xf32>
    %460 = arith.addf %457, %459 : vector<4x2048xf32>
    %cst_164 = arith.constant 5.000000e-01 : f32
    %461 = vector.broadcast %cst_164 : f32 to vector<4x2048xf32>
    %462 = arith.mulf %461, %460 : vector<4x2048xf32>
    %cst_165 = arith.constant 0.707106769 : f32
    %463 = vector.broadcast %cst_165 : f32 to vector<4x2048xf32>
    %464 = arith.mulf %460, %463 : vector<4x2048xf32>
    %465 = math.erf %464 : vector<4x2048xf32>
    %cst_166 = arith.constant 1.000000e+00 : f32
    %466 = vector.broadcast %cst_166 : f32 to vector<4x2048xf32>
    %467 = arith.addf %466, %465 : vector<4x2048xf32>
    %468 = arith.mulf %462, %467 : vector<4x2048xf32>
    %c0_167 = arith.constant 0 : index
    %c0_168 = arith.constant 0 : index
    %469 = vector.load %arg24[%c0_167, %c0_168] : memref<2048x32xf32, #tpu.memory_space<vmem>>, vector<2048x32xf32>
    %cst_169 = arith.constant dense<0.000000e+00> : vector<4x32xf32>
    %470 = tpu.matmul %468, %469, %cst_169 {dimension_numbers = #tpu.dot_dimension_numbers<[1], [0], [0], [1], [0, 0, 1, 1], [], []>} : vector<4x2048xf32>, vector<2048x32xf32>, vector<4x32xf32> -> vector<4x32xf32>
    %c0_170 = arith.constant 0 : index
    %c0_171 = arith.constant 0 : index
    %471 = vector.load %arg25[%c0_170, %c0_171] : memref<1x32xf32, #tpu.memory_space<vmem>>, vector<1x32xf32>
    %472 = vector.broadcast %471 : vector<1x32xf32> to vector<4x32xf32>
    %473 = arith.addf %470, %472 : vector<4x32xf32>
    %474 = arith.addf %455, %473 : vector<4x32xf32>
    %475 = vector.extract_strided_slice %1 {offsets = [2, 0], sizes = [1, 32], strides = [1, 1]} : vector<3x32xf32> to vector<1x32xf32>
    %476 = vector.extract_strided_slice %2 {offsets = [2, 0], sizes = [1, 32], strides = [1, 1]} : vector<3x32xf32> to vector<1x32xf32>
    %cst_172 = arith.constant dense<0.000000e+00> : vector<4xf32>
    %477 = vector.multi_reduction <add>, %474, %cst_172 [1] : vector<4x32xf32> to vector<4xf32>
    %478 = vector.shape_cast %477 : vector<4xf32> to vector<4x1xf32>
    %cst_173 = arith.constant 3.200000e+01 : f32
    %479 = vector.broadcast %cst_173 : f32 to vector<4x1xf32>
    %480 = arith.divf %478, %479 : vector<4x1xf32>
    %481 = vector.broadcast %480 : vector<4x1xf32> to vector<4x32xf32>
    %482 = arith.subf %474, %481 : vector<4x32xf32>
    %483 = arith.mulf %482, %482 : vector<4x32xf32>
    %cst_174 = arith.constant dense<0.000000e+00> : vector<4xf32>
    %484 = vector.multi_reduction <add>, %483, %cst_174 [1] : vector<4x32xf32> to vector<4xf32>
    %485 = vector.shape_cast %484 : vector<4xf32> to vector<4x1xf32>
    %cst_175 = arith.constant 3.200000e+01 : f32
    %486 = vector.broadcast %cst_175 : f32 to vector<4x1xf32>
    %487 = arith.divf %485, %486 : vector<4x1xf32>
    %cst_176 = arith.constant 9.99999974E-6 : f32
    %488 = vector.broadcast %cst_176 : f32 to vector<4x1xf32>
    %489 = arith.addf %487, %488 : vector<4x1xf32>
    %490 = math.rsqrt %489 : vector<4x1xf32>
    %491 = vector.broadcast %490 : vector<4x1xf32> to vector<4x32xf32>
    %492 = arith.mulf %482, %491 : vector<4x32xf32>
    %493 = vector.broadcast %475 : vector<1x32xf32> to vector<4x32xf32>
    %494 = arith.mulf %492, %493 : vector<4x32xf32>
    %495 = vector.broadcast %476 : vector<1x32xf32> to vector<4x32xf32>
    %496 = arith.addf %494, %495 : vector<4x32xf32>
    %497 = arith.addf %28, %496 : vector<4x32xf32>
    %c0_177 = arith.constant 0 : index
    %c0_178 = arith.constant 0 : index
    %c0_179 = arith.constant 0 : index
    %498 = vector.load %arg2[%c0_177, %c0_178, %c0_179] : memref<1x4x1xf32, #tpu.memory_space<vmem>>, vector<1x4x1xf32>
    %499 = vector.shape_cast %498 : vector<1x4x1xf32> to vector<4x1xf32>
    %cst_180 = arith.constant -1.000000e+00 : f32
    %500 = vector.broadcast %cst_180 : f32 to vector<4x1xf32>
    %501 = arith.cmpf oeq, %499, %500 : vector<4x1xf32>
    %502 = arith.extui %501 : vector<4x1xi1> to vector<4x1xi32>
    %503 = arith.sitofp %502 : vector<4x1xi32> to vector<4x1xf32>
    %cst_181 = arith.constant 0.000000e+00 : f32
    %504 = vector.broadcast %cst_181 : f32 to vector<4x1xf32>
    %505 = arith.cmpf oeq, %499, %504 : vector<4x1xf32>
    %506 = arith.extui %505 : vector<4x1xi1> to vector<4x1xi32>
    %507 = arith.sitofp %506 : vector<4x1xi32> to vector<4x1xf32>
    %cst_182 = arith.constant 1.000000e+00 : f32
    %508 = vector.broadcast %cst_182 : f32 to vector<4x1xf32>
    %509 = arith.cmpf oeq, %499, %508 : vector<4x1xf32>
    %510 = arith.extui %509 : vector<4x1xi1> to vector<4x1xi32>
    %511 = arith.sitofp %510 : vector<4x1xi32> to vector<4x1xf32>
    %cst_183 = arith.constant 1.000000e+00 : f32
    %512 = vector.broadcast %cst_183 : f32 to vector<4x1xf32>
    %513 = arith.subf %512, %503 : vector<4x1xf32>
    %514 = vector.broadcast %513 : vector<4x1xf32> to vector<4x32xf32>
    %515 = arith.mulf %514, %497 : vector<4x32xf32>
    %516 = vector.extract_strided_slice %3 {offsets = [0, 0], sizes = [1, 32], strides = [1, 1]} : vector<3x32xf32> to vector<1x32xf32>
    %517 = vector.broadcast %503 : vector<4x1xf32> to vector<4x32xf32>
    %518 = vector.broadcast %516 : vector<1x32xf32> to vector<4x32xf32>
    %519 = arith.mulf %517, %518 : vector<4x32xf32>
    %520 = arith.addf %515, %519 : vector<4x32xf32>
    %521 = vector.extract_strided_slice %3 {offsets = [1, 0], sizes = [1, 32], strides = [1, 1]} : vector<3x32xf32> to vector<1x32xf32>
    %522 = vector.broadcast %507 : vector<4x1xf32> to vector<4x32xf32>
    %523 = vector.broadcast %521 : vector<1x32xf32> to vector<4x32xf32>
    %524 = arith.mulf %522, %523 : vector<4x32xf32>
    %525 = arith.addf %520, %524 : vector<4x32xf32>
    %526 = vector.extract_strided_slice %3 {offsets = [2, 0], sizes = [1, 32], strides = [1, 1]} : vector<3x32xf32> to vector<1x32xf32>
    %527 = vector.broadcast %511 : vector<4x1xf32> to vector<4x32xf32>
    %528 = vector.broadcast %526 : vector<1x32xf32> to vector<4x32xf32>
    %529 = arith.mulf %527, %528 : vector<4x32xf32>
    %530 = arith.addf %525, %529 : vector<4x32xf32>
    %c0_184 = arith.constant 0 : index
    %c0_185 = arith.constant 0 : index
    %c0_186 = arith.constant 0 : index
    %531 = vector.load %arg27[%c0_184, %c0_185, %c0_186] : memref<1x4x32xf32, #tpu.memory_space<vmem>>, vector<1x4x32xf32>
    %532 = vector.shape_cast %531 : vector<1x4x32xf32> to vector<4x32xf32>
    %533 = vector.shape_cast %530 : vector<4x32xf32> to vector<1x4x32xf32>
    tpu.vector_store %arg27[%c0_184, %c0_185, %c0_186], %533 {strides = array<i32>} : memref<1x4x32xf32, #tpu.memory_space<vmem>>, vector<1x4x32xf32>,
    return
  }
  func.func @transform_0(%arg0: i32) -> (i32, i32, i32) {
    %c0_i32 = arith.constant 0 : i32
    %c0_i32_0 = arith.constant 0 : i32
    %c0_i32_1 = arith.constant 0 : i32
    return %arg0, %c0_i32, %c0_i32_0 : i32, i32, i32
  }
  func.func @transform_1(%arg0: i32) -> (i32, i32, i32) {
    %c0_i32 = arith.constant 0 : i32
    %c0_i32_0 = arith.constant 0 : i32
    %c0_i32_1 = arith.constant 0 : i32
    return %arg0, %c0_i32, %c0_i32_0 : i32, i32, i32
  }
  func.func @transform_2(%arg0: i32) -> (i32, i32) {
    %c0_i32 = arith.constant 0 : i32
    %c0_i32_0 = arith.constant 0 : i32
    %c0_i32_1 = arith.constant 0 : i32
    return %c0_i32, %c0_i32_0 : i32, i32
  }
  func.func @transform_3(%arg0: i32) -> (i32, i32) {
    %c0_i32 = arith.constant 0 : i32
    %c0_i32_0 = arith.constant 0 : i32
    %c0_i32_1 = arith.constant 0 : i32
    return %c0_i32, %c0_i32_0 : i32, i32
  }
  func.func @transform_4(%arg0: i32) -> (i32, i32) {
    %c0_i32 = arith.constant 0 : i32
    %c0_i32_0 = arith.constant 0 : i32
    %c0_i32_1 = arith.constant 0 : i32
    return %c0_i32, %c0_i32_0 : i32, i32
  }
  func.func @transform_5(%arg0: i32) -> (i32, i32) {
    %c0_i32 = arith.constant 0 : i32
    %c0_i32_0 = arith.constant 0 : i32
    %c0_i32_1 = arith.constant 0 : i32
    return %c0_i32, %c0_i32_0 : i32, i32
  }
  func.func @transform_6(%arg0: i32) -> (i32, i32) {
    %c0_i32 = arith.constant 0 : i32
    %c0_i32_0 = arith.constant 0 : i32
    %c0_i32_1 = arith.constant 0 : i32
    return %c0_i32, %c0_i32_0 : i32, i32
  }
  func.func @transform_7(%arg0: i32) -> (i32, i32) {
    %c0_i32 = arith.constant 0 : i32
    %c0_i32_0 = arith.constant 0 : i32
    %c0_i32_1 = arith.constant 0 : i32
    return %c0_i32, %c0_i32_0 : i32, i32
  }
  func.func @transform_8(%arg0: i32) -> (i32, i32) {
    %c0_i32 = arith.constant 0 : i32
    %c0_i32_0 = arith.constant 0 : i32
    %c0_i32_1 = arith.constant 0 : i32
    return %c0_i32, %c0_i32_0 : i32, i32
  }
  func.func @transform_9(%arg0: i32) -> (i32, i32) {
    %c0_i32 = arith.constant 0 : i32
    %c0_i32_0 = arith.constant 0 : i32
    %c0_i32_1 = arith.constant 0 : i32
    return %c0_i32, %c0_i32_0 : i32, i32
  }
  func.func @transform_10(%arg0: i32) -> (i32, i32) {
    %c0_i32 = arith.constant 0 : i32
    %c0_i32_0 = arith.constant 0 : i32
    %c0_i32_1 = arith.constant 0 : i32
    return %c0_i32, %c0_i32_0 : i32, i32
  }
  func.func @transform_11(%arg0: i32) -> (i32, i32) {
    %c0_i32 = arith.constant 0 : i32
    %c0_i32_0 = arith.constant 0 : i32
    %c0_i32_1 = arith.constant 0 : i32
    return %c0_i32, %c0_i32_0 : i32, i32
  }
  func.func @transform_12(%arg0: i32) -> (i32, i32) {
    %c0_i32 = arith.constant 0 : i32
    %c0_i32_0 = arith.constant 0 : i32
    %c0_i32_1 = arith.constant 0 : i32
    return %c0_i32, %c0_i32_0 : i32, i32
  }
  func.func @transform_13(%arg0: i32) -> (i32, i32) {
    %c0_i32 = arith.constant 0 : i32
    %c0_i32_0 = arith.constant 0 : i32
    %c0_i32_1 = arith.constant 0 : i32
    return %c0_i32, %c0_i32_0 : i32, i32
  }
  func.func @transform_14(%arg0: i32) -> (i32, i32) {
    %c0_i32 = arith.constant 0 : i32
    %c0_i32_0 = arith.constant 0 : i32
    %c0_i32_1 = arith.constant 0 : i32
    return %c0_i32, %c0_i32_0 : i32, i32
  }
  func.func @transform_15(%arg0: i32) -> (i32, i32) {
    %c0_i32 = arith.constant 0 : i32
    %c0_i32_0 = arith.constant 0 : i32
    %c0_i32_1 = arith.constant 0 : i32
    return %c0_i32, %c0_i32_0 : i32, i32
  }
  func.func @transform_16(%arg0: i32) -> (i32, i32) {
    %c0_i32 = arith.constant 0 : i32
    %c0_i32_0 = arith.constant 0 : i32
    %c0_i32_1 = arith.constant 0 : i32
    return %c0_i32, %c0_i32_0 : i32, i32
  }
  func.func @transform_17(%arg0: i32) -> (i32, i32) {
    %c0_i32 = arith.constant 0 : i32
    %c0_i32_0 = arith.constant 0 : i32
    %c0_i32_1 = arith.constant 0 : i32
    return %c0_i32, %c0_i32_0 : i32, i32
  }
  func.func @transform_18(%arg0: i32) -> (i32, i32) {
    %c0_i32 = arith.constant 0 : i32
    %c0_i32_0 = arith.constant 0 : i32
    %c0_i32_1 = arith.constant 0 : i32
    return %c0_i32, %c0_i32_0 : i32, i32
  }
  func.func @transform_19(%arg0: i32) -> (i32, i32) {
    %c0_i32 = arith.constant 0 : i32
    %c0_i32_0 = arith.constant 0 : i32
    %c0_i32_1 = arith.constant 0 : i32
    return %c0_i32, %c0_i32_0 : i32, i32
  }
  func.func @transform_20(%arg0: i32) -> (i32, i32) {
    %c0_i32 = arith.constant 0 : i32
    %c0_i32_0 = arith.constant 0 : i32
    %c0_i32_1 = arith.constant 0 : i32
    return %c0_i32, %c0_i32_0 : i32, i32
  }
  func.func @transform_21(%arg0: i32) -> (i32, i32) {
    %c0_i32 = arith.constant 0 : i32
    %c0_i32_0 = arith.constant 0 : i32
    %c0_i32_1 = arith.constant 0 : i32
    return %c0_i32, %c0_i32_0 : i32, i32
  }
  func.func @transform_22(%arg0: i32) -> (i32, i32) {
    %c0_i32 = arith.constant 0 : i32
    %c0_i32_0 = arith.constant 0 : i32
    %c0_i32_1 = arith.constant 0 : i32
    return %c0_i32, %c0_i32_0 : i32, i32
  }
  func.func @transform_23(%arg0: i32) -> (i32, i32) {
    %c0_i32 = arith.constant 0 : i32
    %c0_i32_0 = arith.constant 0 : i32
    %c0_i32_1 = arith.constant 0 : i32
    return %c0_i32, %c0_i32_0 : i32, i32
  }
  func.func @transform_24(%arg0: i32) -> (i32, i32) {
    %c0_i32 = arith.constant 0 : i32
    %c0_i32_0 = arith.constant 0 : i32
    %c0_i32_1 = arith.constant 0 : i32
    return %c0_i32, %c0_i32_0 : i32, i32
  }
  func.func @transform_25(%arg0: i32) -> (i32, i32) {
    %c0_i32 = arith.constant 0 : i32
    %c0_i32_0 = arith.constant 0 : i32
    %c0_i32_1 = arith.constant 0 : i32
    return %c0_i32, %c0_i32_0 : i32, i32
  }
  func.func @transform_26(%arg0: i32) -> (i32, i32, i32) {
    %c0_i32 = arith.constant 0 : i32
    %c0_i32_0 = arith.constant 0 : i32
    %c0_i32_1 = arith.constant 0 : i32
    return %arg0, %c0_i32, %c0_i32_0 : i32, i32, i32
  }
}

module attributes {stable_mosaic.version = 11 : i64} {
  func.func @_mask_stage1_kernel(%arg0: i32, %arg1: memref<1x256x4xf32, #tpu.memory_space<vmem>>, %arg2: memref<4x4xf32, #tpu.memory_space<vmem>>, %arg3: memref<1x4xf32, #tpu.memory_space<vmem>>, %arg4: memref<1x4xf32, #tpu.memory_space<vmem>>, %arg5: memref<1x4xf32, #tpu.memory_space<vmem>>, %arg6: memref<1x256x4xf32, #tpu.memory_space<vmem>>) attributes {dimension_semantics = [#tpu.dimension_semantics<parallel>], iteration_bounds = array<i64: 1>, scalar_prefetch = 0 : i64, scratch_operands = 0 : i64, tpu.core_type = #tpu.core_type<tc>, window_params = [{transform_indices = @transform_0, window_bounds = array<i64: 1, 256, 4>}, {pipeline_mode = #tpu.pipeline_mode<synchronous>, transform_indices = @transform_1, window_bounds = array<i64: 4, 4>}, {pipeline_mode = #tpu.pipeline_mode<synchronous>, transform_indices = @transform_2, window_bounds = array<i64: 1, 4>}, {pipeline_mode = #tpu.pipeline_mode<synchronous>, transform_indices = @transform_3, window_bounds = array<i64: 1, 4>}, {pipeline_mode = #tpu.pipeline_mode<synchronous>, transform_indices = @transform_4, window_bounds = array<i64: 1, 4>}, {transform_indices = @transform_5, window_bounds = array<i64: 1, 256, 4>}]} {
    %c0 = arith.constant 0 : index
    %c0_0 = arith.constant 0 : index
    %c0_1 = arith.constant 0 : index
    %0 = vector.load %arg1[%c0, %c0_0, %c0_1] : memref<1x256x4xf32, #tpu.memory_space<vmem>>, vector<1x256x4xf32>
    %1 = vector.shape_cast %0 : vector<1x256x4xf32> to vector<256x4xf32>
    %c0_2 = arith.constant 0 : index
    %c0_3 = arith.constant 0 : index
    %2 = vector.load %arg2[%c0_2, %c0_3] : memref<4x4xf32, #tpu.memory_space<vmem>>, vector<4x4xf32>
    %cst = arith.constant dense<0.000000e+00> : vector<256x4xf32>
    %3 = tpu.matmul %1, %2, %cst {dimension_numbers = #tpu.dot_dimension_numbers<[1], [0], [0], [1], [0, 0, 1, 1], [], []>} : vector<256x4xf32>, vector<4x4xf32>, vector<256x4xf32> -> vector<256x4xf32>
    %c0_4 = arith.constant 0 : index
    %c0_5 = arith.constant 0 : index
    %4 = vector.load %arg3[%c0_4, %c0_5] : memref<1x4xf32, #tpu.memory_space<vmem>>, vector<1x4xf32>
    %5 = vector.broadcast %4 : vector<1x4xf32> to vector<256x4xf32>
    %6 = arith.addf %3, %5 : vector<256x4xf32>
    %c0_6 = arith.constant 0 : index
    %c0_7 = arith.constant 0 : index
    %7 = vector.load %arg4[%c0_6, %c0_7] : memref<1x4xf32, #tpu.memory_space<vmem>>, vector<1x4xf32>
    %c0_8 = arith.constant 0 : index
    %c0_9 = arith.constant 0 : index
    %8 = vector.load %arg5[%c0_8, %c0_9] : memref<1x4xf32, #tpu.memory_space<vmem>>, vector<1x4xf32>
    %cst_10 = arith.constant dense<0.000000e+00> : vector<256xf32>
    %9 = vector.multi_reduction <add>, %6, %cst_10 [1] : vector<256x4xf32> to vector<256xf32>
    %10 = vector.shape_cast %9 : vector<256xf32> to vector<256x1xf32>
    %cst_11 = arith.constant 4.000000e+00 : f32
    %11 = vector.broadcast %cst_11 : f32 to vector<256x1xf32>
    %12 = arith.divf %10, %11 : vector<256x1xf32>
    %13 = vector.broadcast %12 : vector<256x1xf32> to vector<256x4xf32>
    %14 = arith.subf %6, %13 : vector<256x4xf32>
    %15 = arith.mulf %14, %14 : vector<256x4xf32>
    %cst_12 = arith.constant dense<0.000000e+00> : vector<256xf32>
    %16 = vector.multi_reduction <add>, %15, %cst_12 [1] : vector<256x4xf32> to vector<256xf32>
    %17 = vector.shape_cast %16 : vector<256xf32> to vector<256x1xf32>
    %cst_13 = arith.constant 4.000000e+00 : f32
    %18 = vector.broadcast %cst_13 : f32 to vector<256x1xf32>
    %19 = arith.divf %17, %18 : vector<256x1xf32>
    %cst_14 = arith.constant 9.99999997E-7 : f32
    %20 = vector.broadcast %cst_14 : f32 to vector<256x1xf32>
    %21 = arith.addf %19, %20 : vector<256x1xf32>
    %22 = math.rsqrt %21 : vector<256x1xf32>
    %23 = vector.broadcast %22 : vector<256x1xf32> to vector<256x4xf32>
    %24 = arith.mulf %14, %23 : vector<256x4xf32>
    %25 = vector.broadcast %7 : vector<1x4xf32> to vector<256x4xf32>
    %26 = arith.mulf %24, %25 : vector<256x4xf32>
    %27 = vector.broadcast %8 : vector<1x4xf32> to vector<256x4xf32>
    %28 = arith.addf %26, %27 : vector<256x4xf32>
    %cst_15 = arith.constant 5.000000e-01 : f32
    %29 = vector.broadcast %cst_15 : f32 to vector<256x4xf32>
    %30 = arith.mulf %29, %28 : vector<256x4xf32>
    %cst_16 = arith.constant 0.707106769 : f32
    %31 = vector.broadcast %cst_16 : f32 to vector<256x4xf32>
    %32 = arith.mulf %28, %31 : vector<256x4xf32>
    %33 = math.erf %32 : vector<256x4xf32>
    %cst_17 = arith.constant 1.000000e+00 : f32
    %34 = vector.broadcast %cst_17 : f32 to vector<256x4xf32>
    %35 = arith.addf %34, %33 : vector<256x4xf32>
    %36 = arith.mulf %30, %35 : vector<256x4xf32>
    %c0_18 = arith.constant 0 : index
    %c0_19 = arith.constant 0 : index
    %c0_20 = arith.constant 0 : index
    %37 = vector.load %arg6[%c0_18, %c0_19, %c0_20] : memref<1x256x4xf32, #tpu.memory_space<vmem>>, vector<1x256x4xf32>
    %38 = vector.shape_cast %37 : vector<1x256x4xf32> to vector<256x4xf32>
    %39 = vector.shape_cast %36 : vector<256x4xf32> to vector<1x256x4xf32>
    tpu.vector_store %arg6[%c0_18, %c0_19, %c0_20], %39 {strides = array<i32>} : memref<1x256x4xf32, #tpu.memory_space<vmem>>, vector<1x256x4xf32>,
    return
  }
  func.func @transform_0(%arg0: i32) -> (i32, i32, i32) {
    %c0_i32 = arith.constant 0 : i32
    %c0_i32_0 = arith.constant 0 : i32
    %c0_i32_1 = arith.constant 0 : i32
    return %arg0, %c0_i32, %c0_i32_0 : i32, i32, i32
  }
  func.func @transform_1(%arg0: i32) -> (i32, i32) {
    %c0_i32 = arith.constant 0 : i32
    %c0_i32_0 = arith.constant 0 : i32
    %c0_i32_1 = arith.constant 0 : i32
    return %c0_i32, %c0_i32_0 : i32, i32
  }
  func.func @transform_2(%arg0: i32) -> (i32, i32) {
    %c0_i32 = arith.constant 0 : i32
    %c0_i32_0 = arith.constant 0 : i32
    %c0_i32_1 = arith.constant 0 : i32
    return %c0_i32, %c0_i32_0 : i32, i32
  }
  func.func @transform_3(%arg0: i32) -> (i32, i32) {
    %c0_i32 = arith.constant 0 : i32
    %c0_i32_0 = arith.constant 0 : i32
    %c0_i32_1 = arith.constant 0 : i32
    return %c0_i32, %c0_i32_0 : i32, i32
  }
  func.func @transform_4(%arg0: i32) -> (i32, i32) {
    %c0_i32 = arith.constant 0 : i32
    %c0_i32_0 = arith.constant 0 : i32
    %c0_i32_1 = arith.constant 0 : i32
    return %c0_i32, %c0_i32_0 : i32, i32
  }
  func.func @transform_5(%arg0: i32) -> (i32, i32, i32) {
    %c0_i32 = arith.constant 0 : i32
    %c0_i32_0 = arith.constant 0 : i32
    %c0_i32_1 = arith.constant 0 : i32
    return %arg0, %c0_i32, %c0_i32_0 : i32, i32, i32
  }
}

</mosaic_0001>

<llo_original>
// kernel: prompt_encoder_forward.5
$region0: #{prompt_encoder_forward.5}
  #allocation0 [shape = 'u32[]', space=smem, size = 0x4, offset = 0x4, fixed_abs, tag = 'smem constant byte address 0x4 - core index']
  #allocation1 [shape = 'u32[72,128]{1,0:T(1,128)}', space=vmem, size = 0x9000, scoped, tag = 'internal scratch']
  %s0 = inlined_call_operand.vmem [shape: f32[1,64,16], index: 0, kind: input, shape index: {}]
  %s1 = inlined_call_operand.vmem [shape: f32[16,16], index: 1, kind: input, shape index: {}]
  %s2 = inlined_call_operand.vmem [shape: f32[1,16], index: 2, kind: input, shape index: {}]
  %s3 = inlined_call_operand.vmem [shape: f32[1,16], index: 3, kind: input, shape index: {}]
  %s4 = inlined_call_operand.vmem [shape: f32[1,16], index: 4, kind: input, shape index: {}]
  %s5 = inlined_call_operand.vmem [shape: f32[16,32], index: 5, kind: input, shape index: {}]
  %s6 = inlined_call_operand.vmem [shape: f32[1,32], index: 6, kind: input, shape index: {}]
  %s7 = inlined_call_operand.hbm [shape: f32[1,64,32], index: 7, kind: output, shape index: {}]
  %s8 = sld [smem:[#allocation0]]
  $region38: #{prompt_encoder_forward.5} parent=0
    _
  %s10 = ssub.s32 1, %s8
  %s11 = scalar_select 0, %s10, %s8
  $region1: #{prompt_encoder_forward.5} parent=0
    #allocation2 [shape = 'u8[32768]{0}', space=vmem, size = 0x8000, scoped, tag = 'output window, operand 0, single buffered']
    #allocation3 [shape = 's32[1]{0}', space=sflag, size = 0x4, scoped, tag = 'scoped memory for prompt_encoder_forward.5']
    %12 = vsyncpa [#allocation3], 0
    // Predicated region
    $region2: #{prompt_encoder_forward.5} parent=1 // pred_check
      _
    $region3: #{prompt_encoder_forward.5} parent=1 // pred_check_branch
      %14 = sbr.rel (0) target = $region5
    $region4: #{prompt_encoder_forward.5} parent=1 // pred_region
      _
    $region5: #{prompt_encoder_forward.5} parent=1 // pred_fallthru
      _
    // Predicated region
    $region6: #{prompt_encoder_forward.5} parent=1 // pred_check
      _
    $region7: #{prompt_encoder_forward.5} parent=1 // pred_check_branch
      %16 = sbr.rel (0) target = $region9
    $region8: #{prompt_encoder_forward.5} parent=1 // pred_region
      _
    $region9: #{prompt_encoder_forward.5} parent=1 // pred_fallthru
      _
    // Predicated region
    $region10: #{prompt_encoder_forward.5} parent=1 // pred_check
      _
    $region11: #{prompt_encoder_forward.5} parent=1 // pred_check_branch
      %18 = sbr.rel (0) target = $region13
    $region12: #{prompt_encoder_forward.5} parent=1 // pred_region
      _
    $region13: #{prompt_encoder_forward.5} parent=1 // pred_fallthru
      _
    // Predicated region
    $region14: #{prompt_encoder_forward.5} parent=1 // pred_check
      _
    $region15: #{prompt_encoder_forward.5} parent=1 // pred_check_branch
      %20 = sbr.rel (0) target = $region17
    $region16: #{prompt_encoder_forward.5} parent=1 // pred_region
      _
    $region17: #{prompt_encoder_forward.5} parent=1 // pred_fallthru
      _
    // Predicated region
    $region18: #{prompt_encoder_forward.5} parent=1 // pred_check
      _
    $region19: #{prompt_encoder_forward.5} parent=1 // pred_check_branch
      %22 = sbr.rel (0) target = $region21
    $region20: #{prompt_encoder_forward.5} parent=1 // pred_region
      _
    $region21: #{prompt_encoder_forward.5} parent=1 // pred_fallthru
      _
    // Predicated region
    $region22: #{prompt_encoder_forward.5} parent=1 // pred_check
      _
    $region23: #{prompt_encoder_forward.5} parent=1 // pred_check_branch
      %24 = sbr.rel (0) target = $region25
    $region24: #{prompt_encoder_forward.5} parent=1 // pred_region
      _
    $region25: #{prompt_encoder_forward.5} parent=1 // pred_fallthru
      _
    // Predicated region
    $region26: #{prompt_encoder_forward.5} parent=1 // pred_check
      _
    $region27: #{prompt_encoder_forward.5} parent=1 // pred_check_branch
      %26 = sbr.rel (0) target = $region29
    $region28: #{prompt_encoder_forward.5} parent=1 // pred_region
      _
    $region29: #{prompt_encoder_forward.5} parent=1 // pred_fallthru
      _
    %v27 = vld [vmem:[%s0] sm:$0xff]
    %v28 = vld [vmem:[%s0 + $0x8] sm:$0xff]
    %v29 = vld [vmem:[%s0 + $0x10] sm:$0xff]
    %v30 = vld [vmem:[%s0 + $0x18] sm:$0xff]
    %v31 = vld [vmem:[%s0 + $0x20] sm:$0xff]
    %v32 = vld [vmem:[%s0 + $0x28] sm:$0xff]
    %v33 = vld [vmem:[%s0 + $0x30] sm:$0xff]
    %v34 = vld [vmem:[%s0 + $0x38] sm:$0xff]
    %v35 = vld [vmem:[%s1] sm:$0xff]
    %v36 = vld [vmem:[%s1 + $0x8] sm:$0xff]
    %v37 = vld [vmem:[%s2] sm:$0x1]
    %v39 = vperm.slane %v37, 0
    %vm41 = vcmask 130048
    %v43 = vsel %vm41, %v27, 0
    %v46 = vsel %vm41, %v28, 0
    %v49 = vsel %vm41, %v29, 0
    %v52 = vsel %vm41, %v30, 0
    %v55 = vsel %vm41, %v31, 0
    %v58 = vsel %vm41, %v32, 0
    %v61 = vsel %vm41, %v33, 0
    %v64 = vsel %vm41, %v34, 0
    %66 = vmatpush.msra.mxu0 0.0
    %67 = vmatpush.msra.mxu0 0.0
    %68 = vmatpush.msra.mxu0 0.0
    %69 = vmatpush.msra.mxu0 0.0
    %70 = vmatpush.msra.mxu0 0.0
    %71 = vmatpush.msra.mxu0 0.0
    %72 = vmatpush.msra.mxu0 0.0
    %73 = vmatpush.msra.mxu0 0.0
    %74 = vmatpush.msra.mxu0 0.0
    %75 = vmatpush.msra.mxu0 0.0
    %76 = vmatpush.msra.mxu0 0.0
    %77 = vmatpush.msra.mxu0 0.0
    %78 = vmatpush.msra.mxu0 0.0
    %79 = vmatpush.msra.mxu0 0.0
    %80 = vmatpush.msra.mxu0 %v36
    %81 = vmatpush.msra.mxu0 %v35
    %82 = vmatmul.f32.gmra.mxu0 %v43
    %v83 = vpop.f32.mrf.mxu0
    %v84 = vadd.f32 %v39, %v83
    %85 = vmatmul.f32.gmra.mxu0 %v46
    %v86 = vpop.f32.mrf.mxu0
    %v87 = vadd.f32 %v39, %v86
    %88 = vmatmul.f32.gmra.mxu0 %v49
    %v89 = vpop.f32.mrf.mxu0
    %v90 = vadd.f32 %v39, %v89
    %91 = vmatmul.f32.gmra.mxu0 %v52
    %v92 = vpop.f32.mrf.mxu0
    %v93 = vadd.f32 %v39, %v92
    %94 = vmatmul.f32.gmra.mxu0 %v55
    %v95 = vpop.f32.mrf.mxu0
    %v96 = vadd.f32 %v39, %v95
    %97 = vmatmul.f32.gmra.mxu0 %v58
    %v98 = vpop.f32.mrf.mxu0
    %v99 = vadd.f32 %v39, %v98
    %100 = vmatmul.f32.gmra.mxu0 %v61
    %v101 = vpop.f32.mrf.mxu0
    %v102 = vadd.f32 %v39, %v101
    %103 = vmatmul.f32.gmra.mxu0 %v64
    %v104 = vpop.f32.mrf.mxu0
    %v105 = vadd.f32 %v39, %v104
    %106 = vdwg.mxu0
    %v107 = vld [vmem:[%s3] sm:$0x1]
    %v108 = vld [vmem:[%s4] sm:$0x1]
    %v109 = vsel %vm41, %v84, 0.0
    %110 = vadd.xlane.f32.xlu0 %v109
    %v111 = vpop.xlane.xlu0 %110
    %v112 = vsel %vm41, %v87, 0.0
    %113 = vadd.xlane.f32.xlu0 %v112
    %v114 = vpop.xlane.xlu0 %113
    %v115 = vsel %vm41, %v90, 0.0
    %116 = vadd.xlane.f32.xlu0 %v115
    %v117 = vpop.xlane.xlu0 %116
    %v118 = vsel %vm41, %v93, 0.0
    %119 = vadd.xlane.f32.xlu0 %v118
    %v120 = vpop.xlane.xlu0 %119
    %v121 = vsel %vm41, %v96, 0.0
    %122 = vadd.xlane.f32.xlu0 %v121
    %v123 = vpop.xlane.xlu0 %122
    %v124 = vsel %vm41, %v99, 0.0
    %125 = vadd.xlane.f32.xlu0 %v124
    %v126 = vpop.xlane.xlu0 %125
    %v127 = vsel %vm41, %v102, 0.0
    %128 = vadd.xlane.f32.xlu0 %v127
    %v129 = vpop.xlane.xlu0 %128
    %v130 = vsel %vm41, %v105, 0.0
    %131 = vadd.xlane.f32.xlu0 %v130
    %v132 = vpop.xlane.xlu0 %131
    %v133 = vrcp.pop 16.0
    %v134 = vmul.f32 16.0, %v133
    %v135 = vsub.f32 1.0, %v134
    %v136 = vmul.f32 %v133, %v135
    %v137 = vadd.f32 %v133, %v136
    %vm138 = vweird.f32 %v133
    %v139 = vsel %vm138, %v133, %v137
    %v140 = vmul.f32 %v111, %v139
    %v141 = vmul.f32 %v114, %v139
    %v142 = vmul.f32 %v117, %v139
    %v143 = vmul.f32 %v120, %v139
    %v144 = vmul.f32 %v123, %v139
    %v145 = vmul.f32 %v126, %v139
    %v146 = vmul.f32 %v129, %v139
    %v147 = vmul.f32 %v132, %v139
    %v148 = vsub.f32 %v84, %v140
    %v149 = vsub.f32 %v87, %v141
    %v150 = vsub.f32 %v90, %v142
    %v151 = vsub.f32 %v93, %v143
    %v152 = vsub.f32 %v96, %v144
    %v153 = vsub.f32 %v99, %v145
    %v154 = vsub.f32 %v102, %v146
    %v155 = vsub.f32 %v105, %v147
    %v156 = vmul.f32 %v148, %v148
    %v157 = vmul.f32 %v149, %v149
    %v158 = vmul.f32 %v150, %v150
    %v159 = vmul.f32 %v151, %v151
    %v160 = vmul.f32 %v152, %v152
    %v161 = vmul.f32 %v153, %v153
    %v162 = vmul.f32 %v154, %v154
    %v163 = vmul.f32 %v155, %v155
    %v164 = vsel %vm41, %v156, 0.0
    %165 = vadd.xlane.f32.xlu0 %v164
    %v166 = vpop.xlane.xlu0 %165
    %v167 = vsel %vm41, %v157, 0.0
    %168 = vadd.xlane.f32.xlu0 %v167
    %v169 = vpop.xlane.xlu0 %168
    %v170 = vsel %vm41, %v158, 0.0
    %171 = vadd.xlane.f32.xlu0 %v170
    %v172 = vpop.xlane.xlu0 %171
    %v173 = vsel %vm41, %v159, 0.0
    %174 = vadd.xlane.f32.xlu0 %v173
    %v175 = vpop.xlane.xlu0 %174
    %v176 = vsel %vm41, %v160, 0.0
    %177 = vadd.xlane.f32.xlu0 %v176
    %v178 = vpop.xlane.xlu0 %177
    %v179 = vsel %vm41, %v161, 0.0
    %180 = vadd.xlane.f32.xlu0 %v179
    %v181 = vpop.xlane.xlu0 %180
    %v182 = vsel %vm41, %v162, 0.0
    %183 = vadd.xlane.f32.xlu0 %v182
    %v184 = vpop.xlane.xlu0 %183
    %v185 = vsel %vm41, %v163, 0.0
    %186 = vadd.xlane.f32.xlu0 %v185
    %v187 = vpop.xlane.xlu0 %186
    %v188 = vmul.f32 %v166, %v139
    %v189 = vmul.f32 %v169, %v139
    %v190 = vmul.f32 %v172, %v139
    %v191 = vmul.f32 %v175, %v139
    %v192 = vmul.f32 %v178, %v139
    %v193 = vmul.f32 %v181, %v139
    %v194 = vmul.f32 %v184, %v139
    %v195 = vmul.f32 %v187, %v139
    %v196 = vadd.f32 %v188, 1e-06
    %v197 = vadd.f32 %v189, 1e-06
    %v198 = vadd.f32 %v190, 1e-06
    %v199 = vadd.f32 %v191, 1e-06
    %v200 = vadd.f32 %v192, 1e-06
    %v201 = vadd.f32 %v193, 1e-06
    %v202 = vadd.f32 %v194, 1e-06
    %v203 = vadd.f32 %v195, 1e-06
    %v204 = vrsqrt.pop %v196
    %v205 = vmul.f32 %v204, %v196
    %v206 = vmul.f32 %v205, %v204
    %v207 = vmul.f32 0.5, %v206
    %v208 = vsub.f32 1.5, %v207
    %v209 = vmul.f32 %v204, %v208
    %vm210 = vweird.f32 %v196
    %vm211 = vweird.f32 %v204
    %vm212 = vmor %vm210, %vm211
    %v213 = vsel %vm212, %v204, %v209
    %v214 = vrsqrt.pop %v197
    %v215 = vmul.f32 %v214, %v197
    %v216 = vmul.f32 %v215, %v214
    %v217 = vmul.f32 0.5, %v216
    %v218 = vsub.f32 1.5, %v217
    %v219 = vmul.f32 %v214, %v218
    %vm220 = vweird.f32 %v197
    %vm221 = vweird.f32 %v214
    %vm222 = vmor %vm220, %vm221
    %v223 = vsel %vm222, %v214, %v219
    %v224 = vrsqrt.pop %v198
    %v225 = vmul.f32 %v224, %v198
    %v226 = vmul.f32 %v225, %v224
    %v227 = vmul.f32 0.5, %v226
    %v228 = vsub.f32 1.5, %v227
    %v229 = vmul.f32 %v224, %v228
    %vm230 = vweird.f32 %v198
    %vm231 = vweird.f32 %v224
    %vm232 = vmor %vm230, %vm231
    %v233 = vsel %vm232, %v224, %v229
    %v234 = vrsqrt.pop %v199
    %v235 = vmul.f32 %v234, %v199
    %v236 = vmul.f32 %v235, %v234
    %v237 = vmul.f32 0.5, %v236
    %v238 = vsub.f32 1.5, %v237
    %v239 = vmul.f32 %v234, %v238
    %vm240 = vweird.f32 %v199
    %vm241 = vweird.f32 %v234
    %vm242 = vmor %vm240, %vm241
    %v243 = vsel %vm242, %v234, %v239
    %v244 = vrsqrt.pop %v200
    %v245 = vmul.f32 %v244, %v200
    %v246 = vmul.f32 %v245, %v244
    %v247 = vmul.f32 0.5, %v246
    %v248 = vsub.f32 1.5, %v247
    %v249 = vmul.f32 %v244, %v248
    %vm250 = vweird.f32 %v200
    %vm251 = vweird.f32 %v244
    %vm252 = vmor %vm250, %vm251
    %v253 = vsel %vm252, %v244, %v249
    %v254 = vrsqrt.pop %v201
    %v255 = vmul.f32 %v254, %v201
    %v256 = vmul.f32 %v255, %v254
    %v257 = vmul.f32 0.5, %v256
    %v258 = vsub.f32 1.5, %v257
    %v259 = vmul.f32 %v254, %v258
    %vm260 = vweird.f32 %v201
    %vm261 = vweird.f32 %v254
    %vm262 = vmor %vm260, %vm261
    %v263 = vsel %vm262, %v254, %v259
    %v264 = vrsqrt.pop %v202
    %v265 = vmul.f32 %v264, %v202
    %v266 = vmul.f32 %v265, %v264
    %v267 = vmul.f32 0.5, %v266
    %v268 = vsub.f32 1.5, %v267
    %v269 = vmul.f32 %v264, %v268
    %vm270 = vweird.f32 %v202
    %vm271 = vweird.f32 %v264
    %vm272 = vmor %vm270, %vm271
    %v273 = vsel %vm272, %v264, %v269
    %v274 = vrsqrt.pop %v203
    %v275 = vmul.f32 %v274, %v203
    %v276 = vmul.f32 %v275, %v274
    %v277 = vmul.f32 0.5, %v276
    %v278 = vsub.f32 1.5, %v277
    %v279 = vmul.f32 %v274, %v278
    %vm280 = vweird.f32 %v203
    %vm281 = vweird.f32 %v274
    %vm282 = vmor %vm280, %vm281
    %v283 = vsel %vm282, %v274, %v279
    %v284 = vmul.f32 %v148, %v213
    %v285 = vmul.f32 %v149, %v223
    %v286 = vmul.f32 %v150, %v233
    %v287 = vmul.f32 %v151, %v243
    %v288 = vmul.f32 %v152, %v253
    %v289 = vmul.f32 %v153, %v263
    %v290 = vmul.f32 %v154, %v273
    %v291 = vmul.f32 %v155, %v283
    %v293 = vperm.slane %v107, 0
    %v295 = vmul.f32 %v284, %v293
    %v296 = vmul.f32 %v285, %v293
    %v297 = vmul.f32 %v286, %v293
    %v298 = vmul.f32 %v287, %v293
    %v299 = vmul.f32 %v288, %v293
    %v300 = vmul.f32 %v289, %v293
    %v301 = vmul.f32 %v290, %v293
    %v302 = vmul.f32 %v291, %v293
    %v304 = vperm.slane %v108, 0
    %v306 = vadd.f32 %v295, %v304
    %v307 = vadd.f32 %v296, %v304
    %v308 = vadd.f32 %v297, %v304
    %v309 = vadd.f32 %v298, %v304
    %v310 = vadd.f32 %v299, %v304
    %v311 = vadd.f32 %v300, %v304
    %v312 = vadd.f32 %v301, %v304
    %v313 = vadd.f32 %v302, %v304
    %v314 = vmul.f32 %v306, 0.5
    %v315 = vmul.f32 %v307, 0.5
    %v316 = vmul.f32 %v308, 0.5
    %v317 = vmul.f32 %v309, 0.5
    %v318 = vmul.f32 %v310, 0.5
    %v319 = vmul.f32 %v311, 0.5
    %v320 = vmul.f32 %v312, 0.5
    %v321 = vmul.f32 %v313, 0.5
    %v322 = vmul.f32 %v306, 0.70710677
    %v323 = vmul.f32 %v307, 0.70710677
    %v324 = vmul.f32 %v308, 0.70710677
    %v325 = vmul.f32 %v309, 0.70710677
    %v326 = vmul.f32 %v310, 0.70710677
    %v327 = vmul.f32 %v311, 0.70710677
    %v328 = vmul.f32 %v312, 0.70710677
    %v329 = vmul.f32 %v313, 0.70710677
    %v330 = vmul.f32 %v322, %v322
    %v331 = vmin.f32 16.0, %v330
    %v332 = vmul.f32 %v331, 2.1237322e-06
    %v333 = vadd.f32 %v332, 0.00028619796
    %v334 = vmul.f32 %v331, %v333
    %v335 = vadd.f32 %v334, 0.0036580483
    %v336 = vmul.f32 %v331, %v335
    %v337 = vadd.f32 %v336, 0.05243302
    %v338 = vmul.f32 %v331, %v337
    %v339 = vadd.f32 %v338, 0.18741608
    %v340 = vmul.f32 %v331, %v339
    %v341 = vadd.f32 %v340, 1.1283791
    %v342 = vmul.f32 %v322, %v341
    %v343 = vmul.f32 %v331, 3.8918573e-05
    %v344 = vadd.f32 %v343, 0.001143296
    %v345 = vmul.f32 %v331, %v344
    %v346 = vadd.f32 %v345, 0.014752088
    %v347 = vmul.f32 %v331, %v346
    %v348 = vadd.f32 %v347, 0.112945676
    %v349 = vmul.f32 %v331, %v348
    %v350 = vadd.f32 %v349, 0.4994258
    %v351 = vmul.f32 %v331, %v350
    %v352 = vadd.f32 %v351, 1.0
    %v353 = vrcp.pop %v352
    %v354 = vmul.f32 %v352, %v353
    %v355 = vsub.f32 1.0, %v354
    %v356 = vmul.f32 %v353, %v355
    %v357 = vadd.f32 %v353, %v356
    %vm358 = vweird.f32 %v352
    %vm359 = vweird.f32 %v353
    %vm360 = vmor %vm358, %vm359
    %v361 = vsel %vm360, %v353, %v357
    %v362 = vand.u32 2147483647, %v352
    %vm363 = vcmp.eq.f32.partialorder %v362, 8.507059e+37
    %v364 = vand.u32 %v352, 2147483648
    %v365 = vor.u32 1.1754944e-38, %v364
    %v366 = vsel %vm363, %v365, %v361
    %v367 = vmul.f32 %v342, %v366
    %v368 = vmin.f32 %v367, 1.0
    %v369 = vmax.f32 %v368, -1.0
    %v370 = vmul.f32 %v323, %v323
    %v371 = vmin.f32 16.0, %v370
    %v372 = vmul.f32 %v371, 2.1237322e-06
    %v373 = vadd.f32 %v372, 0.00028619796
    %v374 = vmul.f32 %v371, %v373
    %v375 = vadd.f32 %v374, 0.0036580483
    %v376 = vmul.f32 %v371, %v375
    %v377 = vadd.f32 %v376, 0.05243302
    %v378 = vmul.f32 %v371, %v377
    %v379 = vadd.f32 %v378, 0.18741608
    %v380 = vmul.f32 %v371, %v379
    %v381 = vadd.f32 %v380, 1.1283791
    %v382 = vmul.f32 %v323, %v381
    %v383 = vmul.f32 %v371, 3.8918573e-05
    %v384 = vadd.f32 %v383, 0.001143296
    %v385 = vmul.f32 %v371, %v384
    %v386 = vadd.f32 %v385, 0.014752088
    %v387 = vmul.f32 %v371, %v386
    %v388 = vadd.f32 %v387, 0.112945676
    %v389 = vmul.f32 %v371, %v388
    %v390 = vadd.f32 %v389, 0.4994258
    %v391 = vmul.f32 %v371, %v390
    %v392 = vadd.f32 %v391, 1.0
    %v393 = vrcp.pop %v392
    %v394 = vmul.f32 %v392, %v393
    %v395 = vsub.f32 1.0, %v394
    %v396 = vmul.f32 %v393, %v395
    %v397 = vadd.f32 %v393, %v396
    %vm398 = vweird.f32 %v392
    %vm399 = vweird.f32 %v393
    %vm400 = vmor %vm398, %vm399
    %v401 = vsel %vm400, %v393, %v397
    %v402 = vand.u32 2147483647, %v392
    %vm403 = vcmp.eq.f32.partialorder %v402, 8.507059e+37
    %v404 = vand.u32 %v392, 2147483648
    %v405 = vor.u32 1.1754944e-38, %v404
    %v406 = vsel %vm403, %v405, %v401
    %v407 = vmul.f32 %v382, %v406
    %v408 = vmin.f32 %v407, 1.0
    %v409 = vmax.f32 %v408, -1.0
    %v410 = vmul.f32 %v324, %v324
    %v411 = vmin.f32 16.0, %v410
    %v412 = vmul.f32 %v411, 2.1237322e-06
    %v413 = vadd.f32 %v412, 0.00028619796
    %v414 = vmul.f32 %v411, %v413
    %v415 = vadd.f32 %v414, 0.0036580483
    %v416 = vmul.f32 %v411, %v415
    %v417 = vadd.f32 %v416, 0.05243302
    %v418 = vmul.f32 %v411, %v417
    %v419 = vadd.f32 %v418, 0.18741608
    %v420 = vmul.f32 %v411, %v419
    %v421 = vadd.f32 %v420, 1.1283791
    %v422 = vmul.f32 %v324, %v421
    %v423 = vmul.f32 %v411, 3.8918573e-05
    %v424 = vadd.f32 %v423, 0.001143296
    %v425 = vmul.f32 %v411, %v424
    %v426 = vadd.f32 %v425, 0.014752088
    %v427 = vmul.f32 %v411, %v426
    %v428 = vadd.f32 %v427, 0.112945676
    %v429 = vmul.f32 %v411, %v428
    %v430 = vadd.f32 %v429, 0.4994258
    %v431 = vmul.f32 %v411, %v430
    %v432 = vadd.f32 %v431, 1.0
    %v433 = vrcp.pop %v432
    %v434 = vmul.f32 %v432, %v433
    %v435 = vsub.f32 1.0, %v434
    %v436 = vmul.f32 %v433, %v435
    %v437 = vadd.f32 %v433, %v436
    %vm438 = vweird.f32 %v432
    %vm439 = vweird.f32 %v433
    %vm440 = vmor %vm438, %vm439
    %v441 = vsel %vm440, %v433, %v437
    %v442 = vand.u32 2147483647, %v432
    %vm443 = vcmp.eq.f32.partialorder %v442, 8.507059e+37
    %v444 = vand.u32 %v432, 2147483648
    %v445 = vor.u32 1.1754944e-38, %v444
    %v446 = vsel %vm443, %v445, %v441
    %v447 = vmul.f32 %v422, %v446
    %v448 = vmin.f32 %v447, 1.0
    %v449 = vmax.f32 %v448, -1.0
    %v450 = vmul.f32 %v325, %v325
    %v451 = vmin.f32 16.0, %v450
    %v452 = vmul.f32 %v451, 2.1237322e-06
    %v453 = vadd.f32 %v452, 0.00028619796
    %v454 = vmul.f32 %v451, %v453
    %v455 = vadd.f32 %v454, 0.0036580483
    %v456 = vmul.f32 %v451, %v455
    %v457 = vadd.f32 %v456, 0.05243302
    %v458 = vmul.f32 %v451, %v457
    %v459 = vadd.f32 %v458, 0.18741608
    %v460 = vmul.f32 %v451, %v459
    %v461 = vadd.f32 %v460, 1.1283791
    %v462 = vmul.f32 %v325, %v461
    %v463 = vmul.f32 %v451, 3.8918573e-05
    %v464 = vadd.f32 %v463, 0.001143296
    %v465 = vmul.f32 %v451, %v464
    %v466 = vadd.f32 %v465, 0.014752088
    %v467 = vmul.f32 %v451, %v466
    %v468 = vadd.f32 %v467, 0.112945676
    %v469 = vmul.f32 %v451, %v468
    %v470 = vadd.f32 %v469, 0.4994258
    %v471 = vmul.f32 %v451, %v470
    %v472 = vadd.f32 %v471, 1.0
    %v473 = vrcp.pop %v472
    %v474 = vmul.f32 %v472, %v473
    %v475 = vsub.f32 1.0, %v474
    %v476 = vmul.f32 %v473, %v475
    %v477 = vadd.f32 %v473, %v476
    %vm478 = vweird.f32 %v472
    %vm479 = vweird.f32 %v473
    %vm480 = vmor %vm478, %vm479
    %v481 = vsel %vm480, %v473, %v477
    %v482 = vand.u32 2147483647, %v472
    %vm483 = vcmp.eq.f32.partialorder %v482, 8.507059e+37
    %v484 = vand.u32 %v472, 2147483648
    %v485 = vor.u32 1.1754944e-38, %v484
    %v486 = vsel %vm483, %v485, %v481
    %v487 = vmul.f32 %v462, %v486
    %v488 = vmin.f32 %v487, 1.0
    %v489 = vmax.f32 %v488, -1.0
    %v490 = vmul.f32 %v326, %v326
    %v491 = vmin.f32 16.0, %v490
    %v492 = vmul.f32 %v491, 2.1237322e-06
    %v493 = vadd.f32 %v492, 0.00028619796
    %v494 = vmul.f32 %v491, %v493
    %v495 = vadd.f32 %v494, 0.0036580483
    %v496 = vmul.f32 %v491, %v495
    %v497 = vadd.f32 %v496, 0.05243302
    %v498 = vmul.f32 %v491, %v497
    %v499 = vadd.f32 %v498, 0.18741608
    %v500 = vmul.f32 %v491, %v499
    %v501 = vadd.f32 %v500, 1.1283791
    %v502 = vmul.f32 %v326, %v501
    %v503 = vmul.f32 %v491, 3.8918573e-05
    %v504 = vadd.f32 %v503, 0.001143296
    %v505 = vmul.f32 %v491, %v504
    %v506 = vadd.f32 %v505, 0.014752088
    %v507 = vmul.f32 %v491, %v506
    %v508 = vadd.f32 %v507, 0.112945676
    %v509 = vmul.f32 %v491, %v508
    %v510 = vadd.f32 %v509, 0.4994258
    %v511 = vmul.f32 %v491, %v510
    %v512 = vadd.f32 %v511, 1.0
    %v513 = vrcp.pop %v512
    %v514 = vmul.f32 %v512, %v513
    %v515 = vsub.f32 1.0, %v514
    %v516 = vmul.f32 %v513, %v515
    %v517 = vadd.f32 %v513, %v516
    %vm518 = vweird.f32 %v512
    %vm519 = vweird.f32 %v513
    %vm520 = vmor %vm518, %vm519
    %v521 = vsel %vm520, %v513, %v517
    %v522 = vand.u32 2147483647, %v512
    %vm523 = vcmp.eq.f32.partialorder %v522, 8.507059e+37
    %v524 = vand.u32 %v512, 2147483648
    %v525 = vor.u32 1.1754944e-38, %v524
    %v526 = vsel %vm523, %v525, %v521
    %v527 = vmul.f32 %v502, %v526
    %v528 = vmin.f32 %v527, 1.0
    %v529 = vmax.f32 %v528, -1.0
    %v530 = vmul.f32 %v327, %v327
    %v531 = vmin.f32 16.0, %v530
    %v532 = vmul.f32 %v531, 2.1237322e-06
    %v533 = vadd.f32 %v532, 0.00028619796
    %v534 = vmul.f32 %v531, %v533
    %v535 = vadd.f32 %v534, 0.0036580483
    %v536 = vmul.f32 %v531, %v535
    %v537 = vadd.f32 %v536, 0.05243302
    %v538 = vmul.f32 %v531, %v537
    %v539 = vadd.f32 %v538, 0.18741608
    %v540 = vmul.f32 %v531, %v539
    %v541 = vadd.f32 %v540, 1.1283791
    %v542 = vmul.f32 %v327, %v541
    %v543 = vmul.f32 %v531, 3.8918573e-05
    %v544 = vadd.f32 %v543, 0.001143296
    %v545 = vmul.f32 %v531, %v544
    %v546 = vadd.f32 %v545, 0.014752088
    %v547 = vmul.f32 %v531, %v546
    %v548 = vadd.f32 %v547, 0.112945676
    %v549 = vmul.f32 %v531, %v548
    %v550 = vadd.f32 %v549, 0.4994258
    %v551 = vmul.f32 %v531, %v550
    %v552 = vadd.f32 %v551, 1.0
    %v553 = vrcp.pop %v552
    %v554 = vmul.f32 %v552, %v553
    %v555 = vsub.f32 1.0, %v554
    %v556 = vmul.f32 %v553, %v555
    %v557 = vadd.f32 %v553, %v556
    %vm558 = vweird.f32 %v552
    %vm559 = vweird.f32 %v553
    %vm560 = vmor %vm558, %vm559
    %v561 = vsel %vm560, %v553, %v557
    %v562 = vand.u32 2147483647, %v552
    %vm563 = vcmp.eq.f32.partialorder %v562, 8.507059e+37
    %v564 = vand.u32 %v552, 2147483648
    %v565 = vor.u32 1.1754944e-38, %v564
    %v566 = vsel %vm563, %v565, %v561
    %v567 = vmul.f32 %v542, %v566
    %v568 = vmin.f32 %v567, 1.0
    %v569 = vmax.f32 %v568, -1.0
    %v570 = vmul.f32 %v328, %v328
    %v571 = vmin.f32 16.0, %v570
    %v572 = vmul.f32 %v571, 2.1237322e-06
    %v573 = vadd.f32 %v572, 0.00028619796
    %v574 = vmul.f32 %v571, %v573
    %v575 = vadd.f32 %v574, 0.0036580483
    %v576 = vmul.f32 %v571, %v575
    %v577 = vadd.f32 %v576, 0.05243302
    %v578 = vmul.f32 %v571, %v577
    %v579 = vadd.f32 %v578, 0.18741608
    %v580 = vmul.f32 %v571, %v579
    %v581 = vadd.f32 %v580, 1.1283791
    %v582 = vmul.f32 %v328, %v581
    %v583 = vmul.f32 %v571, 3.8918573e-05
    %v584 = vadd.f32 %v583, 0.001143296
    %v585 = vmul.f32 %v571, %v584
    %v586 = vadd.f32 %v585, 0.014752088
    %v587 = vmul.f32 %v571, %v586
    %v588 = vadd.f32 %v587, 0.112945676
    %v589 = vmul.f32 %v571, %v588
    %v590 = vadd.f32 %v589, 0.4994258
    %v591 = vmul.f32 %v571, %v590
    %v592 = vadd.f32 %v591, 1.0
    %v593 = vrcp.pop %v592
    %v594 = vmul.f32 %v592, %v593
    %v595 = vsub.f32 1.0, %v594
    %v596 = vmul.f32 %v593, %v595
    %v597 = vadd.f32 %v593, %v596
    %vm598 = vweird.f32 %v592
    %vm599 = vweird.f32 %v593
    %vm600 = vmor %vm598, %vm599
    %v601 = vsel %vm600, %v593, %v597
    %v602 = vand.u32 2147483647, %v592
    %vm603 = vcmp.eq.f32.partialorder %v602, 8.507059e+37
    %v604 = vand.u32 %v592, 2147483648
    %v605 = vor.u32 1.1754944e-38, %v604
    %v606 = vsel %vm603, %v605, %v601
    %v607 = vmul.f32 %v582, %v606
    %v608 = vmin.f32 %v607, 1.0
    %v609 = vmax.f32 %v608, -1.0
    %v610 = vmul.f32 %v329, %v329
    %v611 = vmin.f32 16.0, %v610
    %v612 = vmul.f32 %v611, 2.1237322e-06
    %v613 = vadd.f32 %v612, 0.00028619796
    %v614 = vmul.f32 %v611, %v613
    %v615 = vadd.f32 %v614, 0.0036580483
    %v616 = vmul.f32 %v611, %v615
    %v617 = vadd.f32 %v616, 0.05243302
    %v618 = vmul.f32 %v611, %v617
    %v619 = vadd.f32 %v618, 0.18741608
    %v620 = vmul.f32 %v611, %v619
    %v621 = vadd.f32 %v620, 1.1283791
    %v622 = vmul.f32 %v329, %v621
    %v623 = vmul.f32 %v611, 3.8918573e-05
    %v624 = vadd.f32 %v623, 0.001143296
    %v625 = vmul.f32 %v611, %v624
    %v626 = vadd.f32 %v625, 0.014752088
    %v627 = vmul.f32 %v611, %v626
    %v628 = vadd.f32 %v627, 0.112945676
    %v629 = vmul.f32 %v611, %v628
    %v630 = vadd.f32 %v629, 0.4994258
    %v631 = vmul.f32 %v611, %v630
    %v632 = vadd.f32 %v631, 1.0
    %v633 = vrcp.pop %v632
    %v634 = vmul.f32 %v632, %v633
    %v635 = vsub.f32 1.0, %v634
    %v636 = vmul.f32 %v633, %v635
    %v637 = vadd.f32 %v633, %v636
    %vm638 = vweird.f32 %v632
    %vm639 = vweird.f32 %v633
    %vm640 = vmor %vm638, %vm639
    %v641 = vsel %vm640, %v633, %v637
    %v642 = vand.u32 2147483647, %v632
    %vm643 = vcmp.eq.f32.partialorder %v642, 8.507059e+37
    %v644 = vand.u32 %v632, 2147483648
    %v645 = vor.u32 1.1754944e-38, %v644
    %v646 = vsel %vm643, %v645, %v641
    %v647 = vmul.f32 %v622, %v646
    %v648 = vmin.f32 %v647, 1.0
    %v649 = vmax.f32 %v648, -1.0
    %v650 = vadd.f32 %v369, 1.0
    %v651 = vadd.f32 %v409, 1.0
    %v652 = vadd.f32 %v449, 1.0
    %v653 = vadd.f32 %v489, 1.0
    %v654 = vadd.f32 %v529, 1.0
    %v655 = vadd.f32 %v569, 1.0
    %v656 = vadd.f32 %v609, 1.0
    %v657 = vadd.f32 %v649, 1.0
    %v658 = vmul.f32 %v314, %v650
    %v659 = vmul.f32 %v315, %v651
    %v660 = vmul.f32 %v316, %v652
    %v661 = vmul.f32 %v317, %v653
    %v662 = vmul.f32 %v318, %v654
    %v663 = vmul.f32 %v319, %v655
    %v664 = vmul.f32 %v320, %v656
    %v665 = vmul.f32 %v321, %v657
    %v666 = vld [vmem:[%s5] sm:$0xff]
    %v667 = vld [vmem:[%s5 + $0x8] sm:$0xff]
    %v668 = vld [vmem:[%s6] sm:$0x1]
    %v670 = vperm.slane %v668, 0
    %v673 = vsel %vm41, %v658, 0
    %v676 = vsel %vm41, %v659, 0
    %v679 = vsel %vm41, %v660, 0
    %v682 = vsel %vm41, %v661, 0
    %v685 = vsel %vm41, %v662, 0
    %v688 = vsel %vm41, %v663, 0
    %v691 = vsel %vm41, %v664, 0
    %v694 = vsel %vm41, %v665, 0
    %696 = vmatpush.msra.mxu0 0.0
    %697 = vmatpush.msra.mxu0 0.0
    %698 = vmatpush.msra.mxu0 0.0
    %699 = vmatpush.msra.mxu0 0.0
    %700 = vmatpush.msra.mxu0 0.0
    %701 = vmatpush.msra.mxu0 0.0
    %702 = vmatpush.msra.mxu0 0.0
    %703 = vmatpush.msra.mxu0 0.0
    %704 = vmatpush.msra.mxu0 0.0
    %705 = vmatpush.msra.mxu0 0.0
    %706 = vmatpush.msra.mxu0 0.0
    %707 = vmatpush.msra.mxu0 0.0
    %708 = vmatpush.msra.mxu0 0.0
    %709 = vmatpush.msra.mxu0 0.0
    %710 = vmatpush.msra.mxu0 %v667
    %711 = vmatpush.msra.mxu0 %v666
    %712 = vmatmul.f32.gmra.mxu0 %v673
    %v713 = vpop.f32.mrf.mxu0
    %v714 = vadd.f32 %v670, %v713
    %715 = vmatmul.f32.gmra.mxu0 %v676
    %v716 = vpop.f32.mrf.mxu0
    %v717 = vadd.f32 %v670, %v716
    %718 = vmatmul.f32.gmra.mxu0 %v679
    %v719 = vpop.f32.mrf.mxu0
    %v720 = vadd.f32 %v670, %v719
    %721 = vmatmul.f32.gmra.mxu0 %v682
    %v722 = vpop.f32.mrf.mxu0
    %v723 = vadd.f32 %v670, %v722
    %724 = vmatmul.f32.gmra.mxu0 %v685
    %v725 = vpop.f32.mrf.mxu0
    %v726 = vadd.f32 %v670, %v725
    %727 = vmatmul.f32.gmra.mxu0 %v688
    %v728 = vpop.f32.mrf.mxu0
    %v729 = vadd.f32 %v670, %v728
    %730 = vmatmul.f32.gmra.mxu0 %v691
    %v731 = vpop.f32.mrf.mxu0
    %v732 = vadd.f32 %v670, %v731
    %733 = vmatmul.f32.gmra.mxu0 %v694
    %v734 = vpop.f32.mrf.mxu0
    %v735 = vadd.f32 %v670, %v734
    %736 = vdwg.mxu0
    %vm737 = vcmask 261120
    %738 = vst.msk [vmem:[#allocation2] sm:$0xff] %vm737, %v714
    %739 = vst.msk [vmem:[#allocation2 + $0x8] sm:$0xff] %vm737, %v717
    %740 = vst.msk [vmem:[#allocation2 + $0x10] sm:$0xff] %vm737, %v720
    %741 = vst.msk [vmem:[#allocation2 + $0x18] sm:$0xff] %vm737, %v723
    %742 = vst.msk [vmem:[#allocation2 + $0x20] sm:$0xff] %vm737, %v726
    %743 = vst.msk [vmem:[#allocation2 + $0x28] sm:$0xff] %vm737, %v729
    %744 = vst.msk [vmem:[#allocation2 + $0x30] sm:$0xff] %vm737, %v732
    %745 = vst.msk [vmem:[#allocation2 + $0x38] sm:$0xff] %vm737, %v735
    // Predicated region
    $region30: #{prompt_encoder_forward.5} parent=1 // pred_check
      _
    $region31: #{prompt_encoder_forward.5} parent=1 // pred_check_branch
      %747 = sbr.rel (0) target = $region33
    $region32: #{prompt_encoder_forward.5} parent=1 // pred_region
      %749 = vsyncadd [#allocation3], 0
      %s750 = sshll.u32 [#allocation2], 4
      %s751 = int_to_ptr.vmem [resolvable:$true] %s750
      %s752 = sshll.u32 %s7, 4
      %s753 = int_to_ptr.hbm [resolvable:$true] %s752
      %758 = dma.vmem_to_hbm [thread:$0]  %s751, 1024, %s753, [#allocation3], 128, 128, 8
    $region33: #{prompt_encoder_forward.5} parent=1 // pred_fallthru
      _
    // Predicated region
    $region34: #{prompt_encoder_forward.5} parent=1 // pred_check
      _
    $region35: #{prompt_encoder_forward.5} parent=1 // pred_check_branch
      %760 = sbr.rel (0) target = $region37
    $region36: #{prompt_encoder_forward.5} parent=1 // pred_region
      %762 = dma.done [#allocation3], 1024
    $region37: #{prompt_encoder_forward.5} parent=1 // pred_fallthru
      _
    %763 = vsyncpa [#allocation3], 1

// kernel: prompt_encoder_forward.4
$region0: #{prompt_encoder_forward.4}
  #allocation0 [shape = 'u32[]', space=smem, size = 0x4, offset = 0x4, fixed_abs, tag = 'smem constant byte address 0x4 - core index']
  #allocation1 [shape = 'u32[72,128]{1,0:T(1,128)}', space=vmem, size = 0x9000, scoped, tag = 'internal scratch']
  %s0 = inlined_call_operand.vmem [shape: f32[1,256,4], index: 0, kind: input, shape index: {}]
  %s1 = inlined_call_operand.vmem [shape: f32[4,4], index: 1, kind: input, shape index: {}]
  %s2 = inlined_call_operand.vmem [shape: f32[1,4], index: 2, kind: input, shape index: {}]
  %s3 = inlined_call_operand.vmem [shape: f32[1,4], index: 3, kind: input, shape index: {}]
  %s4 = inlined_call_operand.vmem [shape: f32[1,4], index: 4, kind: input, shape index: {}]
  %s5 = inlined_call_operand.vmem [shape: f32[1,256,4], index: 5, kind: output, shape index: {}]
  %s6 = sld [smem:[#allocation0]]
  $region30: #{prompt_encoder_forward.4} parent=0
    _
  %s8 = ssub.s32 1, %s6
  %s9 = scalar_select 0, %s8, %s6
  // Predicated region
  $region2: #{prompt_encoder_forward.4} parent=0 // pred_check
    _
  $region3: #{prompt_encoder_forward.4} parent=0 // pred_check_branch
    %11 = sbr.rel (0) target = $region5
  $region4: #{prompt_encoder_forward.4} parent=0 // pred_region
    _
  $region5: #{prompt_encoder_forward.4} parent=0 // pred_fallthru
    _
  // Predicated region
  $region6: #{prompt_encoder_forward.4} parent=0 // pred_check
    _
  $region7: #{prompt_encoder_forward.4} parent=0 // pred_check_branch
    %13 = sbr.rel (0) target = $region9
  $region8: #{prompt_encoder_forward.4} parent=0 // pred_region
    _
  $region9: #{prompt_encoder_forward.4} parent=0 // pred_fallthru
    _
  // Predicated region
  $region10: #{prompt_encoder_forward.4} parent=0 // pred_check
    _
  $region11: #{prompt_encoder_forward.4} parent=0 // pred_check_branch
    %15 = sbr.rel (0) target = $region13
  $region12: #{prompt_encoder_forward.4} parent=0 // pred_region
    _
  $region13: #{prompt_encoder_forward.4} parent=0 // pred_fallthru
    _
  // Predicated region
  $region14: #{prompt_encoder_forward.4} parent=0 // pred_check
    _
  $region15: #{prompt_encoder_forward.4} parent=0 // pred_check_branch
    %17 = sbr.rel (0) target = $region17
  $region16: #{prompt_encoder_forward.4} parent=0 // pred_region
    _
  $region17: #{prompt_encoder_forward.4} parent=0 // pred_fallthru
    _
  // Predicated region
  $region18: #{prompt_encoder_forward.4} parent=0 // pred_check
    _
  $region19: #{prompt_encoder_forward.4} parent=0 // pred_check_branch
    %19 = sbr.rel (0) target = $region21
  $region20: #{prompt_encoder_forward.4} parent=0 // pred_region
    _
  $region21: #{prompt_encoder_forward.4} parent=0 // pred_fallthru
    _
  %v20 = vld [vmem:[%s0] sm:$0xff]
  %v21 = vld [vmem:[%s0 + $0x8] sm:$0xff]
  %v22 = vld [vmem:[%s0 + $0x10] sm:$0xff]
  %v23 = vld [vmem:[%s0 + $0x18] sm:$0xff]
  %v24 = vld [vmem:[%s0 + $0x20] sm:$0xff]
  %v25 = vld [vmem:[%s0 + $0x28] sm:$0xff]
  %v26 = vld [vmem:[%s0 + $0x30] sm:$0xff]
  %v27 = vld [vmem:[%s0 + $0x38] sm:$0xff]
  %v28 = vld [vmem:[%s0 + $0x40] sm:$0xff]
  %v29 = vld [vmem:[%s0 + $0x48] sm:$0xff]
  %v30 = vld [vmem:[%s0 + $0x50] sm:$0xff]
  %v31 = vld [vmem:[%s0 + $0x58] sm:$0xff]
  %v32 = vld [vmem:[%s0 + $0x60] sm:$0xff]
  %v33 = vld [vmem:[%s0 + $0x68] sm:$0xff]
  %v34 = vld [vmem:[%s0 + $0x70] sm:$0xff]
  %v35 = vld [vmem:[%s0 + $0x78] sm:$0xff]
  %v36 = vld [vmem:[%s0 + $0x80] sm:$0xff]
  %v37 = vld [vmem:[%s0 + $0x88] sm:$0xff]
  %v38 = vld [vmem:[%s0 + $0x90] sm:$0xff]
  %v39 = vld [vmem:[%s0 + $0x98] sm:$0xff]
  %v40 = vld [vmem:[%s0 + $0xa0] sm:$0xff]
  %v41 = vld [vmem:[%s0 + $0xa8] sm:$0xff]
  %v42 = vld [vmem:[%s0 + $0xb0] sm:$0xff]
  %v43 = vld [vmem:[%s0 + $0xb8] sm:$0xff]
  %v44 = vld [vmem:[%s0 + $0xc0] sm:$0xff]
  %v45 = vld [vmem:[%s0 + $0xc8] sm:$0xff]
  %v46 = vld [vmem:[%s0 + $0xd0] sm:$0xff]
  %v47 = vld [vmem:[%s0 + $0xd8] sm:$0xff]
  %v48 = vld [vmem:[%s0 + $0xe0] sm:$0xff]
  %v49 = vld [vmem:[%s0 + $0xe8] sm:$0xff]
  %v50 = vld [vmem:[%s0 + $0xf0] sm:$0xff]
  %v51 = vld [vmem:[%s0 + $0xf8] sm:$0xff]
  %v52 = vld [vmem:[%s1] sm:$0xf]
  %v53 = vld [vmem:[%s2] sm:$0x1]
  %v55 = vperm.slane %v53, 0
  %vm57 = vcmask 31744
  %v59 = vsel %vm57, %v20, 0
  %v62 = vsel %vm57, %v21, 0
  %v65 = vsel %vm57, %v22, 0
  %v68 = vsel %vm57, %v23, 0
  %v71 = vsel %vm57, %v24, 0
  %v74 = vsel %vm57, %v25, 0
  %v77 = vsel %vm57, %v26, 0
  %v80 = vsel %vm57, %v27, 0
  %v83 = vsel %vm57, %v28, 0
  %v86 = vsel %vm57, %v29, 0
  %v89 = vsel %vm57, %v30, 0
  %v92 = vsel %vm57, %v31, 0
  %v95 = vsel %vm57, %v32, 0
  %v98 = vsel %vm57, %v33, 0
  %v101 = vsel %vm57, %v34, 0
  %v104 = vsel %vm57, %v35, 0
  %v107 = vsel %vm57, %v36, 0
  %v110 = vsel %vm57, %v37, 0
  %v113 = vsel %vm57, %v38, 0
  %v116 = vsel %vm57, %v39, 0
  %v119 = vsel %vm57, %v40, 0
  %v122 = vsel %vm57, %v41, 0
  %v125 = vsel %vm57, %v42, 0
  %v128 = vsel %vm57, %v43, 0
  %v131 = vsel %vm57, %v44, 0
  %v134 = vsel %vm57, %v45, 0
  %v137 = vsel %vm57, %v46, 0
  %v140 = vsel %vm57, %v47, 0
  %v143 = vsel %vm57, %v48, 0
  %v146 = vsel %vm57, %v49, 0
  %v149 = vsel %vm57, %v50, 0
  %v152 = vsel %vm57, %v51, 0
  %vm154 = vcmask 1043456
  %v156 = vsel %vm154, %v52, 0
  %158 = vmatpush.msra.mxu0 0.0
  %159 = vmatpush.msra.mxu0 0.0
  %160 = vmatpush.msra.mxu0 0.0
  %161 = vmatpush.msra.mxu0 0.0
  %162 = vmatpush.msra.mxu0 0.0
  %163 = vmatpush.msra.mxu0 0.0
  %164 = vmatpush.msra.mxu0 0.0
  %165 = vmatpush.msra.mxu0 0.0
  %166 = vmatpush.msra.mxu0 0.0
  %167 = vmatpush.msra.mxu0 0.0
  %168 = vmatpush.msra.mxu0 0.0
  %169 = vmatpush.msra.mxu0 0.0
  %170 = vmatpush.msra.mxu0 0.0
  %171 = vmatpush.msra.mxu0 0.0
  %172 = vmatpush.msra.mxu0 0.0
  %173 = vmatpush.msra.mxu0 %v156
  %174 = vmatmul.f32.gmra.mxu0 %v59
  %v175 = vpop.f32.mrf.mxu0
  %v176 = vadd.f32 %v55, %v175
  %177 = vmatmul.f32.gmra.mxu0 %v62
  %v178 = vpop.f32.mrf.mxu0
  %v179 = vadd.f32 %v55, %v178
  %180 = vmatmul.f32.gmra.mxu0 %v65
  %v181 = vpop.f32.mrf.mxu0
  %v182 = vadd.f32 %v55, %v181
  %183 = vmatmul.f32.gmra.mxu0 %v68
  %v184 = vpop.f32.mrf.mxu0
  %v185 = vadd.f32 %v55, %v184
  %186 = vmatmul.f32.gmra.mxu0 %v71
  %v187 = vpop.f32.mrf.mxu0
  %v188 = vadd.f32 %v55, %v187
  %189 = vmatmul.f32.gmra.mxu0 %v74
  %v190 = vpop.f32.mrf.mxu0
  %v191 = vadd.f32 %v55, %v190
  %192 = vmatmul.f32.gmra.mxu0 %v77
  %v193 = vpop.f32.mrf.mxu0
  %v194 = vadd.f32 %v55, %v193
  %195 = vmatmul.f32.gmra.mxu0 %v80
  %v196 = vpop.f32.mrf.mxu0
  %v197 = vadd.f32 %v55, %v196
  %198 = vmatmul.f32.gmra.mxu0 %v83
  %v199 = vpop.f32.mrf.mxu0
  %v200 = vadd.f32 %v55, %v199
  %201 = vmatmul.f32.gmra.mxu0 %v86
  %v202 = vpop.f32.mrf.mxu0
  %v203 = vadd.f32 %v55, %v202
  %204 = vmatmul.f32.gmra.mxu0 %v89
  %v205 = vpop.f32.mrf.mxu0
  %v206 = vadd.f32 %v55, %v205
  %207 = vmatmul.f32.gmra.mxu0 %v92
  %v208 = vpop.f32.mrf.mxu0
  %v209 = vadd.f32 %v55, %v208
  %210 = vmatmul.f32.gmra.mxu0 %v95
  %v211 = vpop.f32.mrf.mxu0
  %v212 = vadd.f32 %v55, %v211
  %213 = vmatmul.f32.gmra.mxu0 %v98
  %v214 = vpop.f32.mrf.mxu0
  %v215 = vadd.f32 %v55, %v214
  %216 = vmatmul.f32.gmra.mxu0 %v101
  %v217 = vpop.f32.mrf.mxu0
  %v218 = vadd.f32 %v55, %v217
  %219 = vmatmul.f32.gmra.mxu0 %v104
  %v220 = vpop.f32.mrf.mxu0
  %v221 = vadd.f32 %v55, %v220
  %222 = vmatmul.f32.gmra.mxu0 %v107
  %v223 = vpop.f32.mrf.mxu0
  %v224 = vadd.f32 %v55, %v223
  %225 = vmatmul.f32.gmra.mxu0 %v110
  %v226 = vpop.f32.mrf.mxu0
  %v227 = vadd.f32 %v55, %v226
  %228 = vmatmul.f32.gmra.mxu0 %v113
  %v229 = vpop.f32.mrf.mxu0
  %v230 = vadd.f32 %v55, %v229
  %231 = vmatmul.f32.gmra.mxu0 %v116
  %v232 = vpop.f32.mrf.mxu0
  %v233 = vadd.f32 %v55, %v232
  %234 = vmatmul.f32.gmra.mxu0 %v119
  %v235 = vpop.f32.mrf.mxu0
  %v236 = vadd.f32 %v55, %v235
  %237 = vmatmul.f32.gmra.mxu0 %v122
  %v238 = vpop.f32.mrf.mxu0
  %v239 = vadd.f32 %v55, %v238
  %240 = vmatmul.f32.gmra.mxu0 %v125
  %v241 = vpop.f32.mrf.mxu0
  %v242 = vadd.f32 %v55, %v241
  %243 = vmatmul.f32.gmra.mxu0 %v128
  %v244 = vpop.f32.mrf.mxu0
  %v245 = vadd.f32 %v55, %v244
  %246 = vmatmul.f32.gmra.mxu0 %v131
  %v247 = vpop.f32.mrf.mxu0
  %v248 = vadd.f32 %v55, %v247
  %249 = vmatmul.f32.gmra.mxu0 %v134
  %v250 = vpop.f32.mrf.mxu0
  %v251 = vadd.f32 %v55, %v250
  %252 = vmatmul.f32.gmra.mxu0 %v137
  %v253 = vpop.f32.mrf.mxu0
  %v254 = vadd.f32 %v55, %v253
  %255 = vmatmul.f32.gmra.mxu0 %v140
  %v256 = vpop.f32.mrf.mxu0
  %v257 = vadd.f32 %v55, %v256
  %258 = vmatmul.f32.gmra.mxu0 %v143
  %v259 = vpop.f32.mrf.mxu0
  %v260 = vadd.f32 %v55, %v259
  %261 = vmatmul.f32.gmra.mxu0 %v146
  %v262 = vpop.f32.mrf.mxu0
  %v263 = vadd.f32 %v55, %v262
  %264 = vmatmul.f32.gmra.mxu0 %v149
  %v265 = vpop.f32.mrf.mxu0
  %v266 = vadd.f32 %v55, %v265
  %267 = vmatmul.f32.gmra.mxu0 %v152
  %v268 = vpop.f32.mrf.mxu0
  %v269 = vadd.f32 %v55, %v268
  %270 = vdwg.mxu0
  %v271 = vld [vmem:[%s3] sm:$0x1]
  %v272 = vld [vmem:[%s4] sm:$0x1]
  %v273 = vsel %vm57, %v176, 0.0
  %274 = vadd.xlane.f32.xlu0 %v273
  %v275 = vpop.xlane.xlu0 %274
  %v276 = vsel %vm57, %v179, 0.0
  %277 = vadd.xlane.f32.xlu0 %v276
  %v278 = vpop.xlane.xlu0 %277
  %v279 = vsel %vm57, %v182, 0.0
  %280 = vadd.xlane.f32.xlu0 %v279
  %v281 = vpop.xlane.xlu0 %280
  %v282 = vsel %vm57, %v185, 0.0
  %283 = vadd.xlane.f32.xlu0 %v282
  %v284 = vpop.xlane.xlu0 %283
  %v285 = vsel %vm57, %v188, 0.0
  %286 = vadd.xlane.f32.xlu0 %v285
  %v287 = vpop.xlane.xlu0 %286
  %v288 = vsel %vm57, %v191, 0.0
  %289 = vadd.xlane.f32.xlu0 %v288
  %v290 = vpop.xlane.xlu0 %289
  %v291 = vsel %vm57, %v194, 0.0
  %292 = vadd.xlane.f32.xlu0 %v291
  %v293 = vpop.xlane.xlu0 %292
  %v294 = vsel %vm57, %v197, 0.0
  %295 = vadd.xlane.f32.xlu0 %v294
  %v296 = vpop.xlane.xlu0 %295
  %v297 = vsel %vm57, %v200, 0.0
  %298 = vadd.xlane.f32.xlu0 %v297
  %v299 = vpop.xlane.xlu0 %298
  %v300 = vsel %vm57, %v203, 0.0
  %301 = vadd.xlane.f32.xlu0 %v300
  %v302 = vpop.xlane.xlu0 %301
  %v303 = vsel %vm57, %v206, 0.0
  %304 = vadd.xlane.f32.xlu0 %v303
  %v305 = vpop.xlane.xlu0 %304
  %v306 = vsel %vm57, %v209, 0.0
  %307 = vadd.xlane.f32.xlu0 %v306
  %v308 = vpop.xlane.xlu0 %307
  %v309 = vsel %vm57, %v212, 0.0
  %310 = vadd.xlane.f32.xlu0 %v309
  %v311 = vpop.xlane.xlu0 %310
  %v312 = vsel %vm57, %v215, 0.0
  %313 = vadd.xlane.f32.xlu0 %v312
  %v314 = vpop.xlane.xlu0 %313
  %v315 = vsel %vm57, %v218, 0.0
  %316 = vadd.xlane.f32.xlu0 %v315
  %v317 = vpop.xlane.xlu0 %316
  %v318 = vsel %vm57, %v221, 0.0
  %319 = vadd.xlane.f32.xlu0 %v318
  %v320 = vpop.xlane.xlu0 %319
  %v321 = vsel %vm57, %v224, 0.0
  %322 = vadd.xlane.f32.xlu0 %v321
  %v323 = vpop.xlane.xlu0 %322
  %v324 = vsel %vm57, %v227, 0.0
  %325 = vadd.xlane.f32.xlu0 %v324
  %v326 = vpop.xlane.xlu0 %325
  %v327 = vsel %vm57, %v230, 0.0
  %328 = vadd.xlane.f32.xlu0 %v327
  %v329 = vpop.xlane.xlu0 %328
  %v330 = vsel %vm57, %v233, 0.0
  %331 = vadd.xlane.f32.xlu0 %v330
  %v332 = vpop.xlane.xlu0 %331
  %v333 = vsel %vm57, %v236, 0.0
  %334 = vadd.xlane.f32.xlu0 %v333
  %v335 = vpop.xlane.xlu0 %334
  %v336 = vsel %vm57, %v239, 0.0
  %337 = vadd.xlane.f32.xlu0 %v336
  %v338 = vpop.xlane.xlu0 %337
  %v339 = vsel %vm57, %v242, 0.0
  %340 = vadd.xlane.f32.xlu0 %v339
  %v341 = vpop.xlane.xlu0 %340
  %v342 = vsel %vm57, %v245, 0.0
  %343 = vadd.xlane.f32.xlu0 %v342
  %v344 = vpop.xlane.xlu0 %343
  %v345 = vsel %vm57, %v248, 0.0
  %346 = vadd.xlane.f32.xlu0 %v345
  %v347 = vpop.xlane.xlu0 %346
  %v348 = vsel %vm57, %v251, 0.0
  %349 = vadd.xlane.f32.xlu0 %v348
  %v350 = vpop.xlane.xlu0 %349
  %v351 = vsel %vm57, %v254, 0.0
  %352 = vadd.xlane.f32.xlu0 %v351
  %v353 = vpop.xlane.xlu0 %352
  %v354 = vsel %vm57, %v257, 0.0
  %355 = vadd.xlane.f32.xlu0 %v354
  %v356 = vpop.xlane.xlu0 %355
  %v357 = vsel %vm57, %v260, 0.0
  %358 = vadd.xlane.f32.xlu0 %v357
  %v359 = vpop.xlane.xlu0 %358
  %v360 = vsel %vm57, %v263, 0.0
  %361 = vadd.xlane.f32.xlu0 %v360
  %v362 = vpop.xlane.xlu0 %361
  %v363 = vsel %vm57, %v266, 0.0
  %364 = vadd.xlane.f32.xlu0 %v363
  %v365 = vpop.xlane.xlu0 %364
  %v366 = vsel %vm57, %v269, 0.0
  %367 = vadd.xlane.f32.xlu0 %v366
  %v368 = vpop.xlane.xlu0 %367
  %v369 = vrcp.pop 4.0
  %v370 = vmul.f32 4.0, %v369
  %v371 = vsub.f32 1.0, %v370
  %v372 = vmul.f32 %v369, %v371
  %v373 = vadd.f32 %v369, %v372
  %vm374 = vweird.f32 %v369
  %v375 = vsel %vm374, %v369, %v373
  %v376 = vmul.f32 %v275, %v375
  %v377 = vmul.f32 %v278, %v375
  %v378 = vmul.f32 %v281, %v375
  %v379 = vmul.f32 %v284, %v375
  %v380 = vmul.f32 %v287, %v375
  %v381 = vmul.f32 %v290, %v375
  %v382 = vmul.f32 %v293, %v375
  %v383 = vmul.f32 %v296, %v375
  %v384 = vmul.f32 %v299, %v375
  %v385 = vmul.f32 %v302, %v375
  %v386 = vmul.f32 %v305, %v375
  %v387 = vmul.f32 %v308, %v375
  %v388 = vmul.f32 %v311, %v375
  %v389 = vmul.f32 %v314, %v375
  %v390 = vmul.f32 %v317, %v375
  %v391 = vmul.f32 %v320, %v375
  %v392 = vmul.f32 %v323, %v375
  %v393 = vmul.f32 %v326, %v375
  %v394 = vmul.f32 %v329, %v375
  %v395 = vmul.f32 %v332, %v375
  %v396 = vmul.f32 %v335, %v375
  %v397 = vmul.f32 %v338, %v375
  %v398 = vmul.f32 %v341, %v375
  %v399 = vmul.f32 %v344, %v375
  %v400 = vmul.f32 %v347, %v375
  %v401 = vmul.f32 %v350, %v375
  %v402 = vmul.f32 %v353, %v375
  %v403 = vmul.f32 %v356, %v375
  %v404 = vmul.f32 %v359, %v375
  %v405 = vmul.f32 %v362, %v375
  %v406 = vmul.f32 %v365, %v375
  %v407 = vmul.f32 %v368, %v375
  %v408 = vsub.f32 %v176, %v376
  %v409 = vsub.f32 %v179, %v377
  %v410 = vsub.f32 %v182, %v378
  %v411 = vsub.f32 %v185, %v379
  %v412 = vsub.f32 %v188, %v380
  %v413 = vsub.f32 %v191, %v381
  %v414 = vsub.f32 %v194, %v382
  %v415 = vsub.f32 %v197, %v383
  %v416 = vsub.f32 %v200, %v384
  %v417 = vsub.f32 %v203, %v385
  %v418 = vsub.f32 %v206, %v386
  %v419 = vsub.f32 %v209, %v387
  %v420 = vsub.f32 %v212, %v388
  %v421 = vsub.f32 %v215, %v389
  %v422 = vsub.f32 %v218, %v390
  %v423 = vsub.f32 %v221, %v391
  %v424 = vsub.f32 %v224, %v392
  %v425 = vsub.f32 %v227, %v393
  %v426 = vsub.f32 %v230, %v394
  %v427 = vsub.f32 %v233, %v395
  %v428 = vsub.f32 %v236, %v396
  %v429 = vsub.f32 %v239, %v397
  %v430 = vsub.f32 %v242, %v398
  %v431 = vsub.f32 %v245, %v399
  %v432 = vsub.f32 %v248, %v400
  %v433 = vsub.f32 %v251, %v401
  %v434 = vsub.f32 %v254, %v402
  %v435 = vsub.f32 %v257, %v403
  %v436 = vsub.f32 %v260, %v404
  %v437 = vsub.f32 %v263, %v405
  %v438 = vsub.f32 %v266, %v406
  %v439 = vsub.f32 %v269, %v407
  %v440 = vmul.f32 %v408, %v408
  %v441 = vmul.f32 %v409, %v409
  %v442 = vmul.f32 %v410, %v410
  %v443 = vmul.f32 %v411, %v411
  %v444 = vmul.f32 %v412, %v412
  %v445 = vmul.f32 %v413, %v413
  %v446 = vmul.f32 %v414, %v414
  %v447 = vmul.f32 %v415, %v415
  %v448 = vmul.f32 %v416, %v416
  %v449 = vmul.f32 %v417, %v417
  %v450 = vmul.f32 %v418, %v418
  %v451 = vmul.f32 %v419, %v419
  %v452 = vmul.f32 %v420, %v420
  %v453 = vmul.f32 %v421, %v421
  %v454 = vmul.f32 %v422, %v422
  %v455 = vmul.f32 %v423, %v423
  %v456 = vmul.f32 %v424, %v424
  %v457 = vmul.f32 %v425, %v425
  %v458 = vmul.f32 %v426, %v426
  %v459 = vmul.f32 %v427, %v427
  %v460 = vmul.f32 %v428, %v428
  %v461 = vmul.f32 %v429, %v429
  %v462 = vmul.f32 %v430, %v430
  %v463 = vmul.f32 %v431, %v431
  %v464 = vmul.f32 %v432, %v432
  %v465 = vmul.f32 %v433, %v433
  %v466 = vmul.f32 %v434, %v434
  %v467 = vmul.f32 %v435, %v435
  %v468 = vmul.f32 %v436, %v436
  %v469 = vmul.f32 %v437, %v437
  %v470 = vmul.f32 %v438, %v438
  %v471 = vmul.f32 %v439, %v439
  %v472 = vsel %vm57, %v440, 0.0
  %473 = vadd.xlane.f32.xlu0 %v472
  %v474 = vpop.xlane.xlu0 %473
  %v475 = vsel %vm57, %v441, 0.0
  %476 = vadd.xlane.f32.xlu0 %v475
  %v477 = vpop.xlane.xlu0 %476
  %v478 = vsel %vm57, %v442, 0.0
  %479 = vadd.xlane.f32.xlu0 %v478
  %v480 = vpop.xlane.xlu0 %479
  %v481 = vsel %vm57, %v443, 0.0
  %482 = vadd.xlane.f32.xlu0 %v481
  %v483 = vpop.xlane.xlu0 %482
  %v484 = vsel %vm57, %v444, 0.0
  %485 = vadd.xlane.f32.xlu0 %v484
  %v486 = vpop.xlane.xlu0 %485
  %v487 = vsel %vm57, %v445, 0.0
  %488 = vadd.xlane.f32.xlu0 %v487
  %v489 = vpop.xlane.xlu0 %488
  %v490 = vsel %vm57, %v446, 0.0
  %491 = vadd.xlane.f32.xlu0 %v490
  %v492 = vpop.xlane.xlu0 %491
  %v493 = vsel %vm57, %v447, 0.0
  %494 = vadd.xlane.f32.xlu0 %v493
  %v495 = vpop.xlane.xlu0 %494
  %v496 = vsel %vm57, %v448, 0.0
  %497 = vadd.xlane.f32.xlu0 %v496
  %v498 = vpop.xlane.xlu0 %497
  %v499 = vsel %vm57, %v449, 0.0
  %500 = vadd.xlane.f32.xlu0 %v499
  %v501 = vpop.xlane.xlu0 %500
  %v502 = vsel %vm57, %v450, 0.0
  %503 = vadd.xlane.f32.xlu0 %v502
  %v504 = vpop.xlane.xlu0 %503
  %v505 = vsel %vm57, %v451, 0.0
  %506 = vadd.xlane.f32.xlu0 %v505
  %v507 = vpop.xlane.xlu0 %506
  %v508 = vsel %vm57, %v452, 0.0
  %509 = vadd.xlane.f32.xlu0 %v508
  %v510 = vpop.xlane.xlu0 %509
  %v511 = vsel %vm57, %v453, 0.0
  %512 = vadd.xlane.f32.xlu0 %v511
  %v513 = vpop.xlane.xlu0 %512
  %v514 = vsel %vm57, %v454, 0.0
  %515 = vadd.xlane.f32.xlu0 %v514
  %v516 = vpop.xlane.xlu0 %515
  %v517 = vsel %vm57, %v455, 0.0
  %518 = vadd.xlane.f32.xlu0 %v517
  %v519 = vpop.xlane.xlu0 %518
  %v520 = vsel %vm57, %v456, 0.0
  %521 = vadd.xlane.f32.xlu0 %v520
  %v522 = vpop.xlane.xlu0 %521
  %v523 = vsel %vm57, %v457, 0.0
  %524 = vadd.xlane.f32.xlu0 %v523
  %v525 = vpop.xlane.xlu0 %524
  %v526 = vsel %vm57, %v458, 0.0
  %527 = vadd.xlane.f32.xlu0 %v526
  %v528 = vpop.xlane.xlu0 %527
  %v529 = vsel %vm57, %v459, 0.0
  %530 = vadd.xlane.f32.xlu0 %v529
  %v531 = vpop.xlane.xlu0 %530
  %v532 = vsel %vm57, %v460, 0.0
  %533 = vadd.xlane.f32.xlu0 %v532
  %v534 = vpop.xlane.xlu0 %533
  %v535 = vsel %vm57, %v461, 0.0
  %536 = vadd.xlane.f32.xlu0 %v535
  %v537 = vpop.xlane.xlu0 %536
  %v538 = vsel %vm57, %v462, 0.0
  %539 = vadd.xlane.f32.xlu0 %v538
  %v540 = vpop.xlane.xlu0 %539
  %v541 = vsel %vm57, %v463, 0.0
  %542 = vadd.xlane.f32.xlu0 %v541
  %v543 = vpop.xlane.xlu0 %542
  %v544 = vsel %vm57, %v464, 0.0
  %545 = vadd.xlane.f32.xlu0 %v544
  %v546 = vpop.xlane.xlu0 %545
  %v547 = vsel %vm57, %v465, 0.0
  %548 = vadd.xlane.f32.xlu0 %v547
  %v549 = vpop.xlane.xlu0 %548
  %v550 = vsel %vm57, %v466, 0.0
  %551 = vadd.xlane.f32.xlu0 %v550
  %v552 = vpop.xlane.xlu0 %551
  %v553 = vsel %vm57, %v467, 0.0
  %554 = vadd.xlane.f32.xlu0 %v553
  %v555 = vpop.xlane.xlu0 %554
  %v556 = vsel %vm57, %v468, 0.0
  %557 = vadd.xlane.f32.xlu0 %v556
  %v558 = vpop.xlane.xlu0 %557
  %v559 = vsel %vm57, %v469, 0.0
  %560 = vadd.xlane.f32.xlu0 %v559
  %v561 = vpop.xlane.xlu0 %560
  %v562 = vsel %vm57, %v470, 0.0
  %563 = vadd.xlane.f32.xlu0 %v562
  %v564 = vpop.xlane.xlu0 %563
  %v565 = vsel %vm57, %v471, 0.0
  %566 = vadd.xlane.f32.xlu0 %v565
  %v567 = vpop.xlane.xlu0 %566
  %v568 = vmul.f32 %v474, %v375
  %v569 = vmul.f32 %v477, %v375
  %v570 = vmul.f32 %v480, %v375
  %v571 = vmul.f32 %v483, %v375
  %v572 = vmul.f32 %v486, %v375
  %v573 = vmul.f32 %v489, %v375
  %v574 = vmul.f32 %v492, %v375
  %v575 = vmul.f32 %v495, %v375
  %v576 = vmul.f32 %v498, %v375
  %v577 = vmul.f32 %v501, %v375
  %v578 = vmul.f32 %v504, %v375
  %v579 = vmul.f32 %v507, %v375
  %v580 = vmul.f32 %v510, %v375
  %v581 = vmul.f32 %v513, %v375
  %v582 = vmul.f32 %v516, %v375
  %v583 = vmul.f32 %v519, %v375
  %v584 = vmul.f32 %v522, %v375
  %v585 = vmul.f32 %v525, %v375
  %v586 = vmul.f32 %v528, %v375
  %v587 = vmul.f32 %v531, %v375
  %v588 = vmul.f32 %v534, %v375
  %v589 = vmul.f32 %v537, %v375
  %v590 = vmul.f32 %v540, %v375
  %v591 = vmul.f32 %v543, %v375
  %v592 = vmul.f32 %v546, %v375
  %v593 = vmul.f32 %v549, %v375
  %v594 = vmul.f32 %v552, %v375
  %v595 = vmul.f32 %v555, %v375
  %v596 = vmul.f32 %v558, %v375
  %v597 = vmul.f32 %v561, %v375
  %v598 = vmul.f32 %v564, %v375
  %v599 = vmul.f32 %v567, %v375
  %v600 = vadd.f32 %v568, 1e-06
  %v601 = vadd.f32 %v569, 1e-06
  %v602 = vadd.f32 %v570, 1e-06
  %v603 = vadd.f32 %v571, 1e-06
  %v604 = vadd.f32 %v572, 1e-06
  %v605 = vadd.f32 %v573, 1e-06
  %v606 = vadd.f32 %v574, 1e-06
  %v607 = vadd.f32 %v575, 1e-06
  %v608 = vadd.f32 %v576, 1e-06
  %v609 = vadd.f32 %v577, 1e-06
  %v610 = vadd.f32 %v578, 1e-06
  %v611 = vadd.f32 %v579, 1e-06
  %v612 = vadd.f32 %v580, 1e-06
  %v613 = vadd.f32 %v581, 1e-06
  %v614 = vadd.f32 %v582, 1e-06
  %v615 = vadd.f32 %v583, 1e-06
  %v616 = vadd.f32 %v584, 1e-06
  %v617 = vadd.f32 %v585, 1e-06
  %v618 = vadd.f32 %v586, 1e-06
  %v619 = vadd.f32 %v587, 1e-06
  %v620 = vadd.f32 %v588, 1e-06
  %v621 = vadd.f32 %v589, 1e-06
  %v622 = vadd.f32 %v590, 1e-06
  %v623 = vadd.f32 %v591, 1e-06
  %v624 = vadd.f32 %v592, 1e-06
  %v625 = vadd.f32 %v593, 1e-06
  %v626 = vadd.f32 %v594, 1e-06
  %v627 = vadd.f32 %v595, 1e-06
  %v628 = vadd.f32 %v596, 1e-06
  %v629 = vadd.f32 %v597, 1e-06
  %v630 = vadd.f32 %v598, 1e-06
  %v631 = vadd.f32 %v599, 1e-06
  %v632 = vrsqrt.pop %v600
  %v633 = vmul.f32 %v632, %v600
  %v634 = vmul.f32 %v633, %v632
  %v635 = vmul.f32 0.5, %v634
  %v636 = vsub.f32 1.5, %v635
  %v637 = vmul.f32 %v632, %v636
  %vm638 = vweird.f32 %v600
  %vm639 = vweird.f32 %v632
  %vm640 = vmor %vm638, %vm639
  %v641 = vsel %vm640, %v632, %v637
  %v642 = vrsqrt.pop %v601
  %v643 = vmul.f32 %v642, %v601
  %v644 = vmul.f32 %v643, %v642
  %v645 = vmul.f32 0.5, %v644
  %v646 = vsub.f32 1.5, %v645
  %v647 = vmul.f32 %v642, %v646
  %vm648 = vweird.f32 %v601
  %vm649 = vweird.f32 %v642
  %vm650 = vmor %vm648, %vm649
  %v651 = vsel %vm650, %v642, %v647
  %v652 = vrsqrt.pop %v602
  %v653 = vmul.f32 %v652, %v602
  %v654 = vmul.f32 %v653, %v652
  %v655 = vmul.f32 0.5, %v654
  %v656 = vsub.f32 1.5, %v655
  %v657 = vmul.f32 %v652, %v656
  %vm658 = vweird.f32 %v602
  %vm659 = vweird.f32 %v652
  %vm660 = vmor %vm658, %vm659
  %v661 = vsel %vm660, %v652, %v657
  %v662 = vrsqrt.pop %v603
  %v663 = vmul.f32 %v662, %v603
  %v664 = vmul.f32 %v663, %v662
  %v665 = vmul.f32 0.5, %v664
  %v666 = vsub.f32 1.5, %v665
  %v667 = vmul.f32 %v662, %v666
  %vm668 = vweird.f32 %v603
  %vm669 = vweird.f32 %v662
  %vm670 = vmor %vm668, %vm669
  %v671 = vsel %vm670, %v662, %v667
  %v672 = vrsqrt.pop %v604
  %v673 = vmul.f32 %v672, %v604
  %v674 = vmul.f32 %v673, %v672
  %v675 = vmul.f32 0.5, %v674
  %v676 = vsub.f32 1.5, %v675
  %v677 = vmul.f32 %v672, %v676
  %vm678 = vweird.f32 %v604
  %vm679 = vweird.f32 %v672
  %vm680 = vmor %vm678, %vm679
  %v681 = vsel %vm680, %v672, %v677
  %v682 = vrsqrt.pop %v605
  %v683 = vmul.f32 %v682, %v605
  %v684 = vmul.f32 %v683, %v682
  %v685 = vmul.f32 0.5, %v684
  %v686 = vsub.f32 1.5, %v685
  %v687 = vmul.f32 %v682, %v686
  %vm688 = vweird.f32 %v605
  %vm689 = vweird.f32 %v682
  %vm690 = vmor %vm688, %vm689
  %v691 = vsel %vm690, %v682, %v687
  %v692 = vrsqrt.pop %v606
  %v693 = vmul.f32 %v692, %v606
  %v694 = vmul.f32 %v693, %v692
  %v695 = vmul.f32 0.5, %v694
  %v696 = vsub.f32 1.5, %v695
  %v697 = vmul.f32 %v692, %v696
  %vm698 = vweird.f32 %v606
  %vm699 = vweird.f32 %v692
  %vm700 = vmor %vm698, %vm699
  %v701 = vsel %vm700, %v692, %v697
  %v702 = vrsqrt.pop %v607
  %v703 = vmul.f32 %v702, %v607
  %v704 = vmul.f32 %v703, %v702
  %v705 = vmul.f32 0.5, %v704
  %v706 = vsub.f32 1.5, %v705
  %v707 = vmul.f32 %v702, %v706
  %vm708 = vweird.f32 %v607
  %vm709 = vweird.f32 %v702
  %vm710 = vmor %vm708, %vm709
  %v711 = vsel %vm710, %v702, %v707
  %v712 = vrsqrt.pop %v608
  %v713 = vmul.f32 %v712, %v608
  %v714 = vmul.f32 %v713, %v712
  %v715 = vmul.f32 0.5, %v714
  %v716 = vsub.f32 1.5, %v715
  %v717 = vmul.f32 %v712, %v716
  %vm718 = vweird.f32 %v608
  %vm719 = vweird.f32 %v712
  %vm720 = vmor %vm718, %vm719
  %v721 = vsel %vm720, %v712, %v717
  %v722 = vrsqrt.pop %v609
  %v723 = vmul.f32 %v722, %v609
  %v724 = vmul.f32 %v723, %v722
  %v725 = vmul.f32 0.5, %v724
  %v726 = vsub.f32 1.5, %v725
  %v727 = vmul.f32 %v722, %v726
  %vm728 = vweird.f32 %v609
  %vm729 = vweird.f32 %v722
  %vm730 = vmor %vm728, %vm729
  %v731 = vsel %vm730, %v722, %v727
  %v732 = vrsqrt.pop %v610
  %v733 = vmul.f32 %v732, %v610
  %v734 = vmul.f32 %v733, %v732
  %v735 = vmul.f32 0.5, %v734
  %v736 = vsub.f32 1.5, %v735
  %v737 = vmul.f32 %v732, %v736
  %vm738 = vweird.f32 %v610
  %vm739 = vweird.f32 %v732
  %vm740 = vmor %vm738, %vm739
  %v741 = vsel %vm740, %v732, %v737
  %v742 = vrsqrt.pop %v611
  %v743 = vmul.f32 %v742, %v611
  %v744 = vmul.f32 %v743, %v742
  %v745 = vmul.f32 0.5, %v744
  %v746 = vsub.f32 1.5, %v745
  %v747 = vmul.f32 %v742, %v746
  %vm748 = vweird.f32 %v611
  %vm749 = vweird.f32 %v742
  %vm750 = vmor %vm748, %vm749
  %v751 = vsel %vm750, %v742, %v747
  %v752 = vrsqrt.pop %v612
  %v753 = vmul.f32 %v752, %v612
  %v754 = vmul.f32 %v753, %v752
  %v755 = vmul.f32 0.5, %v754
  %v756 = vsub.f32 1.5, %v755
  %v757 = vmul.f32 %v752, %v756
  %vm758 = vweird.f32 %v612
  %vm759 = vweird.f32 %v752
  %vm760 = vmor %vm758, %vm759
  %v761 = vsel %vm760, %v752, %v757
  %v762 = vrsqrt.pop %v613
  %v763 = vmul.f32 %v762, %v613
  %v764 = vmul.f32 %v763, %v762
  %v765 = vmul.f32 0.5, %v764
  %v766 = vsub.f32 1.5, %v765
  %v767 = vmul.f32 %v762, %v766
  %vm768 = vweird.f32 %v613
  %vm769 = vweird.f32 %v762
  %vm770 = vmor %vm768, %vm769
  %v771 = vsel %vm770, %v762, %v767
  %v772 = vrsqrt.pop %v614
  %v773 = vmul.f32 %v772, %v614
  %v774 = vmul.f32 %v773, %v772
  %v775 = vmul.f32 0.5, %v774
  %v776 = vsub.f32 1.5, %v775
  %v777 = vmul.f32 %v772, %v776
  %vm778 = vweird.f32 %v614
  %vm779 = vweird.f32 %v772
  %vm780 = vmor %vm778, %vm779
  %v781 = vsel %vm780, %v772, %v777
  %v782 = vrsqrt.pop %v615
  %v783 = vmul.f32 %v782, %v615
  %v784 = vmul.f32 %v783, %v782
  %v785 = vmul.f32 0.5, %v784
  %v786 = vsub.f32 1.5, %v785
  %v787 = vmul.f32 %v782, %v786
  %vm788 = vweird.f32 %v615
  %vm789 = vweird.f32 %v782
  %vm790 = vmor %vm788, %vm789
  %v791 = vsel %vm790, %v782, %v787
  %v792 = vrsqrt.pop %v616
  %v793 = vmul.f32 %v792, %v616
  %v794 = vmul.f32 %v793, %v792
  %v795 = vmul.f32 0.5, %v794
  %v796 = vsub.f32 1.5, %v795
  %v797 = vmul.f32 %v792, %v796
  %vm798 = vweird.f32 %v616
  %vm799 = vweird.f32 %v792
  %vm800 = vmor %vm798, %vm799
  %v801 = vsel %vm800, %v792, %v797
  %v802 = vrsqrt.pop %v617
  %v803 = vmul.f32 %v802, %v617
  %v804 = vmul.f32 %v803, %v802
  %v805 = vmul.f32 0.5, %v804
  %v806 = vsub.f32 1.5, %v805
  %v807 = vmul.f32 %v802, %v806
  %vm808 = vweird.f32 %v617
  %vm809 = vweird.f32 %v802
  %vm810 = vmor %vm808, %vm809
  %v811 = vsel %vm810, %v802, %v807
  %v812 = vrsqrt.pop %v618
  %v813 = vmul.f32 %v812, %v618
  %v814 = vmul.f32 %v813, %v812
  %v815 = vmul.f32 0.5, %v814
  %v816 = vsub.f32 1.5, %v815
  %v817 = vmul.f32 %v812, %v816
  %vm818 = vweird.f32 %v618
  %vm819 = vweird.f32 %v812
  %vm820 = vmor %vm818, %vm819
  %v821 = vsel %vm820, %v812, %v817
  %v822 = vrsqrt.pop %v619
  %v823 = vmul.f32 %v822, %v619
  %v824 = vmul.f32 %v823, %v822
  %v825 = vmul.f32 0.5, %v824
  %v826 = vsub.f32 1.5, %v825
  %v827 = vmul.f32 %v822, %v826
  %vm828 = vweird.f32 %v619
  %vm829 = vweird.f32 %v822
  %vm830 = vmor %vm828, %vm829
  %v831 = vsel %vm830, %v822, %v827
  %v832 = vrsqrt.pop %v620
  %v833 = vmul.f32 %v832, %v620
  %v834 = vmul.f32 %v833, %v832
  %v835 = vmul.f32 0.5, %v834
  %v836 = vsub.f32 1.5, %v835
  %v837 = vmul.f32 %v832, %v836
  %vm838 = vweird.f32 %v620
  %vm839 = vweird.f32 %v832
  %vm840 = vmor %vm838, %vm839
  %v841 = vsel %vm840, %v832, %v837
  %v842 = vrsqrt.pop %v621
  %v843 = vmul.f32 %v842, %v621
  %v844 = vmul.f32 %v843, %v842
  %v845 = vmul.f32 0.5, %v844
  %v846 = vsub.f32 1.5, %v845
  %v847 = vmul.f32 %v842, %v846
  %vm848 = vweird.f32 %v621
  %vm849 = vweird.f32 %v842
  %vm850 = vmor %vm848, %vm849
  %v851 = vsel %vm850, %v842, %v847
  %v852 = vrsqrt.pop %v622
  %v853 = vmul.f32 %v852, %v622
  %v854 = vmul.f32 %v853, %v852
  %v855 = vmul.f32 0.5, %v854
  %v856 = vsub.f32 1.5, %v855
  %v857 = vmul.f32 %v852, %v856
  %vm858 = vweird.f32 %v622
  %vm859 = vweird.f32 %v852
  %vm860 = vmor %vm858, %vm859
  %v861 = vsel %vm860, %v852, %v857
  %v862 = vrsqrt.pop %v623
  %v863 = vmul.f32 %v862, %v623
  %v864 = vmul.f32 %v863, %v862
  %v865 = vmul.f32 0.5, %v864
  %v866 = vsub.f32 1.5, %v865
  %v867 = vmul.f32 %v862, %v866
  %vm868 = vweird.f32 %v623
  %vm869 = vweird.f32 %v862
  %vm870 = vmor %vm868, %vm869
  %v871 = vsel %vm870, %v862, %v867
  %v872 = vrsqrt.pop %v624
  %v873 = vmul.f32 %v872, %v624
  %v874 = vmul.f32 %v873, %v872
  %v875 = vmul.f32 0.5, %v874
  %v876 = vsub.f32 1.5, %v875
  %v877 = vmul.f32 %v872, %v876
  %vm878 = vweird.f32 %v624
  %vm879 = vweird.f32 %v872
  %vm880 = vmor %vm878, %vm879
  %v881 = vsel %vm880, %v872, %v877
  %v882 = vrsqrt.pop %v625
  %v883 = vmul.f32 %v882, %v625
  %v884 = vmul.f32 %v883, %v882
  %v885 = vmul.f32 0.5, %v884
  %v886 = vsub.f32 1.5, %v885
  %v887 = vmul.f32 %v882, %v886
  %vm888 = vweird.f32 %v625
  %vm889 = vweird.f32 %v882
  %vm890 = vmor %vm888, %vm889
  %v891 = vsel %vm890, %v882, %v887
  %v892 = vrsqrt.pop %v626
  %v893 = vmul.f32 %v892, %v626
  %v894 = vmul.f32 %v893, %v892
  %v895 = vmul.f32 0.5, %v894
  %v896 = vsub.f32 1.5, %v895
  %v897 = vmul.f32 %v892, %v896
  %vm898 = vweird.f32 %v626
  %vm899 = vweird.f32 %v892
  %vm900 = vmor %vm898, %vm899
  %v901 = vsel %vm900, %v892, %v897
  %v902 = vrsqrt.pop %v627
  %v903 = vmul.f32 %v902, %v627
  %v904 = vmul.f32 %v903, %v902
  %v905 = vmul.f32 0.5, %v904
  %v906 = vsub.f32 1.5, %v905
  %v907 = vmul.f32 %v902, %v906
  %vm908 = vweird.f32 %v627
  %vm909 = vweird.f32 %v902
  %vm910 = vmor %vm908, %vm909
  %v911 = vsel %vm910, %v902, %v907
  %v912 = vrsqrt.pop %v628
  %v913 = vmul.f32 %v912, %v628
  %v914 = vmul.f32 %v913, %v912
  %v915 = vmul.f32 0.5, %v914
  %v916 = vsub.f32 1.5, %v915
  %v917 = vmul.f32 %v912, %v916
  %vm918 = vweird.f32 %v628
  %vm919 = vweird.f32 %v912
  %vm920 = vmor %vm918, %vm919
  %v921 = vsel %vm920, %v912, %v917
  %v922 = vrsqrt.pop %v629
  %v923 = vmul.f32 %v922, %v629
  %v924 = vmul.f32 %v923, %v922
  %v925 = vmul.f32 0.5, %v924
  %v926 = vsub.f32 1.5, %v925
  %v927 = vmul.f32 %v922, %v926
  %vm928 = vweird.f32 %v629
  %vm929 = vweird.f32 %v922
  %vm930 = vmor %vm928, %vm929
  %v931 = vsel %vm930, %v922, %v927
  %v932 = vrsqrt.pop %v630
  %v933 = vmul.f32 %v932, %v630
  %v934 = vmul.f32 %v933, %v932
  %v935 = vmul.f32 0.5, %v934
  %v936 = vsub.f32 1.5, %v935
  %v937 = vmul.f32 %v932, %v936
  %vm938 = vweird.f32 %v630
  %vm939 = vweird.f32 %v932
  %vm940 = vmor %vm938, %vm939
  %v941 = vsel %vm940, %v932, %v937
  %v942 = vrsqrt.pop %v631
  %v943 = vmul.f32 %v942, %v631
  %v944 = vmul.f32 %v943, %v942
  %v945 = vmul.f32 0.5, %v944
  %v946 = vsub.f32 1.5, %v945
  %v947 = vmul.f32 %v942, %v946
  %vm948 = vweird.f32 %v631
  %vm949 = vweird.f32 %v942
  %vm950 = vmor %vm948, %vm949
  %v951 = vsel %vm950, %v942, %v947
  %v952 = vmul.f32 %v408, %v641
  %v953 = vmul.f32 %v409, %v651
  %v954 = vmul.f32 %v410, %v661
  %v955 = vmul.f32 %v411, %v671
  %v956 = vmul.f32 %v412, %v681
  %v957 = vmul.f32 %v413, %v691
  %v958 = vmul.f32 %v414, %v701
  %v959 = vmul.f32 %v415, %v711
  %v960 = vmul.f32 %v416, %v721
  %v961 = vmul.f32 %v417, %v731
  %v962 = vmul.f32 %v418, %v741
  %v963 = vmul.f32 %v419, %v751
  %v964 = vmul.f32 %v420, %v761
  %v965 = vmul.f32 %v421, %v771
  %v966 = vmul.f32 %v422, %v781
  %v967 = vmul.f32 %v423, %v791
  %v968 = vmul.f32 %v424, %v801
  %v969 = vmul.f32 %v425, %v811
  %v970 = vmul.f32 %v426, %v821
  %v971 = vmul.f32 %v427, %v831
  %v972 = vmul.f32 %v428, %v841
  %v973 = vmul.f32 %v429, %v851
  %v974 = vmul.f32 %v430, %v861
  %v975 = vmul.f32 %v431, %v871
  %v976 = vmul.f32 %v432, %v881
  %v977 = vmul.f32 %v433, %v891
  %v978 = vmul.f32 %v434, %v901
  %v979 = vmul.f32 %v435, %v911
  %v980 = vmul.f32 %v436, %v921
  %v981 = vmul.f32 %v437, %v931
  %v982 = vmul.f32 %v438, %v941
  %v983 = vmul.f32 %v439, %v951
  %v985 = vperm.slane %v271, 0
  %v987 = vmul.f32 %v952, %v985
  %v988 = vmul.f32 %v953, %v985
  %v989 = vmul.f32 %v954, %v985
  %v990 = vmul.f32 %v955, %v985
  %v991 = vmul.f32 %v956, %v985
  %v992 = vmul.f32 %v957, %v985
  %v993 = vmul.f32 %v958, %v985
  %v994 = vmul.f32 %v959, %v985
  %v995 = vmul.f32 %v960, %v985
  %v996 = vmul.f32 %v961, %v985
  %v997 = vmul.f32 %v962, %v985
  %v998 = vmul.f32 %v963, %v985
  %v999 = vmul.f32 %v964, %v985
  %v1000 = vmul.f32 %v965, %v985
  %v1001 = vmul.f32 %v966, %v985
  %v1002 = vmul.f32 %v967, %v985
  %v1003 = vmul.f32 %v968, %v985
  %v1004 = vmul.f32 %v969, %v985
  %v1005 = vmul.f32 %v970, %v985
  %v1006 = vmul.f32 %v971, %v985
  %v1007 = vmul.f32 %v972, %v985
  %v1008 = vmul.f32 %v973, %v985
  %v1009 = vmul.f32 %v974, %v985
  %v1010 = vmul.f32 %v975, %v985
  %v1011 = vmul.f32 %v976, %v985
  %v1012 = vmul.f32 %v977, %v985
  %v1013 = vmul.f32 %v978, %v985
  %v1014 = vmul.f32 %v979, %v985
  %v1015 = vmul.f32 %v980, %v985
  %v1016 = vmul.f32 %v981, %v985
  %v1017 = vmul.f32 %v982, %v985
  %v1018 = vmul.f32 %v983, %v985
  %v1020 = vperm.slane %v272, 0
  %v1022 = vadd.f32 %v987, %v1020
  %v1023 = vadd.f32 %v988, %v1020
  %v1024 = vadd.f32 %v989, %v1020
  %v1025 = vadd.f32 %v990, %v1020
  %v1026 = vadd.f32 %v991, %v1020
  %v1027 = vadd.f32 %v992, %v1020
  %v1028 = vadd.f32 %v993, %v1020
  %v1029 = vadd.f32 %v994, %v1020
  %v1030 = vadd.f32 %v995, %v1020
  %v1031 = vadd.f32 %v996, %v1020
  %v1032 = vadd.f32 %v997, %v1020
  %v1033 = vadd.f32 %v998, %v1020
  %v1034 = vadd.f32 %v999, %v1020
  %v1035 = vadd.f32 %v1000, %v1020
  %v1036 = vadd.f32 %v1001, %v1020
  %v1037 = vadd.f32 %v1002, %v1020
  %v1038 = vadd.f32 %v1003, %v1020
  %v1039 = vadd.f32 %v1004, %v1020
  %v1040 = vadd.f32 %v1005, %v1020
  %v1041 = vadd.f32 %v1006, %v1020
  %v1042 = vadd.f32 %v1007, %v1020
  %v1043 = vadd.f32 %v1008, %v1020
  %v1044 = vadd.f32 %v1009, %v1020
  %v1045 = vadd.f32 %v1010, %v1020
  %v1046 = vadd.f32 %v1011, %v1020
  %v1047 = vadd.f32 %v1012, %v1020
  %v1048 = vadd.f32 %v1013, %v1020
  %v1049 = vadd.f32 %v1014, %v1020
  %v1050 = vadd.f32 %v1015, %v1020
  %v1051 = vadd.f32 %v1016, %v1020
  %v1052 = vadd.f32 %v1017, %v1020
  %v1053 = vadd.f32 %v1018, %v1020
  %v1054 = vmul.f32 %v1022, 0.5
  %v1055 = vmul.f32 %v1023, 0.5
  %v1056 = vmul.f32 %v1024, 0.5
  %v1057 = vmul.f32 %v1025, 0.5
  %v1058 = vmul.f32 %v1026, 0.5
  %v1059 = vmul.f32 %v1027, 0.5
  %v1060 = vmul.f32 %v1028, 0.5
  %v1061 = vmul.f32 %v1029, 0.5
  %v1062 = vmul.f32 %v1030, 0.5
  %v1063 = vmul.f32 %v1031, 0.5
  %v1064 = vmul.f32 %v1032, 0.5
  %v1065 = vmul.f32 %v1033, 0.5
  %v1066 = vmul.f32 %v1034, 0.5
  %v1067 = vmul.f32 %v1035, 0.5
  %v1068 = vmul.f32 %v1036, 0.5
  %v1069 = vmul.f32 %v1037, 0.5
  %v1070 = vmul.f32 %v1038, 0.5
  %v1071 = vmul.f32 %v1039, 0.5
  %v1072 = vmul.f32 %v1040, 0.5
  %v1073 = vmul.f32 %v1041, 0.5
  %v1074 = vmul.f32 %v1042, 0.5
  %v1075 = vmul.f32 %v1043, 0.5
  %v1076 = vmul.f32 %v1044, 0.5
  %v1077 = vmul.f32 %v1045, 0.5
  %v1078 = vmul.f32 %v1046, 0.5
  %v1079 = vmul.f32 %v1047, 0.5
  %v1080 = vmul.f32 %v1048, 0.5
  %v1081 = vmul.f32 %v1049, 0.5
  %v1082 = vmul.f32 %v1050, 0.5
  %v1083 = vmul.f32 %v1051, 0.5
  %v1084 = vmul.f32 %v1052, 0.5
  %v1085 = vmul.f32 %v1053, 0.5
  %v1086 = vmul.f32 %v1022, 0.70710677
  %v1087 = vmul.f32 %v1023, 0.70710677
  %v1088 = vmul.f32 %v1024, 0.70710677
  %v1089 = vmul.f32 %v1025, 0.70710677
  %v1090 = vmul.f32 %v1026, 0.70710677
  %v1091 = vmul.f32 %v1027, 0.70710677
  %v1092 = vmul.f32 %v1028, 0.70710677
  %v1093 = vmul.f32 %v1029, 0.70710677
  %v1094 = vmul.f32 %v1030, 0.70710677
  %v1095 = vmul.f32 %v1031, 0.70710677
  %v1096 = vmul.f32 %v1032, 0.70710677
  %v1097 = vmul.f32 %v1033, 0.70710677
  %v1098 = vmul.f32 %v1034, 0.70710677
  %v1099 = vmul.f32 %v1035, 0.70710677
  %v1100 = vmul.f32 %v1036, 0.70710677
  %v1101 = vmul.f32 %v1037, 0.70710677
  %v1102 = vmul.f32 %v1038, 0.70710677
  %v1103 = vmul.f32 %v1039, 0.70710677
  %v1104 = vmul.f32 %v1040, 0.70710677
  %v1105 = vmul.f32 %v1041, 0.70710677
  %v1106 = vmul.f32 %v1042, 0.70710677
  %v1107 = vmul.f32 %v1043, 0.70710677
  %v1108 = vmul.f32 %v1044, 0.70710677
  %v1109 = vmul.f32 %v1045, 0.70710677
  %v1110 = vmul.f32 %v1046, 0.70710677
  %v1111 = vmul.f32 %v1047, 0.70710677
  %v1112 = vmul.f32 %v1048, 0.70710677
  %v1113 = vmul.f32 %v1049, 0.70710677
  %v1114 = vmul.f32 %v1050, 0.70710677
  %v1115 = vmul.f32 %v1051, 0.70710677
  %v1116 = vmul.f32 %v1052, 0.70710677
  %v1117 = vmul.f32 %v1053, 0.70710677
  %v1118 = vmul.f32 %v1086, %v1086
  %v1119 = vmin.f32 16.0, %v1118
  %v1120 = vmul.f32 %v1119, 2.1237322e-06
  %v1121 = vadd.f32 %v1120, 0.00028619796
  %v1122 = vmul.f32 %v1119, %v1121
  %v1123 = vadd.f32 %v1122, 0.0036580483
  %v1124 = vmul.f32 %v1119, %v1123
  %v1125 = vadd.f32 %v1124, 0.05243302
  %v1126 = vmul.f32 %v1119, %v1125
  %v1127 = vadd.f32 %v1126, 0.18741608
  %v1128 = vmul.f32 %v1119, %v1127
  %v1129 = vadd.f32 %v1128, 1.1283791
  %v1130 = vmul.f32 %v1086, %v1129
  %v1131 = vmul.f32 %v1119, 3.8918573e-05
  %v1132 = vadd.f32 %v1131, 0.001143296
  %v1133 = vmul.f32 %v1119, %v1132
  %v1134 = vadd.f32 %v1133, 0.014752088
  %v1135 = vmul.f32 %v1119, %v1134
  %v1136 = vadd.f32 %v1135, 0.112945676
  %v1137 = vmul.f32 %v1119, %v1136
  %v1138 = vadd.f32 %v1137, 0.4994258
  %v1139 = vmul.f32 %v1119, %v1138
  %v1140 = vadd.f32 %v1139, 1.0
  %v1141 = vrcp.pop %v1140
  %v1142 = vmul.f32 %v1140, %v1141
  %v1143 = vsub.f32 1.0, %v1142
  %v1144 = vmul.f32 %v1141, %v1143
  %v1145 = vadd.f32 %v1141, %v1144
  %vm1146 = vweird.f32 %v1140
  %vm1147 = vweird.f32 %v1141
  %vm1148 = vmor %vm1146, %vm1147
  %v1149 = vsel %vm1148, %v1141, %v1145
  %v1150 = vand.u32 2147483647, %v1140
  %vm1151 = vcmp.eq.f32.partialorder %v1150, 8.507059e+37
  %v1152 = vand.u32 %v1140, 2147483648
  %v1153 = vor.u32 1.1754944e-38, %v1152
  %v1154 = vsel %vm1151, %v1153, %v1149
  %v1155 = vmul.f32 %v1130, %v1154
  %v1156 = vmin.f32 %v1155, 1.0
  %v1157 = vmax.f32 %v1156, -1.0
  %v1158 = vmul.f32 %v1087, %v1087
  %v1159 = vmin.f32 16.0, %v1158
  %v1160 = vmul.f32 %v1159, 2.1237322e-06
  %v1161 = vadd.f32 %v1160, 0.00028619796
  %v1162 = vmul.f32 %v1159, %v1161
  %v1163 = vadd.f32 %v1162, 0.0036580483
  %v1164 = vmul.f32 %v1159, %v1163
  %v1165 = vadd.f32 %v1164, 0.05243302
  %v1166 = vmul.f32 %v1159, %v1165
  %v1167 = vadd.f32 %v1166, 0.18741608
  %v1168 = vmul.f32 %v1159, %v1167
  %v1169 = vadd.f32 %v1168, 1.1283791
  %v1170 = vmul.f32 %v1087, %v1169
  %v1171 = vmul.f32 %v1159, 3.8918573e-05
  %v1172 = vadd.f32 %v1171, 0.001143296
  %v1173 = vmul.f32 %v1159, %v1172
  %v1174 = vadd.f32 %v1173, 0.014752088
  %v1175 = vmul.f32 %v1159, %v1174
  %v1176 = vadd.f32 %v1175, 0.112945676
  %v1177 = vmul.f32 %v1159, %v1176
  %v1178 = vadd.f32 %v1177, 0.4994258
  %v1179 = vmul.f32 %v1159, %v1178
  %v1180 = vadd.f32 %v1179, 1.0
  %v1181 = vrcp.pop %v1180
  %v1182 = vmul.f32 %v1180, %v1181
  %v1183 = vsub.f32 1.0, %v1182
  %v1184 = vmul.f32 %v1181, %v1183
  %v1185 = vadd.f32 %v1181, %v1184
  %vm1186 = vweird.f32 %v1180
  %vm1187 = vweird.f32 %v1181
  %vm1188 = vmor %vm1186, %vm1187
  %v1189 = vsel %vm1188, %v1181, %v1185
  %v1190 = vand.u32 2147483647, %v1180
  %vm1191 = vcmp.eq.f32.partialorder %v1190, 8.507059e+37
  %v1192 = vand.u32 %v1180, 2147483648
  %v1193 = vor.u32 1.1754944e-38, %v1192
  %v1194 = vsel %vm1191, %v1193, %v1189
  %v1195 = vmul.f32 %v1170, %v1194
  %v1196 = vmin.f32 %v1195, 1.0
  %v1197 = vmax.f32 %v1196, -1.0
  %v1198 = vmul.f32 %v1088, %v1088
  %v1199 = vmin.f32 16.0, %v1198
  %v1200 = vmul.f32 %v1199, 2.1237322e-06
  %v1201 = vadd.f32 %v1200, 0.00028619796
  %v1202 = vmul.f32 %v1199, %v1201
  %v1203 = vadd.f32 %v1202, 0.0036580483
  %v1204 = vmul.f32 %v1199, %v1203
  %v1205 = vadd.f32 %v1204, 0.05243302
  %v1206 = vmul.f32 %v1199, %v1205
  %v1207 = vadd.f32 %v1206, 0.18741608
  %v1208 = vmul.f32 %v1199, %v1207
  %v1209 = vadd.f32 %v1208, 1.1283791
  %v1210 = vmul.f32 %v1088, %v1209
  %v1211 = vmul.f32 %v1199, 3.8918573e-05
  %v1212 = vadd.f32 %v1211, 0.001143296
  %v1213 = vmul.f32 %v1199, %v1212
  %v1214 = vadd.f32 %v1213, 0.014752088
  %v1215 = vmul.f32 %v1199, %v1214
  %v1216 = vadd.f32 %v1215, 0.112945676
  %v1217 = vmul.f32 %v1199, %v1216
  %v1218 = vadd.f32 %v1217, 0.4994258
  %v1219 = vmul.f32 %v1199, %v1218
  %v1220 = vadd.f32 %v1219, 1.0
  %v1221 = vrcp.pop %v1220
  %v1222 = vmul.f32 %v1220, %v1221
  %v1223 = vsub.f32 1.0, %v1222
  %v1224 = vmul.f32 %v1221, %v1223
  %v1225 = vadd.f32 %v1221, %v1224
  %vm1226 = vweird.f32 %v1220
  %vm1227 = vweird.f32 %v1221
  %vm1228 = vmor %vm1226, %vm1227
  %v1229 = vsel %vm1228, %v1221, %v1225
  %v1230 = vand.u32 2147483647, %v1220
  %vm1231 = vcmp.eq.f32.partialorder %v1230, 8.507059e+37
  %v1232 = vand.u32 %v1220, 2147483648
  %v1233 = vor.u32 1.1754944e-38, %v1232
  %v1234 = vsel %vm1231, %v1233, %v1229
  %v1235 = vmul.f32 %v1210, %v1234
  %v1236 = vmin.f32 %v1235, 1.0
  %v1237 = vmax.f32 %v1236, -1.0
  %v1238 = vmul.f32 %v1089, %v1089
  %v1239 = vmin.f32 16.0, %v1238
  %v1240 = vmul.f32 %v1239, 2.1237322e-06
  %v1241 = vadd.f32 %v1240, 0.00028619796
  %v1242 = vmul.f32 %v1239, %v1241
  %v1243 = vadd.f32 %v1242, 0.0036580483
  %v1244 = vmul.f32 %v1239, %v1243
  %v1245 = vadd.f32 %v1244, 0.05243302
  %v1246 = vmul.f32 %v1239, %v1245
  %v1247 = vadd.f32 %v1246, 0.18741608
  %v1248 = vmul.f32 %v1239, %v1247
  %v1249 = vadd.f32 %v1248, 1.1283791
  %v1250 = vmul.f32 %v1089, %v1249
  %v1251 = vmul.f32 %v1239, 3.8918573e-05
  %v1252 = vadd.f32 %v1251, 0.001143296
  %v1253 = vmul.f32 %v1239, %v1252
  %v1254 = vadd.f32 %v1253, 0.014752088
  %v1255 = vmul.f32 %v1239, %v1254
  %v1256 = vadd.f32 %v1255, 0.112945676
  %v1257 = vmul.f32 %v1239, %v1256
  %v1258 = vadd.f32 %v1257, 0.4994258
  %v1259 = vmul.f32 %v1239, %v1258
  %v1260 = vadd.f32 %v1259, 1.0
  %v1261 = vrcp.pop %v1260
  %v1262 = vmul.f32 %v1260, %v1261
  %v1263 = vsub.f32 1.0, %v1262
  %v1264 = vmul.f32 %v1261, %v1263
  %v1265 = vadd.f32 %v1261, %v1264
  %vm1266 = vweird.f32 %v1260
  %vm1267 = vweird.f32 %v1261
  %vm1268 = vmor %vm1266, %vm1267
  %v1269 = vsel %vm1268, %v1261, %v1265
  %v1270 = vand.u32 2147483647, %v1260
  %vm1271 = vcmp.eq.f32.partialorder %v1270, 8.507059e+37
  %v1272 = vand.u32 %v1260, 2147483648
  %v1273 = vor.u32 1.1754944e-38, %v1272
  %v1274 = vsel %vm1271, %v1273, %v1269
  %v1275 = vmul.f32 %v1250, %v1274
  %v1276 = vmin.f32 %v1275, 1.0
  %v1277 = vmax.f32 %v1276, -1.0
  %v1278 = vmul.f32 %v1090, %v1090
  %v1279 = vmin.f32 16.0, %v1278
  %v1280 = vmul.f32 %v1279, 2.1237322e-06
  %v1281 = vadd.f32 %v1280, 0.00028619796
  %v1282 = vmul.f32 %v1279, %v1281
  %v1283 = vadd.f32 %v1282, 0.0036580483
  %v1284 = vmul.f32 %v1279, %v1283
  %v1285 = vadd.f32 %v1284, 0.05243302
  %v1286 = vmul.f32 %v1279, %v1285
  %v1287 = vadd.f32 %v1286, 0.18741608
  %v1288 = vmul.f32 %v1279, %v1287
  %v1289 = vadd.f32 %v1288, 1.1283791
  %v1290 = vmul.f32 %v1090, %v1289
  %v1291 = vmul.f32 %v1279, 3.8918573e-05
  %v1292 = vadd.f32 %v1291, 0.001143296
  %v1293 = vmul.f32 %v1279, %v1292
  %v1294 = vadd.f32 %v1293, 0.014752088
  %v1295 = vmul.f32 %v1279, %v1294
  %v1296 = vadd.f32 %v1295, 0.112945676
  %v1297 = vmul.f32 %v1279, %v1296
  %v1298 = vadd.f32 %v1297, 0.4994258
  %v1299 = vmul.f32 %v1279, %v1298
  %v1300 = vadd.f32 %v1299, 1.0
  %v1301 = vrcp.pop %v1300
  %v1302 = vmul.f32 %v1300, %v1301
  %v1303 = vsub.f32 1.0, %v1302
  %v1304 = vmul.f32 %v1301, %v1303
  %v1305 = vadd.f32 %v1301, %v1304
  %vm1306 = vweird.f32 %v1300
  %vm1307 = vweird.f32 %v1301
  %vm1308 = vmor %vm1306, %vm1307
  %v1309 = vsel %vm1308, %v1301, %v1305
  %v1310 = vand.u32 2147483647, %v1300
  %vm1311 = vcmp.eq.f32.partialorder %v1310, 8.507059e+37
  %v1312 = vand.u32 %v1300, 2147483648
  %v1313 = vor.u32 1.1754944e-38, %v1312
  %v1314 = vsel %vm1311, %v1313, %v1309
  %v1315 = vmul.f32 %v1290, %v1314
  %v1316 = vmin.f32 %v1315, 1.0
  %v1317 = vmax.f32 %v1316, -1.0
  %v1318 = vmul.f32 %v1091, %v1091
  %v1319 = vmin.f32 16.0, %v1318
  %v1320 = vmul.f32 %v1319, 2.1237322e-06
  %v1321 = vadd.f32 %v1320, 0.00028619796
  %v1322 = vmul.f32 %v1319, %v1321
  %v1323 = vadd.f32 %v1322, 0.0036580483
  %v1324 = vmul.f32 %v1319, %v1323
  %v1325 = vadd.f32 %v1324, 0.05243302
  %v1326 = vmul.f32 %v1319, %v1325
  %v1327 = vadd.f32 %v1326, 0.18741608
  %v1328 = vmul.f32 %v1319, %v1327
  %v1329 = vadd.f32 %v1328, 1.1283791
  %v1330 = vmul.f32 %v1091, %v1329
  %v1331 = vmul.f32 %v1319, 3.8918573e-05
  %v1332 = vadd.f32 %v1331, 0.001143296
  %v1333 = vmul.f32 %v1319, %v1332
  %v1334 = vadd.f32 %v1333, 0.014752088
  %v1335 = vmul.f32 %v1319, %v1334
  %v1336 = vadd.f32 %v1335, 0.112945676
  %v1337 = vmul.f32 %v1319, %v1336
  %v1338 = vadd.f32 %v1337, 0.4994258
  %v1339 = vmul.f32 %v1319, %v1338
  %v1340 = vadd.f32 %v1339, 1.0
  %v1341 = vrcp.pop %v1340
  %v1342 = vmul.f32 %v1340, %v1341
  %v1343 = vsub.f32 1.0, %v1342
  %v1344 = vmul.f32 %v1341, %v1343
  %v1345 = vadd.f32 %v1341, %v1344
  %vm1346 = vweird.f32 %v1340
  %vm1347 = vweird.f32 %v1341
  %vm1348 = vmor %vm1346, %vm1347
  %v1349 = vsel %vm1348, %v1341, %v1345
  %v1350 = vand.u32 2147483647, %v1340
  %vm1351 = vcmp.eq.f32.partialorder %v1350, 8.507059e+37
  %v1352 = vand.u32 %v1340, 2147483648
  %v1353 = vor.u32 1.1754944e-38, %v1352
  %v1354 = vsel %vm1351, %v1353, %v1349
  %v1355 = vmul.f32 %v1330, %v1354
  %v1356 = vmin.f32 %v1355, 1.0
  %v1357 = vmax.f32 %v1356, -1.0
  %v1358 = vmul.f32 %v1092, %v1092
  %v1359 = vmin.f32 16.0, %v1358
  %v1360 = vmul.f32 %v1359, 2.1237322e-06
  %v1361 = vadd.f32 %v1360, 0.00028619796
  %v1362 = vmul.f32 %v1359, %v1361
  %v1363 = vadd.f32 %v1362, 0.0036580483
  %v1364 = vmul.f32 %v1359, %v1363
  %v1365 = vadd.f32 %v1364, 0.05243302
  %v1366 = vmul.f32 %v1359, %v1365
  %v1367 = vadd.f32 %v1366, 0.18741608
  %v1368 = vmul.f32 %v1359, %v1367
  %v1369 = vadd.f32 %v1368, 1.1283791
  %v1370 = vmul.f32 %v1092, %v1369
  %v1371 = vmul.f32 %v1359, 3.8918573e-05
  %v1372 = vadd.f32 %v1371, 0.001143296
  %v1373 = vmul.f32 %v1359, %v1372
  %v1374 = vadd.f32 %v1373, 0.014752088
  %v1375 = vmul.f32 %v1359, %v1374
  %v1376 = vadd.f32 %v1375, 0.112945676
  %v1377 = vmul.f32 %v1359, %v1376
  %v1378 = vadd.f32 %v1377, 0.4994258
  %v1379 = vmul.f32 %v1359, %v1378
  %v1380 = vadd.f32 %v1379, 1.0
  %v1381 = vrcp.pop %v1380
  %v1382 = vmul.f32 %v1380, %v1381
  %v1383 = vsub.f32 1.0, %v1382
  %v1384 = vmul.f32 %v1381, %v1383
  %v1385 = vadd.f32 %v1381, %v1384
  %vm1386 = vweird.f32 %v1380
  %vm1387 = vweird.f32 %v1381
  %vm1388 = vmor %vm1386, %vm1387
  %v1389 = vsel %vm1388, %v1381, %v1385
  %v1390 = vand.u32 2147483647, %v1380
  %vm1391 = vcmp.eq.f32.partialorder %v1390, 8.507059e+37
  %v1392 = vand.u32 %v1380, 2147483648
  %v1393 = vor.u32 1.1754944e-38, %v1392
  %v1394 = vsel %vm1391, %v1393, %v1389
  %v1395 = vmul.f32 %v1370, %v1394
  %v1396 = vmin.f32 %v1395, 1.0
  %v1397 = vmax.f32 %v1396, -1.0
  %v1398 = vmul.f32 %v1093, %v1093
  %v1399 = vmin.f32 16.0, %v1398
  %v1400 = vmul.f32 %v1399, 2.1237322e-06
  %v1401 = vadd.f32 %v1400, 0.00028619796
  %v1402 = vmul.f32 %v1399, %v1401
  %v1403 = vadd.f32 %v1402, 0.0036580483
  %v1404 = vmul.f32 %v1399, %v1403
  %v1405 = vadd.f32 %v1404, 0.05243302
  %v1406 = vmul.f32 %v1399, %v1405
  %v1407 = vadd.f32 %v1406, 0.18741608
  %v1408 = vmul.f32 %v1399, %v1407
  %v1409 = vadd.f32 %v1408, 1.1283791
  %v1410 = vmul.f32 %v1093, %v1409
  %v1411 = vmul.f32 %v1399, 3.8918573e-05
  %v1412 = vadd.f32 %v1411, 0.001143296
  %v1413 = vmul.f32 %v1399, %v1412
  %v1414 = vadd.f32 %v1413, 0.014752088
  %v1415 = vmul.f32 %v1399, %v1414
  %v1416 = vadd.f32 %v1415, 0.112945676
  %v1417 = vmul.f32 %v1399, %v1416
  %v1418 = vadd.f32 %v1417, 0.4994258
  %v1419 = vmul.f32 %v1399, %v1418
  %v1420 = vadd.f32 %v1419, 1.0
  %v1421 = vrcp.pop %v1420
  %v1422 = vmul.f32 %v1420, %v1421
  %v1423 = vsub.f32 1.0, %v1422
  %v1424 = vmul.f32 %v1421, %v1423
  %v1425 = vadd.f32 %v1421, %v1424
  %vm1426 = vweird.f32 %v1420
  %vm1427 = vweird.f32 %v1421
  %vm1428 = vmor %vm1426, %vm1427
  %v1429 = vsel %vm1428, %v1421, %v1425
  %v1430 = vand.u32 2147483647, %v1420
  %vm1431 = vcmp.eq.f32.partialorder %v1430, 8.507059e+37
  %v1432 = vand.u32 %v1420, 2147483648
  %v1433 = vor.u32 1.1754944e-38, %v1432
  %v1434 = vsel %vm1431, %v1433, %v1429
  %v1435 = vmul.f32 %v1410, %v1434
  %v1436 = vmin.f32 %v1435, 1.0
  %v1437 = vmax.f32 %v1436, -1.0
  %v1438 = vmul.f32 %v1094, %v1094
  %v1439 = vmin.f32 16.0, %v1438
  %v1440 = vmul.f32 %v1439, 2.1237322e-06
  %v1441 = vadd.f32 %v1440, 0.00028619796
  %v1442 = vmul.f32 %v1439, %v1441
  %v1443 = vadd.f32 %v1442, 0.0036580483
  %v1444 = vmul.f32 %v1439, %v1443
  %v1445 = vadd.f32 %v1444, 0.05243302
  %v1446 = vmul.f32 %v1439, %v1445
  %v1447 = vadd.f32 %v1446, 0.18741608
  %v1448 = vmul.f32 %v1439, %v1447
  %v1449 = vadd.f32 %v1448, 1.1283791
  %v1450 = vmul.f32 %v1094, %v1449
  %v1451 = vmul.f32 %v1439, 3.8918573e-05
  %v1452 = vadd.f32 %v1451, 0.001143296
  %v1453 = vmul.f32 %v1439, %v1452
  %v1454 = vadd.f32 %v1453, 0.014752088
  %v1455 = vmul.f32 %v1439, %v1454
  %v1456 = vadd.f32 %v1455, 0.112945676
  %v1457 = vmul.f32 %v1439, %v1456
  %v1458 = vadd.f32 %v1457, 0.4994258
  %v1459 = vmul.f32 %v1439, %v1458
  %v1460 = vadd.f32 %v1459, 1.0
  %v1461 = vrcp.pop %v1460
  %v1462 = vmul.f32 %v1460, %v1461
  %v1463 = vsub.f32 1.0, %v1462
  %v1464 = vmul.f32 %v1461, %v1463
  %v1465 = vadd.f32 %v1461, %v1464
  %vm1466 = vweird.f32 %v1460
  %vm1467 = vweird.f32 %v1461
  %vm1468 = vmor %vm1466, %vm1467
  %v1469 = vsel %vm1468, %v1461, %v1465
  %v1470 = vand.u32 2147483647, %v1460
  %vm1471 = vcmp.eq.f32.partialorder %v1470, 8.507059e+37
  %v1472 = vand.u32 %v1460, 2147483648
  %v1473 = vor.u32 1.1754944e-38, %v1472
  %v1474 = vsel %vm1471, %v1473, %v1469
  %v1475 = vmul.f32 %v1450, %v1474
  %v1476 = vmin.f32 %v1475, 1.0
  %v1477 = vmax.f32 %v1476, -1.0
  %v1478 = vmul.f32 %v1095, %v1095
  %v1479 = vmin.f32 16.0, %v1478
  %v1480 = vmul.f32 %v1479, 2.1237322e-06
  %v1481 = vadd.f32 %v1480, 0.00028619796
  %v1482 = vmul.f32 %v1479, %v1481
  %v1483 = vadd.f32 %v1482, 0.0036580483
  %v1484 = vmul.f32 %v1479, %v1483
  %v1485 = vadd.f32 %v1484, 0.05243302
  %v1486 = vmul.f32 %v1479, %v1485
  %v1487 = vadd.f32 %v1486, 0.18741608
  %v1488 = vmul.f32 %v1479, %v1487
  %v1489 = vadd.f32 %v1488, 1.1283791
  %v1490 = vmul.f32 %v1095, %v1489
  %v1491 = vmul.f32 %v1479, 3.8918573e-05
  %v1492 = vadd.f32 %v1491, 0.001143296
  %v1493 = vmul.f32 %v1479, %v1492
  %v1494 = vadd.f32 %v1493, 0.014752088
  %v1495 = vmul.f32 %v1479, %v1494
  %v1496 = vadd.f32 %v1495, 0.112945676
  %v1497 = vmul.f32 %v1479, %v1496
  %v1498 = vadd.f32 %v1497, 0.4994258
  %v1499 = vmul.f32 %v1479, %v1498
  %v1500 = vadd.f32 %v1499, 1.0
  %v1501 = vrcp.pop %v1500
  %v1502 = vmul.f32 %v1500, %v1501
  %v1503 = vsub.f32 1.0, %v1502
  %v1504 = vmul.f32 %v1501, %v1503
  %v1505 = vadd.f32 %v1501, %v1504
  %vm1506 = vweird.f32 %v1500
  %vm1507 = vweird.f32 %v1501
  %vm1508 = vmor %vm1506, %vm1507
  %v1509 = vsel %vm1508, %v1501, %v1505
  %v1510 = vand.u32 2147483647, %v1500
  %vm1511 = vcmp.eq.f32.partialorder %v1510, 8.507059e+37
  %v1512 = vand.u32 %v1500, 2147483648
  %v1513 = vor.u32 1.1754944e-38, %v1512
  %v1514 = vsel %vm1511, %v1513, %v1509
  %v1515 = vmul.f32 %v1490, %v1514
  %v1516 = vmin.f32 %v1515, 1.0
  %v1517 = vmax.f32 %v1516, -1.0
  %v1518 = vmul.f32 %v1096, %v1096
  %v1519 = vmin.f32 16.0, %v1518
  %v1520 = vmul.f32 %v1519, 2.1237322e-06
  %v1521 = vadd.f32 %v1520, 0.00028619796
  %v1522 = vmul.f32 %v1519, %v1521
  %v1523 = vadd.f32 %v1522, 0.0036580483
  %v1524 = vmul.f32 %v1519, %v1523
  %v1525 = vadd.f32 %v1524, 0.05243302
  %v1526 = vmul.f32 %v1519, %v1525
  %v1527 = vadd.f32 %v1526, 0.18741608
  %v1528 = vmul.f32 %v1519, %v1527
  %v1529 = vadd.f32 %v1528, 1.1283791
  %v1530 = vmul.f32 %v1096, %v1529
  %v1531 = vmul.f32 %v1519, 3.8918573e-05
  %v1532 = vadd.f32 %v1531, 0.001143296
  %v1533 = vmul.f32 %v1519, %v1532
  %v1534 = vadd.f32 %v1533, 0.014752088
  %v1535 = vmul.f32 %v1519, %v1534
  %v1536 = vadd.f32 %v1535, 0.112945676
  %v1537 = vmul.f32 %v1519, %v1536
  %v1538 = vadd.f32 %v1537, 0.4994258
  %v1539 = vmul.f32 %v1519, %v1538
  %v1540 = vadd.f32 %v1539, 1.0
  %v1541 = vrcp.pop %v1540
  %v1542 = vmul.f32 %v1540, %v1541
  %v1543 = vsub.f32 1.0, %v1542
  %v1544 = vmul.f32 %v1541, %v1543
  %v1545 = vadd.f32 %v1541, %v1544
  %vm1546 = vweird.f32 %v1540
  %vm1547 = vweird.f32 %v1541
  %vm1548 = vmor %vm1546, %vm1547
  %v1549 = vsel %vm1548, %v1541, %v1545
  %v1550 = vand.u32 2147483647, %v1540
  %vm1551 = vcmp.eq.f32.partialorder %v1550, 8.507059e+37
  %v1552 = vand.u32 %v1540, 2147483648
  %v1553 = vor.u32 1.1754944e-38, %v1552
  %v1554 = vsel %vm1551, %v1553, %v1549
  %v1555 = vmul.f32 %v1530, %v1554
  %v1556 = vmin.f32 %v1555, 1.0
  %v1557 = vmax.f32 %v1556, -1.0
  %v1558 = vmul.f32 %v1097, %v1097
  %v1559 = vmin.f32 16.0, %v1558
  %v1560 = vmul.f32 %v1559, 2.1237322e-06
  %v1561 = vadd.f32 %v1560, 0.00028619796
  %v1562 = vmul.f32 %v1559, %v1561
  %v1563 = vadd.f32 %v1562, 0.0036580483
  %v1564 = vmul.f32 %v1559, %v1563
  %v1565 = vadd.f32 %v1564, 0.05243302
  %v1566 = vmul.f32 %v1559, %v1565
  %v1567 = vadd.f32 %v1566, 0.18741608
  %v1568 = vmul.f32 %v1559, %v1567
  %v1569 = vadd.f32 %v1568, 1.1283791
  %v1570 = vmul.f32 %v1097, %v1569
  %v1571 = vmul.f32 %v1559, 3.8918573e-05
  %v1572 = vadd.f32 %v1571, 0.001143296
  %v1573 = vmul.f32 %v1559, %v1572
  %v1574 = vadd.f32 %v1573, 0.014752088
  %v1575 = vmul.f32 %v1559, %v1574
  %v1576 = vadd.f32 %v1575, 0.112945676
  %v1577 = vmul.f32 %v1559, %v1576
  %v1578 = vadd.f32 %v1577, 0.4994258
  %v1579 = vmul.f32 %v1559, %v1578
  %v1580 = vadd.f32 %v1579, 1.0
  %v1581 = vrcp.pop %v1580
  %v1582 = vmul.f32 %v1580, %v1581
  %v1583 = vsub.f32 1.0, %v1582
  %v1584 = vmul.f32 %v1581, %v1583
  %v1585 = vadd.f32 %v1581, %v1584
  %vm1586 = vweird.f32 %v1580
  %vm1587 = vweird.f32 %v1581
  %vm1588 = vmor %vm1586, %vm1587
  %v1589 = vsel %vm1588, %v1581, %v1585
  %v1590 = vand.u32 2147483647, %v1580
  %vm1591 = vcmp.eq.f32.partialorder %v1590, 8.507059e+37
  %v1592 = vand.u32 %v1580, 2147483648
  %v1593 = vor.u32 1.1754944e-38, %v1592
  %v1594 = vsel %vm1591, %v1593, %v1589
  %v1595 = vmul.f32 %v1570, %v1594
  %v1596 = vmin.f32 %v1595, 1.0
  %v1597 = vmax.f32 %v1596, -1.0
  %v1598 = vmul.f32 %v1098, %v1098
  %v1599 = vmin.f32 16.0, %v1598
  %v1600 = vmul.f32 %v1599, 2.1237322e-06
  %v1601 = vadd.f32 %v1600, 0.00028619796
  %v1602 = vmul.f32 %v1599, %v1601
  %v1603 = vadd.f32 %v1602, 0.0036580483
  %v1604 = vmul.f32 %v1599, %v1603
  %v1605 = vadd.f32 %v1604, 0.05243302
  %v1606 = vmul.f32 %v1599, %v1605
  %v1607 = vadd.f32 %v1606, 0.18741608
  %v1608 = vmul.f32 %v1599, %v1607
  %v1609 = vadd.f32 %v1608, 1.1283791
  %v1610 = vmul.f32 %v1098, %v1609
  %v1611 = vmul.f32 %v1599, 3.8918573e-05
  %v1612 = vadd.f32 %v1611, 0.001143296
  %v1613 = vmul.f32 %v1599, %v1612
  %v1614 = vadd.f32 %v1613, 0.014752088
  %v1615 = vmul.f32 %v1599, %v1614
  %v1616 = vadd.f32 %v1615, 0.112945676
  %v1617 = vmul.f32 %v1599, %v1616
  %v1618 = vadd.f32 %v1617, 0.4994258
  %v1619 = vmul.f32 %v1599, %v1618
  %v1620 = vadd.f32 %v1619, 1.0
  %v1621 = vrcp.pop %v1620
  %v1622 = vmul.f32 %v1620, %v1621
  %v1623 = vsub.f32 1.0, %v1622
  %v1624 = vmul.f32 %v1621, %v1623
  %v1625 = vadd.f32 %v1621, %v1624
  %vm1626 = vweird.f32 %v1620
  %vm1627 = vweird.f32 %v1621
  %vm1628 = vmor %vm1626, %vm1627
  %v1629 = vsel %vm1628, %v1621, %v1625
  %v1630 = vand.u32 2147483647, %v1620
  %vm1631 = vcmp.eq.f32.partialorder %v1630, 8.507059e+37
  %v1632 = vand.u32 %v1620, 2147483648
  %v1633 = vor.u32 1.1754944e-38, %v1632
  %v1634 = vsel %vm1631, %v1633, %v1629
  %v1635 = vmul.f32 %v1610, %v1634
  %v1636 = vmin.f32 %v1635, 1.0
  %v1637 = vmax.f32 %v1636, -1.0
  %v1638 = vmul.f32 %v1099, %v1099
  %v1639 = vmin.f32 16.0, %v1638
  %v1640 = vmul.f32 %v1639, 2.1237322e-06
  %v1641 = vadd.f32 %v1640, 0.00028619796
  %v1642 = vmul.f32 %v1639, %v1641
  %v1643 = vadd.f32 %v1642, 0.0036580483
  %v1644 = vmul.f32 %v1639, %v1643
  %v1645 = vadd.f32 %v1644, 0.05243302
  %v1646 = vmul.f32 %v1639, %v1645
  %v1647 = vadd.f32 %v1646, 0.18741608
  %v1648 = vmul.f32 %v1639, %v1647
  %v1649 = vadd.f32 %v1648, 1.1283791
  %v1650 = vmul.f32 %v1099, %v1649
  %v1651 = vmul.f32 %v1639, 3.8918573e-05
  %v1652 = vadd.f32 %v1651, 0.001143296
  %v1653 = vmul.f32 %v1639, %v1652
  %v1654 = vadd.f32 %v1653, 0.014752088
  %v1655 = vmul.f32 %v1639, %v1654
  %v1656 = vadd.f32 %v1655, 0.112945676
  %v1657 = vmul.f32 %v1639, %v1656
  %v1658 = vadd.f32 %v1657, 0.4994258
  %v1659 = vmul.f32 %v1639, %v1658
  %v1660 = vadd.f32 %v1659, 1.0
  %v1661 = vrcp.pop %v1660
  %v1662 = vmul.f32 %v1660, %v1661
  %v1663 = vsub.f32 1.0, %v1662
  %v1664 = vmul.f32 %v1661, %v1663
  %v1665 = vadd.f32 %v1661, %v1664
  %vm1666 = vweird.f32 %v1660
  %vm1667 = vweird.f32 %v1661
  %vm1668 = vmor %vm1666, %vm1667
  %v1669 = vsel %vm1668, %v1661, %v1665
  %v1670 = vand.u32 2147483647, %v1660
  %vm1671 = vcmp.eq.f32.partialorder %v1670, 8.507059e+37
  %v1672 = vand.u32 %v1660, 2147483648
  %v1673 = vor.u32 1.1754944e-38, %v1672
  %v1674 = vsel %vm1671, %v1673, %v1669
  %v1675 = vmul.f32 %v1650, %v1674
  %v1676 = vmin.f32 %v1675, 1.0
  %v1677 = vmax.f32 %v1676, -1.0
  %v1678 = vmul.f32 %v1100, %v1100
  %v1679 = vmin.f32 16.0, %v1678
  %v1680 = vmul.f32 %v1679, 2.1237322e-06
  %v1681 = vadd.f32 %v1680, 0.00028619796
  %v1682 = vmul.f32 %v1679, %v1681
  %v1683 = vadd.f32 %v1682, 0.0036580483
  %v1684 = vmul.f32 %v1679, %v1683
  %v1685 = vadd.f32 %v1684, 0.05243302
  %v1686 = vmul.f32 %v1679, %v1685
  %v1687 = vadd.f32 %v1686, 0.18741608
  %v1688 = vmul.f32 %v1679, %v1687
  %v1689 = vadd.f32 %v1688, 1.1283791
  %v1690 = vmul.f32 %v1100, %v1689
  %v1691 = vmul.f32 %v1679, 3.8918573e-05
  %v1692 = vadd.f32 %v1691, 0.001143296
  %v1693 = vmul.f32 %v1679, %v1692
  %v1694 = vadd.f32 %v1693, 0.014752088
  %v1695 = vmul.f32 %v1679, %v1694
  %v1696 = vadd.f32 %v1695, 0.112945676
  %v1697 = vmul.f32 %v1679, %v1696
  %v1698 = vadd.f32 %v1697, 0.4994258
  %v1699 = vmul.f32 %v1679, %v1698
  %v1700 = vadd.f32 %v1699, 1.0
  %v1701 = vrcp.pop %v1700
  %v1702 = vmul.f32 %v1700, %v1701
  %v1703 = vsub.f32 1.0, %v1702
  %v1704 = vmul.f32 %v1701, %v1703
  %v1705 = vadd.f32 %v1701, %v1704
  %vm1706 = vweird.f32 %v1700
  %vm1707 = vweird.f32 %v1701
  %vm1708 = vmor %vm1706, %vm1707
  %v1709 = vsel %vm1708, %v1701, %v1705
  %v1710 = vand.u32 2147483647, %v1700
  %vm1711 = vcmp.eq.f32.partialorder %v1710, 8.507059e+37
  %v1712 = vand.u32 %v1700, 2147483648
  %v1713 = vor.u32 1.1754944e-38, %v1712
  %v1714 = vsel %vm1711, %v1713, %v1709
  %v1715 = vmul.f32 %v1690, %v1714
  %v1716 = vmin.f32 %v1715, 1.0
  %v1717 = vmax.f32 %v1716, -1.0
  %v1718 = vmul.f32 %v1101, %v1101
  %v1719 = vmin.f32 16.0, %v1718
  %v1720 = vmul.f32 %v1719, 2.1237322e-06
  %v1721 = vadd.f32 %v1720, 0.00028619796
  %v1722 = vmul.f32 %v1719, %v1721
  %v1723 = vadd.f32 %v1722, 0.0036580483
  %v1724 = vmul.f32 %v1719, %v1723
  %v1725 = vadd.f32 %v1724, 0.05243302
  %v1726 = vmul.f32 %v1719, %v1725
  %v1727 = vadd.f32 %v1726, 0.18741608
  %v1728 = vmul.f32 %v1719, %v1727
  %v1729 = vadd.f32 %v1728, 1.1283791
  %v1730 = vmul.f32 %v1101, %v1729
  %v1731 = vmul.f32 %v1719, 3.8918573e-05
  %v1732 = vadd.f32 %v1731, 0.001143296
  %v1733 = vmul.f32 %v1719, %v1732
  %v1734 = vadd.f32 %v1733, 0.014752088
  %v1735 = vmul.f32 %v1719, %v1734
  %v1736 = vadd.f32 %v1735, 0.112945676
  %v1737 = vmul.f32 %v1719, %v1736
  %v1738 = vadd.f32 %v1737, 0.4994258
  %v1739 = vmul.f32 %v1719, %v1738
  %v1740 = vadd.f32 %v1739, 1.0
  %v1741 = vrcp.pop %v1740
  %v1742 = vmul.f32 %v1740, %v1741
  %v1743 = vsub.f32 1.0, %v1742
  %v1744 = vmul.f32 %v1741, %v1743
  %v1745 = vadd.f32 %v1741, %v1744
  %vm1746 = vweird.f32 %v1740
  %vm1747 = vweird.f32 %v1741
  %vm1748 = vmor %vm1746, %vm1747
  %v1749 = vsel %vm1748, %v1741, %v1745
  %v1750 = vand.u32 2147483647, %v1740
  %vm1751 = vcmp.eq.f32.partialorder %v1750, 8.507059e+37
  %v1752 = vand.u32 %v1740, 2147483648
  %v1753 = vor.u32 1.1754944e-38, %v1752
  %v1754 = vsel %vm1751, %v1753, %v1749
  %v1755 = vmul.f32 %v1730, %v1754
  %v1756 = vmin.f32 %v1755, 1.0
  %v1757 = vmax.f32 %v1756, -1.0
  %v1758 = vmul.f32 %v1102, %v1102
  %v1759 = vmin.f32 16.0, %v1758
  %v1760 = vmul.f32 %v1759, 2.1237322e-06
  %v1761 = vadd.f32 %v1760, 0.00028619796
  %v1762 = vmul.f32 %v1759, %v1761
  %v1763 = vadd.f32 %v1762, 0.0036580483
  %v1764 = vmul.f32 %v1759, %v1763
  %v1765 = vadd.f32 %v1764, 0.05243302
  %v1766 = vmul.f32 %v1759, %v1765
  %v1767 = vadd.f32 %v1766, 0.18741608
  %v1768 = vmul.f32 %v1759, %v1767
  %v1769 = vadd.f32 %v1768, 1.1283791
  %v1770 = vmul.f32 %v1102, %v1769
  %v1771 = vmul.f32 %v1759, 3.8918573e-05
  %v1772 = vadd.f32 %v1771, 0.001143296
  %v1773 = vmul.f32 %v1759, %v1772
  %v1774 = vadd.f32 %v1773, 0.014752088
  %v1775 = vmul.f32 %v1759, %v1774
  %v1776 = vadd.f32 %v1775, 0.112945676
  %v1777 = vmul.f32 %v1759, %v1776
  %v1778 = vadd.f32 %v1777, 0.4994258
  %v1779 = vmul.f32 %v1759, %v1778
  %v1780 = vadd.f32 %v1779, 1.0
  %v1781 = vrcp.pop %v1780
  %v1782 = vmul.f32 %v1780, %v1781
  %v1783 = vsub.f32 1.0, %v1782
  %v1784 = vmul.f32 %v1781, %v1783
  %v1785 = vadd.f32 %v1781, %v1784
  %vm1786 = vweird.f32 %v1780
  %vm1787 = vweird.f32 %v1781
  %vm1788 = vmor %vm1786, %vm1787
  %v1789 = vsel %vm1788, %v1781, %v1785
  %v1790 = vand.u32 2147483647, %v1780
  %vm1791 = vcmp.eq.f32.partialorder %v1790, 8.507059e+37
  %v1792 = vand.u32 %v1780, 2147483648
  %v1793 = vor.u32 1.1754944e-38, %v1792
  %v1794 = vsel %vm1791, %v1793, %v1789
  %v1795 = vmul.f32 %v1770, %v1794
  %v1796 = vmin.f32 %v1795, 1.0
  %v1797 = vmax.f32 %v1796, -1.0
  %v1798 = vmul.f32 %v1103, %v1103
  %v1799 = vmin.f32 16.0, %v1798
  %v1800 = vmul.f32 %v1799, 2.1237322e-06
  %v1801 = vadd.f32 %v1800, 0.00028619796
  %v1802 = vmul.f32 %v1799, %v1801
  %v1803 = vadd.f32 %v1802, 0.0036580483
  %v1804 = vmul.f32 %v1799, %v1803
  %v1805 = vadd.f32 %v1804, 0.05243302
  %v1806 = vmul.f32 %v1799, %v1805
  %v1807 = vadd.f32 %v1806, 0.18741608
  %v1808 = vmul.f32 %v1799, %v1807
  %v1809 = vadd.f32 %v1808, 1.1283791
  %v1810 = vmul.f32 %v1103, %v1809
  %v1811 = vmul.f32 %v1799, 3.8918573e-05
  %v1812 = vadd.f32 %v1811, 0.001143296
  %v1813 = vmul.f32 %v1799, %v1812
  %v1814 = vadd.f32 %v1813, 0.014752088
  %v1815 = vmul.f32 %v1799, %v1814
  %v1816 = vadd.f32 %v1815, 0.112945676
  %v1817 = vmul.f32 %v1799, %v1816
  %v1818 = vadd.f32 %v1817, 0.4994258
  %v1819 = vmul.f32 %v1799, %v1818
  %v1820 = vadd.f32 %v1819, 1.0
  %v1821 = vrcp.pop %v1820
  %v1822 = vmul.f32 %v1820, %v1821
  %v1823 = vsub.f32 1.0, %v1822
  %v1824 = vmul.f32 %v1821, %v1823
  %v1825 = vadd.f32 %v1821, %v1824
  %vm1826 = vweird.f32 %v1820
  %vm1827 = vweird.f32 %v1821
  %vm1828 = vmor %vm1826, %vm1827
  %v1829 = vsel %vm1828, %v1821, %v1825
  %v1830 = vand.u32 2147483647, %v1820
  %vm1831 = vcmp.eq.f32.partialorder %v1830, 8.507059e+37
  %v1832 = vand.u32 %v1820, 2147483648
  %v1833 = vor.u32 1.1754944e-38, %v1832
  %v1834 = vsel %vm1831, %v1833, %v1829
  %v1835 = vmul.f32 %v1810, %v1834
  %v1836 = vmin.f32 %v1835, 1.0
  %v1837 = vmax.f32 %v1836, -1.0
  %v1838 = vmul.f32 %v1104, %v1104
  %v1839 = vmin.f32 16.0, %v1838
  %v1840 = vmul.f32 %v1839, 2.1237322e-06
  %v1841 = vadd.f32 %v1840, 0.00028619796
  %v1842 = vmul.f32 %v1839, %v1841
  %v1843 = vadd.f32 %v1842, 0.0036580483
  %v1844 = vmul.f32 %v1839, %v1843
  %v1845 = vadd.f32 %v1844, 0.05243302
  %v1846 = vmul.f32 %v1839, %v1845
  %v1847 = vadd.f32 %v1846, 0.18741608
  %v1848 = vmul.f32 %v1839, %v1847
  %v1849 = vadd.f32 %v1848, 1.1283791
  %v1850 = vmul.f32 %v1104, %v1849
  %v1851 = vmul.f32 %v1839, 3.8918573e-05
  %v1852 = vadd.f32 %v1851, 0.001143296
  %v1853 = vmul.f32 %v1839, %v1852
  %v1854 = vadd.f32 %v1853, 0.014752088
  %v1855 = vmul.f32 %v1839, %v1854
  %v1856 = vadd.f32 %v1855, 0.112945676
  %v1857 = vmul.f32 %v1839, %v1856
  %v1858 = vadd.f32 %v1857, 0.4994258
  %v1859 = vmul.f32 %v1839, %v1858
  %v1860 = vadd.f32 %v1859, 1.0
  %v1861 = vrcp.pop %v1860
  %v1862 = vmul.f32 %v1860, %v1861
  %v1863 = vsub.f32 1.0, %v1862
  %v1864 = vmul.f32 %v1861, %v1863
  %v1865 = vadd.f32 %v1861, %v1864
  %vm1866 = vweird.f32 %v1860
  %vm1867 = vweird.f32 %v1861
  %vm1868 = vmor %vm1866, %vm1867
  %v1869 = vsel %vm1868, %v1861, %v1865
  %v1870 = vand.u32 2147483647, %v1860
  %vm1871 = vcmp.eq.f32.partialorder %v1870, 8.507059e+37
  %v1872 = vand.u32 %v1860, 2147483648
  %v1873 = vor.u32 1.1754944e-38, %v1872
  %v1874 = vsel %vm1871, %v1873, %v1869
  %v1875 = vmul.f32 %v1850, %v1874
  %v1876 = vmin.f32 %v1875, 1.0
  %v1877 = vmax.f32 %v1876, -1.0
  %v1878 = vmul.f32 %v1105, %v1105
  %v1879 = vmin.f32 16.0, %v1878
  %v1880 = vmul.f32 %v1879, 2.1237322e-06
  %v1881 = vadd.f32 %v1880, 0.00028619796
  %v1882 = vmul.f32 %v1879, %v1881
  %v1883 = vadd.f32 %v1882, 0.0036580483
  %v1884 = vmul.f32 %v1879, %v1883
  %v1885 = vadd.f32 %v1884, 0.05243302
  %v1886 = vmul.f32 %v1879, %v1885
  %v1887 = vadd.f32 %v1886, 0.18741608
  %v1888 = vmul.f32 %v1879, %v1887
  %v1889 = vadd.f32 %v1888, 1.1283791
  %v1890 = vmul.f32 %v1105, %v1889
  %v1891 = vmul.f32 %v1879, 3.8918573e-05
  %v1892 = vadd.f32 %v1891, 0.001143296
  %v1893 = vmul.f32 %v1879, %v1892
  %v1894 = vadd.f32 %v1893, 0.014752088
  %v1895 = vmul.f32 %v1879, %v1894
  %v1896 = vadd.f32 %v1895, 0.112945676
  %v1897 = vmul.f32 %v1879, %v1896
  %v1898 = vadd.f32 %v1897, 0.4994258
  %v1899 = vmul.f32 %v1879, %v1898
  %v1900 = vadd.f32 %v1899, 1.0
  %v1901 = vrcp.pop %v1900
  %v1902 = vmul.f32 %v1900, %v1901
  %v1903 = vsub.f32 1.0, %v1902
  %v1904 = vmul.f32 %v1901, %v1903
  %v1905 = vadd.f32 %v1901, %v1904
  %vm1906 = vweird.f32 %v1900
  %vm1907 = vweird.f32 %v1901
  %vm1908 = vmor %vm1906, %vm1907
  %v1909 = vsel %vm1908, %v1901, %v1905
  %v1910 = vand.u32 2147483647, %v1900
  %vm1911 = vcmp.eq.f32.partialorder %v1910, 8.507059e+37
  %v1912 = vand.u32 %v1900, 2147483648
  %v1913 = vor.u32 1.1754944e-38, %v1912
  %v1914 = vsel %vm1911, %v1913, %v1909
  %v1915 = vmul.f32 %v1890, %v1914
  %v1916 = vmin.f32 %v1915, 1.0
  %v1917 = vmax.f32 %v1916, -1.0
  %v1918 = vmul.f32 %v1106, %v1106
  %v1919 = vmin.f32 16.0, %v1918
  %v1920 = vmul.f32 %v1919, 2.1237322e-06
  %v1921 = vadd.f32 %v1920, 0.00028619796
  %v1922 = vmul.f32 %v1919, %v1921
  %v1923 = vadd.f32 %v1922, 0.0036580483
  %v1924 = vmul.f32 %v1919, %v1923
  %v1925 = vadd.f32 %v1924, 0.05243302
  %v1926 = vmul.f32 %v1919, %v1925
  %v1927 = vadd.f32 %v1926, 0.18741608
  %v1928 = vmul.f32 %v1919, %v1927
  %v1929 = vadd.f32 %v1928, 1.1283791
  %v1930 = vmul.f32 %v1106, %v1929
  %v1931 = vmul.f32 %v1919, 3.8918573e-05
  %v1932 = vadd.f32 %v1931, 0.001143296
  %v1933 = vmul.f32 %v1919, %v1932
  %v1934 = vadd.f32 %v1933, 0.014752088
  %v1935 = vmul.f32 %v1919, %v1934
  %v1936 = vadd.f32 %v1935, 0.112945676
  %v1937 = vmul.f32 %v1919, %v1936
  %v1938 = vadd.f32 %v1937, 0.4994258
  %v1939 = vmul.f32 %v1919, %v1938
  %v1940 = vadd.f32 %v1939, 1.0
  %v1941 = vrcp.pop %v1940
  %v1942 = vmul.f32 %v1940, %v1941
  %v1943 = vsub.f32 1.0, %v1942
  %v1944 = vmul.f32 %v1941, %v1943
  %v1945 = vadd.f32 %v1941, %v1944
  %vm1946 = vweird.f32 %v1940
  %vm1947 = vweird.f32 %v1941
  %vm1948 = vmor %vm1946, %vm1947
  %v1949 = vsel %vm1948, %v1941, %v1945
  %v1950 = vand.u32 2147483647, %v1940
  %vm1951 = vcmp.eq.f32.partialorder %v1950, 8.507059e+37
  %v1952 = vand.u32 %v1940, 2147483648
  %v1953 = vor.u32 1.1754944e-38, %v1952
  %v1954 = vsel %vm1951, %v1953, %v1949
  %v1955 = vmul.f32 %v1930, %v1954
  %v1956 = vmin.f32 %v1955, 1.0
  %v1957 = vmax.f32 %v1956, -1.0
  %v1958 = vmul.f32 %v1107, %v1107
  %v1959 = vmin.f32 16.0, %v1958
  %v1960 = vmul.f32 %v1959, 2.1237322e-06
  %v1961 = vadd.f32 %v1960, 0.00028619796
  %v1962 = vmul.f32 %v1959, %v1961
  %v1963 = vadd.f32 %v1962, 0.0036580483
  %v1964 = vmul.f32 %v1959, %v1963
  %v1965 = vadd.f32 %v1964, 0.05243302
  %v1966 = vmul.f32 %v1959, %v1965
  %v1967 = vadd.f32 %v1966, 0.18741608
  %v1968 = vmul.f32 %v1959, %v1967
  %v1969 = vadd.f32 %v1968, 1.1283791
  %v1970 = vmul.f32 %v1107, %v1969
  %v1971 = vmul.f32 %v1959, 3.8918573e-05
  %v1972 = vadd.f32 %v1971, 0.001143296
  %v1973 = vmul.f32 %v1959, %v1972
  %v1974 = vadd.f32 %v1973, 0.014752088
  %v1975 = vmul.f32 %v1959, %v1974
  %v1976 = vadd.f32 %v1975, 0.112945676
  %v1977 = vmul.f32 %v1959, %v1976
  %v1978 = vadd.f32 %v1977, 0.4994258
  %v1979 = vmul.f32 %v1959, %v1978
  %v1980 = vadd.f32 %v1979, 1.0
  %v1981 = vrcp.pop %v1980
  %v1982 = vmul.f32 %v1980, %v1981
  %v1983 = vsub.f32 1.0, %v1982
  %v1984 = vmul.f32 %v1981, %v1983
  %v1985 = vadd.f32 %v1981, %v1984
  %vm1986 = vweird.f32 %v1980
  %vm1987 = vweird.f32 %v1981
  %vm1988 = vmor %vm1986, %vm1987
  %v1989 = vsel %vm1988, %v1981, %v1985
  %v1990 = vand.u32 2147483647, %v1980
  %vm1991 = vcmp.eq.f32.partialorder %v1990, 8.507059e+37
  %v1992 = vand.u32 %v1980, 2147483648
  %v1993 = vor.u32 1.1754944e-38, %v1992
  %v1994 = vsel %vm1991, %v1993, %v1989
  %v1995 = vmul.f32 %v1970, %v1994
  %v1996 = vmin.f32 %v1995, 1.0
  %v1997 = vmax.f32 %v1996, -1.0
  %v1998 = vmul.f32 %v1108, %v1108
  %v1999 = vmin.f32 16.0, %v1998
  %v2000 = vmul.f32 %v1999, 2.1237322e-06
  %v2001 = vadd.f32 %v2000, 0.00028619796
  %v2002 = vmul.f32 %v1999, %v2001
  %v2003 = vadd.f32 %v2002, 0.0036580483
  %v2004 = vmul.f32 %v1999, %v2003
  %v2005 = vadd.f32 %v2004, 0.05243302
  %v2006 = vmul.f32 %v1999, %v2005
  %v2007 = vadd.f32 %v2006, 0.18741608
  %v2008 = vmul.f32 %v1999, %v2007
  %v2009 = vadd.f32 %v2008, 1.1283791
  %v2010 = vmul.f32 %v1108, %v2009
  %v2011 = vmul.f32 %v1999, 3.8918573e-05
  %v2012 = vadd.f32 %v2011, 0.001143296
  %v2013 = vmul.f32 %v1999, %v2012
  %v2014 = vadd.f32 %v2013, 0.014752088
  %v2015 = vmul.f32 %v1999, %v2014
  %v2016 = vadd.f32 %v2015, 0.112945676
  %v2017 = vmul.f32 %v1999, %v2016
  %v2018 = vadd.f32 %v2017, 0.4994258
  %v2019 = vmul.f32 %v1999, %v2018
  %v2020 = vadd.f32 %v2019, 1.0
  %v2021 = vrcp.pop %v2020
  %v2022 = vmul.f32 %v2020, %v2021
  %v2023 = vsub.f32 1.0, %v2022
  %v2024 = vmul.f32 %v2021, %v2023
  %v2025 = vadd.f32 %v2021, %v2024
  %vm2026 = vweird.f32 %v2020
  %vm2027 = vweird.f32 %v2021
  %vm2028 = vmor %vm2026, %vm2027
  %v2029 = vsel %vm2028, %v2021, %v2025
  %v2030 = vand.u32 2147483647, %v2020
  %vm2031 = vcmp.eq.f32.partialorder %v2030, 8.507059e+37
  %v2032 = vand.u32 %v2020, 2147483648
  %v2033 = vor.u32 1.1754944e-38, %v2032
  %v2034 = vsel %vm2031, %v2033, %v2029
  %v2035 = vmul.f32 %v2010, %v2034
  %v2036 = vmin.f32 %v2035, 1.0
  %v2037 = vmax.f32 %v2036, -1.0
  %v2038 = vmul.f32 %v1109, %v1109
  %v2039 = vmin.f32 16.0, %v2038
  %v2040 = vmul.f32 %v2039, 2.1237322e-06
  %v2041 = vadd.f32 %v2040, 0.00028619796
  %v2042 = vmul.f32 %v2039, %v2041
  %v2043 = vadd.f32 %v2042, 0.0036580483
  %v2044 = vmul.f32 %v2039, %v2043
  %v2045 = vadd.f32 %v2044, 0.05243302
  %v2046 = vmul.f32 %v2039, %v2045
  %v2047 = vadd.f32 %v2046, 0.18741608
  %v2048 = vmul.f32 %v2039, %v2047
  %v2049 = vadd.f32 %v2048, 1.1283791
  %v2050 = vmul.f32 %v1109, %v2049
  %v2051 = vmul.f32 %v2039, 3.8918573e-05
  %v2052 = vadd.f32 %v2051, 0.001143296
  %v2053 = vmul.f32 %v2039, %v2052
  %v2054 = vadd.f32 %v2053, 0.014752088
  %v2055 = vmul.f32 %v2039, %v2054
  %v2056 = vadd.f32 %v2055, 0.112945676
  %v2057 = vmul.f32 %v2039, %v2056
  %v2058 = vadd.f32 %v2057, 0.4994258
  %v2059 = vmul.f32 %v2039, %v2058
  %v2060 = vadd.f32 %v2059, 1.0
  %v2061 = vrcp.pop %v2060
  %v2062 = vmul.f32 %v2060, %v2061
  %v2063 = vsub.f32 1.0, %v2062
  %v2064 = vmul.f32 %v2061, %v2063
  %v2065 = vadd.f32 %v2061, %v2064
  %vm2066 = vweird.f32 %v2060
  %vm2067 = vweird.f32 %v2061
  %vm2068 = vmor %vm2066, %vm2067
  %v2069 = vsel %vm2068, %v2061, %v2065
  %v2070 = vand.u32 2147483647, %v2060
  %vm2071 = vcmp.eq.f32.partialorder %v2070, 8.507059e+37
  %v2072 = vand.u32 %v2060, 2147483648
  %v2073 = vor.u32 1.1754944e-38, %v2072
  %v2074 = vsel %vm2071, %v2073, %v2069
  %v2075 = vmul.f32 %v2050, %v2074
  %v2076 = vmin.f32 %v2075, 1.0
  %v2077 = vmax.f32 %v2076, -1.0
  %v2078 = vmul.f32 %v1110, %v1110
  %v2079 = vmin.f32 16.0, %v2078
  %v2080 = vmul.f32 %v2079, 2.1237322e-06
  %v2081 = vadd.f32 %v2080, 0.00028619796
  %v2082 = vmul.f32 %v2079, %v2081
  %v2083 = vadd.f32 %v2082, 0.0036580483
  %v2084 = vmul.f32 %v2079, %v2083
  %v2085 = vadd.f32 %v2084, 0.05243302
  %v2086 = vmul.f32 %v2079, %v2085
  %v2087 = vadd.f32 %v2086, 0.18741608
  %v2088 = vmul.f32 %v2079, %v2087
  %v2089 = vadd.f32 %v2088, 1.1283791
  %v2090 = vmul.f32 %v1110, %v2089
  %v2091 = vmul.f32 %v2079, 3.8918573e-05
  %v2092 = vadd.f32 %v2091, 0.001143296
  %v2093 = vmul.f32 %v2079, %v2092
  %v2094 = vadd.f32 %v2093, 0.014752088
  %v2095 = vmul.f32 %v2079, %v2094
  %v2096 = vadd.f32 %v2095, 0.112945676
  %v2097 = vmul.f32 %v2079, %v2096
  %v2098 = vadd.f32 %v2097, 0.4994258
  %v2099 = vmul.f32 %v2079, %v2098
  %v2100 = vadd.f32 %v2099, 1.0
  %v2101 = vrcp.pop %v2100
  %v2102 = vmul.f32 %v2100, %v2101
  %v2103 = vsub.f32 1.0, %v2102
  %v2104 = vmul.f32 %v2101, %v2103
  %v2105 = vadd.f32 %v2101, %v2104
  %vm2106 = vweird.f32 %v2100
  %vm2107 = vweird.f32 %v2101
  %vm2108 = vmor %vm2106, %vm2107
  %v2109 = vsel %vm2108, %v2101, %v2105
  %v2110 = vand.u32 2147483647, %v2100
  %vm2111 = vcmp.eq.f32.partialorder %v2110, 8.507059e+37
  %v2112 = vand.u32 %v2100, 2147483648
  %v2113 = vor.u32 1.1754944e-38, %v2112
  %v2114 = vsel %vm2111, %v2113, %v2109
  %v2115 = vmul.f32 %v2090, %v2114
  %v2116 = vmin.f32 %v2115, 1.0
  %v2117 = vmax.f32 %v2116, -1.0
  %v2118 = vmul.f32 %v1111, %v1111
  %v2119 = vmin.f32 16.0, %v2118
  %v2120 = vmul.f32 %v2119, 2.1237322e-06
  %v2121 = vadd.f32 %v2120, 0.00028619796
  %v2122 = vmul.f32 %v2119, %v2121
  %v2123 = vadd.f32 %v2122, 0.0036580483
  %v2124 = vmul.f32 %v2119, %v2123
  %v2125 = vadd.f32 %v2124, 0.05243302
  %v2126 = vmul.f32 %v2119, %v2125
  %v2127 = vadd.f32 %v2126, 0.18741608
  %v2128 = vmul.f32 %v2119, %v2127
  %v2129 = vadd.f32 %v2128, 1.1283791
  %v2130 = vmul.f32 %v1111, %v2129
  %v2131 = vmul.f32 %v2119, 3.8918573e-05
  %v2132 = vadd.f32 %v2131, 0.001143296
  %v2133 = vmul.f32 %v2119, %v2132
  %v2134 = vadd.f32 %v2133, 0.014752088
  %v2135 = vmul.f32 %v2119, %v2134
  %v2136 = vadd.f32 %v2135, 0.112945676
  %v2137 = vmul.f32 %v2119, %v2136
  %v2138 = vadd.f32 %v2137, 0.4994258
  %v2139 = vmul.f32 %v2119, %v2138
  %v2140 = vadd.f32 %v2139, 1.0
  %v2141 = vrcp.pop %v2140
  %v2142 = vmul.f32 %v2140, %v2141
  %v2143 = vsub.f32 1.0, %v2142
  %v2144 = vmul.f32 %v2141, %v2143
  %v2145 = vadd.f32 %v2141, %v2144
  %vm2146 = vweird.f32 %v2140
  %vm2147 = vweird.f32 %v2141
  %vm2148 = vmor %vm2146, %vm2147
  %v2149 = vsel %vm2148, %v2141, %v2145
  %v2150 = vand.u32 2147483647, %v2140
  %vm2151 = vcmp.eq.f32.partialorder %v2150, 8.507059e+37
  %v2152 = vand.u32 %v2140, 2147483648
  %v2153 = vor.u32 1.1754944e-38, %v2152
  %v2154 = vsel %vm2151, %v2153, %v2149
  %v2155 = vmul.f32 %v2130, %v2154
  %v2156 = vmin.f32 %v2155, 1.0
  %v2157 = vmax.f32 %v2156, -1.0
  %v2158 = vmul.f32 %v1112, %v1112
  %v2159 = vmin.f32 16.0, %v2158
  %v2160 = vmul.f32 %v2159, 2.1237322e-06
  %v2161 = vadd.f32 %v2160, 0.00028619796
  %v2162 = vmul.f32 %v2159, %v2161
  %v2163 = vadd.f32 %v2162, 0.0036580483
  %v2164 = vmul.f32 %v2159, %v2163
  %v2165 = vadd.f32 %v2164, 0.05243302
  %v2166 = vmul.f32 %v2159, %v2165
  %v2167 = vadd.f32 %v2166, 0.18741608
  %v2168 = vmul.f32 %v2159, %v2167
  %v2169 = vadd.f32 %v2168, 1.1283791
  %v2170 = vmul.f32 %v1112, %v2169
  %v2171 = vmul.f32 %v2159, 3.8918573e-05
  %v2172 = vadd.f32 %v2171, 0.001143296
  %v2173 = vmul.f32 %v2159, %v2172
  %v2174 = vadd.f32 %v2173, 0.014752088
  %v2175 = vmul.f32 %v2159, %v2174
  %v2176 = vadd.f32 %v2175, 0.112945676
  %v2177 = vmul.f32 %v2159, %v2176
  %v2178 = vadd.f32 %v2177, 0.4994258
  %v2179 = vmul.f32 %v2159, %v2178
  %v2180 = vadd.f32 %v2179, 1.0
  %v2181 = vrcp.pop %v2180
  %v2182 = vmul.f32 %v2180, %v2181
  %v2183 = vsub.f32 1.0, %v2182
  %v2184 = vmul.f32 %v2181, %v2183
  %v2185 = vadd.f32 %v2181, %v2184
  %vm2186 = vweird.f32 %v2180
  %vm2187 = vweird.f32 %v2181
  %vm2188 = vmor %vm2186, %vm2187
  %v2189 = vsel %vm2188, %v2181, %v2185
  %v2190 = vand.u32 2147483647, %v2180
  %vm2191 = vcmp.eq.f32.partialorder %v2190, 8.507059e+37
  %v2192 = vand.u32 %v2180, 2147483648
  %v2193 = vor.u32 1.1754944e-38, %v2192
  %v2194 = vsel %vm2191, %v2193, %v2189
  %v2195 = vmul.f32 %v2170, %v2194
  %v2196 = vmin.f32 %v2195, 1.0
  %v2197 = vmax.f32 %v2196, -1.0
  %v2198 = vmul.f32 %v1113, %v1113
  %v2199 = vmin.f32 16.0, %v2198
  %v2200 = vmul.f32 %v2199, 2.1237322e-06
  %v2201 = vadd.f32 %v2200, 0.00028619796
  %v2202 = vmul.f32 %v2199, %v2201
  %v2203 = vadd.f32 %v2202, 0.0036580483
  %v2204 = vmul.f32 %v2199, %v2203
  %v2205 = vadd.f32 %v2204, 0.05243302
  %v2206 = vmul.f32 %v2199, %v2205
  %v2207 = vadd.f32 %v2206, 0.18741608
  %v2208 = vmul.f32 %v2199, %v2207
  %v2209 = vadd.f32 %v2208, 1.1283791
  %v2210 = vmul.f32 %v1113, %v2209
  %v2211 = vmul.f32 %v2199, 3.8918573e-05
  %v2212 = vadd.f32 %v2211, 0.001143296
  %v2213 = vmul.f32 %v2199, %v2212
  %v2214 = vadd.f32 %v2213, 0.014752088
  %v2215 = vmul.f32 %v2199, %v2214
  %v2216 = vadd.f32 %v2215, 0.112945676
  %v2217 = vmul.f32 %v2199, %v2216
  %v2218 = vadd.f32 %v2217, 0.4994258
  %v2219 = vmul.f32 %v2199, %v2218
  %v2220 = vadd.f32 %v2219, 1.0
  %v2221 = vrcp.pop %v2220
  %v2222 = vmul.f32 %v2220, %v2221
  %v2223 = vsub.f32 1.0, %v2222
  %v2224 = vmul.f32 %v2221, %v2223
  %v2225 = vadd.f32 %v2221, %v2224
  %vm2226 = vweird.f32 %v2220
  %vm2227 = vweird.f32 %v2221
  %vm2228 = vmor %vm2226, %vm2227
  %v2229 = vsel %vm2228, %v2221, %v2225
  %v2230 = vand.u32 2147483647, %v2220
  %vm2231 = vcmp.eq.f32.partialorder %v2230, 8.507059e+37
  %v2232 = vand.u32 %v2220, 2147483648
  %v2233 = vor.u32 1.1754944e-38, %v2232
  %v2234 = vsel %vm2231, %v2233, %v2229
  %v2235 = vmul.f32 %v2210, %v2234
  %v2236 = vmin.f32 %v2235, 1.0
  %v2237 = vmax.f32 %v2236, -1.0
  %v2238 = vmul.f32 %v1114, %v1114
  %v2239 = vmin.f32 16.0, %v2238
  %v2240 = vmul.f32 %v2239, 2.1237322e-06
  %v2241 = vadd.f32 %v2240, 0.00028619796
  %v2242 = vmul.f32 %v2239, %v2241
  %v2243 = vadd.f32 %v2242, 0.0036580483
  %v2244 = vmul.f32 %v2239, %v2243
  %v2245 = vadd.f32 %v2244, 0.05243302
  %v2246 = vmul.f32 %v2239, %v2245
  %v2247 = vadd.f32 %v2246, 0.18741608
  %v2248 = vmul.f32 %v2239, %v2247
  %v2249 = vadd.f32 %v2248, 1.1283791
  %v2250 = vmul.f32 %v1114, %v2249
  %v2251 = vmul.f32 %v2239, 3.8918573e-05
  %v2252 = vadd.f32 %v2251, 0.001143296
  %v2253 = vmul.f32 %v2239, %v2252
  %v2254 = vadd.f32 %v2253, 0.014752088
  %v2255 = vmul.f32 %v2239, %v2254
  %v2256 = vadd.f32 %v2255, 0.112945676
  %v2257 = vmul.f32 %v2239, %v2256
  %v2258 = vadd.f32 %v2257, 0.4994258
  %v2259 = vmul.f32 %v2239, %v2258
  %v2260 = vadd.f32 %v2259, 1.0
  %v2261 = vrcp.pop %v2260
  %v2262 = vmul.f32 %v2260, %v2261
  %v2263 = vsub.f32 1.0, %v2262
  %v2264 = vmul.f32 %v2261, %v2263
  %v2265 = vadd.f32 %v2261, %v2264
  %vm2266 = vweird.f32 %v2260
  %vm2267 = vweird.f32 %v2261
  %vm2268 = vmor %vm2266, %vm2267
  %v2269 = vsel %vm2268, %v2261, %v2265
  %v2270 = vand.u32 2147483647, %v2260
  %vm2271 = vcmp.eq.f32.partialorder %v2270, 8.507059e+37
  %v2272 = vand.u32 %v2260, 2147483648
  %v2273 = vor.u32 1.1754944e-38, %v2272
  %v2274 = vsel %vm2271, %v2273, %v2269
  %v2275 = vmul.f32 %v2250, %v2274
  %v2276 = vmin.f32 %v2275, 1.0
  %v2277 = vmax.f32 %v2276, -1.0
  %v2278 = vmul.f32 %v1115, %v1115
  %v2279 = vmin.f32 16.0, %v2278
  %v2280 = vmul.f32 %v2279, 2.1237322e-06
  %v2281 = vadd.f32 %v2280, 0.00028619796
  %v2282 = vmul.f32 %v2279, %v2281
  %v2283 = vadd.f32 %v2282, 0.0036580483
  %v2284 = vmul.f32 %v2279, %v2283
  %v2285 = vadd.f32 %v2284, 0.05243302
  %v2286 = vmul.f32 %v2279, %v2285
  %v2287 = vadd.f32 %v2286, 0.18741608
  %v2288 = vmul.f32 %v2279, %v2287
  %v2289 = vadd.f32 %v2288, 1.1283791
  %v2290 = vmul.f32 %v1115, %v2289
  %v2291 = vmul.f32 %v2279, 3.8918573e-05
  %v2292 = vadd.f32 %v2291, 0.001143296
  %v2293 = vmul.f32 %v2279, %v2292
  %v2294 = vadd.f32 %v2293, 0.014752088
  %v2295 = vmul.f32 %v2279, %v2294
  %v2296 = vadd.f32 %v2295, 0.112945676
  %v2297 = vmul.f32 %v2279, %v2296
  %v2298 = vadd.f32 %v2297, 0.4994258
  %v2299 = vmul.f32 %v2279, %v2298
  %v2300 = vadd.f32 %v2299, 1.0
  %v2301 = vrcp.pop %v2300
  %v2302 = vmul.f32 %v2300, %v2301
  %v2303 = vsub.f32 1.0, %v2302
  %v2304 = vmul.f32 %v2301, %v2303
  %v2305 = vadd.f32 %v2301, %v2304
  %vm2306 = vweird.f32 %v2300
  %vm2307 = vweird.f32 %v2301
  %vm2308 = vmor %vm2306, %vm2307
  %v2309 = vsel %vm2308, %v2301, %v2305
  %v2310 = vand.u32 2147483647, %v2300
  %vm2311 = vcmp.eq.f32.partialorder %v2310, 8.507059e+37
  %v2312 = vand.u32 %v2300, 2147483648
  %v2313 = vor.u32 1.1754944e-38, %v2312
  %v2314 = vsel %vm2311, %v2313, %v2309
  %v2315 = vmul.f32 %v2290, %v2314
  %v2316 = vmin.f32 %v2315, 1.0
  %v2317 = vmax.f32 %v2316, -1.0
  %v2318 = vmul.f32 %v1116, %v1116
  %v2319 = vmin.f32 16.0, %v2318
  %v2320 = vmul.f32 %v2319, 2.1237322e-06
  %v2321 = vadd.f32 %v2320, 0.00028619796
  %v2322 = vmul.f32 %v2319, %v2321
  %v2323 = vadd.f32 %v2322, 0.0036580483
  %v2324 = vmul.f32 %v2319, %v2323
  %v2325 = vadd.f32 %v2324, 0.05243302
  %v2326 = vmul.f32 %v2319, %v2325
  %v2327 = vadd.f32 %v2326, 0.18741608
  %v2328 = vmul.f32 %v2319, %v2327
  %v2329 = vadd.f32 %v2328, 1.1283791
  %v2330 = vmul.f32 %v1116, %v2329
  %v2331 = vmul.f32 %v2319, 3.8918573e-05
  %v2332 = vadd.f32 %v2331, 0.001143296
  %v2333 = vmul.f32 %v2319, %v2332
  %v2334 = vadd.f32 %v2333, 0.014752088
  %v2335 = vmul.f32 %v2319, %v2334
  %v2336 = vadd.f32 %v2335, 0.112945676
  %v2337 = vmul.f32 %v2319, %v2336
  %v2338 = vadd.f32 %v2337, 0.4994258
  %v2339 = vmul.f32 %v2319, %v2338
  %v2340 = vadd.f32 %v2339, 1.0
  %v2341 = vrcp.pop %v2340
  %v2342 = vmul.f32 %v2340, %v2341
  %v2343 = vsub.f32 1.0, %v2342
  %v2344 = vmul.f32 %v2341, %v2343
  %v2345 = vadd.f32 %v2341, %v2344
  %vm2346 = vweird.f32 %v2340
  %vm2347 = vweird.f32 %v2341
  %vm2348 = vmor %vm2346, %vm2347
  %v2349 = vsel %vm2348, %v2341, %v2345
  %v2350 = vand.u32 2147483647, %v2340
  %vm2351 = vcmp.eq.f32.partialorder %v2350, 8.507059e+37
  %v2352 = vand.u32 %v2340, 2147483648
  %v2353 = vor.u32 1.1754944e-38, %v2352
  %v2354 = vsel %vm2351, %v2353, %v2349
  %v2355 = vmul.f32 %v2330, %v2354
  %v2356 = vmin.f32 %v2355, 1.0
  %v2357 = vmax.f32 %v2356, -1.0
  %v2358 = vmul.f32 %v1117, %v1117
  %v2359 = vmin.f32 16.0, %v2358
  %v2360 = vmul.f32 %v2359, 2.1237322e-06
  %v2361 = vadd.f32 %v2360, 0.00028619796
  %v2362 = vmul.f32 %v2359, %v2361
  %v2363 = vadd.f32 %v2362, 0.0036580483
  %v2364 = vmul.f32 %v2359, %v2363
  %v2365 = vadd.f32 %v2364, 0.05243302
  %v2366 = vmul.f32 %v2359, %v2365
  %v2367 = vadd.f32 %v2366, 0.18741608
  %v2368 = vmul.f32 %v2359, %v2367
  %v2369 = vadd.f32 %v2368, 1.1283791
  %v2370 = vmul.f32 %v1117, %v2369
  %v2371 = vmul.f32 %v2359, 3.8918573e-05
  %v2372 = vadd.f32 %v2371, 0.001143296
  %v2373 = vmul.f32 %v2359, %v2372
  %v2374 = vadd.f32 %v2373, 0.014752088
  %v2375 = vmul.f32 %v2359, %v2374
  %v2376 = vadd.f32 %v2375, 0.112945676
  %v2377 = vmul.f32 %v2359, %v2376
  %v2378 = vadd.f32 %v2377, 0.4994258
  %v2379 = vmul.f32 %v2359, %v2378
  %v2380 = vadd.f32 %v2379, 1.0
  %v2381 = vrcp.pop %v2380
  %v2382 = vmul.f32 %v2380, %v2381
  %v2383 = vsub.f32 1.0, %v2382
  %v2384 = vmul.f32 %v2381, %v2383
  %v2385 = vadd.f32 %v2381, %v2384
  %vm2386 = vweird.f32 %v2380
  %vm2387 = vweird.f32 %v2381
  %vm2388 = vmor %vm2386, %vm2387
  %v2389 = vsel %vm2388, %v2381, %v2385
  %v2390 = vand.u32 2147483647, %v2380
  %vm2391 = vcmp.eq.f32.partialorder %v2390, 8.507059e+37
  %v2392 = vand.u32 %v2380, 2147483648
  %v2393 = vor.u32 1.1754944e-38, %v2392
  %v2394 = vsel %vm2391, %v2393, %v2389
  %v2395 = vmul.f32 %v2370, %v2394
  %v2396 = vmin.f32 %v2395, 1.0
  %v2397 = vmax.f32 %v2396, -1.0
  %v2398 = vadd.f32 %v1157, 1.0
  %v2399 = vadd.f32 %v1197, 1.0
  %v2400 = vadd.f32 %v1237, 1.0
  %v2401 = vadd.f32 %v1277, 1.0
  %v2402 = vadd.f32 %v1317, 1.0
  %v2403 = vadd.f32 %v1357, 1.0
  %v2404 = vadd.f32 %v1397, 1.0
  %v2405 = vadd.f32 %v1437, 1.0
  %v2406 = vadd.f32 %v1477, 1.0
  %v2407 = vadd.f32 %v1517, 1.0
  %v2408 = vadd.f32 %v1557, 1.0
  %v2409 = vadd.f32 %v1597, 1.0
  %v2410 = vadd.f32 %v1637, 1.0
  %v2411 = vadd.f32 %v1677, 1.0
  %v2412 = vadd.f32 %v1717, 1.0
  %v2413 = vadd.f32 %v1757, 1.0
  %v2414 = vadd.f32 %v1797, 1.0
  %v2415 = vadd.f32 %v1837, 1.0
  %v2416 = vadd.f32 %v1877, 1.0
  %v2417 = vadd.f32 %v1917, 1.0
  %v2418 = vadd.f32 %v1957, 1.0
  %v2419 = vadd.f32 %v1997, 1.0
  %v2420 = vadd.f32 %v2037, 1.0
  %v2421 = vadd.f32 %v2077, 1.0
  %v2422 = vadd.f32 %v2117, 1.0
  %v2423 = vadd.f32 %v2157, 1.0
  %v2424 = vadd.f32 %v2197, 1.0
  %v2425 = vadd.f32 %v2237, 1.0
  %v2426 = vadd.f32 %v2277, 1.0
  %v2427 = vadd.f32 %v2317, 1.0
  %v2428 = vadd.f32 %v2357, 1.0
  %v2429 = vadd.f32 %v2397, 1.0
  %v2430 = vmul.f32 %v1054, %v2398
  %v2431 = vmul.f32 %v1055, %v2399
  %v2432 = vmul.f32 %v1056, %v2400
  %v2433 = vmul.f32 %v1057, %v2401
  %v2434 = vmul.f32 %v1058, %v2402
  %v2435 = vmul.f32 %v1059, %v2403
  %v2436 = vmul.f32 %v1060, %v2404
  %v2437 = vmul.f32 %v1061, %v2405
  %v2438 = vmul.f32 %v1062, %v2406
  %v2439 = vmul.f32 %v1063, %v2407
  %v2440 = vmul.f32 %v1064, %v2408
  %v2441 = vmul.f32 %v1065, %v2409
  %v2442 = vmul.f32 %v1066, %v2410
  %v2443 = vmul.f32 %v1067, %v2411
  %v2444 = vmul.f32 %v1068, %v2412
  %v2445 = vmul.f32 %v1069, %v2413
  %v2446 = vmul.f32 %v1070, %v2414
  %v2447 = vmul.f32 %v1071, %v2415
  %v2448 = vmul.f32 %v1072, %v2416
  %v2449 = vmul.f32 %v1073, %v2417
  %v2450 = vmul.f32 %v1074, %v2418
  %v2451 = vmul.f32 %v1075, %v2419
  %v2452 = vmul.f32 %v1076, %v2420
  %v2453 = vmul.f32 %v1077, %v2421
  %v2454 = vmul.f32 %v1078, %v2422
  %v2455 = vmul.f32 %v1079, %v2423
  %v2456 = vmul.f32 %v1080, %v2424
  %v2457 = vmul.f32 %v1081, %v2425
  %v2458 = vmul.f32 %v1082, %v2426
  %v2459 = vmul.f32 %v1083, %v2427
  %v2460 = vmul.f32 %v1084, %v2428
  %v2461 = vmul.f32 %v1085, %v2429
  %2462 = vst.msk [vmem:[%s5] sm:$0xff] %vm57, %v2430
  %2463 = vst.msk [vmem:[%s5 + $0x8] sm:$0xff] %vm57, %v2431
  %2464 = vst.msk [vmem:[%s5 + $0x10] sm:$0xff] %vm57, %v2432
  %2465 = vst.msk [vmem:[%s5 + $0x18] sm:$0xff] %vm57, %v2433
  %2466 = vst.msk [vmem:[%s5 + $0x20] sm:$0xff] %vm57, %v2434
  %2467 = vst.msk [vmem:[%s5 + $0x28] sm:$0xff] %vm57, %v2435
  %2468 = vst.msk [vmem:[%s5 + $0x30] sm:$0xff] %vm57, %v2436
  %2469 = vst.msk [vmem:[%s5 + $0x38] sm:$0xff] %vm57, %v2437
  %2470 = vst.msk [vmem:[%s5 + $0x40] sm:$0xff] %vm57, %v2438
  %2471 = vst.msk [vmem:[%s5 + $0x48] sm:$0xff] %vm57, %v2439
  %2472 = vst.msk [vmem:[%s5 + $0x50] sm:$0xff] %vm57, %v2440
  %2473 = vst.msk [vmem:[%s5 + $0x58] sm:$0xff] %vm57, %v2441
  %2474 = vst.msk [vmem:[%s5 + $0x60] sm:$0xff] %vm57, %v2442
  %2475 = vst.msk [vmem:[%s5 + $0x68] sm:$0xff] %vm57, %v2443
  %2476 = vst.msk [vmem:[%s5 + $0x70] sm:$0xff] %vm57, %v2444
  %2477 = vst.msk [vmem:[%s5 + $0x78] sm:$0xff] %vm57, %v2445
  %2478 = vst.msk [vmem:[%s5 + $0x80] sm:$0xff] %vm57, %v2446
  %2479 = vst.msk [vmem:[%s5 + $0x88] sm:$0xff] %vm57, %v2447
  %2480 = vst.msk [vmem:[%s5 + $0x90] sm:$0xff] %vm57, %v2448
  %2481 = vst.msk [vmem:[%s5 + $0x98] sm:$0xff] %vm57, %v2449
  %2482 = vst.msk [vmem:[%s5 + $0xa0] sm:$0xff] %vm57, %v2450
  %2483 = vst.msk [vmem:[%s5 + $0xa8] sm:$0xff] %vm57, %v2451
  %2484 = vst.msk [vmem:[%s5 + $0xb0] sm:$0xff] %vm57, %v2452
  %2485 = vst.msk [vmem:[%s5 + $0xb8] sm:$0xff] %vm57, %v2453
  %2486 = vst.msk [vmem:[%s5 + $0xc0] sm:$0xff] %vm57, %v2454
  %2487 = vst.msk [vmem:[%s5 + $0xc8] sm:$0xff] %vm57, %v2455
  %2488 = vst.msk [vmem:[%s5 + $0xd0] sm:$0xff] %vm57, %v2456
  %2489 = vst.msk [vmem:[%s5 + $0xd8] sm:$0xff] %vm57, %v2457
  %2490 = vst.msk [vmem:[%s5 + $0xe0] sm:$0xff] %vm57, %v2458
  %2491 = vst.msk [vmem:[%s5 + $0xe8] sm:$0xff] %vm57, %v2459
  %2492 = vst.msk [vmem:[%s5 + $0xf0] sm:$0xff] %vm57, %v2460
  %2493 = vst.msk [vmem:[%s5 + $0xf8] sm:$0xff] %vm57, %v2461
  // Predicated region
  $region22: #{prompt_encoder_forward.4} parent=0 // pred_check
    _
  $region23: #{prompt_encoder_forward.4} parent=0 // pred_check_branch
    %2495 = sbr.rel (0) target = $region25
  $region24: #{prompt_encoder_forward.4} parent=0 // pred_region
    _
  $region25: #{prompt_encoder_forward.4} parent=0 // pred_fallthru
    _
  // Predicated region
  $region26: #{prompt_encoder_forward.4} parent=0 // pred_check
    _
  $region27: #{prompt_encoder_forward.4} parent=0 // pred_check_branch
    %2497 = sbr.rel (0) target = $region29
  $region28: #{prompt_encoder_forward.4} parent=0 // pred_region
    _
  $region29: #{prompt_encoder_forward.4} parent=0 // pred_fallthru
    _

// kernel: prompt_encoder_forward.3
$region0: #{prompt_encoder_forward.3}
  #allocation0 [shape = 'u32[]', space=smem, size = 0x4, offset = 0x4, fixed_abs, tag = 'smem constant byte address 0x4 - core index']
  #allocation1 [shape = 'u32[72,128]{1,0:T(1,128)}', space=vmem, size = 0x9000, scoped, tag = 'internal scratch']
  %s0 = inlined_call_operand.vmem [shape: f32[1,4,2], index: 0, kind: input, shape index: {}]
  %s1 = inlined_call_operand.vmem [shape: f32[1,4,1], index: 1, kind: input, shape index: {}]
  %s2 = inlined_call_operand.vmem [shape: f32[64,2], index: 2, kind: input, shape index: {}]
  %s3 = inlined_call_operand.vmem [shape: f32[2,32], index: 3, kind: input, shape index: {}]
  %s4 = inlined_call_operand.vmem [shape: f32[64,32], index: 4, kind: input, shape index: {}]
  %s5 = inlined_call_operand.vmem [shape: f32[32,64], index: 5, kind: input, shape index: {}]
  %s6 = inlined_call_operand.vmem [shape: f32[1,64], index: 6, kind: input, shape index: {}]
  %s7 = inlined_call_operand.vmem [shape: f32[32,32], index: 7, kind: input, shape index: {}]
  %s8 = inlined_call_operand.vmem [shape: f32[1,32], index: 8, kind: input, shape index: {}]
  %s9 = inlined_call_operand.vmem [shape: f32[32,32], index: 9, kind: input, shape index: {}]
  %s10 = inlined_call_operand.vmem [shape: f32[1,32], index: 10, kind: input, shape index: {}]
  %s11 = inlined_call_operand.vmem [shape: f32[32,16], index: 11, kind: input, shape index: {}]
  %s12 = inlined_call_operand.vmem [shape: f32[1,16], index: 12, kind: input, shape index: {}]
  %s13 = inlined_call_operand.vmem [shape: f32[32,16], index: 13, kind: input, shape index: {}]
  %s14 = inlined_call_operand.vmem [shape: f32[1,16], index: 14, kind: input, shape index: {}]
  %s15 = inlined_call_operand.vmem [shape: f32[32,16], index: 15, kind: input, shape index: {}]
  %s16 = inlined_call_operand.vmem [shape: f32[1,16], index: 16, kind: input, shape index: {}]
  %s17 = inlined_call_operand.vmem [shape: f32[16,32], index: 17, kind: input, shape index: {}]
  %s18 = inlined_call_operand.vmem [shape: f32[1,32], index: 18, kind: input, shape index: {}]
  %s19 = inlined_call_operand.vmem [shape: f32[3,32], index: 19, kind: input, shape index: {}]
  %s20 = inlined_call_operand.vmem [shape: f32[3,32], index: 20, kind: input, shape index: {}]
  %s21 = inlined_call_operand.vmem [shape: f32[32,2048], index: 21, kind: input, shape index: {}]
  %s22 = inlined_call_operand.vmem [shape: f32[1,2048], index: 22, kind: input, shape index: {}]
  %s23 = inlined_call_operand.vmem [shape: f32[2048,32], index: 23, kind: input, shape index: {}]
  %s24 = inlined_call_operand.vmem [shape: f32[1,32], index: 24, kind: input, shape index: {}]
  %s25 = inlined_call_operand.vmem [shape: f32[3,32], index: 25, kind: input, shape index: {}]
  %s26 = inlined_call_operand.hbm [shape: f32[1,4,32], index: 26, kind: output, shape index: {}]
  %s27 = sld [smem:[#allocation0]]
  $region114: #{prompt_encoder_forward.3} parent=0
    _
  %s29 = ssub.s32 1, %s27
  %s30 = scalar_select 0, %s29, %s27
  $region1: #{prompt_encoder_forward.3} parent=0
    #allocation2 [shape = 'u8[2048]{0}', space=vmem, size = 0x800, scoped, tag = 'output window, operand 0, single buffered']
    #allocation3 [shape = 's32[1]{0}', space=sflag, size = 0x4, scoped, tag = 'scoped memory for prompt_encoder_forward.3']
    %31 = vsyncpa [#allocation3], 0
    // Predicated region
    $region2: #{prompt_encoder_forward.3} parent=1 // pred_check
      _
    $region3: #{prompt_encoder_forward.3} parent=1 // pred_check_branch
      %33 = sbr.rel (0) target = $region5
    $region4: #{prompt_encoder_forward.3} parent=1 // pred_region
      _
    $region5: #{prompt_encoder_forward.3} parent=1 // pred_fallthru
      _
    // Predicated region
    $region6: #{prompt_encoder_forward.3} parent=1 // pred_check
      _
    $region7: #{prompt_encoder_forward.3} parent=1 // pred_check_branch
      %35 = sbr.rel (0) target = $region9
    $region8: #{prompt_encoder_forward.3} parent=1 // pred_region
      _
    $region9: #{prompt_encoder_forward.3} parent=1 // pred_fallthru
      _
    // Predicated region
    $region10: #{prompt_encoder_forward.3} parent=1 // pred_check
      _
    $region11: #{prompt_encoder_forward.3} parent=1 // pred_check_branch
      %37 = sbr.rel (0) target = $region13
    $region12: #{prompt_encoder_forward.3} parent=1 // pred_region
      _
    $region13: #{prompt_encoder_forward.3} parent=1 // pred_fallthru
      _
    // Predicated region
    $region14: #{prompt_encoder_forward.3} parent=1 // pred_check
      _
    $region15: #{prompt_encoder_forward.3} parent=1 // pred_check_branch
      %39 = sbr.rel (0) target = $region17
    $region16: #{prompt_encoder_forward.3} parent=1 // pred_region
      _
    $region17: #{prompt_encoder_forward.3} parent=1 // pred_fallthru
      _
    // Predicated region
    $region18: #{prompt_encoder_forward.3} parent=1 // pred_check
      _
    $region19: #{prompt_encoder_forward.3} parent=1 // pred_check_branch
      %41 = sbr.rel (0) target = $region21
    $region20: #{prompt_encoder_forward.3} parent=1 // pred_region
      _
    $region21: #{prompt_encoder_forward.3} parent=1 // pred_fallthru
      _
    // Predicated region
    $region22: #{prompt_encoder_forward.3} parent=1 // pred_check
      _
    $region23: #{prompt_encoder_forward.3} parent=1 // pred_check_branch
      %43 = sbr.rel (0) target = $region25
    $region24: #{prompt_encoder_forward.3} parent=1 // pred_region
      _
    $region25: #{prompt_encoder_forward.3} parent=1 // pred_fallthru
      _
    // Predicated region
    $region26: #{prompt_encoder_forward.3} parent=1 // pred_check
      _
    $region27: #{prompt_encoder_forward.3} parent=1 // pred_check_branch
      %45 = sbr.rel (0) target = $region29
    $region28: #{prompt_encoder_forward.3} parent=1 // pred_region
      _
    $region29: #{prompt_encoder_forward.3} parent=1 // pred_fallthru
      _
    // Predicated region
    $region30: #{prompt_encoder_forward.3} parent=1 // pred_check
      _
    $region31: #{prompt_encoder_forward.3} parent=1 // pred_check_branch
      %47 = sbr.rel (0) target = $region33
    $region32: #{prompt_encoder_forward.3} parent=1 // pred_region
      _
    $region33: #{prompt_encoder_forward.3} parent=1 // pred_fallthru
      _
    // Predicated region
    $region34: #{prompt_encoder_forward.3} parent=1 // pred_check
      _
    $region35: #{prompt_encoder_forward.3} parent=1 // pred_check_branch
      %49 = sbr.rel (0) target = $region37
    $region36: #{prompt_encoder_forward.3} parent=1 // pred_region
      _
    $region37: #{prompt_encoder_forward.3} parent=1 // pred_fallthru
      _
    // Predicated region
    $region38: #{prompt_encoder_forward.3} parent=1 // pred_check
      _
    $region39: #{prompt_encoder_forward.3} parent=1 // pred_check_branch
      %51 = sbr.rel (0) target = $region41
    $region40: #{prompt_encoder_forward.3} parent=1 // pred_region
      _
    $region41: #{prompt_encoder_forward.3} parent=1 // pred_fallthru
      _
    // Predicated region
    $region42: #{prompt_encoder_forward.3} parent=1 // pred_check
      _
    $region43: #{prompt_encoder_forward.3} parent=1 // pred_check_branch
      %53 = sbr.rel (0) target = $region45
    $region44: #{prompt_encoder_forward.3} parent=1 // pred_region
      _
    $region45: #{prompt_encoder_forward.3} parent=1 // pred_fallthru
      _
    // Predicated region
    $region46: #{prompt_encoder_forward.3} parent=1 // pred_check
      _
    $region47: #{prompt_encoder_forward.3} parent=1 // pred_check_branch
      %55 = sbr.rel (0) target = $region49
    $region48: #{prompt_encoder_forward.3} parent=1 // pred_region
      _
    $region49: #{prompt_encoder_forward.3} parent=1 // pred_fallthru
      _
    // Predicated region
    $region50: #{prompt_encoder_forward.3} parent=1 // pred_check
      _
    $region51: #{prompt_encoder_forward.3} parent=1 // pred_check_branch
      %57 = sbr.rel (0) target = $region53
    $region52: #{prompt_encoder_forward.3} parent=1 // pred_region
      _
    $region53: #{prompt_encoder_forward.3} parent=1 // pred_fallthru
      _
    // Predicated region
    $region54: #{prompt_encoder_forward.3} parent=1 // pred_check
      _
    $region55: #{prompt_encoder_forward.3} parent=1 // pred_check_branch
      %59 = sbr.rel (0) target = $region57
    $region56: #{prompt_encoder_forward.3} parent=1 // pred_region
      _
    $region57: #{prompt_encoder_forward.3} parent=1 // pred_fallthru
      _
    // Predicated region
    $region58: #{prompt_encoder_forward.3} parent=1 // pred_check
      _
    $region59: #{prompt_encoder_forward.3} parent=1 // pred_check_branch
      %61 = sbr.rel (0) target = $region61
    $region60: #{prompt_encoder_forward.3} parent=1 // pred_region
      _
    $region61: #{prompt_encoder_forward.3} parent=1 // pred_fallthru
      _
    // Predicated region
    $region62: #{prompt_encoder_forward.3} parent=1 // pred_check
      _
    $region63: #{prompt_encoder_forward.3} parent=1 // pred_check_branch
      %63 = sbr.rel (0) target = $region65
    $region64: #{prompt_encoder_forward.3} parent=1 // pred_region
      _
    $region65: #{prompt_encoder_forward.3} parent=1 // pred_fallthru
      _
    // Predicated region
    $region66: #{prompt_encoder_forward.3} parent=1 // pred_check
      _
    $region67: #{prompt_encoder_forward.3} parent=1 // pred_check_branch
      %65 = sbr.rel (0) target = $region69
    $region68: #{prompt_encoder_forward.3} parent=1 // pred_region
      _
    $region69: #{prompt_encoder_forward.3} parent=1 // pred_fallthru
      _
    // Predicated region
    $region70: #{prompt_encoder_forward.3} parent=1 // pred_check
      _
    $region71: #{prompt_encoder_forward.3} parent=1 // pred_check_branch
      %67 = sbr.rel (0) target = $region73
    $region72: #{prompt_encoder_forward.3} parent=1 // pred_region
      _
    $region73: #{prompt_encoder_forward.3} parent=1 // pred_fallthru
      _
    // Predicated region
    $region74: #{prompt_encoder_forward.3} parent=1 // pred_check
      _
    $region75: #{prompt_encoder_forward.3} parent=1 // pred_check_branch
      %69 = sbr.rel (0) target = $region77
    $region76: #{prompt_encoder_forward.3} parent=1 // pred_region
      _
    $region77: #{prompt_encoder_forward.3} parent=1 // pred_fallthru
      _
    // Predicated region
    $region78: #{prompt_encoder_forward.3} parent=1 // pred_check
      _
    $region79: #{prompt_encoder_forward.3} parent=1 // pred_check_branch
      %71 = sbr.rel (0) target = $region81
    $region80: #{prompt_encoder_forward.3} parent=1 // pred_region
      _
    $region81: #{prompt_encoder_forward.3} parent=1 // pred_fallthru
      _
    // Predicated region
    $region82: #{prompt_encoder_forward.3} parent=1 // pred_check
      _
    $region83: #{prompt_encoder_forward.3} parent=1 // pred_check_branch
      %73 = sbr.rel (0) target = $region85
    $region84: #{prompt_encoder_forward.3} parent=1 // pred_region
      _
    $region85: #{prompt_encoder_forward.3} parent=1 // pred_fallthru
      _
    // Predicated region
    $region86: #{prompt_encoder_forward.3} parent=1 // pred_check
      _
    $region87: #{prompt_encoder_forward.3} parent=1 // pred_check_branch
      %75 = sbr.rel (0) target = $region89
    $region88: #{prompt_encoder_forward.3} parent=1 // pred_region
      _
    $region89: #{prompt_encoder_forward.3} parent=1 // pred_fallthru
      _
    // Predicated region
    $region90: #{prompt_encoder_forward.3} parent=1 // pred_check
      _
    $region91: #{prompt_encoder_forward.3} parent=1 // pred_check_branch
      %77 = sbr.rel (0) target = $region93
    $region92: #{prompt_encoder_forward.3} parent=1 // pred_region
      _
    $region93: #{prompt_encoder_forward.3} parent=1 // pred_fallthru
      _
    // Predicated region
    $region94: #{prompt_encoder_forward.3} parent=1 // pred_check
      _
    $region95: #{prompt_encoder_forward.3} parent=1 // pred_check_branch
      %79 = sbr.rel (0) target = $region97
    $region96: #{prompt_encoder_forward.3} parent=1 // pred_region
      _
    $region97: #{prompt_encoder_forward.3} parent=1 // pred_fallthru
      _
    // Predicated region
    $region98: #{prompt_encoder_forward.3} parent=1 // pred_check
      _
    $region99: #{prompt_encoder_forward.3} parent=1 // pred_check_branch
      %81 = sbr.rel (0) target = $region101
    $region100: #{prompt_encoder_forward.3} parent=1 // pred_region
      _
    $region101: #{prompt_encoder_forward.3} parent=1 // pred_fallthru
      _
    // Predicated region
    $region102: #{prompt_encoder_forward.3} parent=1 // pred_check
      _
    $region103: #{prompt_encoder_forward.3} parent=1 // pred_check_branch
      %83 = sbr.rel (0) target = $region105
    $region104: #{prompt_encoder_forward.3} parent=1 // pred_region
      _
    $region105: #{prompt_encoder_forward.3} parent=1 // pred_fallthru
      _
    %v84 = vld [vmem:[%s3] sm:$0x3]
    %v85 = vld [vmem:[%s19] sm:$0x7]
    %v86 = vld [vmem:[%s20] sm:$0x7]
    %v87 = vld [vmem:[%s25] sm:$0x7]
    %v88 = vld [vmem:[%s0] sm:$0xf]
    %v89 = vmul.f32 %v88, 2.0
    %v90 = vsub.f32 %v89, 1.0
    %92 = vset.pattern.permute.xlu0 0
    %93 = vperm.xlu0 %92, %v90
    %v94 = vpop.permute.xlu0 %93
    %v96 = vperm.slane %v84, 0
    %v97 = vmul.f32 %v94, %v96
    %98 = vset.pattern.permute.xlu0 1
    %99 = vperm.xlu0 %98, %v90
    %v100 = vpop.permute.xlu0 %99
    %v102 = vperm.slane %v84, 1
    %v103 = vmul.f32 %v100, %v102
    %v104 = vadd.f32 %v97, %v103
    %v105 = vmul.f32 %v104, 6.2831855
    %v106 = vlaneseq
    %v107 = vand.u32 %v106, 127
    %vm108 = vcmp.lt.s32.totalorder %v107, 16
    %v109 = vand.u32 2147483647, %v105
    %vm110 = vcmp.le.f32.partialorder %v109, 0.7853982
    %vm111 = vcmp.lt.s32.totalorder %v105, 0
    %v112 = vand.u32 %v105, 2139095040
    %v113 = vshrl.u32 %v112, 23
    %v114 = vsub.s32 %v113, 127
    %v115 = vand.u32 2147483647, %v105
    %v116 = vand.u32 %v115, 8388607
    %v117 = vor.u32 %v116, 8388608
    %v118 = vsub.s32 0, %v117
    %v119 = vadd.s32 %v114, 1
    %vm120 = vcmp.gt.s32.totalorder %v119, 0
    %v121 = vsel %vm120, %v119, 0
    %v122 = vshrl.u32 %v121, 5
    %v123 = vand.u32 %v121, 31
    %v124 = vsub.s32 32, %v123
    %v125 = vshrl.u32 683565275, %v124
    %v126 = vshll.u32 683565275, %v123
    %v127 = vshrl.u32 2475754826, %v124
    %v128 = vor.u32 %v126, %v127
    %v129 = vshll.u32 2475754826, %v123
    %v130 = vshrl.u32 2131351028, %v124
    %v131 = vor.u32 %v129, %v130
    %v132 = vshll.u32 2131351028, %v123
    %v133 = vshrl.u32 2102212464, %v124
    %v134 = vor.u32 %v132, %v133
    %v135 = vshll.u32 2102212464, %v123
    %v136 = vshrl.u32 920167782, %v124
    %v137 = vor.u32 %v135, %v136
    %v138 = vshll.u32 920167782, %v123
    %v139 = vshrl.u32 1326507024, %v124
    %v140 = vor.u32 %v138, %v139
    %vm141 = vcmp.lt.s32.totalorder %v122, 1
    %vm142 = vcmp.lt.s32.totalorder %v122, 2
    %vm143 = vcmp.lt.s32.totalorder %v122, 3
    %vm144 = vcmp.lt.s32.totalorder %v122, 4
    %v145 = vsel %vm141, %v125, %v128
    %v146 = vsel %vm144, %v134, 2102212464
    %v147 = vsel %vm143, %v131, %v146
    %v148 = vsel %vm142, %v145, %v147
    %v149 = vsel %vm141, %v128, %v131
    %v150 = vsel %vm144, %v137, 920167782
    %v151 = vsel %vm143, %v134, %v150
    %v152 = vsel %vm142, %v149, %v151
    %v153 = vsel %vm141, %v131, %v134
    %v154 = vsel %vm144, %v140, 1326507024
    %v155 = vsel %vm143, %v137, %v154
    %v156 = vsel %vm142, %v153, %v155
    %v157 = vshll.u32 %v117, 8
    %v158 = vand.u32 %v157, 65535
    %v159 = vshrl.u32 %v157, 16
    %v160 = vand.u32 %v156, 65535
    %v161 = vshrl.u32 %v156, 16
    %v162 = vmul.u32 %v158, %v160
    %v163 = vmul.u32 %v158, %v161
    %v164 = vmul.u32 %v159, %v160
    %v165 = vmul.u32 %v159, %v161
    %v166 = vshll.u32 %v163, 16
    %v167 = vshrl.u32 %v163, 16
    %v168 = vshll.u32 %v164, 16
    %v169 = vshrl.u32 %v164, 16
    %vm170 = vc.u32 %v162, %v166
    %v171 = vsel %vm170, 1, 0
    %v172 = vadd.s32 %v162, %v166
    %v173 = vadd.s32 %v165, %v171
    %vm174 = vc.u32 %v172, %v168
    %v175 = vsel %vm174, 1, 0
    %v176 = vadd.s32 %v172, %v168
    %v177 = vadd.s32 %v173, %v175
    %v178 = vadd.s32 %v177, %v167
    %v179 = vadd.s32 %v178, %v169
    %v180 = vand.u32 %v157, 65535
    %v181 = vshrl.u32 %v157, 16
    %v182 = vand.u32 %v152, 65535
    %v183 = vshrl.u32 %v152, 16
    %v184 = vmul.u32 %v180, %v182
    %v185 = vmul.u32 %v180, %v183
    %v186 = vmul.u32 %v181, %v182
    %v187 = vmul.u32 %v181, %v183
    %v188 = vshll.u32 %v185, 16
    %v189 = vshrl.u32 %v185, 16
    %v190 = vshll.u32 %v186, 16
    %v191 = vshrl.u32 %v186, 16
    %vm192 = vc.u32 %v184, %v188
    %v193 = vsel %vm192, 1, 0
    %v194 = vadd.s32 %v184, %v188
    %v195 = vadd.s32 %v187, %v193
    %vm196 = vc.u32 %v194, %v190
    %v197 = vsel %vm196, 1, 0
    %v198 = vadd.s32 %v194, %v190
    %v199 = vadd.s32 %v195, %v197
    %v200 = vadd.s32 %v199, %v189
    %v201 = vadd.s32 %v200, %v191
    %v202 = vmul.u32 %v157, %v148
    %v203 = vadd.s32 %v179, %v198
    %vm204 = vc.u32 %v179, %v198
    %v205 = vadd.s32 %v201, 1
    %v206 = vsel %vm204, %v205, %v201
    %v207 = vadd.s32 %v202, %v206
    %v208 = vadd.s32 %v207, 536870912
    %v209 = vshrl.u32 %v208, 30
    %v210 = vshll.u32 %v209, 30
    %v211 = vsub.s32 %v207, %v210
    %vm212 = vcmp.lt.s32.totalorder %v211, 0
    %v213 = vsub.s32 0, %v211
    %v214 = vsel %vm212, %v213, %v211
    %v215 = vclz %v214
    %v216 = vsub.s32 %v215, 2
    %vm217 = vcmp.gt.s32.totalorder 0, %v216
    %v218 = vsel %vm217, 0, %v216
    %v219 = vsub.s32 32, %v218
    %v220 = vshll.u32 %v211, %v218
    %v221 = vshrl.u32 %v203, %v219
    %v222 = vor.u32 %v220, %v221
    %v223 = vsub.s32 4294967266, %v218
    %v224 = vadd.s32 %v223, 127
    %v225 = vshll.u32 %v224, 23
    %v226 = vor.u32 4788187, %v225
    %v227 = vand.u32 2147483647, %v226
    %v229 = vcvt.s32.f32 %v222
    %v230 = vmul.f32 %v229, %v227
    %v231 = vxor.u32 %v230, 2147483648
    %v232 = vsel %vm111, %v231, %v230
    %v233 = vsub.s32 4, %v209
    %v234 = vsel %vm111, %v233, %v209
    %v235 = vsel %vm110, %v105, %v232
    %v236 = vsel %vm110, 0, %v234
    %v237 = vmul.f32 %v235, %v235
    %v238 = vmul.f32 %v237, -0.001358992
    %v239 = vadd.f32 %v238, 0.041655596
    %v240 = vmul.f32 %v237, %v239
    %v241 = vadd.f32 %v240, -0.4999988
    %v242 = vmul.f32 %v237, %v241
    %v243 = vadd.f32 1.0, %v242
    %v244 = vmul.f32 %v235, %v235
    %v245 = vmul.f32 %v244, -0.00019511016
    %v246 = vadd.f32 %v245, 0.008332121
    %v247 = vmul.f32 %v244, %v246
    %v248 = vadd.f32 %v247, -0.16666654
    %v249 = vmul.f32 %v244, %v248
    %v250 = vadd.f32 %v249, 1.0
    %v251 = vmul.f32 %v250, %v235
    %vm252 = vweird.f32 %v105
    %v253 = vadd.s32 %v236, 3
    %v254 = vand.u32 %v253, 3
    %vm255 = vcmp.lt.s32.totalorder %v254, 2
    %vm256 = vcmp.eq.s32.totalorder %v254, 0
    %v257 = vxor.u32 %v251, 2147483648
    %v258 = vsel %vm256, %v243, %v257
    %vm259 = vcmp.eq.s32.totalorder %v254, 2
    %v260 = vxor.u32 %v243, 2147483648
    %v261 = vsel %vm259, %v260, %v251
    %v262 = vsel %vm255, %v258, %v261
    %v263 = vsel %vm252, nan, %v262
    %v264 = vand.u32 2147483647, %v105
    %vm265 = vcmp.le.f32.partialorder %v264, 0.7853982
    %vm266 = vcmp.lt.s32.totalorder %v105, 0
    %v267 = vand.u32 %v105, 2139095040
    %v268 = vshrl.u32 %v267, 23
    %v269 = vsub.s32 %v268, 127
    %v270 = vand.u32 2147483647, %v105
    %v271 = vand.u32 %v270, 8388607
    %v272 = vor.u32 %v271, 8388608
    %v273 = vsub.s32 0, %v272
    %v274 = vadd.s32 %v269, 1
    %vm275 = vcmp.gt.s32.totalorder %v274, 0
    %v276 = vsel %vm275, %v274, 0
    %v277 = vshrl.u32 %v276, 5
    %v278 = vand.u32 %v276, 31
    %v279 = vsub.s32 32, %v278
    %v280 = vshrl.u32 683565275, %v279
    %v281 = vshll.u32 683565275, %v278
    %v282 = vshrl.u32 2475754826, %v279
    %v283 = vor.u32 %v281, %v282
    %v284 = vshll.u32 2475754826, %v278
    %v285 = vshrl.u32 2131351028, %v279
    %v286 = vor.u32 %v284, %v285
    %v287 = vshll.u32 2131351028, %v278
    %v288 = vshrl.u32 2102212464, %v279
    %v289 = vor.u32 %v287, %v288
    %v290 = vshll.u32 2102212464, %v278
    %v291 = vshrl.u32 920167782, %v279
    %v292 = vor.u32 %v290, %v291
    %v293 = vshll.u32 920167782, %v278
    %v294 = vshrl.u32 1326507024, %v279
    %v295 = vor.u32 %v293, %v294
    %vm296 = vcmp.lt.s32.totalorder %v277, 1
    %vm297 = vcmp.lt.s32.totalorder %v277, 2
    %vm298 = vcmp.lt.s32.totalorder %v277, 3
    %vm299 = vcmp.lt.s32.totalorder %v277, 4
    %v300 = vsel %vm296, %v280, %v283
    %v301 = vsel %vm299, %v289, 2102212464
    %v302 = vsel %vm298, %v286, %v301
    %v303 = vsel %vm297, %v300, %v302
    %v304 = vsel %vm296, %v283, %v286
    %v305 = vsel %vm299, %v292, 920167782
    %v306 = vsel %vm298, %v289, %v305
    %v307 = vsel %vm297, %v304, %v306
    %v308 = vsel %vm296, %v286, %v289
    %v309 = vsel %vm299, %v295, 1326507024
    %v310 = vsel %vm298, %v292, %v309
    %v311 = vsel %vm297, %v308, %v310
    %v312 = vshll.u32 %v272, 8
    %v313 = vand.u32 %v312, 65535
    %v314 = vshrl.u32 %v312, 16
    %v315 = vand.u32 %v311, 65535
    %v316 = vshrl.u32 %v311, 16
    %v317 = vmul.u32 %v313, %v315
    %v318 = vmul.u32 %v313, %v316
    %v319 = vmul.u32 %v314, %v315
    %v320 = vmul.u32 %v314, %v316
    %v321 = vshll.u32 %v318, 16
    %v322 = vshrl.u32 %v318, 16
    %v323 = vshll.u32 %v319, 16
    %v324 = vshrl.u32 %v319, 16
    %vm325 = vc.u32 %v317, %v321
    %v326 = vsel %vm325, 1, 0
    %v327 = vadd.s32 %v317, %v321
    %v328 = vadd.s32 %v320, %v326
    %vm329 = vc.u32 %v327, %v323
    %v330 = vsel %vm329, 1, 0
    %v331 = vadd.s32 %v327, %v323
    %v332 = vadd.s32 %v328, %v330
    %v333 = vadd.s32 %v332, %v322
    %v334 = vadd.s32 %v333, %v324
    %v335 = vand.u32 %v312, 65535
    %v336 = vshrl.u32 %v312, 16
    %v337 = vand.u32 %v307, 65535
    %v338 = vshrl.u32 %v307, 16
    %v339 = vmul.u32 %v335, %v337
    %v340 = vmul.u32 %v335, %v338
    %v341 = vmul.u32 %v336, %v337
    %v342 = vmul.u32 %v336, %v338
    %v343 = vshll.u32 %v340, 16
    %v344 = vshrl.u32 %v340, 16
    %v345 = vshll.u32 %v341, 16
    %v346 = vshrl.u32 %v341, 16
    %vm347 = vc.u32 %v339, %v343
    %v348 = vsel %vm347, 1, 0
    %v349 = vadd.s32 %v339, %v343
    %v350 = vadd.s32 %v342, %v348
    %vm351 = vc.u32 %v349, %v345
    %v352 = vsel %vm351, 1, 0
    %v353 = vadd.s32 %v349, %v345
    %v354 = vadd.s32 %v350, %v352
    %v355 = vadd.s32 %v354, %v344
    %v356 = vadd.s32 %v355, %v346
    %v357 = vmul.u32 %v312, %v303
    %v358 = vadd.s32 %v334, %v353
    %vm359 = vc.u32 %v334, %v353
    %v360 = vadd.s32 %v356, 1
    %v361 = vsel %vm359, %v360, %v356
    %v362 = vadd.s32 %v357, %v361
    %v363 = vadd.s32 %v362, 536870912
    %v364 = vshrl.u32 %v363, 30
    %v365 = vshll.u32 %v364, 30
    %v366 = vsub.s32 %v362, %v365
    %vm367 = vcmp.lt.s32.totalorder %v366, 0
    %v368 = vsub.s32 0, %v366
    %v369 = vsel %vm367, %v368, %v366
    %v370 = vclz %v369
    %v371 = vsub.s32 %v370, 2
    %vm372 = vcmp.gt.s32.totalorder 0, %v371
    %v373 = vsel %vm372, 0, %v371
    %v374 = vsub.s32 32, %v373
    %v375 = vshll.u32 %v366, %v373
    %v376 = vshrl.u32 %v358, %v374
    %v377 = vor.u32 %v375, %v376
    %v378 = vsub.s32 4294967266, %v373
    %v379 = vadd.s32 %v378, 127
    %v380 = vshll.u32 %v379, 23
    %v381 = vor.u32 4788187, %v380
    %v382 = vand.u32 2147483647, %v381
    %v384 = vcvt.s32.f32 %v377
    %v385 = vmul.f32 %v384, %v382
    %v386 = vxor.u32 %v385, 2147483648
    %v387 = vsel %vm266, %v386, %v385
    %v388 = vsub.s32 4, %v364
    %v389 = vsel %vm266, %v388, %v364
    %v390 = vsel %vm265, %v105, %v387
    %v391 = vsel %vm265, 0, %v389
    %v392 = vmul.f32 %v390, %v390
    %v393 = vmul.f32 %v392, -0.001358992
    %v394 = vadd.f32 %v393, 0.041655596
    %v395 = vmul.f32 %v392, %v394
    %v396 = vadd.f32 %v395, -0.4999988
    %v397 = vmul.f32 %v392, %v396
    %v398 = vadd.f32 1.0, %v397
    %v399 = vmul.f32 %v390, %v390
    %v400 = vmul.f32 %v399, -0.00019511016
    %v401 = vadd.f32 %v400, 0.008332121
    %v402 = vmul.f32 %v399, %v401
    %v403 = vadd.f32 %v402, -0.16666654
    %v404 = vmul.f32 %v399, %v403
    %v405 = vadd.f32 %v404, 1.0
    %v406 = vmul.f32 %v405, %v390
    %vm407 = vweird.f32 %v105
    %v408 = vand.u32 %v391, 3
    %vm409 = vcmp.lt.s32.totalorder %v408, 2
    %vm410 = vcmp.eq.s32.totalorder %v408, 0
    %v411 = vxor.u32 %v406, 2147483648
    %v412 = vsel %vm410, %v398, %v411
    %vm413 = vcmp.eq.s32.totalorder %v408, 2
    %v414 = vxor.u32 %v398, 2147483648
    %v415 = vsel %vm413, %v414, %v406
    %v416 = vsel %vm409, %v412, %v415
    %v417 = vsel %vm407, nan, %v416
    %v418 = vsel %vm108, %v263, %v417
    %v419 = vld [vmem:[%s2] sm:$0xff]
    %v420 = vld [vmem:[%s2 + $0x8] sm:$0xff]
    %v421 = vld [vmem:[%s2 + $0x10] sm:$0xff]
    %v422 = vld [vmem:[%s2 + $0x18] sm:$0xff]
    %v423 = vld [vmem:[%s2 + $0x20] sm:$0xff]
    %v424 = vld [vmem:[%s2 + $0x28] sm:$0xff]
    %v425 = vld [vmem:[%s2 + $0x30] sm:$0xff]
    %v426 = vld [vmem:[%s2 + $0x38] sm:$0xff]
    %v427 = vmul.f32 %v419, 2.0
    %v428 = vmul.f32 %v420, 2.0
    %v429 = vmul.f32 %v421, 2.0
    %v430 = vmul.f32 %v422, 2.0
    %v431 = vmul.f32 %v423, 2.0
    %v432 = vmul.f32 %v424, 2.0
    %v433 = vmul.f32 %v425, 2.0
    %v434 = vmul.f32 %v426, 2.0
    %v435 = vsub.f32 %v427, 1.0
    %v436 = vsub.f32 %v428, 1.0
    %v437 = vsub.f32 %v429, 1.0
    %v438 = vsub.f32 %v430, 1.0
    %v439 = vsub.f32 %v431, 1.0
    %v440 = vsub.f32 %v432, 1.0
    %v441 = vsub.f32 %v433, 1.0
    %v442 = vsub.f32 %v434, 1.0
    %444 = vset.pattern.permute.xlu0 0
    %445 = vperm.xlu0 %444, %v435
    %v446 = vpop.permute.xlu0 %445
    %449 = vset.pattern.permute.xlu0 0
    %450 = vperm.xlu0 %449, %v436
    %v451 = vpop.permute.xlu0 %450
    %454 = vset.pattern.permute.xlu0 0
    %455 = vperm.xlu0 %454, %v437
    %v456 = vpop.permute.xlu0 %455
    %459 = vset.pattern.permute.xlu0 0
    %460 = vperm.xlu0 %459, %v438
    %v461 = vpop.permute.xlu0 %460
    %464 = vset.pattern.permute.xlu0 0
    %465 = vperm.xlu0 %464, %v439
    %v466 = vpop.permute.xlu0 %465
    %469 = vset.pattern.permute.xlu0 0
    %470 = vperm.xlu0 %469, %v440
    %v471 = vpop.permute.xlu0 %470
    %474 = vset.pattern.permute.xlu0 0
    %475 = vperm.xlu0 %474, %v441
    %v476 = vpop.permute.xlu0 %475
    %479 = vset.pattern.permute.xlu0 0
    %480 = vperm.xlu0 %479, %v442
    %v481 = vpop.permute.xlu0 %480
    %v483 = vmul.f32 %v446, %v96
    %v484 = vmul.f32 %v451, %v96
    %v485 = vmul.f32 %v456, %v96
    %v486 = vmul.f32 %v461, %v96
    %v487 = vmul.f32 %v466, %v96
    %v488 = vmul.f32 %v471, %v96
    %v489 = vmul.f32 %v476, %v96
    %v490 = vmul.f32 %v481, %v96
    %491 = vset.pattern.permute.xlu0 1
    %492 = vperm.xlu0 %491, %v435
    %v493 = vpop.permute.xlu0 %492
    %495 = vset.pattern.permute.xlu0 1
    %496 = vperm.xlu0 %495, %v436
    %v497 = vpop.permute.xlu0 %496
    %499 = vset.pattern.permute.xlu0 1
    %500 = vperm.xlu0 %499, %v437
    %v501 = vpop.permute.xlu0 %500
    %503 = vset.pattern.permute.xlu0 1
    %504 = vperm.xlu0 %503, %v438
    %v505 = vpop.permute.xlu0 %504
    %507 = vset.pattern.permute.xlu0 1
    %508 = vperm.xlu0 %507, %v439
    %v509 = vpop.permute.xlu0 %508
    %511 = vset.pattern.permute.xlu0 1
    %512 = vperm.xlu0 %511, %v440
    %v513 = vpop.permute.xlu0 %512
    %515 = vset.pattern.permute.xlu0 1
    %516 = vperm.xlu0 %515, %v441
    %v517 = vpop.permute.xlu0 %516
    %519 = vset.pattern.permute.xlu0 1
    %520 = vperm.xlu0 %519, %v442
    %v521 = vpop.permute.xlu0 %520
    %v523 = vmul.f32 %v493, %v102
    %v524 = vmul.f32 %v497, %v102
    %v525 = vmul.f32 %v501, %v102
    %v526 = vmul.f32 %v505, %v102
    %v527 = vmul.f32 %v509, %v102
    %v528 = vmul.f32 %v513, %v102
    %v529 = vmul.f32 %v517, %v102
    %v530 = vmul.f32 %v521, %v102
    %v531 = vadd.f32 %v483, %v523
    %v532 = vadd.f32 %v484, %v524
    %v533 = vadd.f32 %v485, %v525
    %v534 = vadd.f32 %v486, %v526
    %v535 = vadd.f32 %v487, %v527
    %v536 = vadd.f32 %v488, %v528
    %v537 = vadd.f32 %v489, %v529
    %v538 = vadd.f32 %v490, %v530
    %v539 = vmul.f32 %v531, 6.2831855
    %v540 = vmul.f32 %v532, 6.2831855
    %v541 = vmul.f32 %v533, 6.2831855
    %v542 = vmul.f32 %v534, 6.2831855
    %v543 = vmul.f32 %v535, 6.2831855
    %v544 = vmul.f32 %v536, 6.2831855
    %v545 = vmul.f32 %v537, 6.2831855
    %v546 = vmul.f32 %v538, 6.2831855
    %v547 = vand.u32 2147483647, %v539
    %vm548 = vcmp.le.f32.partialorder %v547, 0.7853982
    %vm549 = vcmp.lt.s32.totalorder %v539, 0
    %v550 = vand.u32 %v539, 2139095040
    %v551 = vshrl.u32 %v550, 23
    %v552 = vsub.s32 %v551, 127
    %v553 = vand.u32 2147483647, %v539
    %v554 = vand.u32 %v553, 8388607
    %v555 = vor.u32 %v554, 8388608
    %v556 = vsub.s32 0, %v555
    %v557 = vadd.s32 %v552, 1
    %vm558 = vcmp.gt.s32.totalorder %v557, 0
    %v559 = vsel %vm558, %v557, 0
    %v560 = vshrl.u32 %v559, 5
    %v561 = vand.u32 %v559, 31
    %v562 = vsub.s32 32, %v561
    %v563 = vshrl.u32 683565275, %v562
    %v564 = vshll.u32 683565275, %v561
    %v565 = vshrl.u32 2475754826, %v562
    %v566 = vor.u32 %v564, %v565
    %v567 = vshll.u32 2475754826, %v561
    %v568 = vshrl.u32 2131351028, %v562
    %v569 = vor.u32 %v567, %v568
    %v570 = vshll.u32 2131351028, %v561
    %v571 = vshrl.u32 2102212464, %v562
    %v572 = vor.u32 %v570, %v571
    %v573 = vshll.u32 2102212464, %v561
    %v574 = vshrl.u32 920167782, %v562
    %v575 = vor.u32 %v573, %v574
    %v576 = vshll.u32 920167782, %v561
    %v577 = vshrl.u32 1326507024, %v562
    %v578 = vor.u32 %v576, %v577
    %vm579 = vcmp.lt.s32.totalorder %v560, 1
    %vm580 = vcmp.lt.s32.totalorder %v560, 2
    %vm581 = vcmp.lt.s32.totalorder %v560, 3
    %vm582 = vcmp.lt.s32.totalorder %v560, 4
    %v583 = vsel %vm579, %v563, %v566
    %v584 = vsel %vm582, %v572, 2102212464
    %v585 = vsel %vm581, %v569, %v584
    %v586 = vsel %vm580, %v583, %v585
    %v587 = vsel %vm579, %v566, %v569
    %v588 = vsel %vm582, %v575, 920167782
    %v589 = vsel %vm581, %v572, %v588
    %v590 = vsel %vm580, %v587, %v589
    %v591 = vsel %vm579, %v569, %v572
    %v592 = vsel %vm582, %v578, 1326507024
    %v593 = vsel %vm581, %v575, %v592
    %v594 = vsel %vm580, %v591, %v593
    %v595 = vshll.u32 %v555, 8
    %v596 = vand.u32 %v595, 65535
    %v597 = vshrl.u32 %v595, 16
    %v598 = vand.u32 %v594, 65535
    %v599 = vshrl.u32 %v594, 16
    %v600 = vmul.u32 %v596, %v598
    %v601 = vmul.u32 %v596, %v599
    %v602 = vmul.u32 %v597, %v598
    %v603 = vmul.u32 %v597, %v599
    %v604 = vshll.u32 %v601, 16
    %v605 = vshrl.u32 %v601, 16
    %v606 = vshll.u32 %v602, 16
    %v607 = vshrl.u32 %v602, 16
    %vm608 = vc.u32 %v600, %v604
    %v609 = vsel %vm608, 1, 0
    %v610 = vadd.s32 %v600, %v604
    %v611 = vadd.s32 %v603, %v609
    %vm612 = vc.u32 %v610, %v606
    %v613 = vsel %vm612, 1, 0
    %v614 = vadd.s32 %v610, %v606
    %v615 = vadd.s32 %v611, %v613
    %v616 = vadd.s32 %v615, %v605
    %v617 = vadd.s32 %v616, %v607
    %v618 = vand.u32 %v595, 65535
    %v619 = vshrl.u32 %v595, 16
    %v620 = vand.u32 %v590, 65535
    %v621 = vshrl.u32 %v590, 16
    %v622 = vmul.u32 %v618, %v620
    %v623 = vmul.u32 %v618, %v621
    %v624 = vmul.u32 %v619, %v620
    %v625 = vmul.u32 %v619, %v621
    %v626 = vshll.u32 %v623, 16
    %v627 = vshrl.u32 %v623, 16
    %v628 = vshll.u32 %v624, 16
    %v629 = vshrl.u32 %v624, 16
    %vm630 = vc.u32 %v622, %v626
    %v631 = vsel %vm630, 1, 0
    %v632 = vadd.s32 %v622, %v626
    %v633 = vadd.s32 %v625, %v631
    %vm634 = vc.u32 %v632, %v628
    %v635 = vsel %vm634, 1, 0
    %v636 = vadd.s32 %v632, %v628
    %v637 = vadd.s32 %v633, %v635
    %v638 = vadd.s32 %v637, %v627
    %v639 = vadd.s32 %v638, %v629
    %v640 = vmul.u32 %v595, %v586
    %v641 = vadd.s32 %v617, %v636
    %vm642 = vc.u32 %v617, %v636
    %v643 = vadd.s32 %v639, 1
    %v644 = vsel %vm642, %v643, %v639
    %v645 = vadd.s32 %v640, %v644
    %v646 = vadd.s32 %v645, 536870912
    %v647 = vshrl.u32 %v646, 30
    %v648 = vshll.u32 %v647, 30
    %v649 = vsub.s32 %v645, %v648
    %vm650 = vcmp.lt.s32.totalorder %v649, 0
    %v651 = vsub.s32 0, %v649
    %v652 = vsel %vm650, %v651, %v649
    %v653 = vclz %v652
    %v654 = vsub.s32 %v653, 2
    %vm655 = vcmp.gt.s32.totalorder 0, %v654
    %v656 = vsel %vm655, 0, %v654
    %v657 = vsub.s32 32, %v656
    %v658 = vshll.u32 %v649, %v656
    %v659 = vshrl.u32 %v641, %v657
    %v660 = vor.u32 %v658, %v659
    %v661 = vsub.s32 4294967266, %v656
    %v662 = vadd.s32 %v661, 127
    %v663 = vshll.u32 %v662, 23
    %v664 = vor.u32 4788187, %v663
    %v665 = vand.u32 2147483647, %v664
    %v667 = vcvt.s32.f32 %v660
    %v668 = vmul.f32 %v667, %v665
    %v669 = vxor.u32 %v668, 2147483648
    %v670 = vsel %vm549, %v669, %v668
    %v671 = vsub.s32 4, %v647
    %v672 = vsel %vm549, %v671, %v647
    %v673 = vsel %vm548, %v539, %v670
    %v674 = vsel %vm548, 0, %v672
    %v675 = vmul.f32 %v673, %v673
    %v676 = vmul.f32 %v675, -0.001358992
    %v677 = vadd.f32 %v676, 0.041655596
    %v678 = vmul.f32 %v675, %v677
    %v679 = vadd.f32 %v678, -0.4999988
    %v680 = vmul.f32 %v675, %v679
    %v681 = vadd.f32 1.0, %v680
    %v682 = vmul.f32 %v673, %v673
    %v683 = vmul.f32 %v682, -0.00019511016
    %v684 = vadd.f32 %v683, 0.008332121
    %v685 = vmul.f32 %v682, %v684
    %v686 = vadd.f32 %v685, -0.16666654
    %v687 = vmul.f32 %v682, %v686
    %v688 = vadd.f32 %v687, 1.0
    %v689 = vmul.f32 %v688, %v673
    %vm690 = vweird.f32 %v539
    %v691 = vadd.s32 %v674, 3
    %v692 = vand.u32 %v691, 3
    %vm693 = vcmp.lt.s32.totalorder %v692, 2
    %vm694 = vcmp.eq.s32.totalorder %v692, 0
    %v695 = vxor.u32 %v689, 2147483648
    %v696 = vsel %vm694, %v681, %v695
    %vm697 = vcmp.eq.s32.totalorder %v692, 2
    %v698 = vxor.u32 %v681, 2147483648
    %v699 = vsel %vm697, %v698, %v689
    %v700 = vsel %vm693, %v696, %v699
    %v701 = vsel %vm690, nan, %v700
    %v702 = vand.u32 2147483647, %v540
    %vm703 = vcmp.le.f32.partialorder %v702, 0.7853982
    %vm704 = vcmp.lt.s32.totalorder %v540, 0
    %v705 = vand.u32 %v540, 2139095040
    %v706 = vshrl.u32 %v705, 23
    %v707 = vsub.s32 %v706, 127
    %v708 = vand.u32 2147483647, %v540
    %v709 = vand.u32 %v708, 8388607
    %v710 = vor.u32 %v709, 8388608
    %v711 = vsub.s32 0, %v710
    %v712 = vadd.s32 %v707, 1
    %vm713 = vcmp.gt.s32.totalorder %v712, 0
    %v714 = vsel %vm713, %v712, 0
    %v715 = vshrl.u32 %v714, 5
    %v716 = vand.u32 %v714, 31
    %v717 = vsub.s32 32, %v716
    %v718 = vshrl.u32 683565275, %v717
    %v719 = vshll.u32 683565275, %v716
    %v720 = vshrl.u32 2475754826, %v717
    %v721 = vor.u32 %v719, %v720
    %v722 = vshll.u32 2475754826, %v716
    %v723 = vshrl.u32 2131351028, %v717
    %v724 = vor.u32 %v722, %v723
    %v725 = vshll.u32 2131351028, %v716
    %v726 = vshrl.u32 2102212464, %v717
    %v727 = vor.u32 %v725, %v726
    %v728 = vshll.u32 2102212464, %v716
    %v729 = vshrl.u32 920167782, %v717
    %v730 = vor.u32 %v728, %v729
    %v731 = vshll.u32 920167782, %v716
    %v732 = vshrl.u32 1326507024, %v717
    %v733 = vor.u32 %v731, %v732
    %vm734 = vcmp.lt.s32.totalorder %v715, 1
    %vm735 = vcmp.lt.s32.totalorder %v715, 2
    %vm736 = vcmp.lt.s32.totalorder %v715, 3
    %vm737 = vcmp.lt.s32.totalorder %v715, 4
    %v738 = vsel %vm734, %v718, %v721
    %v739 = vsel %vm737, %v727, 2102212464
    %v740 = vsel %vm736, %v724, %v739
    %v741 = vsel %vm735, %v738, %v740
    %v742 = vsel %vm734, %v721, %v724
    %v743 = vsel %vm737, %v730, 920167782
    %v744 = vsel %vm736, %v727, %v743
    %v745 = vsel %vm735, %v742, %v744
    %v746 = vsel %vm734, %v724, %v727
    %v747 = vsel %vm737, %v733, 1326507024
    %v748 = vsel %vm736, %v730, %v747
    %v749 = vsel %vm735, %v746, %v748
    %v750 = vshll.u32 %v710, 8
    %v751 = vand.u32 %v750, 65535
    %v752 = vshrl.u32 %v750, 16
    %v753 = vand.u32 %v749, 65535
    %v754 = vshrl.u32 %v749, 16
    %v755 = vmul.u32 %v751, %v753
    %v756 = vmul.u32 %v751, %v754
    %v757 = vmul.u32 %v752, %v753
    %v758 = vmul.u32 %v752, %v754
    %v759 = vshll.u32 %v756, 16
    %v760 = vshrl.u32 %v756, 16
    %v761 = vshll.u32 %v757, 16
    %v762 = vshrl.u32 %v757, 16
    %vm763 = vc.u32 %v755, %v759
    %v764 = vsel %vm763, 1, 0
    %v765 = vadd.s32 %v755, %v759
    %v766 = vadd.s32 %v758, %v764
    %vm767 = vc.u32 %v765, %v761
    %v768 = vsel %vm767, 1, 0
    %v769 = vadd.s32 %v765, %v761
    %v770 = vadd.s32 %v766, %v768
    %v771 = vadd.s32 %v770, %v760
    %v772 = vadd.s32 %v771, %v762
    %v773 = vand.u32 %v750, 65535
    %v774 = vshrl.u32 %v750, 16
    %v775 = vand.u32 %v745, 65535
    %v776 = vshrl.u32 %v745, 16
    %v777 = vmul.u32 %v773, %v775
    %v778 = vmul.u32 %v773, %v776
    %v779 = vmul.u32 %v774, %v775
    %v780 = vmul.u32 %v774, %v776
    %v781 = vshll.u32 %v778, 16
    %v782 = vshrl.u32 %v778, 16
    %v783 = vshll.u32 %v779, 16
    %v784 = vshrl.u32 %v779, 16
    %vm785 = vc.u32 %v777, %v781
    %v786 = vsel %vm785, 1, 0
    %v787 = vadd.s32 %v777, %v781
    %v788 = vadd.s32 %v780, %v786
    %vm789 = vc.u32 %v787, %v783
    %v790 = vsel %vm789, 1, 0
    %v791 = vadd.s32 %v787, %v783
    %v792 = vadd.s32 %v788, %v790
    %v793 = vadd.s32 %v792, %v782
    %v794 = vadd.s32 %v793, %v784
    %v795 = vmul.u32 %v750, %v741
    %v796 = vadd.s32 %v772, %v791
    %vm797 = vc.u32 %v772, %v791
    %v798 = vadd.s32 %v794, 1
    %v799 = vsel %vm797, %v798, %v794
    %v800 = vadd.s32 %v795, %v799
    %v801 = vadd.s32 %v800, 536870912
    %v802 = vshrl.u32 %v801, 30
    %v803 = vshll.u32 %v802, 30
    %v804 = vsub.s32 %v800, %v803
    %vm805 = vcmp.lt.s32.totalorder %v804, 0
    %v806 = vsub.s32 0, %v804
    %v807 = vsel %vm805, %v806, %v804
    %v808 = vclz %v807
    %v809 = vsub.s32 %v808, 2
    %vm810 = vcmp.gt.s32.totalorder 0, %v809
    %v811 = vsel %vm810, 0, %v809
    %v812 = vsub.s32 32, %v811
    %v813 = vshll.u32 %v804, %v811
    %v814 = vshrl.u32 %v796, %v812
    %v815 = vor.u32 %v813, %v814
    %v816 = vsub.s32 4294967266, %v811
    %v817 = vadd.s32 %v816, 127
    %v818 = vshll.u32 %v817, 23
    %v819 = vor.u32 4788187, %v818
    %v820 = vand.u32 2147483647, %v819
    %v822 = vcvt.s32.f32 %v815
    %v823 = vmul.f32 %v822, %v820
    %v824 = vxor.u32 %v823, 2147483648
    %v825 = vsel %vm704, %v824, %v823
    %v826 = vsub.s32 4, %v802
    %v827 = vsel %vm704, %v826, %v802
    %v828 = vsel %vm703, %v540, %v825
    %v829 = vsel %vm703, 0, %v827
    %v830 = vmul.f32 %v828, %v828
    %v831 = vmul.f32 %v830, -0.001358992
    %v832 = vadd.f32 %v831, 0.041655596
    %v833 = vmul.f32 %v830, %v832
    %v834 = vadd.f32 %v833, -0.4999988
    %v835 = vmul.f32 %v830, %v834
    %v836 = vadd.f32 1.0, %v835
    %v837 = vmul.f32 %v828, %v828
    %v838 = vmul.f32 %v837, -0.00019511016
    %v839 = vadd.f32 %v838, 0.008332121
    %v840 = vmul.f32 %v837, %v839
    %v841 = vadd.f32 %v840, -0.16666654
    %v842 = vmul.f32 %v837, %v841
    %v843 = vadd.f32 %v842, 1.0
    %v844 = vmul.f32 %v843, %v828
    %vm845 = vweird.f32 %v540
    %v846 = vadd.s32 %v829, 3
    %v847 = vand.u32 %v846, 3
    %vm848 = vcmp.lt.s32.totalorder %v847, 2
    %vm849 = vcmp.eq.s32.totalorder %v847, 0
    %v850 = vxor.u32 %v844, 2147483648
    %v851 = vsel %vm849, %v836, %v850
    %vm852 = vcmp.eq.s32.totalorder %v847, 2
    %v853 = vxor.u32 %v836, 2147483648
    %v854 = vsel %vm852, %v853, %v844
    %v855 = vsel %vm848, %v851, %v854
    %v856 = vsel %vm845, nan, %v855
    %v857 = vand.u32 2147483647, %v541
    %vm858 = vcmp.le.f32.partialorder %v857, 0.7853982
    %vm859 = vcmp.lt.s32.totalorder %v541, 0
    %v860 = vand.u32 %v541, 2139095040
    %v861 = vshrl.u32 %v860, 23
    %v862 = vsub.s32 %v861, 127
    %v863 = vand.u32 2147483647, %v541
    %v864 = vand.u32 %v863, 8388607
    %v865 = vor.u32 %v864, 8388608
    %v866 = vsub.s32 0, %v865
    %v867 = vadd.s32 %v862, 1
    %vm868 = vcmp.gt.s32.totalorder %v867, 0
    %v869 = vsel %vm868, %v867, 0
    %v870 = vshrl.u32 %v869, 5
    %v871 = vand.u32 %v869, 31
    %v872 = vsub.s32 32, %v871
    %v873 = vshrl.u32 683565275, %v872
    %v874 = vshll.u32 683565275, %v871
    %v875 = vshrl.u32 2475754826, %v872
    %v876 = vor.u32 %v874, %v875
    %v877 = vshll.u32 2475754826, %v871
    %v878 = vshrl.u32 2131351028, %v872
    %v879 = vor.u32 %v877, %v878
    %v880 = vshll.u32 2131351028, %v871
    %v881 = vshrl.u32 2102212464, %v872
    %v882 = vor.u32 %v880, %v881
    %v883 = vshll.u32 2102212464, %v871
    %v884 = vshrl.u32 920167782, %v872
    %v885 = vor.u32 %v883, %v884
    %v886 = vshll.u32 920167782, %v871
    %v887 = vshrl.u32 1326507024, %v872
    %v888 = vor.u32 %v886, %v887
    %vm889 = vcmp.lt.s32.totalorder %v870, 1
    %vm890 = vcmp.lt.s32.totalorder %v870, 2
    %vm891 = vcmp.lt.s32.totalorder %v870, 3
    %vm892 = vcmp.lt.s32.totalorder %v870, 4
    %v893 = vsel %vm889, %v873, %v876
    %v894 = vsel %vm892, %v882, 2102212464
    %v895 = vsel %vm891, %v879, %v894
    %v896 = vsel %vm890, %v893, %v895
    %v897 = vsel %vm889, %v876, %v879
    %v898 = vsel %vm892, %v885, 920167782
    %v899 = vsel %vm891, %v882, %v898
    %v900 = vsel %vm890, %v897, %v899
    %v901 = vsel %vm889, %v879, %v882
    %v902 = vsel %vm892, %v888, 1326507024
    %v903 = vsel %vm891, %v885, %v902
    %v904 = vsel %vm890, %v901, %v903
    %v905 = vshll.u32 %v865, 8
    %v906 = vand.u32 %v905, 65535
    %v907 = vshrl.u32 %v905, 16
    %v908 = vand.u32 %v904, 65535
    %v909 = vshrl.u32 %v904, 16
    %v910 = vmul.u32 %v906, %v908
    %v911 = vmul.u32 %v906, %v909
    %v912 = vmul.u32 %v907, %v908
    %v913 = vmul.u32 %v907, %v909
    %v914 = vshll.u32 %v911, 16
    %v915 = vshrl.u32 %v911, 16
    %v916 = vshll.u32 %v912, 16
    %v917 = vshrl.u32 %v912, 16
    %vm918 = vc.u32 %v910, %v914
    %v919 = vsel %vm918, 1, 0
    %v920 = vadd.s32 %v910, %v914
    %v921 = vadd.s32 %v913, %v919
    %vm922 = vc.u32 %v920, %v916
    %v923 = vsel %vm922, 1, 0
    %v924 = vadd.s32 %v920, %v916
    %v925 = vadd.s32 %v921, %v923
    %v926 = vadd.s32 %v925, %v915
    %v927 = vadd.s32 %v926, %v917
    %v928 = vand.u32 %v905, 65535
    %v929 = vshrl.u32 %v905, 16
    %v930 = vand.u32 %v900, 65535
    %v931 = vshrl.u32 %v900, 16
    %v932 = vmul.u32 %v928, %v930
    %v933 = vmul.u32 %v928, %v931
    %v934 = vmul.u32 %v929, %v930
    %v935 = vmul.u32 %v929, %v931
    %v936 = vshll.u32 %v933, 16
    %v937 = vshrl.u32 %v933, 16
    %v938 = vshll.u32 %v934, 16
    %v939 = vshrl.u32 %v934, 16
    %vm940 = vc.u32 %v932, %v936
    %v941 = vsel %vm940, 1, 0
    %v942 = vadd.s32 %v932, %v936
    %v943 = vadd.s32 %v935, %v941
    %vm944 = vc.u32 %v942, %v938
    %v945 = vsel %vm944, 1, 0
    %v946 = vadd.s32 %v942, %v938
    %v947 = vadd.s32 %v943, %v945
    %v948 = vadd.s32 %v947, %v937
    %v949 = vadd.s32 %v948, %v939
    %v950 = vmul.u32 %v905, %v896
    %v951 = vadd.s32 %v927, %v946
    %vm952 = vc.u32 %v927, %v946
    %v953 = vadd.s32 %v949, 1
    %v954 = vsel %vm952, %v953, %v949
    %v955 = vadd.s32 %v950, %v954
    %v956 = vadd.s32 %v955, 536870912
    %v957 = vshrl.u32 %v956, 30
    %v958 = vshll.u32 %v957, 30
    %v959 = vsub.s32 %v955, %v958
    %vm960 = vcmp.lt.s32.totalorder %v959, 0
    %v961 = vsub.s32 0, %v959
    %v962 = vsel %vm960, %v961, %v959
    %v963 = vclz %v962
    %v964 = vsub.s32 %v963, 2
    %vm965 = vcmp.gt.s32.totalorder 0, %v964
    %v966 = vsel %vm965, 0, %v964
    %v967 = vsub.s32 32, %v966
    %v968 = vshll.u32 %v959, %v966
    %v969 = vshrl.u32 %v951, %v967
    %v970 = vor.u32 %v968, %v969
    %v971 = vsub.s32 4294967266, %v966
    %v972 = vadd.s32 %v971, 127
    %v973 = vshll.u32 %v972, 23
    %v974 = vor.u32 4788187, %v973
    %v975 = vand.u32 2147483647, %v974
    %v977 = vcvt.s32.f32 %v970
    %v978 = vmul.f32 %v977, %v975
    %v979 = vxor.u32 %v978, 2147483648
    %v980 = vsel %vm859, %v979, %v978
    %v981 = vsub.s32 4, %v957
    %v982 = vsel %vm859, %v981, %v957
    %v983 = vsel %vm858, %v541, %v980
    %v984 = vsel %vm858, 0, %v982
    %v985 = vmul.f32 %v983, %v983
    %v986 = vmul.f32 %v985, -0.001358992
    %v987 = vadd.f32 %v986, 0.041655596
    %v988 = vmul.f32 %v985, %v987
    %v989 = vadd.f32 %v988, -0.4999988
    %v990 = vmul.f32 %v985, %v989
    %v991 = vadd.f32 1.0, %v990
    %v992 = vmul.f32 %v983, %v983
    %v993 = vmul.f32 %v992, -0.00019511016
    %v994 = vadd.f32 %v993, 0.008332121
    %v995 = vmul.f32 %v992, %v994
    %v996 = vadd.f32 %v995, -0.16666654
    %v997 = vmul.f32 %v992, %v996
    %v998 = vadd.f32 %v997, 1.0
    %v999 = vmul.f32 %v998, %v983
    %vm1000 = vweird.f32 %v541
    %v1001 = vadd.s32 %v984, 3
    %v1002 = vand.u32 %v1001, 3
    %vm1003 = vcmp.lt.s32.totalorder %v1002, 2
    %vm1004 = vcmp.eq.s32.totalorder %v1002, 0
    %v1005 = vxor.u32 %v999, 2147483648
    %v1006 = vsel %vm1004, %v991, %v1005
    %vm1007 = vcmp.eq.s32.totalorder %v1002, 2
    %v1008 = vxor.u32 %v991, 2147483648
    %v1009 = vsel %vm1007, %v1008, %v999
    %v1010 = vsel %vm1003, %v1006, %v1009
    %v1011 = vsel %vm1000, nan, %v1010
    %v1012 = vand.u32 2147483647, %v542
    %vm1013 = vcmp.le.f32.partialorder %v1012, 0.7853982
    %vm1014 = vcmp.lt.s32.totalorder %v542, 0
    %v1015 = vand.u32 %v542, 2139095040
    %v1016 = vshrl.u32 %v1015, 23
    %v1017 = vsub.s32 %v1016, 127
    %v1018 = vand.u32 2147483647, %v542
    %v1019 = vand.u32 %v1018, 8388607
    %v1020 = vor.u32 %v1019, 8388608
    %v1021 = vsub.s32 0, %v1020
    %v1022 = vadd.s32 %v1017, 1
    %vm1023 = vcmp.gt.s32.totalorder %v1022, 0
    %v1024 = vsel %vm1023, %v1022, 0
    %v1025 = vshrl.u32 %v1024, 5
    %v1026 = vand.u32 %v1024, 31
    %v1027 = vsub.s32 32, %v1026
    %v1028 = vshrl.u32 683565275, %v1027
    %v1029 = vshll.u32 683565275, %v1026
    %v1030 = vshrl.u32 2475754826, %v1027
    %v1031 = vor.u32 %v1029, %v1030
    %v1032 = vshll.u32 2475754826, %v1026
    %v1033 = vshrl.u32 2131351028, %v1027
    %v1034 = vor.u32 %v1032, %v1033
    %v1035 = vshll.u32 2131351028, %v1026
    %v1036 = vshrl.u32 2102212464, %v1027
    %v1037 = vor.u32 %v1035, %v1036
    %v1038 = vshll.u32 2102212464, %v1026
    %v1039 = vshrl.u32 920167782, %v1027
    %v1040 = vor.u32 %v1038, %v1039
    %v1041 = vshll.u32 920167782, %v1026
    %v1042 = vshrl.u32 1326507024, %v1027
    %v1043 = vor.u32 %v1041, %v1042
    %vm1044 = vcmp.lt.s32.totalorder %v1025, 1
    %vm1045 = vcmp.lt.s32.totalorder %v1025, 2
    %vm1046 = vcmp.lt.s32.totalorder %v1025, 3
    %vm1047 = vcmp.lt.s32.totalorder %v1025, 4
    %v1048 = vsel %vm1044, %v1028, %v1031
    %v1049 = vsel %vm1047, %v1037, 2102212464
    %v1050 = vsel %vm1046, %v1034, %v1049
    %v1051 = vsel %vm1045, %v1048, %v1050
    %v1052 = vsel %vm1044, %v1031, %v1034
    %v1053 = vsel %vm1047, %v1040, 920167782
    %v1054 = vsel %vm1046, %v1037, %v1053
    %v1055 = vsel %vm1045, %v1052, %v1054
    %v1056 = vsel %vm1044, %v1034, %v1037
    %v1057 = vsel %vm1047, %v1043, 1326507024
    %v1058 = vsel %vm1046, %v1040, %v1057
    %v1059 = vsel %vm1045, %v1056, %v1058
    %v1060 = vshll.u32 %v1020, 8
    %v1061 = vand.u32 %v1060, 65535
    %v1062 = vshrl.u32 %v1060, 16
    %v1063 = vand.u32 %v1059, 65535
    %v1064 = vshrl.u32 %v1059, 16
    %v1065 = vmul.u32 %v1061, %v1063
    %v1066 = vmul.u32 %v1061, %v1064
    %v1067 = vmul.u32 %v1062, %v1063
    %v1068 = vmul.u32 %v1062, %v1064
    %v1069 = vshll.u32 %v1066, 16
    %v1070 = vshrl.u32 %v1066, 16
    %v1071 = vshll.u32 %v1067, 16
    %v1072 = vshrl.u32 %v1067, 16
    %vm1073 = vc.u32 %v1065, %v1069
    %v1074 = vsel %vm1073, 1, 0
    %v1075 = vadd.s32 %v1065, %v1069
    %v1076 = vadd.s32 %v1068, %v1074
    %vm1077 = vc.u32 %v1075, %v1071
    %v1078 = vsel %vm1077, 1, 0
    %v1079 = vadd.s32 %v1075, %v1071
    %v1080 = vadd.s32 %v1076, %v1078
    %v1081 = vadd.s32 %v1080, %v1070
    %v1082 = vadd.s32 %v1081, %v1072
    %v1083 = vand.u32 %v1060, 65535
    %v1084 = vshrl.u32 %v1060, 16
    %v1085 = vand.u32 %v1055, 65535
    %v1086 = vshrl.u32 %v1055, 16
    %v1087 = vmul.u32 %v1083, %v1085
    %v1088 = vmul.u32 %v1083, %v1086
    %v1089 = vmul.u32 %v1084, %v1085
    %v1090 = vmul.u32 %v1084, %v1086
    %v1091 = vshll.u32 %v1088, 16
    %v1092 = vshrl.u32 %v1088, 16
    %v1093 = vshll.u32 %v1089, 16
    %v1094 = vshrl.u32 %v1089, 16
    %vm1095 = vc.u32 %v1087, %v1091
    %v1096 = vsel %vm1095, 1, 0
    %v1097 = vadd.s32 %v1087, %v1091
    %v1098 = vadd.s32 %v1090, %v1096
    %vm1099 = vc.u32 %v1097, %v1093
    %v1100 = vsel %vm1099, 1, 0
    %v1101 = vadd.s32 %v1097, %v1093
    %v1102 = vadd.s32 %v1098, %v1100
    %v1103 = vadd.s32 %v1102, %v1092
    %v1104 = vadd.s32 %v1103, %v1094
    %v1105 = vmul.u32 %v1060, %v1051
    %v1106 = vadd.s32 %v1082, %v1101
    %vm1107 = vc.u32 %v1082, %v1101
    %v1108 = vadd.s32 %v1104, 1
    %v1109 = vsel %vm1107, %v1108, %v1104
    %v1110 = vadd.s32 %v1105, %v1109
    %v1111 = vadd.s32 %v1110, 536870912
    %v1112 = vshrl.u32 %v1111, 30
    %v1113 = vshll.u32 %v1112, 30
    %v1114 = vsub.s32 %v1110, %v1113
    %vm1115 = vcmp.lt.s32.totalorder %v1114, 0
    %v1116 = vsub.s32 0, %v1114
    %v1117 = vsel %vm1115, %v1116, %v1114
    %v1118 = vclz %v1117
    %v1119 = vsub.s32 %v1118, 2
    %vm1120 = vcmp.gt.s32.totalorder 0, %v1119
    %v1121 = vsel %vm1120, 0, %v1119
    %v1122 = vsub.s32 32, %v1121
    %v1123 = vshll.u32 %v1114, %v1121
    %v1124 = vshrl.u32 %v1106, %v1122
    %v1125 = vor.u32 %v1123, %v1124
    %v1126 = vsub.s32 4294967266, %v1121
    %v1127 = vadd.s32 %v1126, 127
    %v1128 = vshll.u32 %v1127, 23
    %v1129 = vor.u32 4788187, %v1128
    %v1130 = vand.u32 2147483647, %v1129
    %v1132 = vcvt.s32.f32 %v1125
    %v1133 = vmul.f32 %v1132, %v1130
    %v1134 = vxor.u32 %v1133, 2147483648
    %v1135 = vsel %vm1014, %v1134, %v1133
    %v1136 = vsub.s32 4, %v1112
    %v1137 = vsel %vm1014, %v1136, %v1112
    %v1138 = vsel %vm1013, %v542, %v1135
    %v1139 = vsel %vm1013, 0, %v1137
    %v1140 = vmul.f32 %v1138, %v1138
    %v1141 = vmul.f32 %v1140, -0.001358992
    %v1142 = vadd.f32 %v1141, 0.041655596
    %v1143 = vmul.f32 %v1140, %v1142
    %v1144 = vadd.f32 %v1143, -0.4999988
    %v1145 = vmul.f32 %v1140, %v1144
    %v1146 = vadd.f32 1.0, %v1145
    %v1147 = vmul.f32 %v1138, %v1138
    %v1148 = vmul.f32 %v1147, -0.00019511016
    %v1149 = vadd.f32 %v1148, 0.008332121
    %v1150 = vmul.f32 %v1147, %v1149
    %v1151 = vadd.f32 %v1150, -0.16666654
    %v1152 = vmul.f32 %v1147, %v1151
    %v1153 = vadd.f32 %v1152, 1.0
    %v1154 = vmul.f32 %v1153, %v1138
    %vm1155 = vweird.f32 %v542
    %v1156 = vadd.s32 %v1139, 3
    %v1157 = vand.u32 %v1156, 3
    %vm1158 = vcmp.lt.s32.totalorder %v1157, 2
    %vm1159 = vcmp.eq.s32.totalorder %v1157, 0
    %v1160 = vxor.u32 %v1154, 2147483648
    %v1161 = vsel %vm1159, %v1146, %v1160
    %vm1162 = vcmp.eq.s32.totalorder %v1157, 2
    %v1163 = vxor.u32 %v1146, 2147483648
    %v1164 = vsel %vm1162, %v1163, %v1154
    %v1165 = vsel %vm1158, %v1161, %v1164
    %v1166 = vsel %vm1155, nan, %v1165
    %v1167 = vand.u32 2147483647, %v543
    %vm1168 = vcmp.le.f32.partialorder %v1167, 0.7853982
    %vm1169 = vcmp.lt.s32.totalorder %v543, 0
    %v1170 = vand.u32 %v543, 2139095040
    %v1171 = vshrl.u32 %v1170, 23
    %v1172 = vsub.s32 %v1171, 127
    %v1173 = vand.u32 2147483647, %v543
    %v1174 = vand.u32 %v1173, 8388607
    %v1175 = vor.u32 %v1174, 8388608
    %v1176 = vsub.s32 0, %v1175
    %v1177 = vadd.s32 %v1172, 1
    %vm1178 = vcmp.gt.s32.totalorder %v1177, 0
    %v1179 = vsel %vm1178, %v1177, 0
    %v1180 = vshrl.u32 %v1179, 5
    %v1181 = vand.u32 %v1179, 31
    %v1182 = vsub.s32 32, %v1181
    %v1183 = vshrl.u32 683565275, %v1182
    %v1184 = vshll.u32 683565275, %v1181
    %v1185 = vshrl.u32 2475754826, %v1182
    %v1186 = vor.u32 %v1184, %v1185
    %v1187 = vshll.u32 2475754826, %v1181
    %v1188 = vshrl.u32 2131351028, %v1182
    %v1189 = vor.u32 %v1187, %v1188
    %v1190 = vshll.u32 2131351028, %v1181
    %v1191 = vshrl.u32 2102212464, %v1182
    %v1192 = vor.u32 %v1190, %v1191
    %v1193 = vshll.u32 2102212464, %v1181
    %v1194 = vshrl.u32 920167782, %v1182
    %v1195 = vor.u32 %v1193, %v1194
    %v1196 = vshll.u32 920167782, %v1181
    %v1197 = vshrl.u32 1326507024, %v1182
    %v1198 = vor.u32 %v1196, %v1197
    %vm1199 = vcmp.lt.s32.totalorder %v1180, 1
    %vm1200 = vcmp.lt.s32.totalorder %v1180, 2
    %vm1201 = vcmp.lt.s32.totalorder %v1180, 3
    %vm1202 = vcmp.lt.s32.totalorder %v1180, 4
    %v1203 = vsel %vm1199, %v1183, %v1186
    %v1204 = vsel %vm1202, %v1192, 2102212464
    %v1205 = vsel %vm1201, %v1189, %v1204
    %v1206 = vsel %vm1200, %v1203, %v1205
    %v1207 = vsel %vm1199, %v1186, %v1189
    %v1208 = vsel %vm1202, %v1195, 920167782
    %v1209 = vsel %vm1201, %v1192, %v1208
    %v1210 = vsel %vm1200, %v1207, %v1209
    %v1211 = vsel %vm1199, %v1189, %v1192
    %v1212 = vsel %vm1202, %v1198, 1326507024
    %v1213 = vsel %vm1201, %v1195, %v1212
    %v1214 = vsel %vm1200, %v1211, %v1213
    %v1215 = vshll.u32 %v1175, 8
    %v1216 = vand.u32 %v1215, 65535
    %v1217 = vshrl.u32 %v1215, 16
    %v1218 = vand.u32 %v1214, 65535
    %v1219 = vshrl.u32 %v1214, 16
    %v1220 = vmul.u32 %v1216, %v1218
    %v1221 = vmul.u32 %v1216, %v1219
    %v1222 = vmul.u32 %v1217, %v1218
    %v1223 = vmul.u32 %v1217, %v1219
    %v1224 = vshll.u32 %v1221, 16
    %v1225 = vshrl.u32 %v1221, 16
    %v1226 = vshll.u32 %v1222, 16
    %v1227 = vshrl.u32 %v1222, 16
    %vm1228 = vc.u32 %v1220, %v1224
    %v1229 = vsel %vm1228, 1, 0
    %v1230 = vadd.s32 %v1220, %v1224
    %v1231 = vadd.s32 %v1223, %v1229
    %vm1232 = vc.u32 %v1230, %v1226
    %v1233 = vsel %vm1232, 1, 0
    %v1234 = vadd.s32 %v1230, %v1226
    %v1235 = vadd.s32 %v1231, %v1233
    %v1236 = vadd.s32 %v1235, %v1225
    %v1237 = vadd.s32 %v1236, %v1227
    %v1238 = vand.u32 %v1215, 65535
    %v1239 = vshrl.u32 %v1215, 16
    %v1240 = vand.u32 %v1210, 65535
    %v1241 = vshrl.u32 %v1210, 16
    %v1242 = vmul.u32 %v1238, %v1240
    %v1243 = vmul.u32 %v1238, %v1241
    %v1244 = vmul.u32 %v1239, %v1240
    %v1245 = vmul.u32 %v1239, %v1241
    %v1246 = vshll.u32 %v1243, 16
    %v1247 = vshrl.u32 %v1243, 16
    %v1248 = vshll.u32 %v1244, 16
    %v1249 = vshrl.u32 %v1244, 16
    %vm1250 = vc.u32 %v1242, %v1246
    %v1251 = vsel %vm1250, 1, 0
    %v1252 = vadd.s32 %v1242, %v1246
    %v1253 = vadd.s32 %v1245, %v1251
    %vm1254 = vc.u32 %v1252, %v1248
    %v1255 = vsel %vm1254, 1, 0
    %v1256 = vadd.s32 %v1252, %v1248
    %v1257 = vadd.s32 %v1253, %v1255
    %v1258 = vadd.s32 %v1257, %v1247
    %v1259 = vadd.s32 %v1258, %v1249
    %v1260 = vmul.u32 %v1215, %v1206
    %v1261 = vadd.s32 %v1237, %v1256
    %vm1262 = vc.u32 %v1237, %v1256
    %v1263 = vadd.s32 %v1259, 1
    %v1264 = vsel %vm1262, %v1263, %v1259
    %v1265 = vadd.s32 %v1260, %v1264
    %v1266 = vadd.s32 %v1265, 536870912
    %v1267 = vshrl.u32 %v1266, 30
    %v1268 = vshll.u32 %v1267, 30
    %v1269 = vsub.s32 %v1265, %v1268
    %vm1270 = vcmp.lt.s32.totalorder %v1269, 0
    %v1271 = vsub.s32 0, %v1269
    %v1272 = vsel %vm1270, %v1271, %v1269
    %v1273 = vclz %v1272
    %v1274 = vsub.s32 %v1273, 2
    %vm1275 = vcmp.gt.s32.totalorder 0, %v1274
    %v1276 = vsel %vm1275, 0, %v1274
    %v1277 = vsub.s32 32, %v1276
    %v1278 = vshll.u32 %v1269, %v1276
    %v1279 = vshrl.u32 %v1261, %v1277
    %v1280 = vor.u32 %v1278, %v1279
    %v1281 = vsub.s32 4294967266, %v1276
    %v1282 = vadd.s32 %v1281, 127
    %v1283 = vshll.u32 %v1282, 23
    %v1284 = vor.u32 4788187, %v1283
    %v1285 = vand.u32 2147483647, %v1284
    %v1287 = vcvt.s32.f32 %v1280
    %v1288 = vmul.f32 %v1287, %v1285
    %v1289 = vxor.u32 %v1288, 2147483648
    %v1290 = vsel %vm1169, %v1289, %v1288
    %v1291 = vsub.s32 4, %v1267
    %v1292 = vsel %vm1169, %v1291, %v1267
    %v1293 = vsel %vm1168, %v543, %v1290
    %v1294 = vsel %vm1168, 0, %v1292
    %v1295 = vmul.f32 %v1293, %v1293
    %v1296 = vmul.f32 %v1295, -0.001358992
    %v1297 = vadd.f32 %v1296, 0.041655596
    %v1298 = vmul.f32 %v1295, %v1297
    %v1299 = vadd.f32 %v1298, -0.4999988
    %v1300 = vmul.f32 %v1295, %v1299
    %v1301 = vadd.f32 1.0, %v1300
    %v1302 = vmul.f32 %v1293, %v1293
    %v1303 = vmul.f32 %v1302, -0.00019511016
    %v1304 = vadd.f32 %v1303, 0.008332121
    %v1305 = vmul.f32 %v1302, %v1304
    %v1306 = vadd.f32 %v1305, -0.16666654
    %v1307 = vmul.f32 %v1302, %v1306
    %v1308 = vadd.f32 %v1307, 1.0
    %v1309 = vmul.f32 %v1308, %v1293
    %vm1310 = vweird.f32 %v543
    %v1311 = vadd.s32 %v1294, 3
    %v1312 = vand.u32 %v1311, 3
    %vm1313 = vcmp.lt.s32.totalorder %v1312, 2
    %vm1314 = vcmp.eq.s32.totalorder %v1312, 0
    %v1315 = vxor.u32 %v1309, 2147483648
    %v1316 = vsel %vm1314, %v1301, %v1315
    %vm1317 = vcmp.eq.s32.totalorder %v1312, 2
    %v1318 = vxor.u32 %v1301, 2147483648
    %v1319 = vsel %vm1317, %v1318, %v1309
    %v1320 = vsel %vm1313, %v1316, %v1319
    %v1321 = vsel %vm1310, nan, %v1320
    %v1322 = vand.u32 2147483647, %v544
    %vm1323 = vcmp.le.f32.partialorder %v1322, 0.7853982
    %vm1324 = vcmp.lt.s32.totalorder %v544, 0
    %v1325 = vand.u32 %v544, 2139095040
    %v1326 = vshrl.u32 %v1325, 23
    %v1327 = vsub.s32 %v1326, 127
    %v1328 = vand.u32 2147483647, %v544
    %v1329 = vand.u32 %v1328, 8388607
    %v1330 = vor.u32 %v1329, 8388608
    %v1331 = vsub.s32 0, %v1330
    %v1332 = vadd.s32 %v1327, 1
    %vm1333 = vcmp.gt.s32.totalorder %v1332, 0
    %v1334 = vsel %vm1333, %v1332, 0
    %v1335 = vshrl.u32 %v1334, 5
    %v1336 = vand.u32 %v1334, 31
    %v1337 = vsub.s32 32, %v1336
    %v1338 = vshrl.u32 683565275, %v1337
    %v1339 = vshll.u32 683565275, %v1336
    %v1340 = vshrl.u32 2475754826, %v1337
    %v1341 = vor.u32 %v1339, %v1340
    %v1342 = vshll.u32 2475754826, %v1336
    %v1343 = vshrl.u32 2131351028, %v1337
    %v1344 = vor.u32 %v1342, %v1343
    %v1345 = vshll.u32 2131351028, %v1336
    %v1346 = vshrl.u32 2102212464, %v1337
    %v1347 = vor.u32 %v1345, %v1346
    %v1348 = vshll.u32 2102212464, %v1336
    %v1349 = vshrl.u32 920167782, %v1337
    %v1350 = vor.u32 %v1348, %v1349
    %v1351 = vshll.u32 920167782, %v1336
    %v1352 = vshrl.u32 1326507024, %v1337
    %v1353 = vor.u32 %v1351, %v1352
    %vm1354 = vcmp.lt.s32.totalorder %v1335, 1
    %vm1355 = vcmp.lt.s32.totalorder %v1335, 2
    %vm1356 = vcmp.lt.s32.totalorder %v1335, 3
    %vm1357 = vcmp.lt.s32.totalorder %v1335, 4
    %v1358 = vsel %vm1354, %v1338, %v1341
    %v1359 = vsel %vm1357, %v1347, 2102212464
    %v1360 = vsel %vm1356, %v1344, %v1359
    %v1361 = vsel %vm1355, %v1358, %v1360
    %v1362 = vsel %vm1354, %v1341, %v1344
    %v1363 = vsel %vm1357, %v1350, 920167782
    %v1364 = vsel %vm1356, %v1347, %v1363
    %v1365 = vsel %vm1355, %v1362, %v1364
    %v1366 = vsel %vm1354, %v1344, %v1347
    %v1367 = vsel %vm1357, %v1353, 1326507024
    %v1368 = vsel %vm1356, %v1350, %v1367
    %v1369 = vsel %vm1355, %v1366, %v1368
    %v1370 = vshll.u32 %v1330, 8
    %v1371 = vand.u32 %v1370, 65535
    %v1372 = vshrl.u32 %v1370, 16
    %v1373 = vand.u32 %v1369, 65535
    %v1374 = vshrl.u32 %v1369, 16
    %v1375 = vmul.u32 %v1371, %v1373
    %v1376 = vmul.u32 %v1371, %v1374
    %v1377 = vmul.u32 %v1372, %v1373
    %v1378 = vmul.u32 %v1372, %v1374
    %v1379 = vshll.u32 %v1376, 16
    %v1380 = vshrl.u32 %v1376, 16
    %v1381 = vshll.u32 %v1377, 16
    %v1382 = vshrl.u32 %v1377, 16
    %vm1383 = vc.u32 %v1375, %v1379
    %v1384 = vsel %vm1383, 1, 0
    %v1385 = vadd.s32 %v1375, %v1379
    %v1386 = vadd.s32 %v1378, %v1384
    %vm1387 = vc.u32 %v1385, %v1381
    %v1388 = vsel %vm1387, 1, 0
    %v1389 = vadd.s32 %v1385, %v1381
    %v1390 = vadd.s32 %v1386, %v1388
    %v1391 = vadd.s32 %v1390, %v1380
    %v1392 = vadd.s32 %v1391, %v1382
    %v1393 = vand.u32 %v1370, 65535
    %v1394 = vshrl.u32 %v1370, 16
    %v1395 = vand.u32 %v1365, 65535
    %v1396 = vshrl.u32 %v1365, 16
    %v1397 = vmul.u32 %v1393, %v1395
    %v1398 = vmul.u32 %v1393, %v1396
    %v1399 = vmul.u32 %v1394, %v1395
    %v1400 = vmul.u32 %v1394, %v1396
    %v1401 = vshll.u32 %v1398, 16
    %v1402 = vshrl.u32 %v1398, 16
    %v1403 = vshll.u32 %v1399, 16
    %v1404 = vshrl.u32 %v1399, 16
    %vm1405 = vc.u32 %v1397, %v1401
    %v1406 = vsel %vm1405, 1, 0
    %v1407 = vadd.s32 %v1397, %v1401
    %v1408 = vadd.s32 %v1400, %v1406
    %vm1409 = vc.u32 %v1407, %v1403
    %v1410 = vsel %vm1409, 1, 0
    %v1411 = vadd.s32 %v1407, %v1403
    %v1412 = vadd.s32 %v1408, %v1410
    %v1413 = vadd.s32 %v1412, %v1402
    %v1414 = vadd.s32 %v1413, %v1404
    %v1415 = vmul.u32 %v1370, %v1361
    %v1416 = vadd.s32 %v1392, %v1411
    %vm1417 = vc.u32 %v1392, %v1411
    %v1418 = vadd.s32 %v1414, 1
    %v1419 = vsel %vm1417, %v1418, %v1414
    %v1420 = vadd.s32 %v1415, %v1419
    %v1421 = vadd.s32 %v1420, 536870912
    %v1422 = vshrl.u32 %v1421, 30
    %v1423 = vshll.u32 %v1422, 30
    %v1424 = vsub.s32 %v1420, %v1423
    %vm1425 = vcmp.lt.s32.totalorder %v1424, 0
    %v1426 = vsub.s32 0, %v1424
    %v1427 = vsel %vm1425, %v1426, %v1424
    %v1428 = vclz %v1427
    %v1429 = vsub.s32 %v1428, 2
    %vm1430 = vcmp.gt.s32.totalorder 0, %v1429
    %v1431 = vsel %vm1430, 0, %v1429
    %v1432 = vsub.s32 32, %v1431
    %v1433 = vshll.u32 %v1424, %v1431
    %v1434 = vshrl.u32 %v1416, %v1432
    %v1435 = vor.u32 %v1433, %v1434
    %v1436 = vsub.s32 4294967266, %v1431
    %v1437 = vadd.s32 %v1436, 127
    %v1438 = vshll.u32 %v1437, 23
    %v1439 = vor.u32 4788187, %v1438
    %v1440 = vand.u32 2147483647, %v1439
    %v1442 = vcvt.s32.f32 %v1435
    %v1443 = vmul.f32 %v1442, %v1440
    %v1444 = vxor.u32 %v1443, 2147483648
    %v1445 = vsel %vm1324, %v1444, %v1443
    %v1446 = vsub.s32 4, %v1422
    %v1447 = vsel %vm1324, %v1446, %v1422
    %v1448 = vsel %vm1323, %v544, %v1445
    %v1449 = vsel %vm1323, 0, %v1447
    %v1450 = vmul.f32 %v1448, %v1448
    %v1451 = vmul.f32 %v1450, -0.001358992
    %v1452 = vadd.f32 %v1451, 0.041655596
    %v1453 = vmul.f32 %v1450, %v1452
    %v1454 = vadd.f32 %v1453, -0.4999988
    %v1455 = vmul.f32 %v1450, %v1454
    %v1456 = vadd.f32 1.0, %v1455
    %v1457 = vmul.f32 %v1448, %v1448
    %v1458 = vmul.f32 %v1457, -0.00019511016
    %v1459 = vadd.f32 %v1458, 0.008332121
    %v1460 = vmul.f32 %v1457, %v1459
    %v1461 = vadd.f32 %v1460, -0.16666654
    %v1462 = vmul.f32 %v1457, %v1461
    %v1463 = vadd.f32 %v1462, 1.0
    %v1464 = vmul.f32 %v1463, %v1448
    %vm1465 = vweird.f32 %v544
    %v1466 = vadd.s32 %v1449, 3
    %v1467 = vand.u32 %v1466, 3
    %vm1468 = vcmp.lt.s32.totalorder %v1467, 2
    %vm1469 = vcmp.eq.s32.totalorder %v1467, 0
    %v1470 = vxor.u32 %v1464, 2147483648
    %v1471 = vsel %vm1469, %v1456, %v1470
    %vm1472 = vcmp.eq.s32.totalorder %v1467, 2
    %v1473 = vxor.u32 %v1456, 2147483648
    %v1474 = vsel %vm1472, %v1473, %v1464
    %v1475 = vsel %vm1468, %v1471, %v1474
    %v1476 = vsel %vm1465, nan, %v1475
    %v1477 = vand.u32 2147483647, %v545
    %vm1478 = vcmp.le.f32.partialorder %v1477, 0.7853982
    %vm1479 = vcmp.lt.s32.totalorder %v545, 0
    %v1480 = vand.u32 %v545, 2139095040
    %v1481 = vshrl.u32 %v1480, 23
    %v1482 = vsub.s32 %v1481, 127
    %v1483 = vand.u32 2147483647, %v545
    %v1484 = vand.u32 %v1483, 8388607
    %v1485 = vor.u32 %v1484, 8388608
    %v1486 = vsub.s32 0, %v1485
    %v1487 = vadd.s32 %v1482, 1
    %vm1488 = vcmp.gt.s32.totalorder %v1487, 0
    %v1489 = vsel %vm1488, %v1487, 0
    %v1490 = vshrl.u32 %v1489, 5
    %v1491 = vand.u32 %v1489, 31
    %v1492 = vsub.s32 32, %v1491
    %v1493 = vshrl.u32 683565275, %v1492
    %v1494 = vshll.u32 683565275, %v1491
    %v1495 = vshrl.u32 2475754826, %v1492
    %v1496 = vor.u32 %v1494, %v1495
    %v1497 = vshll.u32 2475754826, %v1491
    %v1498 = vshrl.u32 2131351028, %v1492
    %v1499 = vor.u32 %v1497, %v1498
    %v1500 = vshll.u32 2131351028, %v1491
    %v1501 = vshrl.u32 2102212464, %v1492
    %v1502 = vor.u32 %v1500, %v1501
    %v1503 = vshll.u32 2102212464, %v1491
    %v1504 = vshrl.u32 920167782, %v1492
    %v1505 = vor.u32 %v1503, %v1504
    %v1506 = vshll.u32 920167782, %v1491
    %v1507 = vshrl.u32 1326507024, %v1492
    %v1508 = vor.u32 %v1506, %v1507
    %vm1509 = vcmp.lt.s32.totalorder %v1490, 1
    %vm1510 = vcmp.lt.s32.totalorder %v1490, 2
    %vm1511 = vcmp.lt.s32.totalorder %v1490, 3
    %vm1512 = vcmp.lt.s32.totalorder %v1490, 4
    %v1513 = vsel %vm1509, %v1493, %v1496
    %v1514 = vsel %vm1512, %v1502, 2102212464
    %v1515 = vsel %vm1511, %v1499, %v1514
    %v1516 = vsel %vm1510, %v1513, %v1515
    %v1517 = vsel %vm1509, %v1496, %v1499
    %v1518 = vsel %vm1512, %v1505, 920167782
    %v1519 = vsel %vm1511, %v1502, %v1518
    %v1520 = vsel %vm1510, %v1517, %v1519
    %v1521 = vsel %vm1509, %v1499, %v1502
    %v1522 = vsel %vm1512, %v1508, 1326507024
    %v1523 = vsel %vm1511, %v1505, %v1522
    %v1524 = vsel %vm1510, %v1521, %v1523
    %v1525 = vshll.u32 %v1485, 8
    %v1526 = vand.u32 %v1525, 65535
    %v1527 = vshrl.u32 %v1525, 16
    %v1528 = vand.u32 %v1524, 65535
    %v1529 = vshrl.u32 %v1524, 16
    %v1530 = vmul.u32 %v1526, %v1528
    %v1531 = vmul.u32 %v1526, %v1529
    %v1532 = vmul.u32 %v1527, %v1528
    %v1533 = vmul.u32 %v1527, %v1529
    %v1534 = vshll.u32 %v1531, 16
    %v1535 = vshrl.u32 %v1531, 16
    %v1536 = vshll.u32 %v1532, 16
    %v1537 = vshrl.u32 %v1532, 16
    %vm1538 = vc.u32 %v1530, %v1534
    %v1539 = vsel %vm1538, 1, 0
    %v1540 = vadd.s32 %v1530, %v1534
    %v1541 = vadd.s32 %v1533, %v1539
    %vm1542 = vc.u32 %v1540, %v1536
    %v1543 = vsel %vm1542, 1, 0
    %v1544 = vadd.s32 %v1540, %v1536
    %v1545 = vadd.s32 %v1541, %v1543
    %v1546 = vadd.s32 %v1545, %v1535
    %v1547 = vadd.s32 %v1546, %v1537
    %v1548 = vand.u32 %v1525, 65535
    %v1549 = vshrl.u32 %v1525, 16
    %v1550 = vand.u32 %v1520, 65535
    %v1551 = vshrl.u32 %v1520, 16
    %v1552 = vmul.u32 %v1548, %v1550
    %v1553 = vmul.u32 %v1548, %v1551
    %v1554 = vmul.u32 %v1549, %v1550
    %v1555 = vmul.u32 %v1549, %v1551
    %v1556 = vshll.u32 %v1553, 16
    %v1557 = vshrl.u32 %v1553, 16
    %v1558 = vshll.u32 %v1554, 16
    %v1559 = vshrl.u32 %v1554, 16
    %vm1560 = vc.u32 %v1552, %v1556
    %v1561 = vsel %vm1560, 1, 0
    %v1562 = vadd.s32 %v1552, %v1556
    %v1563 = vadd.s32 %v1555, %v1561
    %vm1564 = vc.u32 %v1562, %v1558
    %v1565 = vsel %vm1564, 1, 0
    %v1566 = vadd.s32 %v1562, %v1558
    %v1567 = vadd.s32 %v1563, %v1565
    %v1568 = vadd.s32 %v1567, %v1557
    %v1569 = vadd.s32 %v1568, %v1559
    %v1570 = vmul.u32 %v1525, %v1516
    %v1571 = vadd.s32 %v1547, %v1566
    %vm1572 = vc.u32 %v1547, %v1566
    %v1573 = vadd.s32 %v1569, 1
    %v1574 = vsel %vm1572, %v1573, %v1569
    %v1575 = vadd.s32 %v1570, %v1574
    %v1576 = vadd.s32 %v1575, 536870912
    %v1577 = vshrl.u32 %v1576, 30
    %v1578 = vshll.u32 %v1577, 30
    %v1579 = vsub.s32 %v1575, %v1578
    %vm1580 = vcmp.lt.s32.totalorder %v1579, 0
    %v1581 = vsub.s32 0, %v1579
    %v1582 = vsel %vm1580, %v1581, %v1579
    %v1583 = vclz %v1582
    %v1584 = vsub.s32 %v1583, 2
    %vm1585 = vcmp.gt.s32.totalorder 0, %v1584
    %v1586 = vsel %vm1585, 0, %v1584
    %v1587 = vsub.s32 32, %v1586
    %v1588 = vshll.u32 %v1579, %v1586
    %v1589 = vshrl.u32 %v1571, %v1587
    %v1590 = vor.u32 %v1588, %v1589
    %v1591 = vsub.s32 4294967266, %v1586
    %v1592 = vadd.s32 %v1591, 127
    %v1593 = vshll.u32 %v1592, 23
    %v1594 = vor.u32 4788187, %v1593
    %v1595 = vand.u32 2147483647, %v1594
    %v1597 = vcvt.s32.f32 %v1590
    %v1598 = vmul.f32 %v1597, %v1595
    %v1599 = vxor.u32 %v1598, 2147483648
    %v1600 = vsel %vm1479, %v1599, %v1598
    %v1601 = vsub.s32 4, %v1577
    %v1602 = vsel %vm1479, %v1601, %v1577
    %v1603 = vsel %vm1478, %v545, %v1600
    %v1604 = vsel %vm1478, 0, %v1602
    %v1605 = vmul.f32 %v1603, %v1603
    %v1606 = vmul.f32 %v1605, -0.001358992
    %v1607 = vadd.f32 %v1606, 0.041655596
    %v1608 = vmul.f32 %v1605, %v1607
    %v1609 = vadd.f32 %v1608, -0.4999988
    %v1610 = vmul.f32 %v1605, %v1609
    %v1611 = vadd.f32 1.0, %v1610
    %v1612 = vmul.f32 %v1603, %v1603
    %v1613 = vmul.f32 %v1612, -0.00019511016
    %v1614 = vadd.f32 %v1613, 0.008332121
    %v1615 = vmul.f32 %v1612, %v1614
    %v1616 = vadd.f32 %v1615, -0.16666654
    %v1617 = vmul.f32 %v1612, %v1616
    %v1618 = vadd.f32 %v1617, 1.0
    %v1619 = vmul.f32 %v1618, %v1603
    %vm1620 = vweird.f32 %v545
    %v1621 = vadd.s32 %v1604, 3
    %v1622 = vand.u32 %v1621, 3
    %vm1623 = vcmp.lt.s32.totalorder %v1622, 2
    %vm1624 = vcmp.eq.s32.totalorder %v1622, 0
    %v1625 = vxor.u32 %v1619, 2147483648
    %v1626 = vsel %vm1624, %v1611, %v1625
    %vm1627 = vcmp.eq.s32.totalorder %v1622, 2
    %v1628 = vxor.u32 %v1611, 2147483648
    %v1629 = vsel %vm1627, %v1628, %v1619
    %v1630 = vsel %vm1623, %v1626, %v1629
    %v1631 = vsel %vm1620, nan, %v1630
    %v1632 = vand.u32 2147483647, %v546
    %vm1633 = vcmp.le.f32.partialorder %v1632, 0.7853982
    %vm1634 = vcmp.lt.s32.totalorder %v546, 0
    %v1635 = vand.u32 %v546, 2139095040
    %v1636 = vshrl.u32 %v1635, 23
    %v1637 = vsub.s32 %v1636, 127
    %v1638 = vand.u32 2147483647, %v546
    %v1639 = vand.u32 %v1638, 8388607
    %v1640 = vor.u32 %v1639, 8388608
    %v1641 = vsub.s32 0, %v1640
    %v1642 = vadd.s32 %v1637, 1
    %vm1643 = vcmp.gt.s32.totalorder %v1642, 0
    %v1644 = vsel %vm1643, %v1642, 0
    %v1645 = vshrl.u32 %v1644, 5
    %v1646 = vand.u32 %v1644, 31
    %v1647 = vsub.s32 32, %v1646
    %v1648 = vshrl.u32 683565275, %v1647
    %v1649 = vshll.u32 683565275, %v1646
    %v1650 = vshrl.u32 2475754826, %v1647
    %v1651 = vor.u32 %v1649, %v1650
    %v1652 = vshll.u32 2475754826, %v1646
    %v1653 = vshrl.u32 2131351028, %v1647
    %v1654 = vor.u32 %v1652, %v1653
    %v1655 = vshll.u32 2131351028, %v1646
    %v1656 = vshrl.u32 2102212464, %v1647
    %v1657 = vor.u32 %v1655, %v1656
    %v1658 = vshll.u32 2102212464, %v1646
    %v1659 = vshrl.u32 920167782, %v1647
    %v1660 = vor.u32 %v1658, %v1659
    %v1661 = vshll.u32 920167782, %v1646
    %v1662 = vshrl.u32 1326507024, %v1647
    %v1663 = vor.u32 %v1661, %v1662
    %vm1664 = vcmp.lt.s32.totalorder %v1645, 1
    %vm1665 = vcmp.lt.s32.totalorder %v1645, 2
    %vm1666 = vcmp.lt.s32.totalorder %v1645, 3
    %vm1667 = vcmp.lt.s32.totalorder %v1645, 4
    %v1668 = vsel %vm1664, %v1648, %v1651
    %v1669 = vsel %vm1667, %v1657, 2102212464
    %v1670 = vsel %vm1666, %v1654, %v1669
    %v1671 = vsel %vm1665, %v1668, %v1670
    %v1672 = vsel %vm1664, %v1651, %v1654
    %v1673 = vsel %vm1667, %v1660, 920167782
    %v1674 = vsel %vm1666, %v1657, %v1673
    %v1675 = vsel %vm1665, %v1672, %v1674
    %v1676 = vsel %vm1664, %v1654, %v1657
    %v1677 = vsel %vm1667, %v1663, 1326507024
    %v1678 = vsel %vm1666, %v1660, %v1677
    %v1679 = vsel %vm1665, %v1676, %v1678
    %v1680 = vshll.u32 %v1640, 8
    %v1681 = vand.u32 %v1680, 65535
    %v1682 = vshrl.u32 %v1680, 16
    %v1683 = vand.u32 %v1679, 65535
    %v1684 = vshrl.u32 %v1679, 16
    %v1685 = vmul.u32 %v1681, %v1683
    %v1686 = vmul.u32 %v1681, %v1684
    %v1687 = vmul.u32 %v1682, %v1683
    %v1688 = vmul.u32 %v1682, %v1684
    %v1689 = vshll.u32 %v1686, 16
    %v1690 = vshrl.u32 %v1686, 16
    %v1691 = vshll.u32 %v1687, 16
    %v1692 = vshrl.u32 %v1687, 16
    %vm1693 = vc.u32 %v1685, %v1689
    %v1694 = vsel %vm1693, 1, 0
    %v1695 = vadd.s32 %v1685, %v1689
    %v1696 = vadd.s32 %v1688, %v1694
    %vm1697 = vc.u32 %v1695, %v1691
    %v1698 = vsel %vm1697, 1, 0
    %v1699 = vadd.s32 %v1695, %v1691
    %v1700 = vadd.s32 %v1696, %v1698
    %v1701 = vadd.s32 %v1700, %v1690
    %v1702 = vadd.s32 %v1701, %v1692
    %v1703 = vand.u32 %v1680, 65535
    %v1704 = vshrl.u32 %v1680, 16
    %v1705 = vand.u32 %v1675, 65535
    %v1706 = vshrl.u32 %v1675, 16
    %v1707 = vmul.u32 %v1703, %v1705
    %v1708 = vmul.u32 %v1703, %v1706
    %v1709 = vmul.u32 %v1704, %v1705
    %v1710 = vmul.u32 %v1704, %v1706
    %v1711 = vshll.u32 %v1708, 16
    %v1712 = vshrl.u32 %v1708, 16
    %v1713 = vshll.u32 %v1709, 16
    %v1714 = vshrl.u32 %v1709, 16
    %vm1715 = vc.u32 %v1707, %v1711
    %v1716 = vsel %vm1715, 1, 0
    %v1717 = vadd.s32 %v1707, %v1711
    %v1718 = vadd.s32 %v1710, %v1716
    %vm1719 = vc.u32 %v1717, %v1713
    %v1720 = vsel %vm1719, 1, 0
    %v1721 = vadd.s32 %v1717, %v1713
    %v1722 = vadd.s32 %v1718, %v1720
    %v1723 = vadd.s32 %v1722, %v1712
    %v1724 = vadd.s32 %v1723, %v1714
    %v1725 = vmul.u32 %v1680, %v1671
    %v1726 = vadd.s32 %v1702, %v1721
    %vm1727 = vc.u32 %v1702, %v1721
    %v1728 = vadd.s32 %v1724, 1
    %v1729 = vsel %vm1727, %v1728, %v1724
    %v1730 = vadd.s32 %v1725, %v1729
    %v1731 = vadd.s32 %v1730, 536870912
    %v1732 = vshrl.u32 %v1731, 30
    %v1733 = vshll.u32 %v1732, 30
    %v1734 = vsub.s32 %v1730, %v1733
    %vm1735 = vcmp.lt.s32.totalorder %v1734, 0
    %v1736 = vsub.s32 0, %v1734
    %v1737 = vsel %vm1735, %v1736, %v1734
    %v1738 = vclz %v1737
    %v1739 = vsub.s32 %v1738, 2
    %vm1740 = vcmp.gt.s32.totalorder 0, %v1739
    %v1741 = vsel %vm1740, 0, %v1739
    %v1742 = vsub.s32 32, %v1741
    %v1743 = vshll.u32 %v1734, %v1741
    %v1744 = vshrl.u32 %v1726, %v1742
    %v1745 = vor.u32 %v1743, %v1744
    %v1746 = vsub.s32 4294967266, %v1741
    %v1747 = vadd.s32 %v1746, 127
    %v1748 = vshll.u32 %v1747, 23
    %v1749 = vor.u32 4788187, %v1748
    %v1750 = vand.u32 2147483647, %v1749
    %v1752 = vcvt.s32.f32 %v1745
    %v1753 = vmul.f32 %v1752, %v1750
    %v1754 = vxor.u32 %v1753, 2147483648
    %v1755 = vsel %vm1634, %v1754, %v1753
    %v1756 = vsub.s32 4, %v1732
    %v1757 = vsel %vm1634, %v1756, %v1732
    %v1758 = vsel %vm1633, %v546, %v1755
    %v1759 = vsel %vm1633, 0, %v1757
    %v1760 = vmul.f32 %v1758, %v1758
    %v1761 = vmul.f32 %v1760, -0.001358992
    %v1762 = vadd.f32 %v1761, 0.041655596
    %v1763 = vmul.f32 %v1760, %v1762
    %v1764 = vadd.f32 %v1763, -0.4999988
    %v1765 = vmul.f32 %v1760, %v1764
    %v1766 = vadd.f32 1.0, %v1765
    %v1767 = vmul.f32 %v1758, %v1758
    %v1768 = vmul.f32 %v1767, -0.00019511016
    %v1769 = vadd.f32 %v1768, 0.008332121
    %v1770 = vmul.f32 %v1767, %v1769
    %v1771 = vadd.f32 %v1770, -0.16666654
    %v1772 = vmul.f32 %v1767, %v1771
    %v1773 = vadd.f32 %v1772, 1.0
    %v1774 = vmul.f32 %v1773, %v1758
    %vm1775 = vweird.f32 %v546
    %v1776 = vadd.s32 %v1759, 3
    %v1777 = vand.u32 %v1776, 3
    %vm1778 = vcmp.lt.s32.totalorder %v1777, 2
    %vm1779 = vcmp.eq.s32.totalorder %v1777, 0
    %v1780 = vxor.u32 %v1774, 2147483648
    %v1781 = vsel %vm1779, %v1766, %v1780
    %vm1782 = vcmp.eq.s32.totalorder %v1777, 2
    %v1783 = vxor.u32 %v1766, 2147483648
    %v1784 = vsel %vm1782, %v1783, %v1774
    %v1785 = vsel %vm1778, %v1781, %v1784
    %v1786 = vsel %vm1775, nan, %v1785
    %v1787 = vand.u32 2147483647, %v539
    %vm1788 = vcmp.le.f32.partialorder %v1787, 0.7853982
    %vm1789 = vcmp.lt.s32.totalorder %v539, 0
    %v1790 = vand.u32 %v539, 2139095040
    %v1791 = vshrl.u32 %v1790, 23
    %v1792 = vsub.s32 %v1791, 127
    %v1793 = vand.u32 2147483647, %v539
    %v1794 = vand.u32 %v1793, 8388607
    %v1795 = vor.u32 %v1794, 8388608
    %v1796 = vsub.s32 0, %v1795
    %v1797 = vadd.s32 %v1792, 1
    %vm1798 = vcmp.gt.s32.totalorder %v1797, 0
    %v1799 = vsel %vm1798, %v1797, 0
    %v1800 = vshrl.u32 %v1799, 5
    %v1801 = vand.u32 %v1799, 31
    %v1802 = vsub.s32 32, %v1801
    %v1803 = vshrl.u32 683565275, %v1802
    %v1804 = vshll.u32 683565275, %v1801
    %v1805 = vshrl.u32 2475754826, %v1802
    %v1806 = vor.u32 %v1804, %v1805
    %v1807 = vshll.u32 2475754826, %v1801
    %v1808 = vshrl.u32 2131351028, %v1802
    %v1809 = vor.u32 %v1807, %v1808
    %v1810 = vshll.u32 2131351028, %v1801
    %v1811 = vshrl.u32 2102212464, %v1802
    %v1812 = vor.u32 %v1810, %v1811
    %v1813 = vshll.u32 2102212464, %v1801
    %v1814 = vshrl.u32 920167782, %v1802
    %v1815 = vor.u32 %v1813, %v1814
    %v1816 = vshll.u32 920167782, %v1801
    %v1817 = vshrl.u32 1326507024, %v1802
    %v1818 = vor.u32 %v1816, %v1817
    %vm1819 = vcmp.lt.s32.totalorder %v1800, 1
    %vm1820 = vcmp.lt.s32.totalorder %v1800, 2
    %vm1821 = vcmp.lt.s32.totalorder %v1800, 3
    %vm1822 = vcmp.lt.s32.totalorder %v1800, 4
    %v1823 = vsel %vm1819, %v1803, %v1806
    %v1824 = vsel %vm1822, %v1812, 2102212464
    %v1825 = vsel %vm1821, %v1809, %v1824
    %v1826 = vsel %vm1820, %v1823, %v1825
    %v1827 = vsel %vm1819, %v1806, %v1809
    %v1828 = vsel %vm1822, %v1815, 920167782
    %v1829 = vsel %vm1821, %v1812, %v1828
    %v1830 = vsel %vm1820, %v1827, %v1829
    %v1831 = vsel %vm1819, %v1809, %v1812
    %v1832 = vsel %vm1822, %v1818, 1326507024
    %v1833 = vsel %vm1821, %v1815, %v1832
    %v1834 = vsel %vm1820, %v1831, %v1833
    %v1835 = vshll.u32 %v1795, 8
    %v1836 = vand.u32 %v1835, 65535
    %v1837 = vshrl.u32 %v1835, 16
    %v1838 = vand.u32 %v1834, 65535
    %v1839 = vshrl.u32 %v1834, 16
    %v1840 = vmul.u32 %v1836, %v1838
    %v1841 = vmul.u32 %v1836, %v1839
    %v1842 = vmul.u32 %v1837, %v1838
    %v1843 = vmul.u32 %v1837, %v1839
    %v1844 = vshll.u32 %v1841, 16
    %v1845 = vshrl.u32 %v1841, 16
    %v1846 = vshll.u32 %v1842, 16
    %v1847 = vshrl.u32 %v1842, 16
    %vm1848 = vc.u32 %v1840, %v1844
    %v1849 = vsel %vm1848, 1, 0
    %v1850 = vadd.s32 %v1840, %v1844
    %v1851 = vadd.s32 %v1843, %v1849
    %vm1852 = vc.u32 %v1850, %v1846
    %v1853 = vsel %vm1852, 1, 0
    %v1854 = vadd.s32 %v1850, %v1846
    %v1855 = vadd.s32 %v1851, %v1853
    %v1856 = vadd.s32 %v1855, %v1845
    %v1857 = vadd.s32 %v1856, %v1847
    %v1858 = vand.u32 %v1835, 65535
    %v1859 = vshrl.u32 %v1835, 16
    %v1860 = vand.u32 %v1830, 65535
    %v1861 = vshrl.u32 %v1830, 16
    %v1862 = vmul.u32 %v1858, %v1860
    %v1863 = vmul.u32 %v1858, %v1861
    %v1864 = vmul.u32 %v1859, %v1860
    %v1865 = vmul.u32 %v1859, %v1861
    %v1866 = vshll.u32 %v1863, 16
    %v1867 = vshrl.u32 %v1863, 16
    %v1868 = vshll.u32 %v1864, 16
    %v1869 = vshrl.u32 %v1864, 16
    %vm1870 = vc.u32 %v1862, %v1866
    %v1871 = vsel %vm1870, 1, 0
    %v1872 = vadd.s32 %v1862, %v1866
    %v1873 = vadd.s32 %v1865, %v1871
    %vm1874 = vc.u32 %v1872, %v1868
    %v1875 = vsel %vm1874, 1, 0
    %v1876 = vadd.s32 %v1872, %v1868
    %v1877 = vadd.s32 %v1873, %v1875
    %v1878 = vadd.s32 %v1877, %v1867
    %v1879 = vadd.s32 %v1878, %v1869
    %v1880 = vmul.u32 %v1835, %v1826
    %v1881 = vadd.s32 %v1857, %v1876
    %vm1882 = vc.u32 %v1857, %v1876
    %v1883 = vadd.s32 %v1879, 1
    %v1884 = vsel %vm1882, %v1883, %v1879
    %v1885 = vadd.s32 %v1880, %v1884
    %v1886 = vadd.s32 %v1885, 536870912
    %v1887 = vshrl.u32 %v1886, 30
    %v1888 = vshll.u32 %v1887, 30
    %v1889 = vsub.s32 %v1885, %v1888
    %vm1890 = vcmp.lt.s32.totalorder %v1889, 0
    %v1891 = vsub.s32 0, %v1889
    %v1892 = vsel %vm1890, %v1891, %v1889
    %v1893 = vclz %v1892
    %v1894 = vsub.s32 %v1893, 2
    %vm1895 = vcmp.gt.s32.totalorder 0, %v1894
    %v1896 = vsel %vm1895, 0, %v1894
    %v1897 = vsub.s32 32, %v1896
    %v1898 = vshll.u32 %v1889, %v1896
    %v1899 = vshrl.u32 %v1881, %v1897
    %v1900 = vor.u32 %v1898, %v1899
    %v1901 = vsub.s32 4294967266, %v1896
    %v1902 = vadd.s32 %v1901, 127
    %v1903 = vshll.u32 %v1902, 23
    %v1904 = vor.u32 4788187, %v1903
    %v1905 = vand.u32 2147483647, %v1904
    %v1907 = vcvt.s32.f32 %v1900
    %v1908 = vmul.f32 %v1907, %v1905
    %v1909 = vxor.u32 %v1908, 2147483648
    %v1910 = vsel %vm1789, %v1909, %v1908
    %v1911 = vsub.s32 4, %v1887
    %v1912 = vsel %vm1789, %v1911, %v1887
    %v1913 = vsel %vm1788, %v539, %v1910
    %v1914 = vsel %vm1788, 0, %v1912
    %v1915 = vmul.f32 %v1913, %v1913
    %v1916 = vmul.f32 %v1915, -0.001358992
    %v1917 = vadd.f32 %v1916, 0.041655596
    %v1918 = vmul.f32 %v1915, %v1917
    %v1919 = vadd.f32 %v1918, -0.4999988
    %v1920 = vmul.f32 %v1915, %v1919
    %v1921 = vadd.f32 1.0, %v1920
    %v1922 = vmul.f32 %v1913, %v1913
    %v1923 = vmul.f32 %v1922, -0.00019511016
    %v1924 = vadd.f32 %v1923, 0.008332121
    %v1925 = vmul.f32 %v1922, %v1924
    %v1926 = vadd.f32 %v1925, -0.16666654
    %v1927 = vmul.f32 %v1922, %v1926
    %v1928 = vadd.f32 %v1927, 1.0
    %v1929 = vmul.f32 %v1928, %v1913
    %vm1930 = vweird.f32 %v539
    %v1931 = vand.u32 %v1914, 3
    %vm1932 = vcmp.lt.s32.totalorder %v1931, 2
    %vm1933 = vcmp.eq.s32.totalorder %v1931, 0
    %v1934 = vxor.u32 %v1929, 2147483648
    %v1935 = vsel %vm1933, %v1921, %v1934
    %vm1936 = vcmp.eq.s32.totalorder %v1931, 2
    %v1937 = vxor.u32 %v1921, 2147483648
    %v1938 = vsel %vm1936, %v1937, %v1929
    %v1939 = vsel %vm1932, %v1935, %v1938
    %v1940 = vsel %vm1930, nan, %v1939
    %v1941 = vand.u32 2147483647, %v540
    %vm1942 = vcmp.le.f32.partialorder %v1941, 0.7853982
    %vm1943 = vcmp.lt.s32.totalorder %v540, 0
    %v1944 = vand.u32 %v540, 2139095040
    %v1945 = vshrl.u32 %v1944, 23
    %v1946 = vsub.s32 %v1945, 127
    %v1947 = vand.u32 2147483647, %v540
    %v1948 = vand.u32 %v1947, 8388607
    %v1949 = vor.u32 %v1948, 8388608
    %v1950 = vsub.s32 0, %v1949
    %v1951 = vadd.s32 %v1946, 1
    %vm1952 = vcmp.gt.s32.totalorder %v1951, 0
    %v1953 = vsel %vm1952, %v1951, 0
    %v1954 = vshrl.u32 %v1953, 5
    %v1955 = vand.u32 %v1953, 31
    %v1956 = vsub.s32 32, %v1955
    %v1957 = vshrl.u32 683565275, %v1956
    %v1958 = vshll.u32 683565275, %v1955
    %v1959 = vshrl.u32 2475754826, %v1956
    %v1960 = vor.u32 %v1958, %v1959
    %v1961 = vshll.u32 2475754826, %v1955
    %v1962 = vshrl.u32 2131351028, %v1956
    %v1963 = vor.u32 %v1961, %v1962
    %v1964 = vshll.u32 2131351028, %v1955
    %v1965 = vshrl.u32 2102212464, %v1956
    %v1966 = vor.u32 %v1964, %v1965
    %v1967 = vshll.u32 2102212464, %v1955
    %v1968 = vshrl.u32 920167782, %v1956
    %v1969 = vor.u32 %v1967, %v1968
    %v1970 = vshll.u32 920167782, %v1955
    %v1971 = vshrl.u32 1326507024, %v1956
    %v1972 = vor.u32 %v1970, %v1971
    %vm1973 = vcmp.lt.s32.totalorder %v1954, 1
    %vm1974 = vcmp.lt.s32.totalorder %v1954, 2
    %vm1975 = vcmp.lt.s32.totalorder %v1954, 3
    %vm1976 = vcmp.lt.s32.totalorder %v1954, 4
    %v1977 = vsel %vm1973, %v1957, %v1960
    %v1978 = vsel %vm1976, %v1966, 2102212464
    %v1979 = vsel %vm1975, %v1963, %v1978
    %v1980 = vsel %vm1974, %v1977, %v1979
    %v1981 = vsel %vm1973, %v1960, %v1963
    %v1982 = vsel %vm1976, %v1969, 920167782
    %v1983 = vsel %vm1975, %v1966, %v1982
    %v1984 = vsel %vm1974, %v1981, %v1983
    %v1985 = vsel %vm1973, %v1963, %v1966
    %v1986 = vsel %vm1976, %v1972, 1326507024
    %v1987 = vsel %vm1975, %v1969, %v1986
    %v1988 = vsel %vm1974, %v1985, %v1987
    %v1989 = vshll.u32 %v1949, 8
    %v1990 = vand.u32 %v1989, 65535
    %v1991 = vshrl.u32 %v1989, 16
    %v1992 = vand.u32 %v1988, 65535
    %v1993 = vshrl.u32 %v1988, 16
    %v1994 = vmul.u32 %v1990, %v1992
    %v1995 = vmul.u32 %v1990, %v1993
    %v1996 = vmul.u32 %v1991, %v1992
    %v1997 = vmul.u32 %v1991, %v1993
    %v1998 = vshll.u32 %v1995, 16
    %v1999 = vshrl.u32 %v1995, 16
    %v2000 = vshll.u32 %v1996, 16
    %v2001 = vshrl.u32 %v1996, 16
    %vm2002 = vc.u32 %v1994, %v1998
    %v2003 = vsel %vm2002, 1, 0
    %v2004 = vadd.s32 %v1994, %v1998
    %v2005 = vadd.s32 %v1997, %v2003
    %vm2006 = vc.u32 %v2004, %v2000
    %v2007 = vsel %vm2006, 1, 0
    %v2008 = vadd.s32 %v2004, %v2000
    %v2009 = vadd.s32 %v2005, %v2007
    %v2010 = vadd.s32 %v2009, %v1999
    %v2011 = vadd.s32 %v2010, %v2001
    %v2012 = vand.u32 %v1989, 65535
    %v2013 = vshrl.u32 %v1989, 16
    %v2014 = vand.u32 %v1984, 65535
    %v2015 = vshrl.u32 %v1984, 16
    %v2016 = vmul.u32 %v2012, %v2014
    %v2017 = vmul.u32 %v2012, %v2015
    %v2018 = vmul.u32 %v2013, %v2014
    %v2019 = vmul.u32 %v2013, %v2015
    %v2020 = vshll.u32 %v2017, 16
    %v2021 = vshrl.u32 %v2017, 16
    %v2022 = vshll.u32 %v2018, 16
    %v2023 = vshrl.u32 %v2018, 16
    %vm2024 = vc.u32 %v2016, %v2020
    %v2025 = vsel %vm2024, 1, 0
    %v2026 = vadd.s32 %v2016, %v2020
    %v2027 = vadd.s32 %v2019, %v2025
    %vm2028 = vc.u32 %v2026, %v2022
    %v2029 = vsel %vm2028, 1, 0
    %v2030 = vadd.s32 %v2026, %v2022
    %v2031 = vadd.s32 %v2027, %v2029
    %v2032 = vadd.s32 %v2031, %v2021
    %v2033 = vadd.s32 %v2032, %v2023
    %v2034 = vmul.u32 %v1989, %v1980
    %v2035 = vadd.s32 %v2011, %v2030
    %vm2036 = vc.u32 %v2011, %v2030
    %v2037 = vadd.s32 %v2033, 1
    %v2038 = vsel %vm2036, %v2037, %v2033
    %v2039 = vadd.s32 %v2034, %v2038
    %v2040 = vadd.s32 %v2039, 536870912
    %v2041 = vshrl.u32 %v2040, 30
    %v2042 = vshll.u32 %v2041, 30
    %v2043 = vsub.s32 %v2039, %v2042
    %vm2044 = vcmp.lt.s32.totalorder %v2043, 0
    %v2045 = vsub.s32 0, %v2043
    %v2046 = vsel %vm2044, %v2045, %v2043
    %v2047 = vclz %v2046
    %v2048 = vsub.s32 %v2047, 2
    %vm2049 = vcmp.gt.s32.totalorder 0, %v2048
    %v2050 = vsel %vm2049, 0, %v2048
    %v2051 = vsub.s32 32, %v2050
    %v2052 = vshll.u32 %v2043, %v2050
    %v2053 = vshrl.u32 %v2035, %v2051
    %v2054 = vor.u32 %v2052, %v2053
    %v2055 = vsub.s32 4294967266, %v2050
    %v2056 = vadd.s32 %v2055, 127
    %v2057 = vshll.u32 %v2056, 23
    %v2058 = vor.u32 4788187, %v2057
    %v2059 = vand.u32 2147483647, %v2058
    %v2061 = vcvt.s32.f32 %v2054
    %v2062 = vmul.f32 %v2061, %v2059
    %v2063 = vxor.u32 %v2062, 2147483648
    %v2064 = vsel %vm1943, %v2063, %v2062
    %v2065 = vsub.s32 4, %v2041
    %v2066 = vsel %vm1943, %v2065, %v2041
    %v2067 = vsel %vm1942, %v540, %v2064
    %v2068 = vsel %vm1942, 0, %v2066
    %v2069 = vmul.f32 %v2067, %v2067
    %v2070 = vmul.f32 %v2069, -0.001358992
    %v2071 = vadd.f32 %v2070, 0.041655596
    %v2072 = vmul.f32 %v2069, %v2071
    %v2073 = vadd.f32 %v2072, -0.4999988
    %v2074 = vmul.f32 %v2069, %v2073
    %v2075 = vadd.f32 1.0, %v2074
    %v2076 = vmul.f32 %v2067, %v2067
    %v2077 = vmul.f32 %v2076, -0.00019511016
    %v2078 = vadd.f32 %v2077, 0.008332121
    %v2079 = vmul.f32 %v2076, %v2078
    %v2080 = vadd.f32 %v2079, -0.16666654
    %v2081 = vmul.f32 %v2076, %v2080
    %v2082 = vadd.f32 %v2081, 1.0
    %v2083 = vmul.f32 %v2082, %v2067
    %vm2084 = vweird.f32 %v540
    %v2085 = vand.u32 %v2068, 3
    %vm2086 = vcmp.lt.s32.totalorder %v2085, 2
    %vm2087 = vcmp.eq.s32.totalorder %v2085, 0
    %v2088 = vxor.u32 %v2083, 2147483648
    %v2089 = vsel %vm2087, %v2075, %v2088
    %vm2090 = vcmp.eq.s32.totalorder %v2085, 2
    %v2091 = vxor.u32 %v2075, 2147483648
    %v2092 = vsel %vm2090, %v2091, %v2083
    %v2093 = vsel %vm2086, %v2089, %v2092
    %v2094 = vsel %vm2084, nan, %v2093
    %v2095 = vand.u32 2147483647, %v541
    %vm2096 = vcmp.le.f32.partialorder %v2095, 0.7853982
    %vm2097 = vcmp.lt.s32.totalorder %v541, 0
    %v2098 = vand.u32 %v541, 2139095040
    %v2099 = vshrl.u32 %v2098, 23
    %v2100 = vsub.s32 %v2099, 127
    %v2101 = vand.u32 2147483647, %v541
    %v2102 = vand.u32 %v2101, 8388607
    %v2103 = vor.u32 %v2102, 8388608
    %v2104 = vsub.s32 0, %v2103
    %v2105 = vadd.s32 %v2100, 1
    %vm2106 = vcmp.gt.s32.totalorder %v2105, 0
    %v2107 = vsel %vm2106, %v2105, 0
    %v2108 = vshrl.u32 %v2107, 5
    %v2109 = vand.u32 %v2107, 31
    %v2110 = vsub.s32 32, %v2109
    %v2111 = vshrl.u32 683565275, %v2110
    %v2112 = vshll.u32 683565275, %v2109
    %v2113 = vshrl.u32 2475754826, %v2110
    %v2114 = vor.u32 %v2112, %v2113
    %v2115 = vshll.u32 2475754826, %v2109
    %v2116 = vshrl.u32 2131351028, %v2110
    %v2117 = vor.u32 %v2115, %v2116
    %v2118 = vshll.u32 2131351028, %v2109
    %v2119 = vshrl.u32 2102212464, %v2110
    %v2120 = vor.u32 %v2118, %v2119
    %v2121 = vshll.u32 2102212464, %v2109
    %v2122 = vshrl.u32 920167782, %v2110
    %v2123 = vor.u32 %v2121, %v2122
    %v2124 = vshll.u32 920167782, %v2109
    %v2125 = vshrl.u32 1326507024, %v2110
    %v2126 = vor.u32 %v2124, %v2125
    %vm2127 = vcmp.lt.s32.totalorder %v2108, 1
    %vm2128 = vcmp.lt.s32.totalorder %v2108, 2
    %vm2129 = vcmp.lt.s32.totalorder %v2108, 3
    %vm2130 = vcmp.lt.s32.totalorder %v2108, 4
    %v2131 = vsel %vm2127, %v2111, %v2114
    %v2132 = vsel %vm2130, %v2120, 2102212464
    %v2133 = vsel %vm2129, %v2117, %v2132
    %v2134 = vsel %vm2128, %v2131, %v2133
    %v2135 = vsel %vm2127, %v2114, %v2117
    %v2136 = vsel %vm2130, %v2123, 920167782
    %v2137 = vsel %vm2129, %v2120, %v2136
    %v2138 = vsel %vm2128, %v2135, %v2137
    %v2139 = vsel %vm2127, %v2117, %v2120
    %v2140 = vsel %vm2130, %v2126, 1326507024
    %v2141 = vsel %vm2129, %v2123, %v2140
    %v2142 = vsel %vm2128, %v2139, %v2141
    %v2143 = vshll.u32 %v2103, 8
    %v2144 = vand.u32 %v2143, 65535
    %v2145 = vshrl.u32 %v2143, 16
    %v2146 = vand.u32 %v2142, 65535
    %v2147 = vshrl.u32 %v2142, 16
    %v2148 = vmul.u32 %v2144, %v2146
    %v2149 = vmul.u32 %v2144, %v2147
    %v2150 = vmul.u32 %v2145, %v2146
    %v2151 = vmul.u32 %v2145, %v2147
    %v2152 = vshll.u32 %v2149, 16
    %v2153 = vshrl.u32 %v2149, 16
    %v2154 = vshll.u32 %v2150, 16
    %v2155 = vshrl.u32 %v2150, 16
    %vm2156 = vc.u32 %v2148, %v2152
    %v2157 = vsel %vm2156, 1, 0
    %v2158 = vadd.s32 %v2148, %v2152
    %v2159 = vadd.s32 %v2151, %v2157
    %vm2160 = vc.u32 %v2158, %v2154
    %v2161 = vsel %vm2160, 1, 0
    %v2162 = vadd.s32 %v2158, %v2154
    %v2163 = vadd.s32 %v2159, %v2161
    %v2164 = vadd.s32 %v2163, %v2153
    %v2165 = vadd.s32 %v2164, %v2155
    %v2166 = vand.u32 %v2143, 65535
    %v2167 = vshrl.u32 %v2143, 16
    %v2168 = vand.u32 %v2138, 65535
    %v2169 = vshrl.u32 %v2138, 16
    %v2170 = vmul.u32 %v2166, %v2168
    %v2171 = vmul.u32 %v2166, %v2169
    %v2172 = vmul.u32 %v2167, %v2168
    %v2173 = vmul.u32 %v2167, %v2169
    %v2174 = vshll.u32 %v2171, 16
    %v2175 = vshrl.u32 %v2171, 16
    %v2176 = vshll.u32 %v2172, 16
    %v2177 = vshrl.u32 %v2172, 16
    %vm2178 = vc.u32 %v2170, %v2174
    %v2179 = vsel %vm2178, 1, 0
    %v2180 = vadd.s32 %v2170, %v2174
    %v2181 = vadd.s32 %v2173, %v2179
    %vm2182 = vc.u32 %v2180, %v2176
    %v2183 = vsel %vm2182, 1, 0
    %v2184 = vadd.s32 %v2180, %v2176
    %v2185 = vadd.s32 %v2181, %v2183
    %v2186 = vadd.s32 %v2185, %v2175
    %v2187 = vadd.s32 %v2186, %v2177
    %v2188 = vmul.u32 %v2143, %v2134
    %v2189 = vadd.s32 %v2165, %v2184
    %vm2190 = vc.u32 %v2165, %v2184
    %v2191 = vadd.s32 %v2187, 1
    %v2192 = vsel %vm2190, %v2191, %v2187
    %v2193 = vadd.s32 %v2188, %v2192
    %v2194 = vadd.s32 %v2193, 536870912
    %v2195 = vshrl.u32 %v2194, 30
    %v2196 = vshll.u32 %v2195, 30
    %v2197 = vsub.s32 %v2193, %v2196
    %vm2198 = vcmp.lt.s32.totalorder %v2197, 0
    %v2199 = vsub.s32 0, %v2197
    %v2200 = vsel %vm2198, %v2199, %v2197
    %v2201 = vclz %v2200
    %v2202 = vsub.s32 %v2201, 2
    %vm2203 = vcmp.gt.s32.totalorder 0, %v2202
    %v2204 = vsel %vm2203, 0, %v2202
    %v2205 = vsub.s32 32, %v2204
    %v2206 = vshll.u32 %v2197, %v2204
    %v2207 = vshrl.u32 %v2189, %v2205
    %v2208 = vor.u32 %v2206, %v2207
    %v2209 = vsub.s32 4294967266, %v2204
    %v2210 = vadd.s32 %v2209, 127
    %v2211 = vshll.u32 %v2210, 23
    %v2212 = vor.u32 4788187, %v2211
    %v2213 = vand.u32 2147483647, %v2212
    %v2215 = vcvt.s32.f32 %v2208
    %v2216 = vmul.f32 %v2215, %v2213
    %v2217 = vxor.u32 %v2216, 2147483648
    %v2218 = vsel %vm2097, %v2217, %v2216
    %v2219 = vsub.s32 4, %v2195
    %v2220 = vsel %vm2097, %v2219, %v2195
    %v2221 = vsel %vm2096, %v541, %v2218
    %v2222 = vsel %vm2096, 0, %v2220
    %v2223 = vmul.f32 %v2221, %v2221
    %v2224 = vmul.f32 %v2223, -0.001358992
    %v2225 = vadd.f32 %v2224, 0.041655596
    %v2226 = vmul.f32 %v2223, %v2225
    %v2227 = vadd.f32 %v2226, -0.4999988
    %v2228 = vmul.f32 %v2223, %v2227
    %v2229 = vadd.f32 1.0, %v2228
    %v2230 = vmul.f32 %v2221, %v2221
    %v2231 = vmul.f32 %v2230, -0.00019511016
    %v2232 = vadd.f32 %v2231, 0.008332121
    %v2233 = vmul.f32 %v2230, %v2232
    %v2234 = vadd.f32 %v2233, -0.16666654
    %v2235 = vmul.f32 %v2230, %v2234
    %v2236 = vadd.f32 %v2235, 1.0
    %v2237 = vmul.f32 %v2236, %v2221
    %vm2238 = vweird.f32 %v541
    %v2239 = vand.u32 %v2222, 3
    %vm2240 = vcmp.lt.s32.totalorder %v2239, 2
    %vm2241 = vcmp.eq.s32.totalorder %v2239, 0
    %v2242 = vxor.u32 %v2237, 2147483648
    %v2243 = vsel %vm2241, %v2229, %v2242
    %vm2244 = vcmp.eq.s32.totalorder %v2239, 2
    %v2245 = vxor.u32 %v2229, 2147483648
    %v2246 = vsel %vm2244, %v2245, %v2237
    %v2247 = vsel %vm2240, %v2243, %v2246
    %v2248 = vsel %vm2238, nan, %v2247
    %v2249 = vand.u32 2147483647, %v542
    %vm2250 = vcmp.le.f32.partialorder %v2249, 0.7853982
    %vm2251 = vcmp.lt.s32.totalorder %v542, 0
    %v2252 = vand.u32 %v542, 2139095040
    %v2253 = vshrl.u32 %v2252, 23
    %v2254 = vsub.s32 %v2253, 127
    %v2255 = vand.u32 2147483647, %v542
    %v2256 = vand.u32 %v2255, 8388607
    %v2257 = vor.u32 %v2256, 8388608
    %v2258 = vsub.s32 0, %v2257
    %v2259 = vadd.s32 %v2254, 1
    %vm2260 = vcmp.gt.s32.totalorder %v2259, 0
    %v2261 = vsel %vm2260, %v2259, 0
    %v2262 = vshrl.u32 %v2261, 5
    %v2263 = vand.u32 %v2261, 31
    %v2264 = vsub.s32 32, %v2263
    %v2265 = vshrl.u32 683565275, %v2264
    %v2266 = vshll.u32 683565275, %v2263
    %v2267 = vshrl.u32 2475754826, %v2264
    %v2268 = vor.u32 %v2266, %v2267
    %v2269 = vshll.u32 2475754826, %v2263
    %v2270 = vshrl.u32 2131351028, %v2264
    %v2271 = vor.u32 %v2269, %v2270
    %v2272 = vshll.u32 2131351028, %v2263
    %v2273 = vshrl.u32 2102212464, %v2264
    %v2274 = vor.u32 %v2272, %v2273
    %v2275 = vshll.u32 2102212464, %v2263
    %v2276 = vshrl.u32 920167782, %v2264
    %v2277 = vor.u32 %v2275, %v2276
    %v2278 = vshll.u32 920167782, %v2263
    %v2279 = vshrl.u32 1326507024, %v2264
    %v2280 = vor.u32 %v2278, %v2279
    %vm2281 = vcmp.lt.s32.totalorder %v2262, 1
    %vm2282 = vcmp.lt.s32.totalorder %v2262, 2
    %vm2283 = vcmp.lt.s32.totalorder %v2262, 3
    %vm2284 = vcmp.lt.s32.totalorder %v2262, 4
    %v2285 = vsel %vm2281, %v2265, %v2268
    %v2286 = vsel %vm2284, %v2274, 2102212464
    %v2287 = vsel %vm2283, %v2271, %v2286
    %v2288 = vsel %vm2282, %v2285, %v2287
    %v2289 = vsel %vm2281, %v2268, %v2271
    %v2290 = vsel %vm2284, %v2277, 920167782
    %v2291 = vsel %vm2283, %v2274, %v2290
    %v2292 = vsel %vm2282, %v2289, %v2291
    %v2293 = vsel %vm2281, %v2271, %v2274
    %v2294 = vsel %vm2284, %v2280, 1326507024
    %v2295 = vsel %vm2283, %v2277, %v2294
    %v2296 = vsel %vm2282, %v2293, %v2295
    %v2297 = vshll.u32 %v2257, 8
    %v2298 = vand.u32 %v2297, 65535
    %v2299 = vshrl.u32 %v2297, 16
    %v2300 = vand.u32 %v2296, 65535
    %v2301 = vshrl.u32 %v2296, 16
    %v2302 = vmul.u32 %v2298, %v2300
    %v2303 = vmul.u32 %v2298, %v2301
    %v2304 = vmul.u32 %v2299, %v2300
    %v2305 = vmul.u32 %v2299, %v2301
    %v2306 = vshll.u32 %v2303, 16
    %v2307 = vshrl.u32 %v2303, 16
    %v2308 = vshll.u32 %v2304, 16
    %v2309 = vshrl.u32 %v2304, 16
    %vm2310 = vc.u32 %v2302, %v2306
    %v2311 = vsel %vm2310, 1, 0
    %v2312 = vadd.s32 %v2302, %v2306
    %v2313 = vadd.s32 %v2305, %v2311
    %vm2314 = vc.u32 %v2312, %v2308
    %v2315 = vsel %vm2314, 1, 0
    %v2316 = vadd.s32 %v2312, %v2308
    %v2317 = vadd.s32 %v2313, %v2315
    %v2318 = vadd.s32 %v2317, %v2307
    %v2319 = vadd.s32 %v2318, %v2309
    %v2320 = vand.u32 %v2297, 65535
    %v2321 = vshrl.u32 %v2297, 16
    %v2322 = vand.u32 %v2292, 65535
    %v2323 = vshrl.u32 %v2292, 16
    %v2324 = vmul.u32 %v2320, %v2322
    %v2325 = vmul.u32 %v2320, %v2323
    %v2326 = vmul.u32 %v2321, %v2322
    %v2327 = vmul.u32 %v2321, %v2323
    %v2328 = vshll.u32 %v2325, 16
    %v2329 = vshrl.u32 %v2325, 16
    %v2330 = vshll.u32 %v2326, 16
    %v2331 = vshrl.u32 %v2326, 16
    %vm2332 = vc.u32 %v2324, %v2328
    %v2333 = vsel %vm2332, 1, 0
    %v2334 = vadd.s32 %v2324, %v2328
    %v2335 = vadd.s32 %v2327, %v2333
    %vm2336 = vc.u32 %v2334, %v2330
    %v2337 = vsel %vm2336, 1, 0
    %v2338 = vadd.s32 %v2334, %v2330
    %v2339 = vadd.s32 %v2335, %v2337
    %v2340 = vadd.s32 %v2339, %v2329
    %v2341 = vadd.s32 %v2340, %v2331
    %v2342 = vmul.u32 %v2297, %v2288
    %v2343 = vadd.s32 %v2319, %v2338
    %vm2344 = vc.u32 %v2319, %v2338
    %v2345 = vadd.s32 %v2341, 1
    %v2346 = vsel %vm2344, %v2345, %v2341
    %v2347 = vadd.s32 %v2342, %v2346
    %v2348 = vadd.s32 %v2347, 536870912
    %v2349 = vshrl.u32 %v2348, 30
    %v2350 = vshll.u32 %v2349, 30
    %v2351 = vsub.s32 %v2347, %v2350
    %vm2352 = vcmp.lt.s32.totalorder %v2351, 0
    %v2353 = vsub.s32 0, %v2351
    %v2354 = vsel %vm2352, %v2353, %v2351
    %v2355 = vclz %v2354
    %v2356 = vsub.s32 %v2355, 2
    %vm2357 = vcmp.gt.s32.totalorder 0, %v2356
    %v2358 = vsel %vm2357, 0, %v2356
    %v2359 = vsub.s32 32, %v2358
    %v2360 = vshll.u32 %v2351, %v2358
    %v2361 = vshrl.u32 %v2343, %v2359
    %v2362 = vor.u32 %v2360, %v2361
    %v2363 = vsub.s32 4294967266, %v2358
    %v2364 = vadd.s32 %v2363, 127
    %v2365 = vshll.u32 %v2364, 23
    %v2366 = vor.u32 4788187, %v2365
    %v2367 = vand.u32 2147483647, %v2366
    %v2369 = vcvt.s32.f32 %v2362
    %v2370 = vmul.f32 %v2369, %v2367
    %v2371 = vxor.u32 %v2370, 2147483648
    %v2372 = vsel %vm2251, %v2371, %v2370
    %v2373 = vsub.s32 4, %v2349
    %v2374 = vsel %vm2251, %v2373, %v2349
    %v2375 = vsel %vm2250, %v542, %v2372
    %v2376 = vsel %vm2250, 0, %v2374
    %v2377 = vmul.f32 %v2375, %v2375
    %v2378 = vmul.f32 %v2377, -0.001358992
    %v2379 = vadd.f32 %v2378, 0.041655596
    %v2380 = vmul.f32 %v2377, %v2379
    %v2381 = vadd.f32 %v2380, -0.4999988
    %v2382 = vmul.f32 %v2377, %v2381
    %v2383 = vadd.f32 1.0, %v2382
    %v2384 = vmul.f32 %v2375, %v2375
    %v2385 = vmul.f32 %v2384, -0.00019511016
    %v2386 = vadd.f32 %v2385, 0.008332121
    %v2387 = vmul.f32 %v2384, %v2386
    %v2388 = vadd.f32 %v2387, -0.16666654
    %v2389 = vmul.f32 %v2384, %v2388
    %v2390 = vadd.f32 %v2389, 1.0
    %v2391 = vmul.f32 %v2390, %v2375
    %vm2392 = vweird.f32 %v542
    %v2393 = vand.u32 %v2376, 3
    %vm2394 = vcmp.lt.s32.totalorder %v2393, 2
    %vm2395 = vcmp.eq.s32.totalorder %v2393, 0
    %v2396 = vxor.u32 %v2391, 2147483648
    %v2397 = vsel %vm2395, %v2383, %v2396
    %vm2398 = vcmp.eq.s32.totalorder %v2393, 2
    %v2399 = vxor.u32 %v2383, 2147483648
    %v2400 = vsel %vm2398, %v2399, %v2391
    %v2401 = vsel %vm2394, %v2397, %v2400
    %v2402 = vsel %vm2392, nan, %v2401
    %v2403 = vand.u32 2147483647, %v543
    %vm2404 = vcmp.le.f32.partialorder %v2403, 0.7853982
    %vm2405 = vcmp.lt.s32.totalorder %v543, 0
    %v2406 = vand.u32 %v543, 2139095040
    %v2407 = vshrl.u32 %v2406, 23
    %v2408 = vsub.s32 %v2407, 127
    %v2409 = vand.u32 2147483647, %v543
    %v2410 = vand.u32 %v2409, 8388607
    %v2411 = vor.u32 %v2410, 8388608
    %v2412 = vsub.s32 0, %v2411
    %v2413 = vadd.s32 %v2408, 1
    %vm2414 = vcmp.gt.s32.totalorder %v2413, 0
    %v2415 = vsel %vm2414, %v2413, 0
    %v2416 = vshrl.u32 %v2415, 5
    %v2417 = vand.u32 %v2415, 31
    %v2418 = vsub.s32 32, %v2417
    %v2419 = vshrl.u32 683565275, %v2418
    %v2420 = vshll.u32 683565275, %v2417
    %v2421 = vshrl.u32 2475754826, %v2418
    %v2422 = vor.u32 %v2420, %v2421
    %v2423 = vshll.u32 2475754826, %v2417
    %v2424 = vshrl.u32 2131351028, %v2418
    %v2425 = vor.u32 %v2423, %v2424
    %v2426 = vshll.u32 2131351028, %v2417
    %v2427 = vshrl.u32 2102212464, %v2418
    %v2428 = vor.u32 %v2426, %v2427
    %v2429 = vshll.u32 2102212464, %v2417
    %v2430 = vshrl.u32 920167782, %v2418
    %v2431 = vor.u32 %v2429, %v2430
    %v2432 = vshll.u32 920167782, %v2417
    %v2433 = vshrl.u32 1326507024, %v2418
    %v2434 = vor.u32 %v2432, %v2433
    %vm2435 = vcmp.lt.s32.totalorder %v2416, 1
    %vm2436 = vcmp.lt.s32.totalorder %v2416, 2
    %vm2437 = vcmp.lt.s32.totalorder %v2416, 3
    %vm2438 = vcmp.lt.s32.totalorder %v2416, 4
    %v2439 = vsel %vm2435, %v2419, %v2422
    %v2440 = vsel %vm2438, %v2428, 2102212464
    %v2441 = vsel %vm2437, %v2425, %v2440
    %v2442 = vsel %vm2436, %v2439, %v2441
    %v2443 = vsel %vm2435, %v2422, %v2425
    %v2444 = vsel %vm2438, %v2431, 920167782
    %v2445 = vsel %vm2437, %v2428, %v2444
    %v2446 = vsel %vm2436, %v2443, %v2445
    %v2447 = vsel %vm2435, %v2425, %v2428
    %v2448 = vsel %vm2438, %v2434, 1326507024
    %v2449 = vsel %vm2437, %v2431, %v2448
    %v2450 = vsel %vm2436, %v2447, %v2449
    %v2451 = vshll.u32 %v2411, 8
    %v2452 = vand.u32 %v2451, 65535
    %v2453 = vshrl.u32 %v2451, 16
    %v2454 = vand.u32 %v2450, 65535
    %v2455 = vshrl.u32 %v2450, 16
    %v2456 = vmul.u32 %v2452, %v2454
    %v2457 = vmul.u32 %v2452, %v2455
    %v2458 = vmul.u32 %v2453, %v2454
    %v2459 = vmul.u32 %v2453, %v2455
    %v2460 = vshll.u32 %v2457, 16
    %v2461 = vshrl.u32 %v2457, 16
    %v2462 = vshll.u32 %v2458, 16
    %v2463 = vshrl.u32 %v2458, 16
    %vm2464 = vc.u32 %v2456, %v2460
    %v2465 = vsel %vm2464, 1, 0
    %v2466 = vadd.s32 %v2456, %v2460
    %v2467 = vadd.s32 %v2459, %v2465
    %vm2468 = vc.u32 %v2466, %v2462
    %v2469 = vsel %vm2468, 1, 0
    %v2470 = vadd.s32 %v2466, %v2462
    %v2471 = vadd.s32 %v2467, %v2469
    %v2472 = vadd.s32 %v2471, %v2461
    %v2473 = vadd.s32 %v2472, %v2463
    %v2474 = vand.u32 %v2451, 65535
    %v2475 = vshrl.u32 %v2451, 16
    %v2476 = vand.u32 %v2446, 65535
    %v2477 = vshrl.u32 %v2446, 16
    %v2478 = vmul.u32 %v2474, %v2476
    %v2479 = vmul.u32 %v2474, %v2477
    %v2480 = vmul.u32 %v2475, %v2476
    %v2481 = vmul.u32 %v2475, %v2477
    %v2482 = vshll.u32 %v2479, 16
    %v2483 = vshrl.u32 %v2479, 16
    %v2484 = vshll.u32 %v2480, 16
    %v2485 = vshrl.u32 %v2480, 16
    %vm2486 = vc.u32 %v2478, %v2482
    %v2487 = vsel %vm2486, 1, 0
    %v2488 = vadd.s32 %v2478, %v2482
    %v2489 = vadd.s32 %v2481, %v2487
    %vm2490 = vc.u32 %v2488, %v2484
    %v2491 = vsel %vm2490, 1, 0
    %v2492 = vadd.s32 %v2488, %v2484
    %v2493 = vadd.s32 %v2489, %v2491
    %v2494 = vadd.s32 %v2493, %v2483
    %v2495 = vadd.s32 %v2494, %v2485
    %v2496 = vmul.u32 %v2451, %v2442
    %v2497 = vadd.s32 %v2473, %v2492
    %vm2498 = vc.u32 %v2473, %v2492
    %v2499 = vadd.s32 %v2495, 1
    %v2500 = vsel %vm2498, %v2499, %v2495
    %v2501 = vadd.s32 %v2496, %v2500
    %v2502 = vadd.s32 %v2501, 536870912
    %v2503 = vshrl.u32 %v2502, 30
    %v2504 = vshll.u32 %v2503, 30
    %v2505 = vsub.s32 %v2501, %v2504
    %vm2506 = vcmp.lt.s32.totalorder %v2505, 0
    %v2507 = vsub.s32 0, %v2505
    %v2508 = vsel %vm2506, %v2507, %v2505
    %v2509 = vclz %v2508
    %v2510 = vsub.s32 %v2509, 2
    %vm2511 = vcmp.gt.s32.totalorder 0, %v2510
    %v2512 = vsel %vm2511, 0, %v2510
    %v2513 = vsub.s32 32, %v2512
    %v2514 = vshll.u32 %v2505, %v2512
    %v2515 = vshrl.u32 %v2497, %v2513
    %v2516 = vor.u32 %v2514, %v2515
    %v2517 = vsub.s32 4294967266, %v2512
    %v2518 = vadd.s32 %v2517, 127
    %v2519 = vshll.u32 %v2518, 23
    %v2520 = vor.u32 4788187, %v2519
    %v2521 = vand.u32 2147483647, %v2520
    %v2523 = vcvt.s32.f32 %v2516
    %v2524 = vmul.f32 %v2523, %v2521
    %v2525 = vxor.u32 %v2524, 2147483648
    %v2526 = vsel %vm2405, %v2525, %v2524
    %v2527 = vsub.s32 4, %v2503
    %v2528 = vsel %vm2405, %v2527, %v2503
    %v2529 = vsel %vm2404, %v543, %v2526
    %v2530 = vsel %vm2404, 0, %v2528
    %v2531 = vmul.f32 %v2529, %v2529
    %v2532 = vmul.f32 %v2531, -0.001358992
    %v2533 = vadd.f32 %v2532, 0.041655596
    %v2534 = vmul.f32 %v2531, %v2533
    %v2535 = vadd.f32 %v2534, -0.4999988
    %v2536 = vmul.f32 %v2531, %v2535
    %v2537 = vadd.f32 1.0, %v2536
    %v2538 = vmul.f32 %v2529, %v2529
    %v2539 = vmul.f32 %v2538, -0.00019511016
    %v2540 = vadd.f32 %v2539, 0.008332121
    %v2541 = vmul.f32 %v2538, %v2540
    %v2542 = vadd.f32 %v2541, -0.16666654
    %v2543 = vmul.f32 %v2538, %v2542
    %v2544 = vadd.f32 %v2543, 1.0
    %v2545 = vmul.f32 %v2544, %v2529
    %vm2546 = vweird.f32 %v543
    %v2547 = vand.u32 %v2530, 3
    %vm2548 = vcmp.lt.s32.totalorder %v2547, 2
    %vm2549 = vcmp.eq.s32.totalorder %v2547, 0
    %v2550 = vxor.u32 %v2545, 2147483648
    %v2551 = vsel %vm2549, %v2537, %v2550
    %vm2552 = vcmp.eq.s32.totalorder %v2547, 2
    %v2553 = vxor.u32 %v2537, 2147483648
    %v2554 = vsel %vm2552, %v2553, %v2545
    %v2555 = vsel %vm2548, %v2551, %v2554
    %v2556 = vsel %vm2546, nan, %v2555
    %v2557 = vand.u32 2147483647, %v544
    %vm2558 = vcmp.le.f32.partialorder %v2557, 0.7853982
    %vm2559 = vcmp.lt.s32.totalorder %v544, 0
    %v2560 = vand.u32 %v544, 2139095040
    %v2561 = vshrl.u32 %v2560, 23
    %v2562 = vsub.s32 %v2561, 127
    %v2563 = vand.u32 2147483647, %v544
    %v2564 = vand.u32 %v2563, 8388607
    %v2565 = vor.u32 %v2564, 8388608
    %v2566 = vsub.s32 0, %v2565
    %v2567 = vadd.s32 %v2562, 1
    %vm2568 = vcmp.gt.s32.totalorder %v2567, 0
    %v2569 = vsel %vm2568, %v2567, 0
    %v2570 = vshrl.u32 %v2569, 5
    %v2571 = vand.u32 %v2569, 31
    %v2572 = vsub.s32 32, %v2571
    %v2573 = vshrl.u32 683565275, %v2572
    %v2574 = vshll.u32 683565275, %v2571
    %v2575 = vshrl.u32 2475754826, %v2572
    %v2576 = vor.u32 %v2574, %v2575
    %v2577 = vshll.u32 2475754826, %v2571
    %v2578 = vshrl.u32 2131351028, %v2572
    %v2579 = vor.u32 %v2577, %v2578
    %v2580 = vshll.u32 2131351028, %v2571
    %v2581 = vshrl.u32 2102212464, %v2572
    %v2582 = vor.u32 %v2580, %v2581
    %v2583 = vshll.u32 2102212464, %v2571
    %v2584 = vshrl.u32 920167782, %v2572
    %v2585 = vor.u32 %v2583, %v2584
    %v2586 = vshll.u32 920167782, %v2571
    %v2587 = vshrl.u32 1326507024, %v2572
    %v2588 = vor.u32 %v2586, %v2587
    %vm2589 = vcmp.lt.s32.totalorder %v2570, 1
    %vm2590 = vcmp.lt.s32.totalorder %v2570, 2
    %vm2591 = vcmp.lt.s32.totalorder %v2570, 3
    %vm2592 = vcmp.lt.s32.totalorder %v2570, 4
    %v2593 = vsel %vm2589, %v2573, %v2576
    %v2594 = vsel %vm2592, %v2582, 2102212464
    %v2595 = vsel %vm2591, %v2579, %v2594
    %v2596 = vsel %vm2590, %v2593, %v2595
    %v2597 = vsel %vm2589, %v2576, %v2579
    %v2598 = vsel %vm2592, %v2585, 920167782
    %v2599 = vsel %vm2591, %v2582, %v2598
    %v2600 = vsel %vm2590, %v2597, %v2599
    %v2601 = vsel %vm2589, %v2579, %v2582
    %v2602 = vsel %vm2592, %v2588, 1326507024
    %v2603 = vsel %vm2591, %v2585, %v2602
    %v2604 = vsel %vm2590, %v2601, %v2603
    %v2605 = vshll.u32 %v2565, 8
    %v2606 = vand.u32 %v2605, 65535
    %v2607 = vshrl.u32 %v2605, 16
    %v2608 = vand.u32 %v2604, 65535
    %v2609 = vshrl.u32 %v2604, 16
    %v2610 = vmul.u32 %v2606, %v2608
    %v2611 = vmul.u32 %v2606, %v2609
    %v2612 = vmul.u32 %v2607, %v2608
    %v2613 = vmul.u32 %v2607, %v2609
    %v2614 = vshll.u32 %v2611, 16
    %v2615 = vshrl.u32 %v2611, 16
    %v2616 = vshll.u32 %v2612, 16
    %v2617 = vshrl.u32 %v2612, 16
    %vm2618 = vc.u32 %v2610, %v2614
    %v2619 = vsel %vm2618, 1, 0
    %v2620 = vadd.s32 %v2610, %v2614
    %v2621 = vadd.s32 %v2613, %v2619
    %vm2622 = vc.u32 %v2620, %v2616
    %v2623 = vsel %vm2622, 1, 0
    %v2624 = vadd.s32 %v2620, %v2616
    %v2625 = vadd.s32 %v2621, %v2623
    %v2626 = vadd.s32 %v2625, %v2615
    %v2627 = vadd.s32 %v2626, %v2617
    %v2628 = vand.u32 %v2605, 65535
    %v2629 = vshrl.u32 %v2605, 16
    %v2630 = vand.u32 %v2600, 65535
    %v2631 = vshrl.u32 %v2600, 16
    %v2632 = vmul.u32 %v2628, %v2630
    %v2633 = vmul.u32 %v2628, %v2631
    %v2634 = vmul.u32 %v2629, %v2630
    %v2635 = vmul.u32 %v2629, %v2631
    %v2636 = vshll.u32 %v2633, 16
    %v2637 = vshrl.u32 %v2633, 16
    %v2638 = vshll.u32 %v2634, 16
    %v2639 = vshrl.u32 %v2634, 16
    %vm2640 = vc.u32 %v2632, %v2636
    %v2641 = vsel %vm2640, 1, 0
    %v2642 = vadd.s32 %v2632, %v2636
    %v2643 = vadd.s32 %v2635, %v2641
    %vm2644 = vc.u32 %v2642, %v2638
    %v2645 = vsel %vm2644, 1, 0
    %v2646 = vadd.s32 %v2642, %v2638
    %v2647 = vadd.s32 %v2643, %v2645
    %v2648 = vadd.s32 %v2647, %v2637
    %v2649 = vadd.s32 %v2648, %v2639
    %v2650 = vmul.u32 %v2605, %v2596
    %v2651 = vadd.s32 %v2627, %v2646
    %vm2652 = vc.u32 %v2627, %v2646
    %v2653 = vadd.s32 %v2649, 1
    %v2654 = vsel %vm2652, %v2653, %v2649
    %v2655 = vadd.s32 %v2650, %v2654
    %v2656 = vadd.s32 %v2655, 536870912
    %v2657 = vshrl.u32 %v2656, 30
    %v2658 = vshll.u32 %v2657, 30
    %v2659 = vsub.s32 %v2655, %v2658
    %vm2660 = vcmp.lt.s32.totalorder %v2659, 0
    %v2661 = vsub.s32 0, %v2659
    %v2662 = vsel %vm2660, %v2661, %v2659
    %v2663 = vclz %v2662
    %v2664 = vsub.s32 %v2663, 2
    %vm2665 = vcmp.gt.s32.totalorder 0, %v2664
    %v2666 = vsel %vm2665, 0, %v2664
    %v2667 = vsub.s32 32, %v2666
    %v2668 = vshll.u32 %v2659, %v2666
    %v2669 = vshrl.u32 %v2651, %v2667
    %v2670 = vor.u32 %v2668, %v2669
    %v2671 = vsub.s32 4294967266, %v2666
    %v2672 = vadd.s32 %v2671, 127
    %v2673 = vshll.u32 %v2672, 23
    %v2674 = vor.u32 4788187, %v2673
    %v2675 = vand.u32 2147483647, %v2674
    %v2677 = vcvt.s32.f32 %v2670
    %v2678 = vmul.f32 %v2677, %v2675
    %v2679 = vxor.u32 %v2678, 2147483648
    %v2680 = vsel %vm2559, %v2679, %v2678
    %v2681 = vsub.s32 4, %v2657
    %v2682 = vsel %vm2559, %v2681, %v2657
    %v2683 = vsel %vm2558, %v544, %v2680
    %v2684 = vsel %vm2558, 0, %v2682
    %v2685 = vmul.f32 %v2683, %v2683
    %v2686 = vmul.f32 %v2685, -0.001358992
    %v2687 = vadd.f32 %v2686, 0.041655596
    %v2688 = vmul.f32 %v2685, %v2687
    %v2689 = vadd.f32 %v2688, -0.4999988
    %v2690 = vmul.f32 %v2685, %v2689
    %v2691 = vadd.f32 1.0, %v2690
    %v2692 = vmul.f32 %v2683, %v2683
    %v2693 = vmul.f32 %v2692, -0.00019511016
    %v2694 = vadd.f32 %v2693, 0.008332121
    %v2695 = vmul.f32 %v2692, %v2694
    %v2696 = vadd.f32 %v2695, -0.16666654
    %v2697 = vmul.f32 %v2692, %v2696
    %v2698 = vadd.f32 %v2697, 1.0
    %v2699 = vmul.f32 %v2698, %v2683
    %vm2700 = vweird.f32 %v544
    %v2701 = vand.u32 %v2684, 3
    %vm2702 = vcmp.lt.s32.totalorder %v2701, 2
    %vm2703 = vcmp.eq.s32.totalorder %v2701, 0
    %v2704 = vxor.u32 %v2699, 2147483648
    %v2705 = vsel %vm2703, %v2691, %v2704
    %vm2706 = vcmp.eq.s32.totalorder %v2701, 2
    %v2707 = vxor.u32 %v2691, 2147483648
    %v2708 = vsel %vm2706, %v2707, %v2699
    %v2709 = vsel %vm2702, %v2705, %v2708
    %v2710 = vsel %vm2700, nan, %v2709
    %v2711 = vand.u32 2147483647, %v545
    %vm2712 = vcmp.le.f32.partialorder %v2711, 0.7853982
    %vm2713 = vcmp.lt.s32.totalorder %v545, 0
    %v2714 = vand.u32 %v545, 2139095040
    %v2715 = vshrl.u32 %v2714, 23
    %v2716 = vsub.s32 %v2715, 127
    %v2717 = vand.u32 2147483647, %v545
    %v2718 = vand.u32 %v2717, 8388607
    %v2719 = vor.u32 %v2718, 8388608
    %v2720 = vsub.s32 0, %v2719
    %v2721 = vadd.s32 %v2716, 1
    %vm2722 = vcmp.gt.s32.totalorder %v2721, 0
    %v2723 = vsel %vm2722, %v2721, 0
    %v2724 = vshrl.u32 %v2723, 5
    %v2725 = vand.u32 %v2723, 31
    %v2726 = vsub.s32 32, %v2725
    %v2727 = vshrl.u32 683565275, %v2726
    %v2728 = vshll.u32 683565275, %v2725
    %v2729 = vshrl.u32 2475754826, %v2726
    %v2730 = vor.u32 %v2728, %v2729
    %v2731 = vshll.u32 2475754826, %v2725
    %v2732 = vshrl.u32 2131351028, %v2726
    %v2733 = vor.u32 %v2731, %v2732
    %v2734 = vshll.u32 2131351028, %v2725
    %v2735 = vshrl.u32 2102212464, %v2726
    %v2736 = vor.u32 %v2734, %v2735
    %v2737 = vshll.u32 2102212464, %v2725
    %v2738 = vshrl.u32 920167782, %v2726
    %v2739 = vor.u32 %v2737, %v2738
    %v2740 = vshll.u32 920167782, %v2725
    %v2741 = vshrl.u32 1326507024, %v2726
    %v2742 = vor.u32 %v2740, %v2741
    %vm2743 = vcmp.lt.s32.totalorder %v2724, 1
    %vm2744 = vcmp.lt.s32.totalorder %v2724, 2
    %vm2745 = vcmp.lt.s32.totalorder %v2724, 3
    %vm2746 = vcmp.lt.s32.totalorder %v2724, 4
    %v2747 = vsel %vm2743, %v2727, %v2730
    %v2748 = vsel %vm2746, %v2736, 2102212464
    %v2749 = vsel %vm2745, %v2733, %v2748
    %v2750 = vsel %vm2744, %v2747, %v2749
    %v2751 = vsel %vm2743, %v2730, %v2733
    %v2752 = vsel %vm2746, %v2739, 920167782
    %v2753 = vsel %vm2745, %v2736, %v2752
    %v2754 = vsel %vm2744, %v2751, %v2753
    %v2755 = vsel %vm2743, %v2733, %v2736
    %v2756 = vsel %vm2746, %v2742, 1326507024
    %v2757 = vsel %vm2745, %v2739, %v2756
    %v2758 = vsel %vm2744, %v2755, %v2757
    %v2759 = vshll.u32 %v2719, 8
    %v2760 = vand.u32 %v2759, 65535
    %v2761 = vshrl.u32 %v2759, 16
    %v2762 = vand.u32 %v2758, 65535
    %v2763 = vshrl.u32 %v2758, 16
    %v2764 = vmul.u32 %v2760, %v2762
    %v2765 = vmul.u32 %v2760, %v2763
    %v2766 = vmul.u32 %v2761, %v2762
    %v2767 = vmul.u32 %v2761, %v2763
    %v2768 = vshll.u32 %v2765, 16
    %v2769 = vshrl.u32 %v2765, 16
    %v2770 = vshll.u32 %v2766, 16
    %v2771 = vshrl.u32 %v2766, 16
    %vm2772 = vc.u32 %v2764, %v2768
    %v2773 = vsel %vm2772, 1, 0
    %v2774 = vadd.s32 %v2764, %v2768
    %v2775 = vadd.s32 %v2767, %v2773
    %vm2776 = vc.u32 %v2774, %v2770
    %v2777 = vsel %vm2776, 1, 0
    %v2778 = vadd.s32 %v2774, %v2770
    %v2779 = vadd.s32 %v2775, %v2777
    %v2780 = vadd.s32 %v2779, %v2769
    %v2781 = vadd.s32 %v2780, %v2771
    %v2782 = vand.u32 %v2759, 65535
    %v2783 = vshrl.u32 %v2759, 16
    %v2784 = vand.u32 %v2754, 65535
    %v2785 = vshrl.u32 %v2754, 16
    %v2786 = vmul.u32 %v2782, %v2784
    %v2787 = vmul.u32 %v2782, %v2785
    %v2788 = vmul.u32 %v2783, %v2784
    %v2789 = vmul.u32 %v2783, %v2785
    %v2790 = vshll.u32 %v2787, 16
    %v2791 = vshrl.u32 %v2787, 16
    %v2792 = vshll.u32 %v2788, 16
    %v2793 = vshrl.u32 %v2788, 16
    %vm2794 = vc.u32 %v2786, %v2790
    %v2795 = vsel %vm2794, 1, 0
    %v2796 = vadd.s32 %v2786, %v2790
    %v2797 = vadd.s32 %v2789, %v2795
    %vm2798 = vc.u32 %v2796, %v2792
    %v2799 = vsel %vm2798, 1, 0
    %v2800 = vadd.s32 %v2796, %v2792
    %v2801 = vadd.s32 %v2797, %v2799
    %v2802 = vadd.s32 %v2801, %v2791
    %v2803 = vadd.s32 %v2802, %v2793
    %v2804 = vmul.u32 %v2759, %v2750
    %v2805 = vadd.s32 %v2781, %v2800
    %vm2806 = vc.u32 %v2781, %v2800
    %v2807 = vadd.s32 %v2803, 1
    %v2808 = vsel %vm2806, %v2807, %v2803
    %v2809 = vadd.s32 %v2804, %v2808
    %v2810 = vadd.s32 %v2809, 536870912
    %v2811 = vshrl.u32 %v2810, 30
    %v2812 = vshll.u32 %v2811, 30
    %v2813 = vsub.s32 %v2809, %v2812
    %vm2814 = vcmp.lt.s32.totalorder %v2813, 0
    %v2815 = vsub.s32 0, %v2813
    %v2816 = vsel %vm2814, %v2815, %v2813
    %v2817 = vclz %v2816
    %v2818 = vsub.s32 %v2817, 2
    %vm2819 = vcmp.gt.s32.totalorder 0, %v2818
    %v2820 = vsel %vm2819, 0, %v2818
    %v2821 = vsub.s32 32, %v2820
    %v2822 = vshll.u32 %v2813, %v2820
    %v2823 = vshrl.u32 %v2805, %v2821
    %v2824 = vor.u32 %v2822, %v2823
    %v2825 = vsub.s32 4294967266, %v2820
    %v2826 = vadd.s32 %v2825, 127
    %v2827 = vshll.u32 %v2826, 23
    %v2828 = vor.u32 4788187, %v2827
    %v2829 = vand.u32 2147483647, %v2828
    %v2831 = vcvt.s32.f32 %v2824
    %v2832 = vmul.f32 %v2831, %v2829
    %v2833 = vxor.u32 %v2832, 2147483648
    %v2834 = vsel %vm2713, %v2833, %v2832
    %v2835 = vsub.s32 4, %v2811
    %v2836 = vsel %vm2713, %v2835, %v2811
    %v2837 = vsel %vm2712, %v545, %v2834
    %v2838 = vsel %vm2712, 0, %v2836
    %v2839 = vmul.f32 %v2837, %v2837
    %v2840 = vmul.f32 %v2839, -0.001358992
    %v2841 = vadd.f32 %v2840, 0.041655596
    %v2842 = vmul.f32 %v2839, %v2841
    %v2843 = vadd.f32 %v2842, -0.4999988
    %v2844 = vmul.f32 %v2839, %v2843
    %v2845 = vadd.f32 1.0, %v2844
    %v2846 = vmul.f32 %v2837, %v2837
    %v2847 = vmul.f32 %v2846, -0.00019511016
    %v2848 = vadd.f32 %v2847, 0.008332121
    %v2849 = vmul.f32 %v2846, %v2848
    %v2850 = vadd.f32 %v2849, -0.16666654
    %v2851 = vmul.f32 %v2846, %v2850
    %v2852 = vadd.f32 %v2851, 1.0
    %v2853 = vmul.f32 %v2852, %v2837
    %vm2854 = vweird.f32 %v545
    %v2855 = vand.u32 %v2838, 3
    %vm2856 = vcmp.lt.s32.totalorder %v2855, 2
    %vm2857 = vcmp.eq.s32.totalorder %v2855, 0
    %v2858 = vxor.u32 %v2853, 2147483648
    %v2859 = vsel %vm2857, %v2845, %v2858
    %vm2860 = vcmp.eq.s32.totalorder %v2855, 2
    %v2861 = vxor.u32 %v2845, 2147483648
    %v2862 = vsel %vm2860, %v2861, %v2853
    %v2863 = vsel %vm2856, %v2859, %v2862
    %v2864 = vsel %vm2854, nan, %v2863
    %v2865 = vand.u32 2147483647, %v546
    %vm2866 = vcmp.le.f32.partialorder %v2865, 0.7853982
    %vm2867 = vcmp.lt.s32.totalorder %v546, 0
    %v2868 = vand.u32 %v546, 2139095040
    %v2869 = vshrl.u32 %v2868, 23
    %v2870 = vsub.s32 %v2869, 127
    %v2871 = vand.u32 2147483647, %v546
    %v2872 = vand.u32 %v2871, 8388607
    %v2873 = vor.u32 %v2872, 8388608
    %v2874 = vsub.s32 0, %v2873
    %v2875 = vadd.s32 %v2870, 1
    %vm2876 = vcmp.gt.s32.totalorder %v2875, 0
    %v2877 = vsel %vm2876, %v2875, 0
    %v2878 = vshrl.u32 %v2877, 5
    %v2879 = vand.u32 %v2877, 31
    %v2880 = vsub.s32 32, %v2879
    %v2881 = vshrl.u32 683565275, %v2880
    %v2882 = vshll.u32 683565275, %v2879
    %v2883 = vshrl.u32 2475754826, %v2880
    %v2884 = vor.u32 %v2882, %v2883
    %v2885 = vshll.u32 2475754826, %v2879
    %v2886 = vshrl.u32 2131351028, %v2880
    %v2887 = vor.u32 %v2885, %v2886
    %v2888 = vshll.u32 2131351028, %v2879
    %v2889 = vshrl.u32 2102212464, %v2880
    %v2890 = vor.u32 %v2888, %v2889
    %v2891 = vshll.u32 2102212464, %v2879
    %v2892 = vshrl.u32 920167782, %v2880
    %v2893 = vor.u32 %v2891, %v2892
    %v2894 = vshll.u32 920167782, %v2879
    %v2895 = vshrl.u32 1326507024, %v2880
    %v2896 = vor.u32 %v2894, %v2895
    %vm2897 = vcmp.lt.s32.totalorder %v2878, 1
    %vm2898 = vcmp.lt.s32.totalorder %v2878, 2
    %vm2899 = vcmp.lt.s32.totalorder %v2878, 3
    %vm2900 = vcmp.lt.s32.totalorder %v2878, 4
    %v2901 = vsel %vm2897, %v2881, %v2884
    %v2902 = vsel %vm2900, %v2890, 2102212464
    %v2903 = vsel %vm2899, %v2887, %v2902
    %v2904 = vsel %vm2898, %v2901, %v2903
    %v2905 = vsel %vm2897, %v2884, %v2887
    %v2906 = vsel %vm2900, %v2893, 920167782
    %v2907 = vsel %vm2899, %v2890, %v2906
    %v2908 = vsel %vm2898, %v2905, %v2907
    %v2909 = vsel %vm2897, %v2887, %v2890
    %v2910 = vsel %vm2900, %v2896, 1326507024
    %v2911 = vsel %vm2899, %v2893, %v2910
    %v2912 = vsel %vm2898, %v2909, %v2911
    %v2913 = vshll.u32 %v2873, 8
    %v2914 = vand.u32 %v2913, 65535
    %v2915 = vshrl.u32 %v2913, 16
    %v2916 = vand.u32 %v2912, 65535
    %v2917 = vshrl.u32 %v2912, 16
    %v2918 = vmul.u32 %v2914, %v2916
    %v2919 = vmul.u32 %v2914, %v2917
    %v2920 = vmul.u32 %v2915, %v2916
    %v2921 = vmul.u32 %v2915, %v2917
    %v2922 = vshll.u32 %v2919, 16
    %v2923 = vshrl.u32 %v2919, 16
    %v2924 = vshll.u32 %v2920, 16
    %v2925 = vshrl.u32 %v2920, 16
    %vm2926 = vc.u32 %v2918, %v2922
    %v2927 = vsel %vm2926, 1, 0
    %v2928 = vadd.s32 %v2918, %v2922
    %v2929 = vadd.s32 %v2921, %v2927
    %vm2930 = vc.u32 %v2928, %v2924
    %v2931 = vsel %vm2930, 1, 0
    %v2932 = vadd.s32 %v2928, %v2924
    %v2933 = vadd.s32 %v2929, %v2931
    %v2934 = vadd.s32 %v2933, %v2923
    %v2935 = vadd.s32 %v2934, %v2925
    %v2936 = vand.u32 %v2913, 65535
    %v2937 = vshrl.u32 %v2913, 16
    %v2938 = vand.u32 %v2908, 65535
    %v2939 = vshrl.u32 %v2908, 16
    %v2940 = vmul.u32 %v2936, %v2938
    %v2941 = vmul.u32 %v2936, %v2939
    %v2942 = vmul.u32 %v2937, %v2938
    %v2943 = vmul.u32 %v2937, %v2939
    %v2944 = vshll.u32 %v2941, 16
    %v2945 = vshrl.u32 %v2941, 16
    %v2946 = vshll.u32 %v2942, 16
    %v2947 = vshrl.u32 %v2942, 16
    %vm2948 = vc.u32 %v2940, %v2944
    %v2949 = vsel %vm2948, 1, 0
    %v2950 = vadd.s32 %v2940, %v2944
    %v2951 = vadd.s32 %v2943, %v2949
    %vm2952 = vc.u32 %v2950, %v2946
    %v2953 = vsel %vm2952, 1, 0
    %v2954 = vadd.s32 %v2950, %v2946
    %v2955 = vadd.s32 %v2951, %v2953
    %v2956 = vadd.s32 %v2955, %v2945
    %v2957 = vadd.s32 %v2956, %v2947
    %v2958 = vmul.u32 %v2913, %v2904
    %v2959 = vadd.s32 %v2935, %v2954
    %vm2960 = vc.u32 %v2935, %v2954
    %v2961 = vadd.s32 %v2957, 1
    %v2962 = vsel %vm2960, %v2961, %v2957
    %v2963 = vadd.s32 %v2958, %v2962
    %v2964 = vadd.s32 %v2963, 536870912
    %v2965 = vshrl.u32 %v2964, 30
    %v2966 = vshll.u32 %v2965, 30
    %v2967 = vsub.s32 %v2963, %v2966
    %vm2968 = vcmp.lt.s32.totalorder %v2967, 0
    %v2969 = vsub.s32 0, %v2967
    %v2970 = vsel %vm2968, %v2969, %v2967
    %v2971 = vclz %v2970
    %v2972 = vsub.s32 %v2971, 2
    %vm2973 = vcmp.gt.s32.totalorder 0, %v2972
    %v2974 = vsel %vm2973, 0, %v2972
    %v2975 = vsub.s32 32, %v2974
    %v2976 = vshll.u32 %v2967, %v2974
    %v2977 = vshrl.u32 %v2959, %v2975
    %v2978 = vor.u32 %v2976, %v2977
    %v2979 = vsub.s32 4294967266, %v2974
    %v2980 = vadd.s32 %v2979, 127
    %v2981 = vshll.u32 %v2980, 23
    %v2982 = vor.u32 4788187, %v2981
    %v2983 = vand.u32 2147483647, %v2982
    %v2985 = vcvt.s32.f32 %v2978
    %v2986 = vmul.f32 %v2985, %v2983
    %v2987 = vxor.u32 %v2986, 2147483648
    %v2988 = vsel %vm2867, %v2987, %v2986
    %v2989 = vsub.s32 4, %v2965
    %v2990 = vsel %vm2867, %v2989, %v2965
    %v2991 = vsel %vm2866, %v546, %v2988
    %v2992 = vsel %vm2866, 0, %v2990
    %v2993 = vmul.f32 %v2991, %v2991
    %v2994 = vmul.f32 %v2993, -0.001358992
    %v2995 = vadd.f32 %v2994, 0.041655596
    %v2996 = vmul.f32 %v2993, %v2995
    %v2997 = vadd.f32 %v2996, -0.4999988
    %v2998 = vmul.f32 %v2993, %v2997
    %v2999 = vadd.f32 1.0, %v2998
    %v3000 = vmul.f32 %v2991, %v2991
    %v3001 = vmul.f32 %v3000, -0.00019511016
    %v3002 = vadd.f32 %v3001, 0.008332121
    %v3003 = vmul.f32 %v3000, %v3002
    %v3004 = vadd.f32 %v3003, -0.16666654
    %v3005 = vmul.f32 %v3000, %v3004
    %v3006 = vadd.f32 %v3005, 1.0
    %v3007 = vmul.f32 %v3006, %v2991
    %vm3008 = vweird.f32 %v546
    %v3009 = vand.u32 %v2992, 3
    %vm3010 = vcmp.lt.s32.totalorder %v3009, 2
    %vm3011 = vcmp.eq.s32.totalorder %v3009, 0
    %v3012 = vxor.u32 %v3007, 2147483648
    %v3013 = vsel %vm3011, %v2999, %v3012
    %vm3014 = vcmp.eq.s32.totalorder %v3009, 2
    %v3015 = vxor.u32 %v2999, 2147483648
    %v3016 = vsel %vm3014, %v3015, %v3007
    %v3017 = vsel %vm3010, %v3013, %v3016
    %v3018 = vsel %vm3008, nan, %v3017
    %v3019 = vsel %vm108, %v701, %v1940
    %v3020 = vsel %vm108, %v856, %v2094
    %v3021 = vsel %vm108, %v1011, %v2248
    %v3022 = vsel %vm108, %v1166, %v2402
    %v3023 = vsel %vm108, %v1321, %v2556
    %v3024 = vsel %vm108, %v1476, %v2710
    %v3025 = vsel %vm108, %v1631, %v2864
    %v3026 = vsel %vm108, %v1786, %v3018
    %v3027 = vld [vmem:[%s4] sm:$0xff]
    %v3028 = vld [vmem:[%s4 + $0x8] sm:$0xff]
    %v3029 = vld [vmem:[%s4 + $0x10] sm:$0xff]
    %v3030 = vld [vmem:[%s4 + $0x18] sm:$0xff]
    %v3031 = vld [vmem:[%s4 + $0x20] sm:$0xff]
    %v3032 = vld [vmem:[%s4 + $0x28] sm:$0xff]
    %v3033 = vld [vmem:[%s4 + $0x30] sm:$0xff]
    %v3034 = vld [vmem:[%s4 + $0x38] sm:$0xff]
    %v3035 = vadd.f32 %v418, %v418
    %v3036 = vld [vmem:[%s5] sm:$0xff]
    %v3037 = vld [vmem:[%s5 + $0x8] sm:$0xff]
    %v3038 = vld [vmem:[%s5 + $0x10] sm:$0xff]
    %v3039 = vld [vmem:[%s5 + $0x18] sm:$0xff]
    %v3040 = vld [vmem:[%s6] sm:$0x1]
    %v3042 = vperm.slane %v3040, 0
    %vm3044 = vcmask 261120
    %v3046 = vsel %vm3044, %v3035, 0
    %3048 = vmatpush.msra.mxu0 0.0
    %3049 = vmatpush.msra.mxu0 0.0
    %3050 = vmatpush.msra.mxu0 0.0
    %3051 = vmatpush.msra.mxu0 0.0
    %3052 = vmatpush.msra.mxu0 0.0
    %3053 = vmatpush.msra.mxu0 0.0
    %3054 = vmatpush.msra.mxu0 0.0
    %3055 = vmatpush.msra.mxu0 0.0
    %3056 = vmatpush.msra.mxu0 0.0
    %3057 = vmatpush.msra.mxu0 0.0
    %3058 = vmatpush.msra.mxu0 0.0
    %3059 = vmatpush.msra.mxu0 0.0
    %3060 = vmatpush.msra.mxu0 %v3039
    %3061 = vmatpush.msra.mxu0 %v3038
    %3062 = vmatpush.msra.mxu0 %v3037
    %3063 = vmatpush.msra.mxu0 %v3036
    %3064 = vmatmul.f32.gmra.mxu0 %v3046
    %v3065 = vpop.f32.mrf.mxu0
    %v3066 = vadd.f32 %v3042, %v3065
    %3067 = vdwg.mxu0
    %v3068 = vld [vmem:[%s7] sm:$0xff]
    %v3069 = vld [vmem:[%s7 + $0x8] sm:$0xff]
    %v3070 = vld [vmem:[%s7 + $0x10] sm:$0xff]
    %v3071 = vld [vmem:[%s7 + $0x18] sm:$0xff]
    %v3072 = vld [vmem:[%s8] sm:$0x1]
    %v3074 = vperm.slane %v3072, 0
    %v3077 = vsel %vm3044, %v418, 0
    %3079 = vmatpush.msra.mxu0 0.0
    %3080 = vmatpush.msra.mxu0 0.0
    %3081 = vmatpush.msra.mxu0 0.0
    %3082 = vmatpush.msra.mxu0 0.0
    %3083 = vmatpush.msra.mxu0 0.0
    %3084 = vmatpush.msra.mxu0 0.0
    %3085 = vmatpush.msra.mxu0 0.0
    %3086 = vmatpush.msra.mxu0 0.0
    %3087 = vmatpush.msra.mxu0 0.0
    %3088 = vmatpush.msra.mxu0 0.0
    %3089 = vmatpush.msra.mxu0 0.0
    %3090 = vmatpush.msra.mxu0 0.0
    %3091 = vmatpush.msra.mxu0 %v3071
    %3092 = vmatpush.msra.mxu0 %v3070
    %3093 = vmatpush.msra.mxu0 %v3069
    %3094 = vmatpush.msra.mxu0 %v3068
    %3095 = vmatmul.f32.gmra.mxu0 %v3077
    %v3096 = vpop.f32.mrf.mxu0
    %v3097 = vadd.f32 %v3074, %v3096
    %3098 = vdwg.mxu0
    %v3099 = vld [vmem:[%s9] sm:$0xff]
    %v3100 = vld [vmem:[%s9 + $0x8] sm:$0xff]
    %v3101 = vld [vmem:[%s9 + $0x10] sm:$0xff]
    %v3102 = vld [vmem:[%s9 + $0x18] sm:$0xff]
    %v3103 = vld [vmem:[%s10] sm:$0x1]
    %3105 = vrot.lane.b32.xlu0 %v3066, 96
    %v3106 = vpop.permute.xlu0 %3105
    %vm3107 = vcmask 31744
    %v3108 = vsel %vm3107, %v3066, 0
    %v3110 = vsel %vm3107, %v3106, 0
    %3112 = vmatpush.xpose.msra.mxu0 0.0
    %3113 = vmatpush.xpose.msra.mxu0 0.0
    %3114 = vmatpush.xpose.msra.mxu0 0.0
    %3115 = vmatpush.xpose.msra.mxu0 0.0
    %3116 = vmatpush.xpose.msra.mxu0 0.0
    %3117 = vmatpush.xpose.msra.mxu0 0.0
    %3118 = vmatpush.xpose.msra.mxu0 0.0
    %3119 = vmatpush.xpose.msra.mxu0 0.0
    %3120 = vmatpush.xpose.msra.mxu0 0.0
    %3121 = vmatpush.xpose.msra.mxu0 0.0
    %3122 = vmatpush.xpose.msra.mxu0 0.0
    %3123 = vmatpush.xpose.msra.mxu0 0.0
    %3124 = vmatpush.xpose.msra.mxu0 0.0
    %3125 = vmatpush.xpose.msra.mxu0 0.0
    %3126 = vmatpush.xpose.msra.mxu0 0.0
    %3127 = vmatpush.xpose.msra.mxu0 %v3110
    %3128 = vmatmul.f32.gmra.mxu0 %v3108
    %v3129 = vpop.f32.mrf.mxu0
    %v3130 = vadd.f32 0.0, %v3129
    %3131 = vdwg.mxu0
    %v3132 = vmul.f32 %v3130, 0.5
    %vm3133 = vcmask 27648
    %v3134 = vsel %vm3133, %v3132, -inf
    %3135 = vmax.xlane.f32.xlu0 %v3134
    %v3136 = vpop.xlane.xlu0 %3135
    %v3137 = vsub.f32 %v3132, %v3136
    %v3138 = vmul.f32 %v3137, 1.442695
    %v3139 = vpow.pop %v3138
    %v3140 = vsel %vm3133, %v3139, 0.0
    %3141 = vadd.xlane.f32.xlu0 %v3140
    %v3142 = vpop.xlane.xlu0 %3141
    %v3143 = vrcp.pop %v3142
    %v3144 = vmul.f32 %v3139, %v3143
    %v3146 = vsel %vm3107, %v3144, 0
    %vm3148 = vcmask 1043456
    %v3150 = vsel %vm3148, %v3097, 0
    %3152 = vmatpush.msra.mxu0 0.0
    %3153 = vmatpush.msra.mxu0 0.0
    %3154 = vmatpush.msra.mxu0 0.0
    %3155 = vmatpush.msra.mxu0 0.0
    %3156 = vmatpush.msra.mxu0 0.0
    %3157 = vmatpush.msra.mxu0 0.0
    %3158 = vmatpush.msra.mxu0 0.0
    %3159 = vmatpush.msra.mxu0 0.0
    %3160 = vmatpush.msra.mxu0 0.0
    %3161 = vmatpush.msra.mxu0 0.0
    %3162 = vmatpush.msra.mxu0 0.0
    %3163 = vmatpush.msra.mxu0 0.0
    %3164 = vmatpush.msra.mxu0 0.0
    %3165 = vmatpush.msra.mxu0 0.0
    %3166 = vmatpush.msra.mxu0 0.0
    %3167 = vmatpush.msra.mxu0 %v3150
    %3168 = vmatmul.f32.gmra.mxu0 %v3146
    %v3169 = vpop.f32.mrf.mxu0
    %v3170 = vadd.f32 0.0, %v3169
    %3171 = vdwg.mxu0
    %3172 = vrot.lane.b32.xlu0 %v3066, 124
    %v3173 = vpop.permute.xlu0 %3172
    %3174 = vrot.lane.b32.xlu0 %v3066, 92
    %v3175 = vpop.permute.xlu0 %3174
    %v3176 = vsel %vm3107, %v3173, 0
    %v3178 = vsel %vm3107, %v3175, 0
    %3180 = vmatpush.xpose.msra.mxu0 0.0
    %3181 = vmatpush.xpose.msra.mxu0 0.0
    %3182 = vmatpush.xpose.msra.mxu0 0.0
    %3183 = vmatpush.xpose.msra.mxu0 0.0
    %3184 = vmatpush.xpose.msra.mxu0 0.0
    %3185 = vmatpush.xpose.msra.mxu0 0.0
    %3186 = vmatpush.xpose.msra.mxu0 0.0
    %3187 = vmatpush.xpose.msra.mxu0 0.0
    %3188 = vmatpush.xpose.msra.mxu0 0.0
    %3189 = vmatpush.xpose.msra.mxu0 0.0
    %3190 = vmatpush.xpose.msra.mxu0 0.0
    %3191 = vmatpush.xpose.msra.mxu0 0.0
    %3192 = vmatpush.xpose.msra.mxu0 0.0
    %3193 = vmatpush.xpose.msra.mxu0 0.0
    %3194 = vmatpush.xpose.msra.mxu0 0.0
    %3195 = vmatpush.xpose.msra.mxu0 %v3178
    %3196 = vmatmul.f32.gmra.mxu0 %v3176
    %v3197 = vpop.f32.mrf.mxu0
    %v3198 = vadd.f32 0.0, %v3197
    %3199 = vdwg.mxu0
    %v3200 = vmul.f32 %v3198, 0.5
    %v3201 = vsel %vm3133, %v3200, -inf
    %3202 = vmax.xlane.f32.xlu0 %v3201
    %v3203 = vpop.xlane.xlu0 %3202
    %v3204 = vsub.f32 %v3200, %v3203
    %v3205 = vmul.f32 %v3204, 1.442695
    %v3206 = vpow.pop %v3205
    %v3207 = vsel %vm3133, %v3206, 0.0
    %3208 = vadd.xlane.f32.xlu0 %v3207
    %v3209 = vpop.xlane.xlu0 %3208
    %v3210 = vrcp.pop %v3209
    %v3211 = vmul.f32 %v3206, %v3210
    %3212 = vrot.lane.b32.xlu0 %v3097, 124
    %v3213 = vpop.permute.xlu0 %3212
    %v3215 = vsel %vm3107, %v3211, 0
    %v3217 = vsel %vm3148, %v3213, 0
    %3219 = vmatpush.msra.mxu0 0.0
    %3220 = vmatpush.msra.mxu0 0.0
    %3221 = vmatpush.msra.mxu0 0.0
    %3222 = vmatpush.msra.mxu0 0.0
    %3223 = vmatpush.msra.mxu0 0.0
    %3224 = vmatpush.msra.mxu0 0.0
    %3225 = vmatpush.msra.mxu0 0.0
    %3226 = vmatpush.msra.mxu0 0.0
    %3227 = vmatpush.msra.mxu0 0.0
    %3228 = vmatpush.msra.mxu0 0.0
    %3229 = vmatpush.msra.mxu0 0.0
    %3230 = vmatpush.msra.mxu0 0.0
    %3231 = vmatpush.msra.mxu0 0.0
    %3232 = vmatpush.msra.mxu0 0.0
    %3233 = vmatpush.msra.mxu0 0.0
    %3234 = vmatpush.msra.mxu0 %v3217
    %3235 = vmatmul.f32.gmra.mxu0 %v3215
    %v3236 = vpop.f32.mrf.mxu0
    %v3237 = vadd.f32 0.0, %v3236
    %3238 = vdwg.mxu0
    %v3240 = vrot.slane %v3099, 4
    %v3242 = vsel %vm3107, %v3237, 0
    %v3244 = vsel %vm3148, %v3240, 0
    %3246 = vmatpush.msra.mxu0 0.0
    %3247 = vmatpush.msra.mxu0 0.0
    %3248 = vmatpush.msra.mxu0 0.0
    %3249 = vmatpush.msra.mxu0 0.0
    %3250 = vmatpush.msra.mxu0 0.0
    %3251 = vmatpush.msra.mxu0 0.0
    %3252 = vmatpush.msra.mxu0 0.0
    %3253 = vmatpush.msra.mxu0 0.0
    %3254 = vmatpush.msra.mxu0 0.0
    %3255 = vmatpush.msra.mxu0 0.0
    %3256 = vmatpush.msra.mxu0 0.0
    %3257 = vmatpush.msra.mxu0 0.0
    %3258 = vmatpush.msra.mxu0 0.0
    %3259 = vmatpush.msra.mxu0 0.0
    %3260 = vmatpush.msra.mxu0 0.0
    %3261 = vmatpush.msra.mxu0 %v3244
    %3262 = vmatmul.f32.gmra.mxu0 %v3242
    %v3263 = vpop.f32.mrf.mxu0
    %v3264 = vadd.f32 0.0, %v3263
    %3265 = vdwg.mxu0
    %v3267 = vsel %vm3107, %v3170, 0
    %v3269 = vsel %vm3148, %v3099, 0
    %3271 = vmatpush.msra.mxu0 0.0
    %3272 = vmatpush.msra.mxu0 0.0
    %3273 = vmatpush.msra.mxu0 0.0
    %3274 = vmatpush.msra.mxu0 0.0
    %3275 = vmatpush.msra.mxu0 0.0
    %3276 = vmatpush.msra.mxu0 0.0
    %3277 = vmatpush.msra.mxu0 0.0
    %3278 = vmatpush.msra.mxu0 0.0
    %3279 = vmatpush.msra.mxu0 0.0
    %3280 = vmatpush.msra.mxu0 0.0
    %3281 = vmatpush.msra.mxu0 0.0
    %3282 = vmatpush.msra.mxu0 0.0
    %3283 = vmatpush.msra.mxu0 0.0
    %3284 = vmatpush.msra.mxu0 0.0
    %3285 = vmatpush.msra.mxu0 0.0
    %3286 = vmatpush.msra.mxu0 %v3269
    %3287 = vmatmul.f32.gmra.mxu0 %v3267
    %v3288 = vpop.f32.mrf.mxu0
    %v3289 = vadd.f32 %v3264, %v3288
    %3290 = vdwg.mxu0
    %3291 = vrot.lane.b32.xlu0 %v3066, 120
    %v3292 = vpop.permute.xlu0 %3291
    %3293 = vrot.lane.b32.xlu0 %v3066, 88
    %v3294 = vpop.permute.xlu0 %3293
    %v3295 = vsel %vm3107, %v3292, 0
    %v3297 = vsel %vm3107, %v3294, 0
    %3299 = vmatpush.xpose.msra.mxu0 0.0
    %3300 = vmatpush.xpose.msra.mxu0 0.0
    %3301 = vmatpush.xpose.msra.mxu0 0.0
    %3302 = vmatpush.xpose.msra.mxu0 0.0
    %3303 = vmatpush.xpose.msra.mxu0 0.0
    %3304 = vmatpush.xpose.msra.mxu0 0.0
    %3305 = vmatpush.xpose.msra.mxu0 0.0
    %3306 = vmatpush.xpose.msra.mxu0 0.0
    %3307 = vmatpush.xpose.msra.mxu0 0.0
    %3308 = vmatpush.xpose.msra.mxu0 0.0
    %3309 = vmatpush.xpose.msra.mxu0 0.0
    %3310 = vmatpush.xpose.msra.mxu0 0.0
    %3311 = vmatpush.xpose.msra.mxu0 0.0
    %3312 = vmatpush.xpose.msra.mxu0 0.0
    %3313 = vmatpush.xpose.msra.mxu0 0.0
    %3314 = vmatpush.xpose.msra.mxu0 %v3297
    %3315 = vmatmul.f32.gmra.mxu0 %v3295
    %v3316 = vpop.f32.mrf.mxu0
    %v3317 = vadd.f32 0.0, %v3316
    %3318 = vdwg.mxu0
    %v3319 = vmul.f32 %v3317, 0.5
    %v3320 = vsel %vm3133, %v3319, -inf
    %3321 = vmax.xlane.f32.xlu0 %v3320
    %v3322 = vpop.xlane.xlu0 %3321
    %v3323 = vsub.f32 %v3319, %v3322
    %v3324 = vmul.f32 %v3323, 1.442695
    %v3325 = vpow.pop %v3324
    %v3326 = vsel %vm3133, %v3325, 0.0
    %3327 = vadd.xlane.f32.xlu0 %v3326
    %v3328 = vpop.xlane.xlu0 %3327
    %v3329 = vrcp.pop %v3328
    %v3330 = vmul.f32 %v3325, %v3329
    %3331 = vrot.lane.b32.xlu0 %v3097, 120
    %v3332 = vpop.permute.xlu0 %3331
    %v3334 = vsel %vm3107, %v3330, 0
    %v3336 = vsel %vm3148, %v3332, 0
    %3338 = vmatpush.msra.mxu0 0.0
    %3339 = vmatpush.msra.mxu0 0.0
    %3340 = vmatpush.msra.mxu0 0.0
    %3341 = vmatpush.msra.mxu0 0.0
    %3342 = vmatpush.msra.mxu0 0.0
    %3343 = vmatpush.msra.mxu0 0.0
    %3344 = vmatpush.msra.mxu0 0.0
    %3345 = vmatpush.msra.mxu0 0.0
    %3346 = vmatpush.msra.mxu0 0.0
    %3347 = vmatpush.msra.mxu0 0.0
    %3348 = vmatpush.msra.mxu0 0.0
    %3349 = vmatpush.msra.mxu0 0.0
    %3350 = vmatpush.msra.mxu0 0.0
    %3351 = vmatpush.msra.mxu0 0.0
    %3352 = vmatpush.msra.mxu0 0.0
    %3353 = vmatpush.msra.mxu0 %v3336
    %3354 = vmatmul.f32.gmra.mxu0 %v3334
    %v3355 = vpop.f32.mrf.mxu0
    %v3356 = vadd.f32 0.0, %v3355
    %3357 = vdwg.mxu0
    %v3359 = vsel %vm3107, %v3356, 0
    %v3362 = vsel %vm3148, %v3100, 0
    %3364 = vmatpush.msra.mxu0 0.0
    %3365 = vmatpush.msra.mxu0 0.0
    %3366 = vmatpush.msra.mxu0 0.0
    %3367 = vmatpush.msra.mxu0 0.0
    %3368 = vmatpush.msra.mxu0 0.0
    %3369 = vmatpush.msra.mxu0 0.0
    %3370 = vmatpush.msra.mxu0 0.0
    %3371 = vmatpush.msra.mxu0 0.0
    %3372 = vmatpush.msra.mxu0 0.0
    %3373 = vmatpush.msra.mxu0 0.0
    %3374 = vmatpush.msra.mxu0 0.0
    %3375 = vmatpush.msra.mxu0 0.0
    %3376 = vmatpush.msra.mxu0 0.0
    %3377 = vmatpush.msra.mxu0 0.0
    %3378 = vmatpush.msra.mxu0 0.0
    %3379 = vmatpush.msra.mxu0 %v3362
    %3380 = vmatmul.f32.gmra.mxu0 %v3359
    %v3381 = vpop.f32.mrf.mxu0
    %v3382 = vadd.f32 0.0, %v3381
    %3383 = vdwg.mxu0
    %v3384 = vadd.f32 %v3289, %v3382
    %3385 = vrot.lane.b32.xlu0 %v3066, 116
    %v3386 = vpop.permute.xlu0 %3385
    %3387 = vrot.lane.b32.xlu0 %v3066, 84
    %v3388 = vpop.permute.xlu0 %3387
    %v3389 = vsel %vm3107, %v3386, 0
    %v3391 = vsel %vm3107, %v3388, 0
    %3393 = vmatpush.xpose.msra.mxu0 0.0
    %3394 = vmatpush.xpose.msra.mxu0 0.0
    %3395 = vmatpush.xpose.msra.mxu0 0.0
    %3396 = vmatpush.xpose.msra.mxu0 0.0
    %3397 = vmatpush.xpose.msra.mxu0 0.0
    %3398 = vmatpush.xpose.msra.mxu0 0.0
    %3399 = vmatpush.xpose.msra.mxu0 0.0
    %3400 = vmatpush.xpose.msra.mxu0 0.0
    %3401 = vmatpush.xpose.msra.mxu0 0.0
    %3402 = vmatpush.xpose.msra.mxu0 0.0
    %3403 = vmatpush.xpose.msra.mxu0 0.0
    %3404 = vmatpush.xpose.msra.mxu0 0.0
    %3405 = vmatpush.xpose.msra.mxu0 0.0
    %3406 = vmatpush.xpose.msra.mxu0 0.0
    %3407 = vmatpush.xpose.msra.mxu0 0.0
    %3408 = vmatpush.xpose.msra.mxu0 %v3391
    %3409 = vmatmul.f32.gmra.mxu0 %v3389
    %v3410 = vpop.f32.mrf.mxu0
    %v3411 = vadd.f32 0.0, %v3410
    %3412 = vdwg.mxu0
    %v3413 = vmul.f32 %v3411, 0.5
    %v3414 = vsel %vm3133, %v3413, -inf
    %3415 = vmax.xlane.f32.xlu0 %v3414
    %v3416 = vpop.xlane.xlu0 %3415
    %v3417 = vsub.f32 %v3413, %v3416
    %v3418 = vmul.f32 %v3417, 1.442695
    %v3419 = vpow.pop %v3418
    %v3420 = vsel %vm3133, %v3419, 0.0
    %3421 = vadd.xlane.f32.xlu0 %v3420
    %v3422 = vpop.xlane.xlu0 %3421
    %v3423 = vrcp.pop %v3422
    %v3424 = vmul.f32 %v3419, %v3423
    %3425 = vrot.lane.b32.xlu0 %v3097, 116
    %v3426 = vpop.permute.xlu0 %3425
    %v3428 = vsel %vm3107, %v3424, 0
    %v3430 = vsel %vm3148, %v3426, 0
    %3432 = vmatpush.msra.mxu0 0.0
    %3433 = vmatpush.msra.mxu0 0.0
    %3434 = vmatpush.msra.mxu0 0.0
    %3435 = vmatpush.msra.mxu0 0.0
    %3436 = vmatpush.msra.mxu0 0.0
    %3437 = vmatpush.msra.mxu0 0.0
    %3438 = vmatpush.msra.mxu0 0.0
    %3439 = vmatpush.msra.mxu0 0.0
    %3440 = vmatpush.msra.mxu0 0.0
    %3441 = vmatpush.msra.mxu0 0.0
    %3442 = vmatpush.msra.mxu0 0.0
    %3443 = vmatpush.msra.mxu0 0.0
    %3444 = vmatpush.msra.mxu0 0.0
    %3445 = vmatpush.msra.mxu0 0.0
    %3446 = vmatpush.msra.mxu0 0.0
    %3447 = vmatpush.msra.mxu0 %v3430
    %3448 = vmatmul.f32.gmra.mxu0 %v3428
    %v3449 = vpop.f32.mrf.mxu0
    %v3450 = vadd.f32 0.0, %v3449
    %3451 = vdwg.mxu0
    %v3452 = vrot.slane %v3100, 4
    %v3454 = vsel %vm3107, %v3450, 0
    %v3456 = vsel %vm3148, %v3452, 0
    %3458 = vmatpush.msra.mxu0 0.0
    %3459 = vmatpush.msra.mxu0 0.0
    %3460 = vmatpush.msra.mxu0 0.0
    %3461 = vmatpush.msra.mxu0 0.0
    %3462 = vmatpush.msra.mxu0 0.0
    %3463 = vmatpush.msra.mxu0 0.0
    %3464 = vmatpush.msra.mxu0 0.0
    %3465 = vmatpush.msra.mxu0 0.0
    %3466 = vmatpush.msra.mxu0 0.0
    %3467 = vmatpush.msra.mxu0 0.0
    %3468 = vmatpush.msra.mxu0 0.0
    %3469 = vmatpush.msra.mxu0 0.0
    %3470 = vmatpush.msra.mxu0 0.0
    %3471 = vmatpush.msra.mxu0 0.0
    %3472 = vmatpush.msra.mxu0 0.0
    %3473 = vmatpush.msra.mxu0 %v3456
    %3474 = vmatmul.f32.gmra.mxu0 %v3454
    %v3475 = vpop.f32.mrf.mxu0
    %v3476 = vadd.f32 0.0, %v3475
    %3477 = vdwg.mxu0
    %v3478 = vadd.f32 %v3384, %v3476
    %3479 = vrot.lane.b32.xlu0 %v3066, 112
    %v3480 = vpop.permute.xlu0 %3479
    %3481 = vrot.lane.b32.xlu0 %v3066, 80
    %v3482 = vpop.permute.xlu0 %3481
    %v3483 = vsel %vm3107, %v3480, 0
    %v3485 = vsel %vm3107, %v3482, 0
    %3487 = vmatpush.xpose.msra.mxu0 0.0
    %3488 = vmatpush.xpose.msra.mxu0 0.0
    %3489 = vmatpush.xpose.msra.mxu0 0.0
    %3490 = vmatpush.xpose.msra.mxu0 0.0
    %3491 = vmatpush.xpose.msra.mxu0 0.0
    %3492 = vmatpush.xpose.msra.mxu0 0.0
    %3493 = vmatpush.xpose.msra.mxu0 0.0
    %3494 = vmatpush.xpose.msra.mxu0 0.0
    %3495 = vmatpush.xpose.msra.mxu0 0.0
    %3496 = vmatpush.xpose.msra.mxu0 0.0
    %3497 = vmatpush.xpose.msra.mxu0 0.0
    %3498 = vmatpush.xpose.msra.mxu0 0.0
    %3499 = vmatpush.xpose.msra.mxu0 0.0
    %3500 = vmatpush.xpose.msra.mxu0 0.0
    %3501 = vmatpush.xpose.msra.mxu0 0.0
    %3502 = vmatpush.xpose.msra.mxu0 %v3485
    %3503 = vmatmul.f32.gmra.mxu0 %v3483
    %v3504 = vpop.f32.mrf.mxu0
    %v3505 = vadd.f32 0.0, %v3504
    %3506 = vdwg.mxu0
    %v3507 = vmul.f32 %v3505, 0.5
    %v3508 = vsel %vm3133, %v3507, -inf
    %3509 = vmax.xlane.f32.xlu0 %v3508
    %v3510 = vpop.xlane.xlu0 %3509
    %v3511 = vsub.f32 %v3507, %v3510
    %v3512 = vmul.f32 %v3511, 1.442695
    %v3513 = vpow.pop %v3512
    %v3514 = vsel %vm3133, %v3513, 0.0
    %3515 = vadd.xlane.f32.xlu0 %v3514
    %v3516 = vpop.xlane.xlu0 %3515
    %v3517 = vrcp.pop %v3516
    %v3518 = vmul.f32 %v3513, %v3517
    %3519 = vrot.lane.b32.xlu0 %v3097, 112
    %v3520 = vpop.permute.xlu0 %3519
    %v3522 = vsel %vm3107, %v3518, 0
    %v3524 = vsel %vm3148, %v3520, 0
    %3526 = vmatpush.msra.mxu0 0.0
    %3527 = vmatpush.msra.mxu0 0.0
    %3528 = vmatpush.msra.mxu0 0.0
    %3529 = vmatpush.msra.mxu0 0.0
    %3530 = vmatpush.msra.mxu0 0.0
    %3531 = vmatpush.msra.mxu0 0.0
    %3532 = vmatpush.msra.mxu0 0.0
    %3533 = vmatpush.msra.mxu0 0.0
    %3534 = vmatpush.msra.mxu0 0.0
    %3535 = vmatpush.msra.mxu0 0.0
    %3536 = vmatpush.msra.mxu0 0.0
    %3537 = vmatpush.msra.mxu0 0.0
    %3538 = vmatpush.msra.mxu0 0.0
    %3539 = vmatpush.msra.mxu0 0.0
    %3540 = vmatpush.msra.mxu0 0.0
    %3541 = vmatpush.msra.mxu0 %v3524
    %3542 = vmatmul.f32.gmra.mxu0 %v3522
    %v3543 = vpop.f32.mrf.mxu0
    %v3544 = vadd.f32 0.0, %v3543
    %3545 = vdwg.mxu0
    %v3547 = vsel %vm3107, %v3544, 0
    %v3550 = vsel %vm3148, %v3101, 0
    %3552 = vmatpush.msra.mxu0 0.0
    %3553 = vmatpush.msra.mxu0 0.0
    %3554 = vmatpush.msra.mxu0 0.0
    %3555 = vmatpush.msra.mxu0 0.0
    %3556 = vmatpush.msra.mxu0 0.0
    %3557 = vmatpush.msra.mxu0 0.0
    %3558 = vmatpush.msra.mxu0 0.0
    %3559 = vmatpush.msra.mxu0 0.0
    %3560 = vmatpush.msra.mxu0 0.0
    %3561 = vmatpush.msra.mxu0 0.0
    %3562 = vmatpush.msra.mxu0 0.0
    %3563 = vmatpush.msra.mxu0 0.0
    %3564 = vmatpush.msra.mxu0 0.0
    %3565 = vmatpush.msra.mxu0 0.0
    %3566 = vmatpush.msra.mxu0 0.0
    %3567 = vmatpush.msra.mxu0 %v3550
    %3568 = vmatmul.f32.gmra.mxu0 %v3547
    %v3569 = vpop.f32.mrf.mxu0
    %v3570 = vadd.f32 0.0, %v3569
    %3571 = vdwg.mxu0
    %v3572 = vadd.f32 %v3478, %v3570
    %3573 = vrot.lane.b32.xlu0 %v3066, 108
    %v3574 = vpop.permute.xlu0 %3573
    %3575 = vrot.lane.b32.xlu0 %v3066, 76
    %v3576 = vpop.permute.xlu0 %3575
    %v3577 = vsel %vm3107, %v3574, 0
    %v3579 = vsel %vm3107, %v3576, 0
    %3581 = vmatpush.xpose.msra.mxu0 0.0
    %3582 = vmatpush.xpose.msra.mxu0 0.0
    %3583 = vmatpush.xpose.msra.mxu0 0.0
    %3584 = vmatpush.xpose.msra.mxu0 0.0
    %3585 = vmatpush.xpose.msra.mxu0 0.0
    %3586 = vmatpush.xpose.msra.mxu0 0.0
    %3587 = vmatpush.xpose.msra.mxu0 0.0
    %3588 = vmatpush.xpose.msra.mxu0 0.0
    %3589 = vmatpush.xpose.msra.mxu0 0.0
    %3590 = vmatpush.xpose.msra.mxu0 0.0
    %3591 = vmatpush.xpose.msra.mxu0 0.0
    %3592 = vmatpush.xpose.msra.mxu0 0.0
    %3593 = vmatpush.xpose.msra.mxu0 0.0
    %3594 = vmatpush.xpose.msra.mxu0 0.0
    %3595 = vmatpush.xpose.msra.mxu0 0.0
    %3596 = vmatpush.xpose.msra.mxu0 %v3579
    %3597 = vmatmul.f32.gmra.mxu0 %v3577
    %v3598 = vpop.f32.mrf.mxu0
    %v3599 = vadd.f32 0.0, %v3598
    %3600 = vdwg.mxu0
    %v3601 = vmul.f32 %v3599, 0.5
    %v3602 = vsel %vm3133, %v3601, -inf
    %3603 = vmax.xlane.f32.xlu0 %v3602
    %v3604 = vpop.xlane.xlu0 %3603
    %v3605 = vsub.f32 %v3601, %v3604
    %v3606 = vmul.f32 %v3605, 1.442695
    %v3607 = vpow.pop %v3606
    %v3608 = vsel %vm3133, %v3607, 0.0
    %3609 = vadd.xlane.f32.xlu0 %v3608
    %v3610 = vpop.xlane.xlu0 %3609
    %v3611 = vrcp.pop %v3610
    %v3612 = vmul.f32 %v3607, %v3611
    %3613 = vrot.lane.b32.xlu0 %v3097, 108
    %v3614 = vpop.permute.xlu0 %3613
    %v3616 = vsel %vm3107, %v3612, 0
    %v3618 = vsel %vm3148, %v3614, 0
    %3620 = vmatpush.msra.mxu0 0.0
    %3621 = vmatpush.msra.mxu0 0.0
    %3622 = vmatpush.msra.mxu0 0.0
    %3623 = vmatpush.msra.mxu0 0.0
    %3624 = vmatpush.msra.mxu0 0.0
    %3625 = vmatpush.msra.mxu0 0.0
    %3626 = vmatpush.msra.mxu0 0.0
    %3627 = vmatpush.msra.mxu0 0.0
    %3628 = vmatpush.msra.mxu0 0.0
    %3629 = vmatpush.msra.mxu0 0.0
    %3630 = vmatpush.msra.mxu0 0.0
    %3631 = vmatpush.msra.mxu0 0.0
    %3632 = vmatpush.msra.mxu0 0.0
    %3633 = vmatpush.msra.mxu0 0.0
    %3634 = vmatpush.msra.mxu0 0.0
    %3635 = vmatpush.msra.mxu0 %v3618
    %3636 = vmatmul.f32.gmra.mxu0 %v3616
    %v3637 = vpop.f32.mrf.mxu0
    %v3638 = vadd.f32 0.0, %v3637
    %3639 = vdwg.mxu0
    %v3640 = vrot.slane %v3101, 4
    %v3642 = vsel %vm3107, %v3638, 0
    %v3644 = vsel %vm3148, %v3640, 0
    %3646 = vmatpush.msra.mxu0 0.0
    %3647 = vmatpush.msra.mxu0 0.0
    %3648 = vmatpush.msra.mxu0 0.0
    %3649 = vmatpush.msra.mxu0 0.0
    %3650 = vmatpush.msra.mxu0 0.0
    %3651 = vmatpush.msra.mxu0 0.0
    %3652 = vmatpush.msra.mxu0 0.0
    %3653 = vmatpush.msra.mxu0 0.0
    %3654 = vmatpush.msra.mxu0 0.0
    %3655 = vmatpush.msra.mxu0 0.0
    %3656 = vmatpush.msra.mxu0 0.0
    %3657 = vmatpush.msra.mxu0 0.0
    %3658 = vmatpush.msra.mxu0 0.0
    %3659 = vmatpush.msra.mxu0 0.0
    %3660 = vmatpush.msra.mxu0 0.0
    %3661 = vmatpush.msra.mxu0 %v3644
    %3662 = vmatmul.f32.gmra.mxu0 %v3642
    %v3663 = vpop.f32.mrf.mxu0
    %v3664 = vadd.f32 0.0, %v3663
    %3665 = vdwg.mxu0
    %v3666 = vadd.f32 %v3572, %v3664
    %3667 = vrot.lane.b32.xlu0 %v3066, 104
    %v3668 = vpop.permute.xlu0 %3667
    %3669 = vrot.lane.b32.xlu0 %v3066, 72
    %v3670 = vpop.permute.xlu0 %3669
    %v3671 = vsel %vm3107, %v3668, 0
    %v3673 = vsel %vm3107, %v3670, 0
    %3675 = vmatpush.xpose.msra.mxu0 0.0
    %3676 = vmatpush.xpose.msra.mxu0 0.0
    %3677 = vmatpush.xpose.msra.mxu0 0.0
    %3678 = vmatpush.xpose.msra.mxu0 0.0
    %3679 = vmatpush.xpose.msra.mxu0 0.0
    %3680 = vmatpush.xpose.msra.mxu0 0.0
    %3681 = vmatpush.xpose.msra.mxu0 0.0
    %3682 = vmatpush.xpose.msra.mxu0 0.0
    %3683 = vmatpush.xpose.msra.mxu0 0.0
    %3684 = vmatpush.xpose.msra.mxu0 0.0
    %3685 = vmatpush.xpose.msra.mxu0 0.0
    %3686 = vmatpush.xpose.msra.mxu0 0.0
    %3687 = vmatpush.xpose.msra.mxu0 0.0
    %3688 = vmatpush.xpose.msra.mxu0 0.0
    %3689 = vmatpush.xpose.msra.mxu0 0.0
    %3690 = vmatpush.xpose.msra.mxu0 %v3673
    %3691 = vmatmul.f32.gmra.mxu0 %v3671
    %v3692 = vpop.f32.mrf.mxu0
    %v3693 = vadd.f32 0.0, %v3692
    %3694 = vdwg.mxu0
    %v3695 = vmul.f32 %v3693, 0.5
    %v3696 = vsel %vm3133, %v3695, -inf
    %3697 = vmax.xlane.f32.xlu0 %v3696
    %v3698 = vpop.xlane.xlu0 %3697
    %v3699 = vsub.f32 %v3695, %v3698
    %v3700 = vmul.f32 %v3699, 1.442695
    %v3701 = vpow.pop %v3700
    %v3702 = vsel %vm3133, %v3701, 0.0
    %3703 = vadd.xlane.f32.xlu0 %v3702
    %v3704 = vpop.xlane.xlu0 %3703
    %v3705 = vrcp.pop %v3704
    %v3706 = vmul.f32 %v3701, %v3705
    %3707 = vrot.lane.b32.xlu0 %v3097, 104
    %v3708 = vpop.permute.xlu0 %3707
    %v3710 = vsel %vm3107, %v3706, 0
    %v3712 = vsel %vm3148, %v3708, 0
    %3714 = vmatpush.msra.mxu0 0.0
    %3715 = vmatpush.msra.mxu0 0.0
    %3716 = vmatpush.msra.mxu0 0.0
    %3717 = vmatpush.msra.mxu0 0.0
    %3718 = vmatpush.msra.mxu0 0.0
    %3719 = vmatpush.msra.mxu0 0.0
    %3720 = vmatpush.msra.mxu0 0.0
    %3721 = vmatpush.msra.mxu0 0.0
    %3722 = vmatpush.msra.mxu0 0.0
    %3723 = vmatpush.msra.mxu0 0.0
    %3724 = vmatpush.msra.mxu0 0.0
    %3725 = vmatpush.msra.mxu0 0.0
    %3726 = vmatpush.msra.mxu0 0.0
    %3727 = vmatpush.msra.mxu0 0.0
    %3728 = vmatpush.msra.mxu0 0.0
    %3729 = vmatpush.msra.mxu0 %v3712
    %3730 = vmatmul.f32.gmra.mxu0 %v3710
    %v3731 = vpop.f32.mrf.mxu0
    %v3732 = vadd.f32 0.0, %v3731
    %3733 = vdwg.mxu0
    %v3735 = vsel %vm3107, %v3732, 0
    %v3738 = vsel %vm3148, %v3102, 0
    %3740 = vmatpush.msra.mxu0 0.0
    %3741 = vmatpush.msra.mxu0 0.0
    %3742 = vmatpush.msra.mxu0 0.0
    %3743 = vmatpush.msra.mxu0 0.0
    %3744 = vmatpush.msra.mxu0 0.0
    %3745 = vmatpush.msra.mxu0 0.0
    %3746 = vmatpush.msra.mxu0 0.0
    %3747 = vmatpush.msra.mxu0 0.0
    %3748 = vmatpush.msra.mxu0 0.0
    %3749 = vmatpush.msra.mxu0 0.0
    %3750 = vmatpush.msra.mxu0 0.0
    %3751 = vmatpush.msra.mxu0 0.0
    %3752 = vmatpush.msra.mxu0 0.0
    %3753 = vmatpush.msra.mxu0 0.0
    %3754 = vmatpush.msra.mxu0 0.0
    %3755 = vmatpush.msra.mxu0 %v3738
    %3756 = vmatmul.f32.gmra.mxu0 %v3735
    %v3757 = vpop.f32.mrf.mxu0
    %v3758 = vadd.f32 0.0, %v3757
    %3759 = vdwg.mxu0
    %v3760 = vadd.f32 %v3666, %v3758
    %3761 = vrot.lane.b32.xlu0 %v3066, 100
    %v3762 = vpop.permute.xlu0 %3761
    %3763 = vrot.lane.b32.xlu0 %v3066, 68
    %v3764 = vpop.permute.xlu0 %3763
    %v3765 = vsel %vm3107, %v3762, 0
    %v3767 = vsel %vm3107, %v3764, 0
    %3769 = vmatpush.xpose.msra.mxu0 0.0
    %3770 = vmatpush.xpose.msra.mxu0 0.0
    %3771 = vmatpush.xpose.msra.mxu0 0.0
    %3772 = vmatpush.xpose.msra.mxu0 0.0
    %3773 = vmatpush.xpose.msra.mxu0 0.0
    %3774 = vmatpush.xpose.msra.mxu0 0.0
    %3775 = vmatpush.xpose.msra.mxu0 0.0
    %3776 = vmatpush.xpose.msra.mxu0 0.0
    %3777 = vmatpush.xpose.msra.mxu0 0.0
    %3778 = vmatpush.xpose.msra.mxu0 0.0
    %3779 = vmatpush.xpose.msra.mxu0 0.0
    %3780 = vmatpush.xpose.msra.mxu0 0.0
    %3781 = vmatpush.xpose.msra.mxu0 0.0
    %3782 = vmatpush.xpose.msra.mxu0 0.0
    %3783 = vmatpush.xpose.msra.mxu0 0.0
    %3784 = vmatpush.xpose.msra.mxu0 %v3767
    %3785 = vmatmul.f32.gmra.mxu0 %v3765
    %v3786 = vpop.f32.mrf.mxu0
    %v3787 = vadd.f32 0.0, %v3786
    %3788 = vdwg.mxu0
    %v3789 = vmul.f32 %v3787, 0.5
    %v3790 = vsel %vm3133, %v3789, -inf
    %3791 = vmax.xlane.f32.xlu0 %v3790
    %v3792 = vpop.xlane.xlu0 %3791
    %v3793 = vsub.f32 %v3789, %v3792
    %v3794 = vmul.f32 %v3793, 1.442695
    %v3795 = vpow.pop %v3794
    %v3796 = vsel %vm3133, %v3795, 0.0
    %3797 = vadd.xlane.f32.xlu0 %v3796
    %v3798 = vpop.xlane.xlu0 %3797
    %v3799 = vrcp.pop %v3798
    %v3800 = vmul.f32 %v3795, %v3799
    %3801 = vrot.lane.b32.xlu0 %v3097, 100
    %v3802 = vpop.permute.xlu0 %3801
    %v3804 = vsel %vm3107, %v3800, 0
    %v3806 = vsel %vm3148, %v3802, 0
    %3808 = vmatpush.msra.mxu0 0.0
    %3809 = vmatpush.msra.mxu0 0.0
    %3810 = vmatpush.msra.mxu0 0.0
    %3811 = vmatpush.msra.mxu0 0.0
    %3812 = vmatpush.msra.mxu0 0.0
    %3813 = vmatpush.msra.mxu0 0.0
    %3814 = vmatpush.msra.mxu0 0.0
    %3815 = vmatpush.msra.mxu0 0.0
    %3816 = vmatpush.msra.mxu0 0.0
    %3817 = vmatpush.msra.mxu0 0.0
    %3818 = vmatpush.msra.mxu0 0.0
    %3819 = vmatpush.msra.mxu0 0.0
    %3820 = vmatpush.msra.mxu0 0.0
    %3821 = vmatpush.msra.mxu0 0.0
    %3822 = vmatpush.msra.mxu0 0.0
    %3823 = vmatpush.msra.mxu0 %v3806
    %3824 = vmatmul.f32.gmra.mxu0 %v3804
    %v3825 = vpop.f32.mrf.mxu0
    %v3826 = vadd.f32 0.0, %v3825
    %3827 = vdwg.mxu0
    %v3828 = vrot.slane %v3102, 4
    %v3830 = vsel %vm3107, %v3826, 0
    %v3832 = vsel %vm3148, %v3828, 0
    %3834 = vmatpush.msra.mxu0 0.0
    %3835 = vmatpush.msra.mxu0 0.0
    %3836 = vmatpush.msra.mxu0 0.0
    %3837 = vmatpush.msra.mxu0 0.0
    %3838 = vmatpush.msra.mxu0 0.0
    %3839 = vmatpush.msra.mxu0 0.0
    %3840 = vmatpush.msra.mxu0 0.0
    %3841 = vmatpush.msra.mxu0 0.0
    %3842 = vmatpush.msra.mxu0 0.0
    %3843 = vmatpush.msra.mxu0 0.0
    %3844 = vmatpush.msra.mxu0 0.0
    %3845 = vmatpush.msra.mxu0 0.0
    %3846 = vmatpush.msra.mxu0 0.0
    %3847 = vmatpush.msra.mxu0 0.0
    %3848 = vmatpush.msra.mxu0 0.0
    %3849 = vmatpush.msra.mxu0 %v3832
    %3850 = vmatmul.f32.gmra.mxu0 %v3830
    %v3851 = vpop.f32.mrf.mxu0
    %v3852 = vadd.f32 0.0, %v3851
    %3853 = vdwg.mxu0
    %v3854 = vadd.f32 %v3760, %v3852
    %v3856 = vperm.slane %v3103, 0
    %v3858 = vadd.f32 %v3854, %v3856
    %v3859 = vadd.f32 %v418, %v3858
    %vm3860 = vcmask 257024
    %v3861 = vsel %vm3860, %v3859, 0.0
    %3862 = vadd.xlane.f32.xlu0 %v3861
    %v3863 = vpop.xlane.xlu0 %3862
    %v3864 = vrcp.pop 32.0
    %v3865 = vmul.f32 32.0, %v3864
    %v3866 = vsub.f32 1.0, %v3865
    %v3867 = vmul.f32 %v3864, %v3866
    %v3868 = vadd.f32 %v3864, %v3867
    %vm3869 = vweird.f32 %v3864
    %v3870 = vsel %vm3869, %v3864, %v3868
    %v3871 = vmul.f32 %v3863, %v3870
    %v3872 = vsub.f32 %v3859, %v3871
    %v3873 = vmul.f32 %v3872, %v3872
    %v3874 = vsel %vm3860, %v3873, 0.0
    %3875 = vadd.xlane.f32.xlu0 %v3874
    %v3876 = vpop.xlane.xlu0 %3875
    %v3877 = vmul.f32 %v3876, %v3870
    %v3878 = vadd.f32 %v3877, 1e-05
    %v3879 = vrsqrt.pop %v3878
    %v3880 = vmul.f32 %v3879, %v3878
    %v3881 = vmul.f32 %v3880, %v3879
    %v3882 = vmul.f32 0.5, %v3881
    %v3883 = vsub.f32 1.5, %v3882
    %v3884 = vmul.f32 %v3879, %v3883
    %vm3885 = vweird.f32 %v3878
    %vm3886 = vweird.f32 %v3879
    %vm3887 = vmor %vm3885, %vm3886
    %v3888 = vsel %vm3887, %v3879, %v3884
    %v3889 = vmul.f32 %v3872, %v3888
    %v3890 = vperm.slane %v85, 0
    %v3891 = vmul.f32 %v3889, %v3890
    %v3892 = vperm.slane %v86, 0
    %v3893 = vadd.f32 %v3891, %v3892
    %v3894 = vadd.f32 %v3893, %v418
    %v3895 = vld [vmem:[%s11] sm:$0xff]
    %v3896 = vld [vmem:[%s11 + $0x8] sm:$0xff]
    %v3897 = vld [vmem:[%s11 + $0x10] sm:$0xff]
    %v3898 = vld [vmem:[%s11 + $0x18] sm:$0xff]
    %v3899 = vld [vmem:[%s12] sm:$0x1]
    %v3901 = vperm.slane %v3899, 0
    %v3904 = vsel %vm3044, %v3894, 0
    %3906 = vmatpush.msra.mxu0 0.0
    %3907 = vmatpush.msra.mxu0 0.0
    %3908 = vmatpush.msra.mxu0 0.0
    %3909 = vmatpush.msra.mxu0 0.0
    %3910 = vmatpush.msra.mxu0 0.0
    %3911 = vmatpush.msra.mxu0 0.0
    %3912 = vmatpush.msra.mxu0 0.0
    %3913 = vmatpush.msra.mxu0 0.0
    %3914 = vmatpush.msra.mxu0 0.0
    %3915 = vmatpush.msra.mxu0 0.0
    %3916 = vmatpush.msra.mxu0 0.0
    %3917 = vmatpush.msra.mxu0 0.0
    %3918 = vmatpush.msra.mxu0 %v3898
    %3919 = vmatpush.msra.mxu0 %v3897
    %3920 = vmatpush.msra.mxu0 %v3896
    %3921 = vmatpush.msra.mxu0 %v3895
    %3922 = vmatmul.f32.gmra.mxu0 %v3904
    %v3923 = vpop.f32.mrf.mxu0
    %v3924 = vadd.f32 %v3901, %v3923
    %3925 = vdwg.mxu0
    %v3926 = vadd.f32 %v3027, %v3019
    %v3927 = vadd.f32 %v3028, %v3020
    %v3928 = vadd.f32 %v3029, %v3021
    %v3929 = vadd.f32 %v3030, %v3022
    %v3930 = vadd.f32 %v3031, %v3023
    %v3931 = vadd.f32 %v3032, %v3024
    %v3932 = vadd.f32 %v3033, %v3025
    %v3933 = vadd.f32 %v3034, %v3026
    %v3934 = vld [vmem:[%s13] sm:$0xff]
    %v3935 = vld [vmem:[%s13 + $0x8] sm:$0xff]
    %v3936 = vld [vmem:[%s13 + $0x10] sm:$0xff]
    %v3937 = vld [vmem:[%s13 + $0x18] sm:$0xff]
    %v3938 = vld [vmem:[%s14] sm:$0x1]
    %v3940 = vperm.slane %v3938, 0
    %v3943 = vsel %vm3044, %v3926, 0
    %v3946 = vsel %vm3044, %v3927, 0
    %v3949 = vsel %vm3044, %v3928, 0
    %v3952 = vsel %vm3044, %v3929, 0
    %v3955 = vsel %vm3044, %v3930, 0
    %v3958 = vsel %vm3044, %v3931, 0
    %v3961 = vsel %vm3044, %v3932, 0
    %v3964 = vsel %vm3044, %v3933, 0
    %3966 = vmatpush.msra.mxu0 0.0
    %3967 = vmatpush.msra.mxu0 0.0
    %3968 = vmatpush.msra.mxu0 0.0
    %3969 = vmatpush.msra.mxu0 0.0
    %3970 = vmatpush.msra.mxu0 0.0
    %3971 = vmatpush.msra.mxu0 0.0
    %3972 = vmatpush.msra.mxu0 0.0
    %3973 = vmatpush.msra.mxu0 0.0
    %3974 = vmatpush.msra.mxu0 0.0
    %3975 = vmatpush.msra.mxu0 0.0
    %3976 = vmatpush.msra.mxu0 0.0
    %3977 = vmatpush.msra.mxu0 0.0
    %3978 = vmatpush.msra.mxu0 %v3937
    %3979 = vmatpush.msra.mxu0 %v3936
    %3980 = vmatpush.msra.mxu0 %v3935
    %3981 = vmatpush.msra.mxu0 %v3934
    %3982 = vmatmul.f32.gmra.mxu0 %v3943
    %v3983 = vpop.f32.mrf.mxu0
    %v3984 = vadd.f32 %v3940, %v3983
    %3985 = vmatmul.f32.gmra.mxu0 %v3946
    %v3986 = vpop.f32.mrf.mxu0
    %v3987 = vadd.f32 %v3940, %v3986
    %3988 = vmatmul.f32.gmra.mxu0 %v3949
    %v3989 = vpop.f32.mrf.mxu0
    %v3990 = vadd.f32 %v3940, %v3989
    %3991 = vmatmul.f32.gmra.mxu0 %v3952
    %v3992 = vpop.f32.mrf.mxu0
    %v3993 = vadd.f32 %v3940, %v3992
    %3994 = vmatmul.f32.gmra.mxu0 %v3955
    %v3995 = vpop.f32.mrf.mxu0
    %v3996 = vadd.f32 %v3940, %v3995
    %3997 = vmatmul.f32.gmra.mxu0 %v3958
    %v3998 = vpop.f32.mrf.mxu0
    %v3999 = vadd.f32 %v3940, %v3998
    %4000 = vmatmul.f32.gmra.mxu0 %v3961
    %v4001 = vpop.f32.mrf.mxu0
    %v4002 = vadd.f32 %v3940, %v4001
    %4003 = vmatmul.f32.gmra.mxu0 %v3964
    %v4004 = vpop.f32.mrf.mxu0
    %v4005 = vadd.f32 %v3940, %v4004
    %4006 = vdwg.mxu0
    %v4007 = vld [vmem:[%s15] sm:$0xff]
    %v4008 = vld [vmem:[%s15 + $0x8] sm:$0xff]
    %v4009 = vld [vmem:[%s15 + $0x10] sm:$0xff]
    %v4010 = vld [vmem:[%s15 + $0x18] sm:$0xff]
    %v4011 = vld [vmem:[%s16] sm:$0x1]
    %v4013 = vperm.slane %v4011, 0
    %v4016 = vsel %vm3044, %v3027, 0
    %v4019 = vsel %vm3044, %v3028, 0
    %v4022 = vsel %vm3044, %v3029, 0
    %v4025 = vsel %vm3044, %v3030, 0
    %v4028 = vsel %vm3044, %v3031, 0
    %v4031 = vsel %vm3044, %v3032, 0
    %v4034 = vsel %vm3044, %v3033, 0
    %v4037 = vsel %vm3044, %v3034, 0
    %4039 = vmatpush.msra.mxu0 0.0
    %4040 = vmatpush.msra.mxu0 0.0
    %4041 = vmatpush.msra.mxu0 0.0
    %4042 = vmatpush.msra.mxu0 0.0
    %4043 = vmatpush.msra.mxu0 0.0
    %4044 = vmatpush.msra.mxu0 0.0
    %4045 = vmatpush.msra.mxu0 0.0
    %4046 = vmatpush.msra.mxu0 0.0
    %4047 = vmatpush.msra.mxu0 0.0
    %4048 = vmatpush.msra.mxu0 0.0
    %4049 = vmatpush.msra.mxu0 0.0
    %4050 = vmatpush.msra.mxu0 0.0
    %4051 = vmatpush.msra.mxu0 %v4010
    %4052 = vmatpush.msra.mxu0 %v4009
    %4053 = vmatpush.msra.mxu0 %v4008
    %4054 = vmatpush.msra.mxu0 %v4007
    %4055 = vmatmul.f32.gmra.mxu0 %v4016
    %v4056 = vpop.f32.mrf.mxu0
    %v4057 = vadd.f32 %v4013, %v4056
    %4058 = vmatmul.f32.gmra.mxu0 %v4019
    %v4059 = vpop.f32.mrf.mxu0
    %v4060 = vadd.f32 %v4013, %v4059
    %4061 = vmatmul.f32.gmra.mxu0 %v4022
    %v4062 = vpop.f32.mrf.mxu0
    %v4063 = vadd.f32 %v4013, %v4062
    %4064 = vmatmul.f32.gmra.mxu0 %v4025
    %v4065 = vpop.f32.mrf.mxu0
    %v4066 = vadd.f32 %v4013, %v4065
    %4067 = vmatmul.f32.gmra.mxu0 %v4028
    %v4068 = vpop.f32.mrf.mxu0
    %v4069 = vadd.f32 %v4013, %v4068
    %4070 = vmatmul.f32.gmra.mxu0 %v4031
    %v4071 = vpop.f32.mrf.mxu0
    %v4072 = vadd.f32 %v4013, %v4071
    %4073 = vmatmul.f32.gmra.mxu0 %v4034
    %v4074 = vpop.f32.mrf.mxu0
    %v4075 = vadd.f32 %v4013, %v4074
    %4076 = vmatmul.f32.gmra.mxu0 %v4037
    %v4077 = vpop.f32.mrf.mxu0
    %v4078 = vadd.f32 %v4013, %v4077
    %4079 = vdwg.mxu0
    %v4080 = vld [vmem:[%s17] sm:$0xff]
    %v4081 = vld [vmem:[%s17 + $0x8] sm:$0xff]
    %v4082 = vld [vmem:[%s18] sm:$0x1]
    %vm4083 = vcmask 15360
    %v4085 = vsel %vm4083, %v3924, 0
    %v4088 = vsel %vm4083, %v3984, 0
    %v4091 = vsel %vm4083, %v3987, 0
    %v4094 = vsel %vm4083, %v3990, 0
    %v4097 = vsel %vm4083, %v3993, 0
    %v4100 = vsel %vm4083, %v3996, 0
    %v4103 = vsel %vm4083, %v3999, 0
    %v4106 = vsel %vm4083, %v4002, 0
    %v4109 = vsel %vm4083, %v4005, 0
    %4111 = vmatpush.xpose.msra.mxu0 0.0
    %4112 = vmatpush.xpose.msra.mxu0 0.0
    %4113 = vmatpush.xpose.msra.mxu0 0.0
    %4114 = vmatpush.xpose.msra.mxu0 0.0
    %4115 = vmatpush.xpose.msra.mxu0 0.0
    %4116 = vmatpush.xpose.msra.mxu0 0.0
    %4117 = vmatpush.xpose.msra.mxu0 0.0
    %4118 = vmatpush.xpose.msra.mxu0 0.0
    %4119 = vmatpush.xpose.msra.mxu0 %v4109
    %4120 = vmatpush.xpose.msra.mxu0 %v4106
    %4121 = vmatpush.xpose.msra.mxu0 %v4103
    %4122 = vmatpush.xpose.msra.mxu0 %v4100
    %4123 = vmatpush.xpose.msra.mxu0 %v4097
    %4124 = vmatpush.xpose.msra.mxu0 %v4094
    %4125 = vmatpush.xpose.msra.mxu0 %v4091
    %4126 = vmatpush.xpose.msra.mxu0 %v4088
    %4127 = vmatmul.f32.gmra.mxu0 %v4085
    %v4128 = vpop.f32.mrf.mxu0
    %v4129 = vadd.f32 0.0, %v4128
    %4130 = vdwg.mxu0
    %v4131 = vmul.f32 %v4129, 0.70710677
    %vm4132 = vcmask 519168
    %v4133 = vsel %vm4132, %v4131, -inf
    %4134 = vmax.xlane.f32.xlu0 %v4133
    %v4135 = vpop.xlane.xlu0 %4134
    %v4136 = vsub.f32 %v4131, %v4135
    %v4137 = vmul.f32 %v4136, 1.442695
    %v4138 = vpow.pop %v4137
    %v4139 = vsel %vm4132, %v4138, 0.0
    %4140 = vadd.xlane.f32.xlu0 %v4139
    %v4141 = vpop.xlane.xlu0 %4140
    %v4142 = vrcp.pop %v4141
    %v4143 = vmul.f32 %v4138, %v4142
    %vm4144 = vcmask 523264
    %v4146 = vsel %vm4144, %v4143, 0
    %4148 = vmatpush.msra.mxu0 0.0
    %4149 = vmatpush.msra.mxu0 0.0
    %4150 = vmatpush.msra.mxu0 0.0
    %4151 = vmatpush.msra.mxu0 0.0
    %4152 = vmatpush.msra.mxu0 0.0
    %4153 = vmatpush.msra.mxu0 0.0
    %4154 = vmatpush.msra.mxu0 0.0
    %4155 = vmatpush.msra.mxu0 0.0
    %4156 = vmatpush.msra.mxu0 %v4078
    %4157 = vmatpush.msra.mxu0 %v4075
    %4158 = vmatpush.msra.mxu0 %v4072
    %4159 = vmatpush.msra.mxu0 %v4069
    %4160 = vmatpush.msra.mxu0 %v4066
    %4161 = vmatpush.msra.mxu0 %v4063
    %4162 = vmatpush.msra.mxu0 %v4060
    %4163 = vmatpush.msra.mxu0 %v4057
    %4164 = vmatmul.f32.gmra.mxu0 %v4146
    %v4165 = vpop.f32.mrf.mxu0
    %v4166 = vadd.f32 0.0, %v4165
    %4167 = vdwg.mxu0
    %4168 = vrot.lane.b32.xlu0 %v3924, 126
    %v4169 = vpop.permute.xlu0 %4168
    %4170 = vrot.lane.b32.xlu0 %v3984, 126
    %v4171 = vpop.permute.xlu0 %4170
    %4172 = vrot.lane.b32.xlu0 %v3987, 126
    %v4173 = vpop.permute.xlu0 %4172
    %4174 = vrot.lane.b32.xlu0 %v3990, 126
    %v4175 = vpop.permute.xlu0 %4174
    %4176 = vrot.lane.b32.xlu0 %v3993, 126
    %v4177 = vpop.permute.xlu0 %4176
    %4178 = vrot.lane.b32.xlu0 %v3996, 126
    %v4179 = vpop.permute.xlu0 %4178
    %4180 = vrot.lane.b32.xlu0 %v3999, 126
    %v4181 = vpop.permute.xlu0 %4180
    %4182 = vrot.lane.b32.xlu0 %v4002, 126
    %v4183 = vpop.permute.xlu0 %4182
    %4184 = vrot.lane.b32.xlu0 %v4005, 126
    %v4185 = vpop.permute.xlu0 %4184
    %v4186 = vsel %vm4083, %v4169, 0
    %v4188 = vsel %vm4083, %v4171, 0
    %v4190 = vsel %vm4083, %v4173, 0
    %v4192 = vsel %vm4083, %v4175, 0
    %v4194 = vsel %vm4083, %v4177, 0
    %v4196 = vsel %vm4083, %v4179, 0
    %v4198 = vsel %vm4083, %v4181, 0
    %v4200 = vsel %vm4083, %v4183, 0
    %v4202 = vsel %vm4083, %v4185, 0
    %4204 = vmatpush.xpose.msra.mxu0 0.0
    %4205 = vmatpush.xpose.msra.mxu0 0.0
    %4206 = vmatpush.xpose.msra.mxu0 0.0
    %4207 = vmatpush.xpose.msra.mxu0 0.0
    %4208 = vmatpush.xpose.msra.mxu0 0.0
    %4209 = vmatpush.xpose.msra.mxu0 0.0
    %4210 = vmatpush.xpose.msra.mxu0 0.0
    %4211 = vmatpush.xpose.msra.mxu0 0.0
    %4212 = vmatpush.xpose.msra.mxu0 %v4202
    %4213 = vmatpush.xpose.msra.mxu0 %v4200
    %4214 = vmatpush.xpose.msra.mxu0 %v4198
    %4215 = vmatpush.xpose.msra.mxu0 %v4196
    %4216 = vmatpush.xpose.msra.mxu0 %v4194
    %4217 = vmatpush.xpose.msra.mxu0 %v4192
    %4218 = vmatpush.xpose.msra.mxu0 %v4190
    %4219 = vmatpush.xpose.msra.mxu0 %v4188
    %4220 = vmatmul.f32.gmra.mxu0 %v4186
    %v4221 = vpop.f32.mrf.mxu0
    %v4222 = vadd.f32 0.0, %v4221
    %4223 = vdwg.mxu0
    %v4224 = vmul.f32 %v4222, 0.70710677
    %v4225 = vsel %vm4132, %v4224, -inf
    %4226 = vmax.xlane.f32.xlu0 %v4225
    %v4227 = vpop.xlane.xlu0 %4226
    %v4228 = vsub.f32 %v4224, %v4227
    %v4229 = vmul.f32 %v4228, 1.442695
    %v4230 = vpow.pop %v4229
    %v4231 = vsel %vm4132, %v4230, 0.0
    %4232 = vadd.xlane.f32.xlu0 %v4231
    %v4233 = vpop.xlane.xlu0 %4232
    %v4234 = vrcp.pop %v4233
    %v4235 = vmul.f32 %v4230, %v4234
    %4244 = vrot.lane.b32.xlu0 %v4057, 126
    %v4245 = vpop.permute.xlu0 %4244
    %4246 = vrot.lane.b32.xlu0 %v4060, 126
    %v4247 = vpop.permute.xlu0 %4246
    %4248 = vrot.lane.b32.xlu0 %v4063, 126
    %v4249 = vpop.permute.xlu0 %4248
    %4250 = vrot.lane.b32.xlu0 %v4066, 126
    %v4251 = vpop.permute.xlu0 %4250
    %4252 = vrot.lane.b32.xlu0 %v4069, 126
    %v4253 = vpop.permute.xlu0 %4252
    %4254 = vrot.lane.b32.xlu0 %v4072, 126
    %v4255 = vpop.permute.xlu0 %4254
    %4256 = vrot.lane.b32.xlu0 %v4075, 126
    %v4257 = vpop.permute.xlu0 %4256
    %4258 = vrot.lane.b32.xlu0 %v4078, 126
    %v4259 = vpop.permute.xlu0 %4258
    %v4269 = vsel %vm4144, %v4235, 0
    %4271 = vmatpush.msra.mxu0 0.0
    %4272 = vmatpush.msra.mxu0 0.0
    %4273 = vmatpush.msra.mxu0 0.0
    %4274 = vmatpush.msra.mxu0 0.0
    %4275 = vmatpush.msra.mxu0 0.0
    %4276 = vmatpush.msra.mxu0 0.0
    %4277 = vmatpush.msra.mxu0 0.0
    %4278 = vmatpush.msra.mxu0 0.0
    %4279 = vmatpush.msra.mxu0 %v4259
    %4280 = vmatpush.msra.mxu0 %v4257
    %4281 = vmatpush.msra.mxu0 %v4255
    %4282 = vmatpush.msra.mxu0 %v4253
    %4283 = vmatpush.msra.mxu0 %v4251
    %4284 = vmatpush.msra.mxu0 %v4249
    %4285 = vmatpush.msra.mxu0 %v4247
    %4286 = vmatpush.msra.mxu0 %v4245
    %4287 = vmatmul.f32.gmra.mxu0 %v4269
    %v4288 = vpop.f32.mrf.mxu0
    %v4289 = vadd.f32 0.0, %v4288
    %4290 = vdwg.mxu0
    %v4292 = vrot.slane %v4080, 2
    %v4294 = vsel %vm4083, %v4289, 0
    %vm4296 = vcmask 1041408
    %v4297 = vsel %vm4296, %v4292, 0
    %4299 = vmatpush.msra.mxu0 0.0
    %4300 = vmatpush.msra.mxu0 0.0
    %4301 = vmatpush.msra.mxu0 0.0
    %4302 = vmatpush.msra.mxu0 0.0
    %4303 = vmatpush.msra.mxu0 0.0
    %4304 = vmatpush.msra.mxu0 0.0
    %4305 = vmatpush.msra.mxu0 0.0
    %4306 = vmatpush.msra.mxu0 0.0
    %4307 = vmatpush.msra.mxu0 0.0
    %4308 = vmatpush.msra.mxu0 0.0
    %4309 = vmatpush.msra.mxu0 0.0
    %4310 = vmatpush.msra.mxu0 0.0
    %4311 = vmatpush.msra.mxu0 0.0
    %4312 = vmatpush.msra.mxu0 0.0
    %4313 = vmatpush.msra.mxu0 0.0
    %4314 = vmatpush.msra.mxu0 %v4297
    %4315 = vmatmul.f32.gmra.mxu0 %v4294
    %v4316 = vpop.f32.mrf.mxu0
    %v4317 = vadd.f32 0.0, %v4316
    %4318 = vdwg.mxu0
    %v4320 = vsel %vm4083, %v4166, 0
    %v4322 = vsel %vm4296, %v4080, 0
    %4324 = vmatpush.msra.mxu0 0.0
    %4325 = vmatpush.msra.mxu0 0.0
    %4326 = vmatpush.msra.mxu0 0.0
    %4327 = vmatpush.msra.mxu0 0.0
    %4328 = vmatpush.msra.mxu0 0.0
    %4329 = vmatpush.msra.mxu0 0.0
    %4330 = vmatpush.msra.mxu0 0.0
    %4331 = vmatpush.msra.mxu0 0.0
    %4332 = vmatpush.msra.mxu0 0.0
    %4333 = vmatpush.msra.mxu0 0.0
    %4334 = vmatpush.msra.mxu0 0.0
    %4335 = vmatpush.msra.mxu0 0.0
    %4336 = vmatpush.msra.mxu0 0.0
    %4337 = vmatpush.msra.mxu0 0.0
    %4338 = vmatpush.msra.mxu0 0.0
    %4339 = vmatpush.msra.mxu0 %v4322
    %4340 = vmatmul.f32.gmra.mxu0 %v4320
    %v4341 = vpop.f32.mrf.mxu0
    %v4342 = vadd.f32 %v4317, %v4341
    %4343 = vdwg.mxu0
    %4344 = vrot.lane.b32.xlu0 %v3924, 124
    %v4345 = vpop.permute.xlu0 %4344
    %4346 = vrot.lane.b32.xlu0 %v3984, 124
    %v4347 = vpop.permute.xlu0 %4346
    %4348 = vrot.lane.b32.xlu0 %v3987, 124
    %v4349 = vpop.permute.xlu0 %4348
    %4350 = vrot.lane.b32.xlu0 %v3990, 124
    %v4351 = vpop.permute.xlu0 %4350
    %4352 = vrot.lane.b32.xlu0 %v3993, 124
    %v4353 = vpop.permute.xlu0 %4352
    %4354 = vrot.lane.b32.xlu0 %v3996, 124
    %v4355 = vpop.permute.xlu0 %4354
    %4356 = vrot.lane.b32.xlu0 %v3999, 124
    %v4357 = vpop.permute.xlu0 %4356
    %4358 = vrot.lane.b32.xlu0 %v4002, 124
    %v4359 = vpop.permute.xlu0 %4358
    %4360 = vrot.lane.b32.xlu0 %v4005, 124
    %v4361 = vpop.permute.xlu0 %4360
    %v4362 = vsel %vm4083, %v4345, 0
    %v4364 = vsel %vm4083, %v4347, 0
    %v4366 = vsel %vm4083, %v4349, 0
    %v4368 = vsel %vm4083, %v4351, 0
    %v4370 = vsel %vm4083, %v4353, 0
    %v4372 = vsel %vm4083, %v4355, 0
    %v4374 = vsel %vm4083, %v4357, 0
    %v4376 = vsel %vm4083, %v4359, 0
    %v4378 = vsel %vm4083, %v4361, 0
    %4380 = vmatpush.xpose.msra.mxu0 0.0
    %4381 = vmatpush.xpose.msra.mxu0 0.0
    %4382 = vmatpush.xpose.msra.mxu0 0.0
    %4383 = vmatpush.xpose.msra.mxu0 0.0
    %4384 = vmatpush.xpose.msra.mxu0 0.0
    %4385 = vmatpush.xpose.msra.mxu0 0.0
    %4386 = vmatpush.xpose.msra.mxu0 0.0
    %4387 = vmatpush.xpose.msra.mxu0 0.0
    %4388 = vmatpush.xpose.msra.mxu0 %v4378
    %4389 = vmatpush.xpose.msra.mxu0 %v4376
    %4390 = vmatpush.xpose.msra.mxu0 %v4374
    %4391 = vmatpush.xpose.msra.mxu0 %v4372
    %4392 = vmatpush.xpose.msra.mxu0 %v4370
    %4393 = vmatpush.xpose.msra.mxu0 %v4368
    %4394 = vmatpush.xpose.msra.mxu0 %v4366
    %4395 = vmatpush.xpose.msra.mxu0 %v4364
    %4396 = vmatmul.f32.gmra.mxu0 %v4362
    %v4397 = vpop.f32.mrf.mxu0
    %v4398 = vadd.f32 0.0, %v4397
    %4399 = vdwg.mxu0
    %v4400 = vmul.f32 %v4398, 0.70710677
    %v4401 = vsel %vm4132, %v4400, -inf
    %4402 = vmax.xlane.f32.xlu0 %v4401
    %v4403 = vpop.xlane.xlu0 %4402
    %v4404 = vsub.f32 %v4400, %v4403
    %v4405 = vmul.f32 %v4404, 1.442695
    %v4406 = vpow.pop %v4405
    %v4407 = vsel %vm4132, %v4406, 0.0
    %4408 = vadd.xlane.f32.xlu0 %v4407
    %v4409 = vpop.xlane.xlu0 %4408
    %v4410 = vrcp.pop %v4409
    %v4411 = vmul.f32 %v4406, %v4410
    %4412 = vrot.lane.b32.xlu0 %v4057, 124
    %v4413 = vpop.permute.xlu0 %4412
    %4414 = vrot.lane.b32.xlu0 %v4060, 124
    %v4415 = vpop.permute.xlu0 %4414
    %4416 = vrot.lane.b32.xlu0 %v4063, 124
    %v4417 = vpop.permute.xlu0 %4416
    %4418 = vrot.lane.b32.xlu0 %v4066, 124
    %v4419 = vpop.permute.xlu0 %4418
    %4420 = vrot.lane.b32.xlu0 %v4069, 124
    %v4421 = vpop.permute.xlu0 %4420
    %4422 = vrot.lane.b32.xlu0 %v4072, 124
    %v4423 = vpop.permute.xlu0 %4422
    %4424 = vrot.lane.b32.xlu0 %v4075, 124
    %v4425 = vpop.permute.xlu0 %4424
    %4426 = vrot.lane.b32.xlu0 %v4078, 124
    %v4427 = vpop.permute.xlu0 %4426
    %v4437 = vsel %vm4144, %v4411, 0
    %4439 = vmatpush.msra.mxu0 0.0
    %4440 = vmatpush.msra.mxu0 0.0
    %4441 = vmatpush.msra.mxu0 0.0
    %4442 = vmatpush.msra.mxu0 0.0
    %4443 = vmatpush.msra.mxu0 0.0
    %4444 = vmatpush.msra.mxu0 0.0
    %4445 = vmatpush.msra.mxu0 0.0
    %4446 = vmatpush.msra.mxu0 0.0
    %4447 = vmatpush.msra.mxu0 %v4427
    %4448 = vmatpush.msra.mxu0 %v4425
    %4449 = vmatpush.msra.mxu0 %v4423
    %4450 = vmatpush.msra.mxu0 %v4421
    %4451 = vmatpush.msra.mxu0 %v4419
    %4452 = vmatpush.msra.mxu0 %v4417
    %4453 = vmatpush.msra.mxu0 %v4415
    %4454 = vmatpush.msra.mxu0 %v4413
    %4455 = vmatmul.f32.gmra.mxu0 %v4437
    %v4456 = vpop.f32.mrf.mxu0
    %v4457 = vadd.f32 0.0, %v4456
    %4458 = vdwg.mxu0
    %v4459 = vrot.slane %v4080, 4
    %v4461 = vsel %vm4083, %v4457, 0
    %v4463 = vsel %vm4296, %v4459, 0
    %4465 = vmatpush.msra.mxu0 0.0
    %4466 = vmatpush.msra.mxu0 0.0
    %4467 = vmatpush.msra.mxu0 0.0
    %4468 = vmatpush.msra.mxu0 0.0
    %4469 = vmatpush.msra.mxu0 0.0
    %4470 = vmatpush.msra.mxu0 0.0
    %4471 = vmatpush.msra.mxu0 0.0
    %4472 = vmatpush.msra.mxu0 0.0
    %4473 = vmatpush.msra.mxu0 0.0
    %4474 = vmatpush.msra.mxu0 0.0
    %4475 = vmatpush.msra.mxu0 0.0
    %4476 = vmatpush.msra.mxu0 0.0
    %4477 = vmatpush.msra.mxu0 0.0
    %4478 = vmatpush.msra.mxu0 0.0
    %4479 = vmatpush.msra.mxu0 0.0
    %4480 = vmatpush.msra.mxu0 %v4463
    %4481 = vmatmul.f32.gmra.mxu0 %v4461
    %v4482 = vpop.f32.mrf.mxu0
    %v4483 = vadd.f32 0.0, %v4482
    %4484 = vdwg.mxu0
    %v4485 = vadd.f32 %v4342, %v4483
    %4486 = vrot.lane.b32.xlu0 %v3924, 122
    %v4487 = vpop.permute.xlu0 %4486
    %4488 = vrot.lane.b32.xlu0 %v3984, 122
    %v4489 = vpop.permute.xlu0 %4488
    %4490 = vrot.lane.b32.xlu0 %v3987, 122
    %v4491 = vpop.permute.xlu0 %4490
    %4492 = vrot.lane.b32.xlu0 %v3990, 122
    %v4493 = vpop.permute.xlu0 %4492
    %4494 = vrot.lane.b32.xlu0 %v3993, 122
    %v4495 = vpop.permute.xlu0 %4494
    %4496 = vrot.lane.b32.xlu0 %v3996, 122
    %v4497 = vpop.permute.xlu0 %4496
    %4498 = vrot.lane.b32.xlu0 %v3999, 122
    %v4499 = vpop.permute.xlu0 %4498
    %4500 = vrot.lane.b32.xlu0 %v4002, 122
    %v4501 = vpop.permute.xlu0 %4500
    %4502 = vrot.lane.b32.xlu0 %v4005, 122
    %v4503 = vpop.permute.xlu0 %4502
    %v4504 = vsel %vm4083, %v4487, 0
    %v4506 = vsel %vm4083, %v4489, 0
    %v4508 = vsel %vm4083, %v4491, 0
    %v4510 = vsel %vm4083, %v4493, 0
    %v4512 = vsel %vm4083, %v4495, 0
    %v4514 = vsel %vm4083, %v4497, 0
    %v4516 = vsel %vm4083, %v4499, 0
    %v4518 = vsel %vm4083, %v4501, 0
    %v4520 = vsel %vm4083, %v4503, 0
    %4522 = vmatpush.xpose.msra.mxu0 0.0
    %4523 = vmatpush.xpose.msra.mxu0 0.0
    %4524 = vmatpush.xpose.msra.mxu0 0.0
    %4525 = vmatpush.xpose.msra.mxu0 0.0
    %4526 = vmatpush.xpose.msra.mxu0 0.0
    %4527 = vmatpush.xpose.msra.mxu0 0.0
    %4528 = vmatpush.xpose.msra.mxu0 0.0
    %4529 = vmatpush.xpose.msra.mxu0 0.0
    %4530 = vmatpush.xpose.msra.mxu0 %v4520
    %4531 = vmatpush.xpose.msra.mxu0 %v4518
    %4532 = vmatpush.xpose.msra.mxu0 %v4516
    %4533 = vmatpush.xpose.msra.mxu0 %v4514
    %4534 = vmatpush.xpose.msra.mxu0 %v4512
    %4535 = vmatpush.xpose.msra.mxu0 %v4510
    %4536 = vmatpush.xpose.msra.mxu0 %v4508
    %4537 = vmatpush.xpose.msra.mxu0 %v4506
    %4538 = vmatmul.f32.gmra.mxu0 %v4504
    %v4539 = vpop.f32.mrf.mxu0
    %v4540 = vadd.f32 0.0, %v4539
    %4541 = vdwg.mxu0
    %v4542 = vmul.f32 %v4540, 0.70710677
    %v4543 = vsel %vm4132, %v4542, -inf
    %4544 = vmax.xlane.f32.xlu0 %v4543
    %v4545 = vpop.xlane.xlu0 %4544
    %v4546 = vsub.f32 %v4542, %v4545
    %v4547 = vmul.f32 %v4546, 1.442695
    %v4548 = vpow.pop %v4547
    %v4549 = vsel %vm4132, %v4548, 0.0
    %4550 = vadd.xlane.f32.xlu0 %v4549
    %v4551 = vpop.xlane.xlu0 %4550
    %v4552 = vrcp.pop %v4551
    %v4553 = vmul.f32 %v4548, %v4552
    %4554 = vrot.lane.b32.xlu0 %v4057, 122
    %v4555 = vpop.permute.xlu0 %4554
    %4556 = vrot.lane.b32.xlu0 %v4060, 122
    %v4557 = vpop.permute.xlu0 %4556
    %4558 = vrot.lane.b32.xlu0 %v4063, 122
    %v4559 = vpop.permute.xlu0 %4558
    %4560 = vrot.lane.b32.xlu0 %v4066, 122
    %v4561 = vpop.permute.xlu0 %4560
    %4562 = vrot.lane.b32.xlu0 %v4069, 122
    %v4563 = vpop.permute.xlu0 %4562
    %4564 = vrot.lane.b32.xlu0 %v4072, 122
    %v4565 = vpop.permute.xlu0 %4564
    %4566 = vrot.lane.b32.xlu0 %v4075, 122
    %v4567 = vpop.permute.xlu0 %4566
    %4568 = vrot.lane.b32.xlu0 %v4078, 122
    %v4569 = vpop.permute.xlu0 %4568
    %v4579 = vsel %vm4144, %v4553, 0
    %4581 = vmatpush.msra.mxu0 0.0
    %4582 = vmatpush.msra.mxu0 0.0
    %4583 = vmatpush.msra.mxu0 0.0
    %4584 = vmatpush.msra.mxu0 0.0
    %4585 = vmatpush.msra.mxu0 0.0
    %4586 = vmatpush.msra.mxu0 0.0
    %4587 = vmatpush.msra.mxu0 0.0
    %4588 = vmatpush.msra.mxu0 0.0
    %4589 = vmatpush.msra.mxu0 %v4569
    %4590 = vmatpush.msra.mxu0 %v4567
    %4591 = vmatpush.msra.mxu0 %v4565
    %4592 = vmatpush.msra.mxu0 %v4563
    %4593 = vmatpush.msra.mxu0 %v4561
    %4594 = vmatpush.msra.mxu0 %v4559
    %4595 = vmatpush.msra.mxu0 %v4557
    %4596 = vmatpush.msra.mxu0 %v4555
    %4597 = vmatmul.f32.gmra.mxu0 %v4579
    %v4598 = vpop.f32.mrf.mxu0
    %v4599 = vadd.f32 0.0, %v4598
    %4600 = vdwg.mxu0
    %v4601 = vrot.slane %v4080, 6
    %v4603 = vsel %vm4083, %v4599, 0
    %v4605 = vsel %vm4296, %v4601, 0
    %4607 = vmatpush.msra.mxu0 0.0
    %4608 = vmatpush.msra.mxu0 0.0
    %4609 = vmatpush.msra.mxu0 0.0
    %4610 = vmatpush.msra.mxu0 0.0
    %4611 = vmatpush.msra.mxu0 0.0
    %4612 = vmatpush.msra.mxu0 0.0
    %4613 = vmatpush.msra.mxu0 0.0
    %4614 = vmatpush.msra.mxu0 0.0
    %4615 = vmatpush.msra.mxu0 0.0
    %4616 = vmatpush.msra.mxu0 0.0
    %4617 = vmatpush.msra.mxu0 0.0
    %4618 = vmatpush.msra.mxu0 0.0
    %4619 = vmatpush.msra.mxu0 0.0
    %4620 = vmatpush.msra.mxu0 0.0
    %4621 = vmatpush.msra.mxu0 0.0
    %4622 = vmatpush.msra.mxu0 %v4605
    %4623 = vmatmul.f32.gmra.mxu0 %v4603
    %v4624 = vpop.f32.mrf.mxu0
    %v4625 = vadd.f32 0.0, %v4624
    %4626 = vdwg.mxu0
    %v4627 = vadd.f32 %v4485, %v4625
    %4628 = vrot.lane.b32.xlu0 %v3924, 120
    %v4629 = vpop.permute.xlu0 %4628
    %4630 = vrot.lane.b32.xlu0 %v3984, 120
    %v4631 = vpop.permute.xlu0 %4630
    %4632 = vrot.lane.b32.xlu0 %v3987, 120
    %v4633 = vpop.permute.xlu0 %4632
    %4634 = vrot.lane.b32.xlu0 %v3990, 120
    %v4635 = vpop.permute.xlu0 %4634
    %4636 = vrot.lane.b32.xlu0 %v3993, 120
    %v4637 = vpop.permute.xlu0 %4636
    %4638 = vrot.lane.b32.xlu0 %v3996, 120
    %v4639 = vpop.permute.xlu0 %4638
    %4640 = vrot.lane.b32.xlu0 %v3999, 120
    %v4641 = vpop.permute.xlu0 %4640
    %4642 = vrot.lane.b32.xlu0 %v4002, 120
    %v4643 = vpop.permute.xlu0 %4642
    %4644 = vrot.lane.b32.xlu0 %v4005, 120
    %v4645 = vpop.permute.xlu0 %4644
    %v4646 = vsel %vm4083, %v4629, 0
    %v4648 = vsel %vm4083, %v4631, 0
    %v4650 = vsel %vm4083, %v4633, 0
    %v4652 = vsel %vm4083, %v4635, 0
    %v4654 = vsel %vm4083, %v4637, 0
    %v4656 = vsel %vm4083, %v4639, 0
    %v4658 = vsel %vm4083, %v4641, 0
    %v4660 = vsel %vm4083, %v4643, 0
    %v4662 = vsel %vm4083, %v4645, 0
    %4664 = vmatpush.xpose.msra.mxu0 0.0
    %4665 = vmatpush.xpose.msra.mxu0 0.0
    %4666 = vmatpush.xpose.msra.mxu0 0.0
    %4667 = vmatpush.xpose.msra.mxu0 0.0
    %4668 = vmatpush.xpose.msra.mxu0 0.0
    %4669 = vmatpush.xpose.msra.mxu0 0.0
    %4670 = vmatpush.xpose.msra.mxu0 0.0
    %4671 = vmatpush.xpose.msra.mxu0 0.0
    %4672 = vmatpush.xpose.msra.mxu0 %v4662
    %4673 = vmatpush.xpose.msra.mxu0 %v4660
    %4674 = vmatpush.xpose.msra.mxu0 %v4658
    %4675 = vmatpush.xpose.msra.mxu0 %v4656
    %4676 = vmatpush.xpose.msra.mxu0 %v4654
    %4677 = vmatpush.xpose.msra.mxu0 %v4652
    %4678 = vmatpush.xpose.msra.mxu0 %v4650
    %4679 = vmatpush.xpose.msra.mxu0 %v4648
    %4680 = vmatmul.f32.gmra.mxu0 %v4646
    %v4681 = vpop.f32.mrf.mxu0
    %v4682 = vadd.f32 0.0, %v4681
    %4683 = vdwg.mxu0
    %v4684 = vmul.f32 %v4682, 0.70710677
    %v4685 = vsel %vm4132, %v4684, -inf
    %4686 = vmax.xlane.f32.xlu0 %v4685
    %v4687 = vpop.xlane.xlu0 %4686
    %v4688 = vsub.f32 %v4684, %v4687
    %v4689 = vmul.f32 %v4688, 1.442695
    %v4690 = vpow.pop %v4689
    %v4691 = vsel %vm4132, %v4690, 0.0
    %4692 = vadd.xlane.f32.xlu0 %v4691
    %v4693 = vpop.xlane.xlu0 %4692
    %v4694 = vrcp.pop %v4693
    %v4695 = vmul.f32 %v4690, %v4694
    %4696 = vrot.lane.b32.xlu0 %v4057, 120
    %v4697 = vpop.permute.xlu0 %4696
    %4698 = vrot.lane.b32.xlu0 %v4060, 120
    %v4699 = vpop.permute.xlu0 %4698
    %4700 = vrot.lane.b32.xlu0 %v4063, 120
    %v4701 = vpop.permute.xlu0 %4700
    %4702 = vrot.lane.b32.xlu0 %v4066, 120
    %v4703 = vpop.permute.xlu0 %4702
    %4704 = vrot.lane.b32.xlu0 %v4069, 120
    %v4705 = vpop.permute.xlu0 %4704
    %4706 = vrot.lane.b32.xlu0 %v4072, 120
    %v4707 = vpop.permute.xlu0 %4706
    %4708 = vrot.lane.b32.xlu0 %v4075, 120
    %v4709 = vpop.permute.xlu0 %4708
    %4710 = vrot.lane.b32.xlu0 %v4078, 120
    %v4711 = vpop.permute.xlu0 %4710
    %v4721 = vsel %vm4144, %v4695, 0
    %4723 = vmatpush.msra.mxu0 0.0
    %4724 = vmatpush.msra.mxu0 0.0
    %4725 = vmatpush.msra.mxu0 0.0
    %4726 = vmatpush.msra.mxu0 0.0
    %4727 = vmatpush.msra.mxu0 0.0
    %4728 = vmatpush.msra.mxu0 0.0
    %4729 = vmatpush.msra.mxu0 0.0
    %4730 = vmatpush.msra.mxu0 0.0
    %4731 = vmatpush.msra.mxu0 %v4711
    %4732 = vmatpush.msra.mxu0 %v4709
    %4733 = vmatpush.msra.mxu0 %v4707
    %4734 = vmatpush.msra.mxu0 %v4705
    %4735 = vmatpush.msra.mxu0 %v4703
    %4736 = vmatpush.msra.mxu0 %v4701
    %4737 = vmatpush.msra.mxu0 %v4699
    %4738 = vmatpush.msra.mxu0 %v4697
    %4739 = vmatmul.f32.gmra.mxu0 %v4721
    %v4740 = vpop.f32.mrf.mxu0
    %v4741 = vadd.f32 0.0, %v4740
    %4742 = vdwg.mxu0
    %v4744 = vsel %vm4083, %v4741, 0
    %v4747 = vsel %vm4296, %v4081, 0
    %4749 = vmatpush.msra.mxu0 0.0
    %4750 = vmatpush.msra.mxu0 0.0
    %4751 = vmatpush.msra.mxu0 0.0
    %4752 = vmatpush.msra.mxu0 0.0
    %4753 = vmatpush.msra.mxu0 0.0
    %4754 = vmatpush.msra.mxu0 0.0
    %4755 = vmatpush.msra.mxu0 0.0
    %4756 = vmatpush.msra.mxu0 0.0
    %4757 = vmatpush.msra.mxu0 0.0
    %4758 = vmatpush.msra.mxu0 0.0
    %4759 = vmatpush.msra.mxu0 0.0
    %4760 = vmatpush.msra.mxu0 0.0
    %4761 = vmatpush.msra.mxu0 0.0
    %4762 = vmatpush.msra.mxu0 0.0
    %4763 = vmatpush.msra.mxu0 0.0
    %4764 = vmatpush.msra.mxu0 %v4747
    %4765 = vmatmul.f32.gmra.mxu0 %v4744
    %v4766 = vpop.f32.mrf.mxu0
    %v4767 = vadd.f32 0.0, %v4766
    %4768 = vdwg.mxu0
    %v4769 = vadd.f32 %v4627, %v4767
    %4770 = vrot.lane.b32.xlu0 %v3924, 118
    %v4771 = vpop.permute.xlu0 %4770
    %4772 = vrot.lane.b32.xlu0 %v3984, 118
    %v4773 = vpop.permute.xlu0 %4772
    %4774 = vrot.lane.b32.xlu0 %v3987, 118
    %v4775 = vpop.permute.xlu0 %4774
    %4776 = vrot.lane.b32.xlu0 %v3990, 118
    %v4777 = vpop.permute.xlu0 %4776
    %4778 = vrot.lane.b32.xlu0 %v3993, 118
    %v4779 = vpop.permute.xlu0 %4778
    %4780 = vrot.lane.b32.xlu0 %v3996, 118
    %v4781 = vpop.permute.xlu0 %4780
    %4782 = vrot.lane.b32.xlu0 %v3999, 118
    %v4783 = vpop.permute.xlu0 %4782
    %4784 = vrot.lane.b32.xlu0 %v4002, 118
    %v4785 = vpop.permute.xlu0 %4784
    %4786 = vrot.lane.b32.xlu0 %v4005, 118
    %v4787 = vpop.permute.xlu0 %4786
    %v4788 = vsel %vm4083, %v4771, 0
    %v4790 = vsel %vm4083, %v4773, 0
    %v4792 = vsel %vm4083, %v4775, 0
    %v4794 = vsel %vm4083, %v4777, 0
    %v4796 = vsel %vm4083, %v4779, 0
    %v4798 = vsel %vm4083, %v4781, 0
    %v4800 = vsel %vm4083, %v4783, 0
    %v4802 = vsel %vm4083, %v4785, 0
    %v4804 = vsel %vm4083, %v4787, 0
    %4806 = vmatpush.xpose.msra.mxu0 0.0
    %4807 = vmatpush.xpose.msra.mxu0 0.0
    %4808 = vmatpush.xpose.msra.mxu0 0.0
    %4809 = vmatpush.xpose.msra.mxu0 0.0
    %4810 = vmatpush.xpose.msra.mxu0 0.0
    %4811 = vmatpush.xpose.msra.mxu0 0.0
    %4812 = vmatpush.xpose.msra.mxu0 0.0
    %4813 = vmatpush.xpose.msra.mxu0 0.0
    %4814 = vmatpush.xpose.msra.mxu0 %v4804
    %4815 = vmatpush.xpose.msra.mxu0 %v4802
    %4816 = vmatpush.xpose.msra.mxu0 %v4800
    %4817 = vmatpush.xpose.msra.mxu0 %v4798
    %4818 = vmatpush.xpose.msra.mxu0 %v4796
    %4819 = vmatpush.xpose.msra.mxu0 %v4794
    %4820 = vmatpush.xpose.msra.mxu0 %v4792
    %4821 = vmatpush.xpose.msra.mxu0 %v4790
    %4822 = vmatmul.f32.gmra.mxu0 %v4788
    %v4823 = vpop.f32.mrf.mxu0
    %v4824 = vadd.f32 0.0, %v4823
    %4825 = vdwg.mxu0
    %v4826 = vmul.f32 %v4824, 0.70710677
    %v4827 = vsel %vm4132, %v4826, -inf
    %4828 = vmax.xlane.f32.xlu0 %v4827
    %v4829 = vpop.xlane.xlu0 %4828
    %v4830 = vsub.f32 %v4826, %v4829
    %v4831 = vmul.f32 %v4830, 1.442695
    %v4832 = vpow.pop %v4831
    %v4833 = vsel %vm4132, %v4832, 0.0
    %4834 = vadd.xlane.f32.xlu0 %v4833
    %v4835 = vpop.xlane.xlu0 %4834
    %v4836 = vrcp.pop %v4835
    %v4837 = vmul.f32 %v4832, %v4836
    %4838 = vrot.lane.b32.xlu0 %v4057, 118
    %v4839 = vpop.permute.xlu0 %4838
    %4840 = vrot.lane.b32.xlu0 %v4060, 118
    %v4841 = vpop.permute.xlu0 %4840
    %4842 = vrot.lane.b32.xlu0 %v4063, 118
    %v4843 = vpop.permute.xlu0 %4842
    %4844 = vrot.lane.b32.xlu0 %v4066, 118
    %v4845 = vpop.permute.xlu0 %4844
    %4846 = vrot.lane.b32.xlu0 %v4069, 118
    %v4847 = vpop.permute.xlu0 %4846
    %4848 = vrot.lane.b32.xlu0 %v4072, 118
    %v4849 = vpop.permute.xlu0 %4848
    %4850 = vrot.lane.b32.xlu0 %v4075, 118
    %v4851 = vpop.permute.xlu0 %4850
    %4852 = vrot.lane.b32.xlu0 %v4078, 118
    %v4853 = vpop.permute.xlu0 %4852
    %v4863 = vsel %vm4144, %v4837, 0
    %4865 = vmatpush.msra.mxu0 0.0
    %4866 = vmatpush.msra.mxu0 0.0
    %4867 = vmatpush.msra.mxu0 0.0
    %4868 = vmatpush.msra.mxu0 0.0
    %4869 = vmatpush.msra.mxu0 0.0
    %4870 = vmatpush.msra.mxu0 0.0
    %4871 = vmatpush.msra.mxu0 0.0
    %4872 = vmatpush.msra.mxu0 0.0
    %4873 = vmatpush.msra.mxu0 %v4853
    %4874 = vmatpush.msra.mxu0 %v4851
    %4875 = vmatpush.msra.mxu0 %v4849
    %4876 = vmatpush.msra.mxu0 %v4847
    %4877 = vmatpush.msra.mxu0 %v4845
    %4878 = vmatpush.msra.mxu0 %v4843
    %4879 = vmatpush.msra.mxu0 %v4841
    %4880 = vmatpush.msra.mxu0 %v4839
    %4881 = vmatmul.f32.gmra.mxu0 %v4863
    %v4882 = vpop.f32.mrf.mxu0
    %v4883 = vadd.f32 0.0, %v4882
    %4884 = vdwg.mxu0
    %v4885 = vrot.slane %v4081, 2
    %v4887 = vsel %vm4083, %v4883, 0
    %v4889 = vsel %vm4296, %v4885, 0
    %4891 = vmatpush.msra.mxu0 0.0
    %4892 = vmatpush.msra.mxu0 0.0
    %4893 = vmatpush.msra.mxu0 0.0
    %4894 = vmatpush.msra.mxu0 0.0
    %4895 = vmatpush.msra.mxu0 0.0
    %4896 = vmatpush.msra.mxu0 0.0
    %4897 = vmatpush.msra.mxu0 0.0
    %4898 = vmatpush.msra.mxu0 0.0
    %4899 = vmatpush.msra.mxu0 0.0
    %4900 = vmatpush.msra.mxu0 0.0
    %4901 = vmatpush.msra.mxu0 0.0
    %4902 = vmatpush.msra.mxu0 0.0
    %4903 = vmatpush.msra.mxu0 0.0
    %4904 = vmatpush.msra.mxu0 0.0
    %4905 = vmatpush.msra.mxu0 0.0
    %4906 = vmatpush.msra.mxu0 %v4889
    %4907 = vmatmul.f32.gmra.mxu0 %v4887
    %v4908 = vpop.f32.mrf.mxu0
    %v4909 = vadd.f32 0.0, %v4908
    %4910 = vdwg.mxu0
    %v4911 = vadd.f32 %v4769, %v4909
    %4912 = vrot.lane.b32.xlu0 %v3924, 116
    %v4913 = vpop.permute.xlu0 %4912
    %4914 = vrot.lane.b32.xlu0 %v3984, 116
    %v4915 = vpop.permute.xlu0 %4914
    %4916 = vrot.lane.b32.xlu0 %v3987, 116
    %v4917 = vpop.permute.xlu0 %4916
    %4918 = vrot.lane.b32.xlu0 %v3990, 116
    %v4919 = vpop.permute.xlu0 %4918
    %4920 = vrot.lane.b32.xlu0 %v3993, 116
    %v4921 = vpop.permute.xlu0 %4920
    %4922 = vrot.lane.b32.xlu0 %v3996, 116
    %v4923 = vpop.permute.xlu0 %4922
    %4924 = vrot.lane.b32.xlu0 %v3999, 116
    %v4925 = vpop.permute.xlu0 %4924
    %4926 = vrot.lane.b32.xlu0 %v4002, 116
    %v4927 = vpop.permute.xlu0 %4926
    %4928 = vrot.lane.b32.xlu0 %v4005, 116
    %v4929 = vpop.permute.xlu0 %4928
    %v4930 = vsel %vm4083, %v4913, 0
    %v4932 = vsel %vm4083, %v4915, 0
    %v4934 = vsel %vm4083, %v4917, 0
    %v4936 = vsel %vm4083, %v4919, 0
    %v4938 = vsel %vm4083, %v4921, 0
    %v4940 = vsel %vm4083, %v4923, 0
    %v4942 = vsel %vm4083, %v4925, 0
    %v4944 = vsel %vm4083, %v4927, 0
    %v4946 = vsel %vm4083, %v4929, 0
    %4948 = vmatpush.xpose.msra.mxu0 0.0
    %4949 = vmatpush.xpose.msra.mxu0 0.0
    %4950 = vmatpush.xpose.msra.mxu0 0.0
    %4951 = vmatpush.xpose.msra.mxu0 0.0
    %4952 = vmatpush.xpose.msra.mxu0 0.0
    %4953 = vmatpush.xpose.msra.mxu0 0.0
    %4954 = vmatpush.xpose.msra.mxu0 0.0
    %4955 = vmatpush.xpose.msra.mxu0 0.0
    %4956 = vmatpush.xpose.msra.mxu0 %v4946
    %4957 = vmatpush.xpose.msra.mxu0 %v4944
    %4958 = vmatpush.xpose.msra.mxu0 %v4942
    %4959 = vmatpush.xpose.msra.mxu0 %v4940
    %4960 = vmatpush.xpose.msra.mxu0 %v4938
    %4961 = vmatpush.xpose.msra.mxu0 %v4936
    %4962 = vmatpush.xpose.msra.mxu0 %v4934
    %4963 = vmatpush.xpose.msra.mxu0 %v4932
    %4964 = vmatmul.f32.gmra.mxu0 %v4930
    %v4965 = vpop.f32.mrf.mxu0
    %v4966 = vadd.f32 0.0, %v4965
    %4967 = vdwg.mxu0
    %v4968 = vmul.f32 %v4966, 0.70710677
    %v4969 = vsel %vm4132, %v4968, -inf
    %4970 = vmax.xlane.f32.xlu0 %v4969
    %v4971 = vpop.xlane.xlu0 %4970
    %v4972 = vsub.f32 %v4968, %v4971
    %v4973 = vmul.f32 %v4972, 1.442695
    %v4974 = vpow.pop %v4973
    %v4975 = vsel %vm4132, %v4974, 0.0
    %4976 = vadd.xlane.f32.xlu0 %v4975
    %v4977 = vpop.xlane.xlu0 %4976
    %v4978 = vrcp.pop %v4977
    %v4979 = vmul.f32 %v4974, %v4978
    %4980 = vrot.lane.b32.xlu0 %v4057, 116
    %v4981 = vpop.permute.xlu0 %4980
    %4982 = vrot.lane.b32.xlu0 %v4060, 116
    %v4983 = vpop.permute.xlu0 %4982
    %4984 = vrot.lane.b32.xlu0 %v4063, 116
    %v4985 = vpop.permute.xlu0 %4984
    %4986 = vrot.lane.b32.xlu0 %v4066, 116
    %v4987 = vpop.permute.xlu0 %4986
    %4988 = vrot.lane.b32.xlu0 %v4069, 116
    %v4989 = vpop.permute.xlu0 %4988
    %4990 = vrot.lane.b32.xlu0 %v4072, 116
    %v4991 = vpop.permute.xlu0 %4990
    %4992 = vrot.lane.b32.xlu0 %v4075, 116
    %v4993 = vpop.permute.xlu0 %4992
    %4994 = vrot.lane.b32.xlu0 %v4078, 116
    %v4995 = vpop.permute.xlu0 %4994
    %v5005 = vsel %vm4144, %v4979, 0
    %5007 = vmatpush.msra.mxu0 0.0
    %5008 = vmatpush.msra.mxu0 0.0
    %5009 = vmatpush.msra.mxu0 0.0
    %5010 = vmatpush.msra.mxu0 0.0
    %5011 = vmatpush.msra.mxu0 0.0
    %5012 = vmatpush.msra.mxu0 0.0
    %5013 = vmatpush.msra.mxu0 0.0
    %5014 = vmatpush.msra.mxu0 0.0
    %5015 = vmatpush.msra.mxu0 %v4995
    %5016 = vmatpush.msra.mxu0 %v4993
    %5017 = vmatpush.msra.mxu0 %v4991
    %5018 = vmatpush.msra.mxu0 %v4989
    %5019 = vmatpush.msra.mxu0 %v4987
    %5020 = vmatpush.msra.mxu0 %v4985
    %5021 = vmatpush.msra.mxu0 %v4983
    %5022 = vmatpush.msra.mxu0 %v4981
    %5023 = vmatmul.f32.gmra.mxu0 %v5005
    %v5024 = vpop.f32.mrf.mxu0
    %v5025 = vadd.f32 0.0, %v5024
    %5026 = vdwg.mxu0
    %v5027 = vrot.slane %v4081, 4
    %v5029 = vsel %vm4083, %v5025, 0
    %v5031 = vsel %vm4296, %v5027, 0
    %5033 = vmatpush.msra.mxu0 0.0
    %5034 = vmatpush.msra.mxu0 0.0
    %5035 = vmatpush.msra.mxu0 0.0
    %5036 = vmatpush.msra.mxu0 0.0
    %5037 = vmatpush.msra.mxu0 0.0
    %5038 = vmatpush.msra.mxu0 0.0
    %5039 = vmatpush.msra.mxu0 0.0
    %5040 = vmatpush.msra.mxu0 0.0
    %5041 = vmatpush.msra.mxu0 0.0
    %5042 = vmatpush.msra.mxu0 0.0
    %5043 = vmatpush.msra.mxu0 0.0
    %5044 = vmatpush.msra.mxu0 0.0
    %5045 = vmatpush.msra.mxu0 0.0
    %5046 = vmatpush.msra.mxu0 0.0
    %5047 = vmatpush.msra.mxu0 0.0
    %5048 = vmatpush.msra.mxu0 %v5031
    %5049 = vmatmul.f32.gmra.mxu0 %v5029
    %v5050 = vpop.f32.mrf.mxu0
    %v5051 = vadd.f32 0.0, %v5050
    %5052 = vdwg.mxu0
    %v5053 = vadd.f32 %v4911, %v5051
    %5054 = vrot.lane.b32.xlu0 %v3924, 114
    %v5055 = vpop.permute.xlu0 %5054
    %5056 = vrot.lane.b32.xlu0 %v3984, 114
    %v5057 = vpop.permute.xlu0 %5056
    %5058 = vrot.lane.b32.xlu0 %v3987, 114
    %v5059 = vpop.permute.xlu0 %5058
    %5060 = vrot.lane.b32.xlu0 %v3990, 114
    %v5061 = vpop.permute.xlu0 %5060
    %5062 = vrot.lane.b32.xlu0 %v3993, 114
    %v5063 = vpop.permute.xlu0 %5062
    %5064 = vrot.lane.b32.xlu0 %v3996, 114
    %v5065 = vpop.permute.xlu0 %5064
    %5066 = vrot.lane.b32.xlu0 %v3999, 114
    %v5067 = vpop.permute.xlu0 %5066
    %5068 = vrot.lane.b32.xlu0 %v4002, 114
    %v5069 = vpop.permute.xlu0 %5068
    %5070 = vrot.lane.b32.xlu0 %v4005, 114
    %v5071 = vpop.permute.xlu0 %5070
    %v5072 = vsel %vm4083, %v5055, 0
    %v5074 = vsel %vm4083, %v5057, 0
    %v5076 = vsel %vm4083, %v5059, 0
    %v5078 = vsel %vm4083, %v5061, 0
    %v5080 = vsel %vm4083, %v5063, 0
    %v5082 = vsel %vm4083, %v5065, 0
    %v5084 = vsel %vm4083, %v5067, 0
    %v5086 = vsel %vm4083, %v5069, 0
    %v5088 = vsel %vm4083, %v5071, 0
    %5090 = vmatpush.xpose.msra.mxu0 0.0
    %5091 = vmatpush.xpose.msra.mxu0 0.0
    %5092 = vmatpush.xpose.msra.mxu0 0.0
    %5093 = vmatpush.xpose.msra.mxu0 0.0
    %5094 = vmatpush.xpose.msra.mxu0 0.0
    %5095 = vmatpush.xpose.msra.mxu0 0.0
    %5096 = vmatpush.xpose.msra.mxu0 0.0
    %5097 = vmatpush.xpose.msra.mxu0 0.0
    %5098 = vmatpush.xpose.msra.mxu0 %v5088
    %5099 = vmatpush.xpose.msra.mxu0 %v5086
    %5100 = vmatpush.xpose.msra.mxu0 %v5084
    %5101 = vmatpush.xpose.msra.mxu0 %v5082
    %5102 = vmatpush.xpose.msra.mxu0 %v5080
    %5103 = vmatpush.xpose.msra.mxu0 %v5078
    %5104 = vmatpush.xpose.msra.mxu0 %v5076
    %5105 = vmatpush.xpose.msra.mxu0 %v5074
    %5106 = vmatmul.f32.gmra.mxu0 %v5072
    %v5107 = vpop.f32.mrf.mxu0
    %v5108 = vadd.f32 0.0, %v5107
    %5109 = vdwg.mxu0
    %v5110 = vmul.f32 %v5108, 0.70710677
    %v5111 = vsel %vm4132, %v5110, -inf
    %5112 = vmax.xlane.f32.xlu0 %v5111
    %v5113 = vpop.xlane.xlu0 %5112
    %v5114 = vsub.f32 %v5110, %v5113
    %v5115 = vmul.f32 %v5114, 1.442695
    %v5116 = vpow.pop %v5115
    %v5117 = vsel %vm4132, %v5116, 0.0
    %5118 = vadd.xlane.f32.xlu0 %v5117
    %v5119 = vpop.xlane.xlu0 %5118
    %v5120 = vrcp.pop %v5119
    %v5121 = vmul.f32 %v5116, %v5120
    %5122 = vrot.lane.b32.xlu0 %v4057, 114
    %v5123 = vpop.permute.xlu0 %5122
    %5124 = vrot.lane.b32.xlu0 %v4060, 114
    %v5125 = vpop.permute.xlu0 %5124
    %5126 = vrot.lane.b32.xlu0 %v4063, 114
    %v5127 = vpop.permute.xlu0 %5126
    %5128 = vrot.lane.b32.xlu0 %v4066, 114
    %v5129 = vpop.permute.xlu0 %5128
    %5130 = vrot.lane.b32.xlu0 %v4069, 114
    %v5131 = vpop.permute.xlu0 %5130
    %5132 = vrot.lane.b32.xlu0 %v4072, 114
    %v5133 = vpop.permute.xlu0 %5132
    %5134 = vrot.lane.b32.xlu0 %v4075, 114
    %v5135 = vpop.permute.xlu0 %5134
    %5136 = vrot.lane.b32.xlu0 %v4078, 114
    %v5137 = vpop.permute.xlu0 %5136
    %v5147 = vsel %vm4144, %v5121, 0
    %5149 = vmatpush.msra.mxu0 0.0
    %5150 = vmatpush.msra.mxu0 0.0
    %5151 = vmatpush.msra.mxu0 0.0
    %5152 = vmatpush.msra.mxu0 0.0
    %5153 = vmatpush.msra.mxu0 0.0
    %5154 = vmatpush.msra.mxu0 0.0
    %5155 = vmatpush.msra.mxu0 0.0
    %5156 = vmatpush.msra.mxu0 0.0
    %5157 = vmatpush.msra.mxu0 %v5137
    %5158 = vmatpush.msra.mxu0 %v5135
    %5159 = vmatpush.msra.mxu0 %v5133
    %5160 = vmatpush.msra.mxu0 %v5131
    %5161 = vmatpush.msra.mxu0 %v5129
    %5162 = vmatpush.msra.mxu0 %v5127
    %5163 = vmatpush.msra.mxu0 %v5125
    %5164 = vmatpush.msra.mxu0 %v5123
    %5165 = vmatmul.f32.gmra.mxu0 %v5147
    %v5166 = vpop.f32.mrf.mxu0
    %v5167 = vadd.f32 0.0, %v5166
    %5168 = vdwg.mxu0
    %v5169 = vrot.slane %v4081, 6
    %v5171 = vsel %vm4083, %v5167, 0
    %v5173 = vsel %vm4296, %v5169, 0
    %5175 = vmatpush.msra.mxu0 0.0
    %5176 = vmatpush.msra.mxu0 0.0
    %5177 = vmatpush.msra.mxu0 0.0
    %5178 = vmatpush.msra.mxu0 0.0
    %5179 = vmatpush.msra.mxu0 0.0
    %5180 = vmatpush.msra.mxu0 0.0
    %5181 = vmatpush.msra.mxu0 0.0
    %5182 = vmatpush.msra.mxu0 0.0
    %5183 = vmatpush.msra.mxu0 0.0
    %5184 = vmatpush.msra.mxu0 0.0
    %5185 = vmatpush.msra.mxu0 0.0
    %5186 = vmatpush.msra.mxu0 0.0
    %5187 = vmatpush.msra.mxu0 0.0
    %5188 = vmatpush.msra.mxu0 0.0
    %5189 = vmatpush.msra.mxu0 0.0
    %5190 = vmatpush.msra.mxu0 %v5173
    %5191 = vmatmul.f32.gmra.mxu0 %v5171
    %v5192 = vpop.f32.mrf.mxu0
    %v5193 = vadd.f32 0.0, %v5192
    %5194 = vdwg.mxu0
    %v5195 = vadd.f32 %v5053, %v5193
    %v5197 = vperm.slane %v4082, 0
    %v5199 = vadd.f32 %v5195, %v5197
    %v5200 = vadd.f32 %v3893, %v5199
    %v5201 = vsel %vm3860, %v5200, 0.0
    %5202 = vadd.xlane.f32.xlu0 %v5201
    %v5203 = vpop.xlane.xlu0 %5202
    %v5204 = vmul.f32 %v5203, %v3870
    %v5205 = vsub.f32 %v5200, %v5204
    %v5206 = vmul.f32 %v5205, %v5205
    %v5207 = vsel %vm3860, %v5206, 0.0
    %5208 = vadd.xlane.f32.xlu0 %v5207
    %v5209 = vpop.xlane.xlu0 %5208
    %v5210 = vmul.f32 %v5209, %v3870
    %v5211 = vadd.f32 %v5210, 1e-05
    %v5212 = vrsqrt.pop %v5211
    %v5213 = vmul.f32 %v5212, %v5211
    %v5214 = vmul.f32 %v5213, %v5212
    %v5215 = vmul.f32 0.5, %v5214
    %v5216 = vsub.f32 1.5, %v5215
    %v5217 = vmul.f32 %v5212, %v5216
    %vm5218 = vweird.f32 %v5211
    %vm5219 = vweird.f32 %v5212
    %vm5220 = vmor %vm5218, %vm5219
    %v5221 = vsel %vm5220, %v5212, %v5217
    %v5222 = vmul.f32 %v5205, %v5221
    %v5223 = vperm.slane %v85, 1
    %v5224 = vmul.f32 %v5222, %v5223
    %v5225 = vperm.slane %v86, 1
    %v5226 = vadd.f32 %v5224, %v5225
    %v5227 = vld [vmem:[%s21] sm:$0xff]
    %v5228 = vld [vmem:[%s21 + $0x8] sm:$0xff]
    %v5229 = vld [vmem:[%s21 + $0x10] sm:$0xff]
    %v5230 = vld [vmem:[%s21 + $0x18] sm:$0xff]
    %v5231 = vld [vmem:[%s21 + $0x20] sm:$0xff]
    %v5232 = vld [vmem:[%s21 + $0x28] sm:$0xff]
    %v5233 = vld [vmem:[%s21 + $0x30] sm:$0xff]
    %v5234 = vld [vmem:[%s21 + $0x38] sm:$0xff]
    %v5235 = vld [vmem:[%s21 + $0x40] sm:$0xff]
    %v5236 = vld [vmem:[%s21 + $0x48] sm:$0xff]
    %v5237 = vld [vmem:[%s21 + $0x50] sm:$0xff]
    %v5238 = vld [vmem:[%s21 + $0x58] sm:$0xff]
    %v5239 = vld [vmem:[%s21 + $0x60] sm:$0xff]
    %v5240 = vld [vmem:[%s21 + $0x68] sm:$0xff]
    %v5241 = vld [vmem:[%s21 + $0x70] sm:$0xff]
    %v5242 = vld [vmem:[%s21 + $0x78] sm:$0xff]
    %v5243 = vld [vmem:[%s21 + $0x80] sm:$0xff]
    %v5244 = vld [vmem:[%s21 + $0x88] sm:$0xff]
    %v5245 = vld [vmem:[%s21 + $0x90] sm:$0xff]
    %v5246 = vld [vmem:[%s21 + $0x98] sm:$0xff]
    %v5247 = vld [vmem:[%s21 + $0xa0] sm:$0xff]
    %v5248 = vld [vmem:[%s21 + $0xa8] sm:$0xff]
    %v5249 = vld [vmem:[%s21 + $0xb0] sm:$0xff]
    %v5250 = vld [vmem:[%s21 + $0xb8] sm:$0xff]
    %v5251 = vld [vmem:[%s21 + $0xc0] sm:$0xff]
    %v5252 = vld [vmem:[%s21 + $0xc8] sm:$0xff]
    %v5253 = vld [vmem:[%s21 + $0xd0] sm:$0xff]
    %v5254 = vld [vmem:[%s21 + $0xd8] sm:$0xff]
    %v5255 = vld [vmem:[%s21 + $0xe0] sm:$0xff]
    %v5256 = vld [vmem:[%s21 + $0xe8] sm:$0xff]
    %v5257 = vld [vmem:[%s21 + $0xf0] sm:$0xff]
    %v5258 = vld [vmem:[%s21 + $0xf8] sm:$0xff]
    %v5259 = vld [vmem:[%s21 + $0x100] sm:$0xff]
    %v5260 = vld [vmem:[%s21 + $0x108] sm:$0xff]
    %v5261 = vld [vmem:[%s21 + $0x110] sm:$0xff]
    %v5262 = vld [vmem:[%s21 + $0x118] sm:$0xff]
    %v5263 = vld [vmem:[%s21 + $0x120] sm:$0xff]
    %v5264 = vld [vmem:[%s21 + $0x128] sm:$0xff]
    %v5265 = vld [vmem:[%s21 + $0x130] sm:$0xff]
    %v5266 = vld [vmem:[%s21 + $0x138] sm:$0xff]
    %v5267 = vld [vmem:[%s21 + $0x140] sm:$0xff]
    %v5268 = vld [vmem:[%s21 + $0x148] sm:$0xff]
    %v5269 = vld [vmem:[%s21 + $0x150] sm:$0xff]
    %v5270 = vld [vmem:[%s21 + $0x158] sm:$0xff]
    %v5271 = vld [vmem:[%s21 + $0x160] sm:$0xff]
    %v5272 = vld [vmem:[%s21 + $0x168] sm:$0xff]
    %v5273 = vld [vmem:[%s21 + $0x170] sm:$0xff]
    %v5274 = vld [vmem:[%s21 + $0x178] sm:$0xff]
    %v5275 = vld [vmem:[%s21 + $0x180] sm:$0xff]
    %v5276 = vld [vmem:[%s21 + $0x188] sm:$0xff]
    %v5277 = vld [vmem:[%s21 + $0x190] sm:$0xff]
    %v5278 = vld [vmem:[%s21 + $0x198] sm:$0xff]
    %v5279 = vld [vmem:[%s21 + $0x1a0] sm:$0xff]
    %v5280 = vld [vmem:[%s21 + $0x1a8] sm:$0xff]
    %v5281 = vld [vmem:[%s21 + $0x1b0] sm:$0xff]
    %v5282 = vld [vmem:[%s21 + $0x1b8] sm:$0xff]
    %v5283 = vld [vmem:[%s21 + $0x1c0] sm:$0xff]
    %v5284 = vld [vmem:[%s21 + $0x1c8] sm:$0xff]
    %v5285 = vld [vmem:[%s21 + $0x1d0] sm:$0xff]
    %v5286 = vld [vmem:[%s21 + $0x1d8] sm:$0xff]
    %v5287 = vld [vmem:[%s21 + $0x1e0] sm:$0xff]
    %v5288 = vld [vmem:[%s21 + $0x1e8] sm:$0xff]
    %v5289 = vld [vmem:[%s21 + $0x1f0] sm:$0xff]
    %v5290 = vld [vmem:[%s21 + $0x1f8] sm:$0xff]
    %v5291 = vld [vmem:[%s22] sm:$0xff]
    %v5292 = vld [vmem:[%s22 + $0x8] sm:$0xff]
    %v5295 = vperm.slane %v5291, 0
    %v5296 = vperm.slane %v5291, 1
    %v5297 = vperm.slane %v5291, 2
    %v5298 = vperm.slane %v5291, 3
    %v5299 = vperm.slane %v5291, 4
    %v5300 = vperm.slane %v5291, 5
    %v5301 = vperm.slane %v5291, 6
    %v5302 = vperm.slane %v5291, 7
    %v5303 = vperm.slane %v5292, 0
    %v5304 = vperm.slane %v5292, 1
    %v5305 = vperm.slane %v5292, 2
    %v5306 = vperm.slane %v5292, 3
    %v5307 = vperm.slane %v5292, 4
    %v5308 = vperm.slane %v5292, 5
    %v5309 = vperm.slane %v5292, 6
    %v5310 = vperm.slane %v5292, 7
    %v5328 = vsel %vm3044, %v5226, 0
    %5330 = vmatpush.msra.mxu0 0.0
    %5331 = vmatpush.msra.mxu0 0.0
    %5332 = vmatpush.msra.mxu0 0.0
    %5333 = vmatpush.msra.mxu0 0.0
    %5334 = vmatpush.msra.mxu0 0.0
    %5335 = vmatpush.msra.mxu0 0.0
    %5336 = vmatpush.msra.mxu0 0.0
    %5337 = vmatpush.msra.mxu0 0.0
    %5338 = vmatpush.msra.mxu0 0.0
    %5339 = vmatpush.msra.mxu0 0.0
    %5340 = vmatpush.msra.mxu0 0.0
    %5341 = vmatpush.msra.mxu0 0.0
    %5342 = vmatpush.msra.mxu0 %v5275
    %5343 = vmatpush.msra.mxu0 %v5259
    %5344 = vmatpush.msra.mxu0 %v5243
    %5345 = vmatpush.msra.mxu0 %v5227
    %5346 = vmatmul.f32.gmra.mxu0 %v5328
    %v5347 = vpop.f32.mrf.mxu0
    %v5348 = vadd.f32 %v5295, %v5347
    %5349 = vdwg.mxu0
    %5350 = vmatpush.msra.mxu0 0.0
    %5351 = vmatpush.msra.mxu0 0.0
    %5352 = vmatpush.msra.mxu0 0.0
    %5353 = vmatpush.msra.mxu0 0.0
    %5354 = vmatpush.msra.mxu0 0.0
    %5355 = vmatpush.msra.mxu0 0.0
    %5356 = vmatpush.msra.mxu0 0.0
    %5357 = vmatpush.msra.mxu0 0.0
    %5358 = vmatpush.msra.mxu0 0.0
    %5359 = vmatpush.msra.mxu0 0.0
    %5360 = vmatpush.msra.mxu0 0.0
    %5361 = vmatpush.msra.mxu0 0.0
    %5362 = vmatpush.msra.mxu0 %v5276
    %5363 = vmatpush.msra.mxu0 %v5260
    %5364 = vmatpush.msra.mxu0 %v5244
    %5365 = vmatpush.msra.mxu0 %v5228
    %5366 = vmatmul.f32.gmra.mxu0 %v5328
    %v5367 = vpop.f32.mrf.mxu0
    %v5368 = vadd.f32 %v5296, %v5367
    %5369 = vdwg.mxu0
    %5370 = vmatpush.msra.mxu0 0.0
    %5371 = vmatpush.msra.mxu0 0.0
    %5372 = vmatpush.msra.mxu0 0.0
    %5373 = vmatpush.msra.mxu0 0.0
    %5374 = vmatpush.msra.mxu0 0.0
    %5375 = vmatpush.msra.mxu0 0.0
    %5376 = vmatpush.msra.mxu0 0.0
    %5377 = vmatpush.msra.mxu0 0.0
    %5378 = vmatpush.msra.mxu0 0.0
    %5379 = vmatpush.msra.mxu0 0.0
    %5380 = vmatpush.msra.mxu0 0.0
    %5381 = vmatpush.msra.mxu0 0.0
    %5382 = vmatpush.msra.mxu0 %v5277
    %5383 = vmatpush.msra.mxu0 %v5261
    %5384 = vmatpush.msra.mxu0 %v5245
    %5385 = vmatpush.msra.mxu0 %v5229
    %5386 = vmatmul.f32.gmra.mxu0 %v5328
    %v5387 = vpop.f32.mrf.mxu0
    %v5388 = vadd.f32 %v5297, %v5387
    %5389 = vdwg.mxu0
    %5390 = vmatpush.msra.mxu0 0.0
    %5391 = vmatpush.msra.mxu0 0.0
    %5392 = vmatpush.msra.mxu0 0.0
    %5393 = vmatpush.msra.mxu0 0.0
    %5394 = vmatpush.msra.mxu0 0.0
    %5395 = vmatpush.msra.mxu0 0.0
    %5396 = vmatpush.msra.mxu0 0.0
    %5397 = vmatpush.msra.mxu0 0.0
    %5398 = vmatpush.msra.mxu0 0.0
    %5399 = vmatpush.msra.mxu0 0.0
    %5400 = vmatpush.msra.mxu0 0.0
    %5401 = vmatpush.msra.mxu0 0.0
    %5402 = vmatpush.msra.mxu0 %v5278
    %5403 = vmatpush.msra.mxu0 %v5262
    %5404 = vmatpush.msra.mxu0 %v5246
    %5405 = vmatpush.msra.mxu0 %v5230
    %5406 = vmatmul.f32.gmra.mxu0 %v5328
    %v5407 = vpop.f32.mrf.mxu0
    %v5408 = vadd.f32 %v5298, %v5407
    %5409 = vdwg.mxu0
    %5410 = vmatpush.msra.mxu0 0.0
    %5411 = vmatpush.msra.mxu0 0.0
    %5412 = vmatpush.msra.mxu0 0.0
    %5413 = vmatpush.msra.mxu0 0.0
    %5414 = vmatpush.msra.mxu0 0.0
    %5415 = vmatpush.msra.mxu0 0.0
    %5416 = vmatpush.msra.mxu0 0.0
    %5417 = vmatpush.msra.mxu0 0.0
    %5418 = vmatpush.msra.mxu0 0.0
    %5419 = vmatpush.msra.mxu0 0.0
    %5420 = vmatpush.msra.mxu0 0.0
    %5421 = vmatpush.msra.mxu0 0.0
    %5422 = vmatpush.msra.mxu0 %v5279
    %5423 = vmatpush.msra.mxu0 %v5263
    %5424 = vmatpush.msra.mxu0 %v5247
    %5425 = vmatpush.msra.mxu0 %v5231
    %5426 = vmatmul.f32.gmra.mxu0 %v5328
    %v5427 = vpop.f32.mrf.mxu0
    %v5428 = vadd.f32 %v5299, %v5427
    %5429 = vdwg.mxu0
    %5430 = vmatpush.msra.mxu0 0.0
    %5431 = vmatpush.msra.mxu0 0.0
    %5432 = vmatpush.msra.mxu0 0.0
    %5433 = vmatpush.msra.mxu0 0.0
    %5434 = vmatpush.msra.mxu0 0.0
    %5435 = vmatpush.msra.mxu0 0.0
    %5436 = vmatpush.msra.mxu0 0.0
    %5437 = vmatpush.msra.mxu0 0.0
    %5438 = vmatpush.msra.mxu0 0.0
    %5439 = vmatpush.msra.mxu0 0.0
    %5440 = vmatpush.msra.mxu0 0.0
    %5441 = vmatpush.msra.mxu0 0.0
    %5442 = vmatpush.msra.mxu0 %v5280
    %5443 = vmatpush.msra.mxu0 %v5264
    %5444 = vmatpush.msra.mxu0 %v5248
    %5445 = vmatpush.msra.mxu0 %v5232
    %5446 = vmatmul.f32.gmra.mxu0 %v5328
    %v5447 = vpop.f32.mrf.mxu0
    %v5448 = vadd.f32 %v5300, %v5447
    %5449 = vdwg.mxu0
    %5450 = vmatpush.msra.mxu0 0.0
    %5451 = vmatpush.msra.mxu0 0.0
    %5452 = vmatpush.msra.mxu0 0.0
    %5453 = vmatpush.msra.mxu0 0.0
    %5454 = vmatpush.msra.mxu0 0.0
    %5455 = vmatpush.msra.mxu0 0.0
    %5456 = vmatpush.msra.mxu0 0.0
    %5457 = vmatpush.msra.mxu0 0.0
    %5458 = vmatpush.msra.mxu0 0.0
    %5459 = vmatpush.msra.mxu0 0.0
    %5460 = vmatpush.msra.mxu0 0.0
    %5461 = vmatpush.msra.mxu0 0.0
    %5462 = vmatpush.msra.mxu0 %v5281
    %5463 = vmatpush.msra.mxu0 %v5265
    %5464 = vmatpush.msra.mxu0 %v5249
    %5465 = vmatpush.msra.mxu0 %v5233
    %5466 = vmatmul.f32.gmra.mxu0 %v5328
    %v5467 = vpop.f32.mrf.mxu0
    %v5468 = vadd.f32 %v5301, %v5467
    %5469 = vdwg.mxu0
    %5470 = vmatpush.msra.mxu0 0.0
    %5471 = vmatpush.msra.mxu0 0.0
    %5472 = vmatpush.msra.mxu0 0.0
    %5473 = vmatpush.msra.mxu0 0.0
    %5474 = vmatpush.msra.mxu0 0.0
    %5475 = vmatpush.msra.mxu0 0.0
    %5476 = vmatpush.msra.mxu0 0.0
    %5477 = vmatpush.msra.mxu0 0.0
    %5478 = vmatpush.msra.mxu0 0.0
    %5479 = vmatpush.msra.mxu0 0.0
    %5480 = vmatpush.msra.mxu0 0.0
    %5481 = vmatpush.msra.mxu0 0.0
    %5482 = vmatpush.msra.mxu0 %v5282
    %5483 = vmatpush.msra.mxu0 %v5266
    %5484 = vmatpush.msra.mxu0 %v5250
    %5485 = vmatpush.msra.mxu0 %v5234
    %5486 = vmatmul.f32.gmra.mxu0 %v5328
    %v5487 = vpop.f32.mrf.mxu0
    %v5488 = vadd.f32 %v5302, %v5487
    %5489 = vdwg.mxu0
    %5490 = vmatpush.msra.mxu0 0.0
    %5491 = vmatpush.msra.mxu0 0.0
    %5492 = vmatpush.msra.mxu0 0.0
    %5493 = vmatpush.msra.mxu0 0.0
    %5494 = vmatpush.msra.mxu0 0.0
    %5495 = vmatpush.msra.mxu0 0.0
    %5496 = vmatpush.msra.mxu0 0.0
    %5497 = vmatpush.msra.mxu0 0.0
    %5498 = vmatpush.msra.mxu0 0.0
    %5499 = vmatpush.msra.mxu0 0.0
    %5500 = vmatpush.msra.mxu0 0.0
    %5501 = vmatpush.msra.mxu0 0.0
    %5502 = vmatpush.msra.mxu0 %v5283
    %5503 = vmatpush.msra.mxu0 %v5267
    %5504 = vmatpush.msra.mxu0 %v5251
    %5505 = vmatpush.msra.mxu0 %v5235
    %5506 = vmatmul.f32.gmra.mxu0 %v5328
    %v5507 = vpop.f32.mrf.mxu0
    %v5508 = vadd.f32 %v5303, %v5507
    %5509 = vdwg.mxu0
    %5510 = vmatpush.msra.mxu0 0.0
    %5511 = vmatpush.msra.mxu0 0.0
    %5512 = vmatpush.msra.mxu0 0.0
    %5513 = vmatpush.msra.mxu0 0.0
    %5514 = vmatpush.msra.mxu0 0.0
    %5515 = vmatpush.msra.mxu0 0.0
    %5516 = vmatpush.msra.mxu0 0.0
    %5517 = vmatpush.msra.mxu0 0.0
    %5518 = vmatpush.msra.mxu0 0.0
    %5519 = vmatpush.msra.mxu0 0.0
    %5520 = vmatpush.msra.mxu0 0.0
    %5521 = vmatpush.msra.mxu0 0.0
    %5522 = vmatpush.msra.mxu0 %v5284
    %5523 = vmatpush.msra.mxu0 %v5268
    %5524 = vmatpush.msra.mxu0 %v5252
    %5525 = vmatpush.msra.mxu0 %v5236
    %5526 = vmatmul.f32.gmra.mxu0 %v5328
    %v5527 = vpop.f32.mrf.mxu0
    %v5528 = vadd.f32 %v5304, %v5527
    %5529 = vdwg.mxu0
    %5530 = vmatpush.msra.mxu0 0.0
    %5531 = vmatpush.msra.mxu0 0.0
    %5532 = vmatpush.msra.mxu0 0.0
    %5533 = vmatpush.msra.mxu0 0.0
    %5534 = vmatpush.msra.mxu0 0.0
    %5535 = vmatpush.msra.mxu0 0.0
    %5536 = vmatpush.msra.mxu0 0.0
    %5537 = vmatpush.msra.mxu0 0.0
    %5538 = vmatpush.msra.mxu0 0.0
    %5539 = vmatpush.msra.mxu0 0.0
    %5540 = vmatpush.msra.mxu0 0.0
    %5541 = vmatpush.msra.mxu0 0.0
    %5542 = vmatpush.msra.mxu0 %v5285
    %5543 = vmatpush.msra.mxu0 %v5269
    %5544 = vmatpush.msra.mxu0 %v5253
    %5545 = vmatpush.msra.mxu0 %v5237
    %5546 = vmatmul.f32.gmra.mxu0 %v5328
    %v5547 = vpop.f32.mrf.mxu0
    %v5548 = vadd.f32 %v5305, %v5547
    %5549 = vdwg.mxu0
    %5550 = vmatpush.msra.mxu0 0.0
    %5551 = vmatpush.msra.mxu0 0.0
    %5552 = vmatpush.msra.mxu0 0.0
    %5553 = vmatpush.msra.mxu0 0.0
    %5554 = vmatpush.msra.mxu0 0.0
    %5555 = vmatpush.msra.mxu0 0.0
    %5556 = vmatpush.msra.mxu0 0.0
    %5557 = vmatpush.msra.mxu0 0.0
    %5558 = vmatpush.msra.mxu0 0.0
    %5559 = vmatpush.msra.mxu0 0.0
    %5560 = vmatpush.msra.mxu0 0.0
    %5561 = vmatpush.msra.mxu0 0.0
    %5562 = vmatpush.msra.mxu0 %v5286
    %5563 = vmatpush.msra.mxu0 %v5270
    %5564 = vmatpush.msra.mxu0 %v5254
    %5565 = vmatpush.msra.mxu0 %v5238
    %5566 = vmatmul.f32.gmra.mxu0 %v5328
    %v5567 = vpop.f32.mrf.mxu0
    %v5568 = vadd.f32 %v5306, %v5567
    %5569 = vdwg.mxu0
    %5570 = vmatpush.msra.mxu0 0.0
    %5571 = vmatpush.msra.mxu0 0.0
    %5572 = vmatpush.msra.mxu0 0.0
    %5573 = vmatpush.msra.mxu0 0.0
    %5574 = vmatpush.msra.mxu0 0.0
    %5575 = vmatpush.msra.mxu0 0.0
    %5576 = vmatpush.msra.mxu0 0.0
    %5577 = vmatpush.msra.mxu0 0.0
    %5578 = vmatpush.msra.mxu0 0.0
    %5579 = vmatpush.msra.mxu0 0.0
    %5580 = vmatpush.msra.mxu0 0.0
    %5581 = vmatpush.msra.mxu0 0.0
    %5582 = vmatpush.msra.mxu0 %v5287
    %5583 = vmatpush.msra.mxu0 %v5271
    %5584 = vmatpush.msra.mxu0 %v5255
    %5585 = vmatpush.msra.mxu0 %v5239
    %5586 = vmatmul.f32.gmra.mxu0 %v5328
    %v5587 = vpop.f32.mrf.mxu0
    %v5588 = vadd.f32 %v5307, %v5587
    %5589 = vdwg.mxu0
    %5590 = vmatpush.msra.mxu0 0.0
    %5591 = vmatpush.msra.mxu0 0.0
    %5592 = vmatpush.msra.mxu0 0.0
    %5593 = vmatpush.msra.mxu0 0.0
    %5594 = vmatpush.msra.mxu0 0.0
    %5595 = vmatpush.msra.mxu0 0.0
    %5596 = vmatpush.msra.mxu0 0.0
    %5597 = vmatpush.msra.mxu0 0.0
    %5598 = vmatpush.msra.mxu0 0.0
    %5599 = vmatpush.msra.mxu0 0.0
    %5600 = vmatpush.msra.mxu0 0.0
    %5601 = vmatpush.msra.mxu0 0.0
    %5602 = vmatpush.msra.mxu0 %v5288
    %5603 = vmatpush.msra.mxu0 %v5272
    %5604 = vmatpush.msra.mxu0 %v5256
    %5605 = vmatpush.msra.mxu0 %v5240
    %5606 = vmatmul.f32.gmra.mxu0 %v5328
    %v5607 = vpop.f32.mrf.mxu0
    %v5608 = vadd.f32 %v5308, %v5607
    %5609 = vdwg.mxu0
    %5610 = vmatpush.msra.mxu0 0.0
    %5611 = vmatpush.msra.mxu0 0.0
    %5612 = vmatpush.msra.mxu0 0.0
    %5613 = vmatpush.msra.mxu0 0.0
    %5614 = vmatpush.msra.mxu0 0.0
    %5615 = vmatpush.msra.mxu0 0.0
    %5616 = vmatpush.msra.mxu0 0.0
    %5617 = vmatpush.msra.mxu0 0.0
    %5618 = vmatpush.msra.mxu0 0.0
    %5619 = vmatpush.msra.mxu0 0.0
    %5620 = vmatpush.msra.mxu0 0.0
    %5621 = vmatpush.msra.mxu0 0.0
    %5622 = vmatpush.msra.mxu0 %v5289
    %5623 = vmatpush.msra.mxu0 %v5273
    %5624 = vmatpush.msra.mxu0 %v5257
    %5625 = vmatpush.msra.mxu0 %v5241
    %5626 = vmatmul.f32.gmra.mxu0 %v5328
    %v5627 = vpop.f32.mrf.mxu0
    %v5628 = vadd.f32 %v5309, %v5627
    %5629 = vdwg.mxu0
    %5630 = vmatpush.msra.mxu0 0.0
    %5631 = vmatpush.msra.mxu0 0.0
    %5632 = vmatpush.msra.mxu0 0.0
    %5633 = vmatpush.msra.mxu0 0.0
    %5634 = vmatpush.msra.mxu0 0.0
    %5635 = vmatpush.msra.mxu0 0.0
    %5636 = vmatpush.msra.mxu0 0.0
    %5637 = vmatpush.msra.mxu0 0.0
    %5638 = vmatpush.msra.mxu0 0.0
    %5639 = vmatpush.msra.mxu0 0.0
    %5640 = vmatpush.msra.mxu0 0.0
    %5641 = vmatpush.msra.mxu0 0.0
    %5642 = vmatpush.msra.mxu0 %v5290
    %5643 = vmatpush.msra.mxu0 %v5274
    %5644 = vmatpush.msra.mxu0 %v5258
    %5645 = vmatpush.msra.mxu0 %v5242
    %5646 = vmatmul.f32.gmra.mxu0 %v5328
    %v5647 = vpop.f32.mrf.mxu0
    %v5648 = vadd.f32 %v5310, %v5647
    %5649 = vdwg.mxu0
    %v5650 = vmul.f32 %v5348, 0.5
    %v5651 = vmul.f32 %v5368, 0.5
    %v5652 = vmul.f32 %v5388, 0.5
    %v5653 = vmul.f32 %v5408, 0.5
    %v5654 = vmul.f32 %v5428, 0.5
    %v5655 = vmul.f32 %v5448, 0.5
    %v5656 = vmul.f32 %v5468, 0.5
    %v5657 = vmul.f32 %v5488, 0.5
    %v5658 = vmul.f32 %v5508, 0.5
    %v5659 = vmul.f32 %v5528, 0.5
    %v5660 = vmul.f32 %v5548, 0.5
    %v5661 = vmul.f32 %v5568, 0.5
    %v5662 = vmul.f32 %v5588, 0.5
    %v5663 = vmul.f32 %v5608, 0.5
    %v5664 = vmul.f32 %v5628, 0.5
    %v5665 = vmul.f32 %v5648, 0.5
    %v5666 = vmul.f32 %v5348, 0.70710677
    %v5667 = vmul.f32 %v5368, 0.70710677
    %v5668 = vmul.f32 %v5388, 0.70710677
    %v5669 = vmul.f32 %v5408, 0.70710677
    %v5670 = vmul.f32 %v5428, 0.70710677
    %v5671 = vmul.f32 %v5448, 0.70710677
    %v5672 = vmul.f32 %v5468, 0.70710677
    %v5673 = vmul.f32 %v5488, 0.70710677
    %v5674 = vmul.f32 %v5508, 0.70710677
    %v5675 = vmul.f32 %v5528, 0.70710677
    %v5676 = vmul.f32 %v5548, 0.70710677
    %v5677 = vmul.f32 %v5568, 0.70710677
    %v5678 = vmul.f32 %v5588, 0.70710677
    %v5679 = vmul.f32 %v5608, 0.70710677
    %v5680 = vmul.f32 %v5628, 0.70710677
    %v5681 = vmul.f32 %v5648, 0.70710677
    %v5682 = vmul.f32 %v5666, %v5666
    %v5683 = vmin.f32 16.0, %v5682
    %v5684 = vmul.f32 %v5683, 2.1237322e-06
    %v5685 = vadd.f32 %v5684, 0.00028619796
    %v5686 = vmul.f32 %v5683, %v5685
    %v5687 = vadd.f32 %v5686, 0.0036580483
    %v5688 = vmul.f32 %v5683, %v5687
    %v5689 = vadd.f32 %v5688, 0.05243302
    %v5690 = vmul.f32 %v5683, %v5689
    %v5691 = vadd.f32 %v5690, 0.18741608
    %v5692 = vmul.f32 %v5683, %v5691
    %v5693 = vadd.f32 %v5692, 1.1283791
    %v5694 = vmul.f32 %v5666, %v5693
    %v5695 = vmul.f32 %v5683, 3.8918573e-05
    %v5696 = vadd.f32 %v5695, 0.001143296
    %v5697 = vmul.f32 %v5683, %v5696
    %v5698 = vadd.f32 %v5697, 0.014752088
    %v5699 = vmul.f32 %v5683, %v5698
    %v5700 = vadd.f32 %v5699, 0.112945676
    %v5701 = vmul.f32 %v5683, %v5700
    %v5702 = vadd.f32 %v5701, 0.4994258
    %v5703 = vmul.f32 %v5683, %v5702
    %v5704 = vadd.f32 %v5703, 1.0
    %v5705 = vrcp.pop %v5704
    %v5706 = vmul.f32 %v5704, %v5705
    %v5707 = vsub.f32 1.0, %v5706
    %v5708 = vmul.f32 %v5705, %v5707
    %v5709 = vadd.f32 %v5705, %v5708
    %vm5710 = vweird.f32 %v5704
    %vm5711 = vweird.f32 %v5705
    %vm5712 = vmor %vm5710, %vm5711
    %v5713 = vsel %vm5712, %v5705, %v5709
    %v5714 = vand.u32 2147483647, %v5704
    %vm5715 = vcmp.eq.f32.partialorder %v5714, 8.507059e+37
    %v5716 = vand.u32 %v5704, 2147483648
    %v5717 = vor.u32 1.1754944e-38, %v5716
    %v5718 = vsel %vm5715, %v5717, %v5713
    %v5719 = vmul.f32 %v5694, %v5718
    %v5720 = vmin.f32 %v5719, 1.0
    %v5721 = vmax.f32 %v5720, -1.0
    %v5722 = vmul.f32 %v5667, %v5667
    %v5723 = vmin.f32 16.0, %v5722
    %v5724 = vmul.f32 %v5723, 2.1237322e-06
    %v5725 = vadd.f32 %v5724, 0.00028619796
    %v5726 = vmul.f32 %v5723, %v5725
    %v5727 = vadd.f32 %v5726, 0.0036580483
    %v5728 = vmul.f32 %v5723, %v5727
    %v5729 = vadd.f32 %v5728, 0.05243302
    %v5730 = vmul.f32 %v5723, %v5729
    %v5731 = vadd.f32 %v5730, 0.18741608
    %v5732 = vmul.f32 %v5723, %v5731
    %v5733 = vadd.f32 %v5732, 1.1283791
    %v5734 = vmul.f32 %v5667, %v5733
    %v5735 = vmul.f32 %v5723, 3.8918573e-05
    %v5736 = vadd.f32 %v5735, 0.001143296
    %v5737 = vmul.f32 %v5723, %v5736
    %v5738 = vadd.f32 %v5737, 0.014752088
    %v5739 = vmul.f32 %v5723, %v5738
    %v5740 = vadd.f32 %v5739, 0.112945676
    %v5741 = vmul.f32 %v5723, %v5740
    %v5742 = vadd.f32 %v5741, 0.4994258
    %v5743 = vmul.f32 %v5723, %v5742
    %v5744 = vadd.f32 %v5743, 1.0
    %v5745 = vrcp.pop %v5744
    %v5746 = vmul.f32 %v5744, %v5745
    %v5747 = vsub.f32 1.0, %v5746
    %v5748 = vmul.f32 %v5745, %v5747
    %v5749 = vadd.f32 %v5745, %v5748
    %vm5750 = vweird.f32 %v5744
    %vm5751 = vweird.f32 %v5745
    %vm5752 = vmor %vm5750, %vm5751
    %v5753 = vsel %vm5752, %v5745, %v5749
    %v5754 = vand.u32 2147483647, %v5744
    %vm5755 = vcmp.eq.f32.partialorder %v5754, 8.507059e+37
    %v5756 = vand.u32 %v5744, 2147483648
    %v5757 = vor.u32 1.1754944e-38, %v5756
    %v5758 = vsel %vm5755, %v5757, %v5753
    %v5759 = vmul.f32 %v5734, %v5758
    %v5760 = vmin.f32 %v5759, 1.0
    %v5761 = vmax.f32 %v5760, -1.0
    %v5762 = vmul.f32 %v5668, %v5668
    %v5763 = vmin.f32 16.0, %v5762
    %v5764 = vmul.f32 %v5763, 2.1237322e-06
    %v5765 = vadd.f32 %v5764, 0.00028619796
    %v5766 = vmul.f32 %v5763, %v5765
    %v5767 = vadd.f32 %v5766, 0.0036580483
    %v5768 = vmul.f32 %v5763, %v5767
    %v5769 = vadd.f32 %v5768, 0.05243302
    %v5770 = vmul.f32 %v5763, %v5769
    %v5771 = vadd.f32 %v5770, 0.18741608
    %v5772 = vmul.f32 %v5763, %v5771
    %v5773 = vadd.f32 %v5772, 1.1283791
    %v5774 = vmul.f32 %v5668, %v5773
    %v5775 = vmul.f32 %v5763, 3.8918573e-05
    %v5776 = vadd.f32 %v5775, 0.001143296
    %v5777 = vmul.f32 %v5763, %v5776
    %v5778 = vadd.f32 %v5777, 0.014752088
    %v5779 = vmul.f32 %v5763, %v5778
    %v5780 = vadd.f32 %v5779, 0.112945676
    %v5781 = vmul.f32 %v5763, %v5780
    %v5782 = vadd.f32 %v5781, 0.4994258
    %v5783 = vmul.f32 %v5763, %v5782
    %v5784 = vadd.f32 %v5783, 1.0
    %v5785 = vrcp.pop %v5784
    %v5786 = vmul.f32 %v5784, %v5785
    %v5787 = vsub.f32 1.0, %v5786
    %v5788 = vmul.f32 %v5785, %v5787
    %v5789 = vadd.f32 %v5785, %v5788
    %vm5790 = vweird.f32 %v5784
    %vm5791 = vweird.f32 %v5785
    %vm5792 = vmor %vm5790, %vm5791
    %v5793 = vsel %vm5792, %v5785, %v5789
    %v5794 = vand.u32 2147483647, %v5784
    %vm5795 = vcmp.eq.f32.partialorder %v5794, 8.507059e+37
    %v5796 = vand.u32 %v5784, 2147483648
    %v5797 = vor.u32 1.1754944e-38, %v5796
    %v5798 = vsel %vm5795, %v5797, %v5793
    %v5799 = vmul.f32 %v5774, %v5798
    %v5800 = vmin.f32 %v5799, 1.0
    %v5801 = vmax.f32 %v5800, -1.0
    %v5802 = vmul.f32 %v5669, %v5669
    %v5803 = vmin.f32 16.0, %v5802
    %v5804 = vmul.f32 %v5803, 2.1237322e-06
    %v5805 = vadd.f32 %v5804, 0.00028619796
    %v5806 = vmul.f32 %v5803, %v5805
    %v5807 = vadd.f32 %v5806, 0.0036580483
    %v5808 = vmul.f32 %v5803, %v5807
    %v5809 = vadd.f32 %v5808, 0.05243302
    %v5810 = vmul.f32 %v5803, %v5809
    %v5811 = vadd.f32 %v5810, 0.18741608
    %v5812 = vmul.f32 %v5803, %v5811
    %v5813 = vadd.f32 %v5812, 1.1283791
    %v5814 = vmul.f32 %v5669, %v5813
    %v5815 = vmul.f32 %v5803, 3.8918573e-05
    %v5816 = vadd.f32 %v5815, 0.001143296
    %v5817 = vmul.f32 %v5803, %v5816
    %v5818 = vadd.f32 %v5817, 0.014752088
    %v5819 = vmul.f32 %v5803, %v5818
    %v5820 = vadd.f32 %v5819, 0.112945676
    %v5821 = vmul.f32 %v5803, %v5820
    %v5822 = vadd.f32 %v5821, 0.4994258
    %v5823 = vmul.f32 %v5803, %v5822
    %v5824 = vadd.f32 %v5823, 1.0
    %v5825 = vrcp.pop %v5824
    %v5826 = vmul.f32 %v5824, %v5825
    %v5827 = vsub.f32 1.0, %v5826
    %v5828 = vmul.f32 %v5825, %v5827
    %v5829 = vadd.f32 %v5825, %v5828
    %vm5830 = vweird.f32 %v5824
    %vm5831 = vweird.f32 %v5825
    %vm5832 = vmor %vm5830, %vm5831
    %v5833 = vsel %vm5832, %v5825, %v5829
    %v5834 = vand.u32 2147483647, %v5824
    %vm5835 = vcmp.eq.f32.partialorder %v5834, 8.507059e+37
    %v5836 = vand.u32 %v5824, 2147483648
    %v5837 = vor.u32 1.1754944e-38, %v5836
    %v5838 = vsel %vm5835, %v5837, %v5833
    %v5839 = vmul.f32 %v5814, %v5838
    %v5840 = vmin.f32 %v5839, 1.0
    %v5841 = vmax.f32 %v5840, -1.0
    %v5842 = vmul.f32 %v5670, %v5670
    %v5843 = vmin.f32 16.0, %v5842
    %v5844 = vmul.f32 %v5843, 2.1237322e-06
    %v5845 = vadd.f32 %v5844, 0.00028619796
    %v5846 = vmul.f32 %v5843, %v5845
    %v5847 = vadd.f32 %v5846, 0.0036580483
    %v5848 = vmul.f32 %v5843, %v5847
    %v5849 = vadd.f32 %v5848, 0.05243302
    %v5850 = vmul.f32 %v5843, %v5849
    %v5851 = vadd.f32 %v5850, 0.18741608
    %v5852 = vmul.f32 %v5843, %v5851
    %v5853 = vadd.f32 %v5852, 1.1283791
    %v5854 = vmul.f32 %v5670, %v5853
    %v5855 = vmul.f32 %v5843, 3.8918573e-05
    %v5856 = vadd.f32 %v5855, 0.001143296
    %v5857 = vmul.f32 %v5843, %v5856
    %v5858 = vadd.f32 %v5857, 0.014752088
    %v5859 = vmul.f32 %v5843, %v5858
    %v5860 = vadd.f32 %v5859, 0.112945676
    %v5861 = vmul.f32 %v5843, %v5860
    %v5862 = vadd.f32 %v5861, 0.4994258
    %v5863 = vmul.f32 %v5843, %v5862
    %v5864 = vadd.f32 %v5863, 1.0
    %v5865 = vrcp.pop %v5864
    %v5866 = vmul.f32 %v5864, %v5865
    %v5867 = vsub.f32 1.0, %v5866
    %v5868 = vmul.f32 %v5865, %v5867
    %v5869 = vadd.f32 %v5865, %v5868
    %vm5870 = vweird.f32 %v5864
    %vm5871 = vweird.f32 %v5865
    %vm5872 = vmor %vm5870, %vm5871
    %v5873 = vsel %vm5872, %v5865, %v5869
    %v5874 = vand.u32 2147483647, %v5864
    %vm5875 = vcmp.eq.f32.partialorder %v5874, 8.507059e+37
    %v5876 = vand.u32 %v5864, 2147483648
    %v5877 = vor.u32 1.1754944e-38, %v5876
    %v5878 = vsel %vm5875, %v5877, %v5873
    %v5879 = vmul.f32 %v5854, %v5878
    %v5880 = vmin.f32 %v5879, 1.0
    %v5881 = vmax.f32 %v5880, -1.0
    %v5882 = vmul.f32 %v5671, %v5671
    %v5883 = vmin.f32 16.0, %v5882
    %v5884 = vmul.f32 %v5883, 2.1237322e-06
    %v5885 = vadd.f32 %v5884, 0.00028619796
    %v5886 = vmul.f32 %v5883, %v5885
    %v5887 = vadd.f32 %v5886, 0.0036580483
    %v5888 = vmul.f32 %v5883, %v5887
    %v5889 = vadd.f32 %v5888, 0.05243302
    %v5890 = vmul.f32 %v5883, %v5889
    %v5891 = vadd.f32 %v5890, 0.18741608
    %v5892 = vmul.f32 %v5883, %v5891
    %v5893 = vadd.f32 %v5892, 1.1283791
    %v5894 = vmul.f32 %v5671, %v5893
    %v5895 = vmul.f32 %v5883, 3.8918573e-05
    %v5896 = vadd.f32 %v5895, 0.001143296
    %v5897 = vmul.f32 %v5883, %v5896
    %v5898 = vadd.f32 %v5897, 0.014752088
    %v5899 = vmul.f32 %v5883, %v5898
    %v5900 = vadd.f32 %v5899, 0.112945676
    %v5901 = vmul.f32 %v5883, %v5900
    %v5902 = vadd.f32 %v5901, 0.4994258
    %v5903 = vmul.f32 %v5883, %v5902
    %v5904 = vadd.f32 %v5903, 1.0
    %v5905 = vrcp.pop %v5904
    %v5906 = vmul.f32 %v5904, %v5905
    %v5907 = vsub.f32 1.0, %v5906
    %v5908 = vmul.f32 %v5905, %v5907
    %v5909 = vadd.f32 %v5905, %v5908
    %vm5910 = vweird.f32 %v5904
    %vm5911 = vweird.f32 %v5905
    %vm5912 = vmor %vm5910, %vm5911
    %v5913 = vsel %vm5912, %v5905, %v5909
    %v5914 = vand.u32 2147483647, %v5904
    %vm5915 = vcmp.eq.f32.partialorder %v5914, 8.507059e+37
    %v5916 = vand.u32 %v5904, 2147483648
    %v5917 = vor.u32 1.1754944e-38, %v5916
    %v5918 = vsel %vm5915, %v5917, %v5913
    %v5919 = vmul.f32 %v5894, %v5918
    %v5920 = vmin.f32 %v5919, 1.0
    %v5921 = vmax.f32 %v5920, -1.0
    %v5922 = vmul.f32 %v5672, %v5672
    %v5923 = vmin.f32 16.0, %v5922
    %v5924 = vmul.f32 %v5923, 2.1237322e-06
    %v5925 = vadd.f32 %v5924, 0.00028619796
    %v5926 = vmul.f32 %v5923, %v5925
    %v5927 = vadd.f32 %v5926, 0.0036580483
    %v5928 = vmul.f32 %v5923, %v5927
    %v5929 = vadd.f32 %v5928, 0.05243302
    %v5930 = vmul.f32 %v5923, %v5929
    %v5931 = vadd.f32 %v5930, 0.18741608
    %v5932 = vmul.f32 %v5923, %v5931
    %v5933 = vadd.f32 %v5932, 1.1283791
    %v5934 = vmul.f32 %v5672, %v5933
    %v5935 = vmul.f32 %v5923, 3.8918573e-05
    %v5936 = vadd.f32 %v5935, 0.001143296
    %v5937 = vmul.f32 %v5923, %v5936
    %v5938 = vadd.f32 %v5937, 0.014752088
    %v5939 = vmul.f32 %v5923, %v5938
    %v5940 = vadd.f32 %v5939, 0.112945676
    %v5941 = vmul.f32 %v5923, %v5940
    %v5942 = vadd.f32 %v5941, 0.4994258
    %v5943 = vmul.f32 %v5923, %v5942
    %v5944 = vadd.f32 %v5943, 1.0
    %v5945 = vrcp.pop %v5944
    %v5946 = vmul.f32 %v5944, %v5945
    %v5947 = vsub.f32 1.0, %v5946
    %v5948 = vmul.f32 %v5945, %v5947
    %v5949 = vadd.f32 %v5945, %v5948
    %vm5950 = vweird.f32 %v5944
    %vm5951 = vweird.f32 %v5945
    %vm5952 = vmor %vm5950, %vm5951
    %v5953 = vsel %vm5952, %v5945, %v5949
    %v5954 = vand.u32 2147483647, %v5944
    %vm5955 = vcmp.eq.f32.partialorder %v5954, 8.507059e+37
    %v5956 = vand.u32 %v5944, 2147483648
    %v5957 = vor.u32 1.1754944e-38, %v5956
    %v5958 = vsel %vm5955, %v5957, %v5953
    %v5959 = vmul.f32 %v5934, %v5958
    %v5960 = vmin.f32 %v5959, 1.0
    %v5961 = vmax.f32 %v5960, -1.0
    %v5962 = vmul.f32 %v5673, %v5673
    %v5963 = vmin.f32 16.0, %v5962
    %v5964 = vmul.f32 %v5963, 2.1237322e-06
    %v5965 = vadd.f32 %v5964, 0.00028619796
    %v5966 = vmul.f32 %v5963, %v5965
    %v5967 = vadd.f32 %v5966, 0.0036580483
    %v5968 = vmul.f32 %v5963, %v5967
    %v5969 = vadd.f32 %v5968, 0.05243302
    %v5970 = vmul.f32 %v5963, %v5969
    %v5971 = vadd.f32 %v5970, 0.18741608
    %v5972 = vmul.f32 %v5963, %v5971
    %v5973 = vadd.f32 %v5972, 1.1283791
    %v5974 = vmul.f32 %v5673, %v5973
    %v5975 = vmul.f32 %v5963, 3.8918573e-05
    %v5976 = vadd.f32 %v5975, 0.001143296
    %v5977 = vmul.f32 %v5963, %v5976
    %v5978 = vadd.f32 %v5977, 0.014752088
    %v5979 = vmul.f32 %v5963, %v5978
    %v5980 = vadd.f32 %v5979, 0.112945676
    %v5981 = vmul.f32 %v5963, %v5980
    %v5982 = vadd.f32 %v5981, 0.4994258
    %v5983 = vmul.f32 %v5963, %v5982
    %v5984 = vadd.f32 %v5983, 1.0
    %v5985 = vrcp.pop %v5984
    %v5986 = vmul.f32 %v5984, %v5985
    %v5987 = vsub.f32 1.0, %v5986
    %v5988 = vmul.f32 %v5985, %v5987
    %v5989 = vadd.f32 %v5985, %v5988
    %vm5990 = vweird.f32 %v5984
    %vm5991 = vweird.f32 %v5985
    %vm5992 = vmor %vm5990, %vm5991
    %v5993 = vsel %vm5992, %v5985, %v5989
    %v5994 = vand.u32 2147483647, %v5984
    %vm5995 = vcmp.eq.f32.partialorder %v5994, 8.507059e+37
    %v5996 = vand.u32 %v5984, 2147483648
    %v5997 = vor.u32 1.1754944e-38, %v5996
    %v5998 = vsel %vm5995, %v5997, %v5993
    %v5999 = vmul.f32 %v5974, %v5998
    %v6000 = vmin.f32 %v5999, 1.0
    %v6001 = vmax.f32 %v6000, -1.0
    %v6002 = vmul.f32 %v5674, %v5674
    %v6003 = vmin.f32 16.0, %v6002
    %v6004 = vmul.f32 %v6003, 2.1237322e-06
    %v6005 = vadd.f32 %v6004, 0.00028619796
    %v6006 = vmul.f32 %v6003, %v6005
    %v6007 = vadd.f32 %v6006, 0.0036580483
    %v6008 = vmul.f32 %v6003, %v6007
    %v6009 = vadd.f32 %v6008, 0.05243302
    %v6010 = vmul.f32 %v6003, %v6009
    %v6011 = vadd.f32 %v6010, 0.18741608
    %v6012 = vmul.f32 %v6003, %v6011
    %v6013 = vadd.f32 %v6012, 1.1283791
    %v6014 = vmul.f32 %v5674, %v6013
    %v6015 = vmul.f32 %v6003, 3.8918573e-05
    %v6016 = vadd.f32 %v6015, 0.001143296
    %v6017 = vmul.f32 %v6003, %v6016
    %v6018 = vadd.f32 %v6017, 0.014752088
    %v6019 = vmul.f32 %v6003, %v6018
    %v6020 = vadd.f32 %v6019, 0.112945676
    %v6021 = vmul.f32 %v6003, %v6020
    %v6022 = vadd.f32 %v6021, 0.4994258
    %v6023 = vmul.f32 %v6003, %v6022
    %v6024 = vadd.f32 %v6023, 1.0
    %v6025 = vrcp.pop %v6024
    %v6026 = vmul.f32 %v6024, %v6025
    %v6027 = vsub.f32 1.0, %v6026
    %v6028 = vmul.f32 %v6025, %v6027
    %v6029 = vadd.f32 %v6025, %v6028
    %vm6030 = vweird.f32 %v6024
    %vm6031 = vweird.f32 %v6025
    %vm6032 = vmor %vm6030, %vm6031
    %v6033 = vsel %vm6032, %v6025, %v6029
    %v6034 = vand.u32 2147483647, %v6024
    %vm6035 = vcmp.eq.f32.partialorder %v6034, 8.507059e+37
    %v6036 = vand.u32 %v6024, 2147483648
    %v6037 = vor.u32 1.1754944e-38, %v6036
    %v6038 = vsel %vm6035, %v6037, %v6033
    %v6039 = vmul.f32 %v6014, %v6038
    %v6040 = vmin.f32 %v6039, 1.0
    %v6041 = vmax.f32 %v6040, -1.0
    %v6042 = vmul.f32 %v5675, %v5675
    %v6043 = vmin.f32 16.0, %v6042
    %v6044 = vmul.f32 %v6043, 2.1237322e-06
    %v6045 = vadd.f32 %v6044, 0.00028619796
    %v6046 = vmul.f32 %v6043, %v6045
    %v6047 = vadd.f32 %v6046, 0.0036580483
    %v6048 = vmul.f32 %v6043, %v6047
    %v6049 = vadd.f32 %v6048, 0.05243302
    %v6050 = vmul.f32 %v6043, %v6049
    %v6051 = vadd.f32 %v6050, 0.18741608
    %v6052 = vmul.f32 %v6043, %v6051
    %v6053 = vadd.f32 %v6052, 1.1283791
    %v6054 = vmul.f32 %v5675, %v6053
    %v6055 = vmul.f32 %v6043, 3.8918573e-05
    %v6056 = vadd.f32 %v6055, 0.001143296
    %v6057 = vmul.f32 %v6043, %v6056
    %v6058 = vadd.f32 %v6057, 0.014752088
    %v6059 = vmul.f32 %v6043, %v6058
    %v6060 = vadd.f32 %v6059, 0.112945676
    %v6061 = vmul.f32 %v6043, %v6060
    %v6062 = vadd.f32 %v6061, 0.4994258
    %v6063 = vmul.f32 %v6043, %v6062
    %v6064 = vadd.f32 %v6063, 1.0
    %v6065 = vrcp.pop %v6064
    %v6066 = vmul.f32 %v6064, %v6065
    %v6067 = vsub.f32 1.0, %v6066
    %v6068 = vmul.f32 %v6065, %v6067
    %v6069 = vadd.f32 %v6065, %v6068
    %vm6070 = vweird.f32 %v6064
    %vm6071 = vweird.f32 %v6065
    %vm6072 = vmor %vm6070, %vm6071
    %v6073 = vsel %vm6072, %v6065, %v6069
    %v6074 = vand.u32 2147483647, %v6064
    %vm6075 = vcmp.eq.f32.partialorder %v6074, 8.507059e+37
    %v6076 = vand.u32 %v6064, 2147483648
    %v6077 = vor.u32 1.1754944e-38, %v6076
    %v6078 = vsel %vm6075, %v6077, %v6073
    %v6079 = vmul.f32 %v6054, %v6078
    %v6080 = vmin.f32 %v6079, 1.0
    %v6081 = vmax.f32 %v6080, -1.0
    %v6082 = vmul.f32 %v5676, %v5676
    %v6083 = vmin.f32 16.0, %v6082
    %v6084 = vmul.f32 %v6083, 2.1237322e-06
    %v6085 = vadd.f32 %v6084, 0.00028619796
    %v6086 = vmul.f32 %v6083, %v6085
    %v6087 = vadd.f32 %v6086, 0.0036580483
    %v6088 = vmul.f32 %v6083, %v6087
    %v6089 = vadd.f32 %v6088, 0.05243302
    %v6090 = vmul.f32 %v6083, %v6089
    %v6091 = vadd.f32 %v6090, 0.18741608
    %v6092 = vmul.f32 %v6083, %v6091
    %v6093 = vadd.f32 %v6092, 1.1283791
    %v6094 = vmul.f32 %v5676, %v6093
    %v6095 = vmul.f32 %v6083, 3.8918573e-05
    %v6096 = vadd.f32 %v6095, 0.001143296
    %v6097 = vmul.f32 %v6083, %v6096
    %v6098 = vadd.f32 %v6097, 0.014752088
    %v6099 = vmul.f32 %v6083, %v6098
    %v6100 = vadd.f32 %v6099, 0.112945676
    %v6101 = vmul.f32 %v6083, %v6100
    %v6102 = vadd.f32 %v6101, 0.4994258
    %v6103 = vmul.f32 %v6083, %v6102
    %v6104 = vadd.f32 %v6103, 1.0
    %v6105 = vrcp.pop %v6104
    %v6106 = vmul.f32 %v6104, %v6105
    %v6107 = vsub.f32 1.0, %v6106
    %v6108 = vmul.f32 %v6105, %v6107
    %v6109 = vadd.f32 %v6105, %v6108
    %vm6110 = vweird.f32 %v6104
    %vm6111 = vweird.f32 %v6105
    %vm6112 = vmor %vm6110, %vm6111
    %v6113 = vsel %vm6112, %v6105, %v6109
    %v6114 = vand.u32 2147483647, %v6104
    %vm6115 = vcmp.eq.f32.partialorder %v6114, 8.507059e+37
    %v6116 = vand.u32 %v6104, 2147483648
    %v6117 = vor.u32 1.1754944e-38, %v6116
    %v6118 = vsel %vm6115, %v6117, %v6113
    %v6119 = vmul.f32 %v6094, %v6118
    %v6120 = vmin.f32 %v6119, 1.0
    %v6121 = vmax.f32 %v6120, -1.0
    %v6122 = vmul.f32 %v5677, %v5677
    %v6123 = vmin.f32 16.0, %v6122
    %v6124 = vmul.f32 %v6123, 2.1237322e-06
    %v6125 = vadd.f32 %v6124, 0.00028619796
    %v6126 = vmul.f32 %v6123, %v6125
    %v6127 = vadd.f32 %v6126, 0.0036580483
    %v6128 = vmul.f32 %v6123, %v6127
    %v6129 = vadd.f32 %v6128, 0.05243302
    %v6130 = vmul.f32 %v6123, %v6129
    %v6131 = vadd.f32 %v6130, 0.18741608
    %v6132 = vmul.f32 %v6123, %v6131
    %v6133 = vadd.f32 %v6132, 1.1283791
    %v6134 = vmul.f32 %v5677, %v6133
    %v6135 = vmul.f32 %v6123, 3.8918573e-05
    %v6136 = vadd.f32 %v6135, 0.001143296
    %v6137 = vmul.f32 %v6123, %v6136
    %v6138 = vadd.f32 %v6137, 0.014752088
    %v6139 = vmul.f32 %v6123, %v6138
    %v6140 = vadd.f32 %v6139, 0.112945676
    %v6141 = vmul.f32 %v6123, %v6140
    %v6142 = vadd.f32 %v6141, 0.4994258
    %v6143 = vmul.f32 %v6123, %v6142
    %v6144 = vadd.f32 %v6143, 1.0
    %v6145 = vrcp.pop %v6144
    %v6146 = vmul.f32 %v6144, %v6145
    %v6147 = vsub.f32 1.0, %v6146
    %v6148 = vmul.f32 %v6145, %v6147
    %v6149 = vadd.f32 %v6145, %v6148
    %vm6150 = vweird.f32 %v6144
    %vm6151 = vweird.f32 %v6145
    %vm6152 = vmor %vm6150, %vm6151
    %v6153 = vsel %vm6152, %v6145, %v6149
    %v6154 = vand.u32 2147483647, %v6144
    %vm6155 = vcmp.eq.f32.partialorder %v6154, 8.507059e+37
    %v6156 = vand.u32 %v6144, 2147483648
    %v6157 = vor.u32 1.1754944e-38, %v6156
    %v6158 = vsel %vm6155, %v6157, %v6153
    %v6159 = vmul.f32 %v6134, %v6158
    %v6160 = vmin.f32 %v6159, 1.0
    %v6161 = vmax.f32 %v6160, -1.0
    %v6162 = vmul.f32 %v5678, %v5678
    %v6163 = vmin.f32 16.0, %v6162
    %v6164 = vmul.f32 %v6163, 2.1237322e-06
    %v6165 = vadd.f32 %v6164, 0.00028619796
    %v6166 = vmul.f32 %v6163, %v6165
    %v6167 = vadd.f32 %v6166, 0.0036580483
    %v6168 = vmul.f32 %v6163, %v6167
    %v6169 = vadd.f32 %v6168, 0.05243302
    %v6170 = vmul.f32 %v6163, %v6169
    %v6171 = vadd.f32 %v6170, 0.18741608
    %v6172 = vmul.f32 %v6163, %v6171
    %v6173 = vadd.f32 %v6172, 1.1283791
    %v6174 = vmul.f32 %v5678, %v6173
    %v6175 = vmul.f32 %v6163, 3.8918573e-05
    %v6176 = vadd.f32 %v6175, 0.001143296
    %v6177 = vmul.f32 %v6163, %v6176
    %v6178 = vadd.f32 %v6177, 0.014752088
    %v6179 = vmul.f32 %v6163, %v6178
    %v6180 = vadd.f32 %v6179, 0.112945676
    %v6181 = vmul.f32 %v6163, %v6180
    %v6182 = vadd.f32 %v6181, 0.4994258
    %v6183 = vmul.f32 %v6163, %v6182
    %v6184 = vadd.f32 %v6183, 1.0
    %v6185 = vrcp.pop %v6184
    %v6186 = vmul.f32 %v6184, %v6185
    %v6187 = vsub.f32 1.0, %v6186
    %v6188 = vmul.f32 %v6185, %v6187
    %v6189 = vadd.f32 %v6185, %v6188
    %vm6190 = vweird.f32 %v6184
    %vm6191 = vweird.f32 %v6185
    %vm6192 = vmor %vm6190, %vm6191
    %v6193 = vsel %vm6192, %v6185, %v6189
    %v6194 = vand.u32 2147483647, %v6184
    %vm6195 = vcmp.eq.f32.partialorder %v6194, 8.507059e+37
    %v6196 = vand.u32 %v6184, 2147483648
    %v6197 = vor.u32 1.1754944e-38, %v6196
    %v6198 = vsel %vm6195, %v6197, %v6193
    %v6199 = vmul.f32 %v6174, %v6198
    %v6200 = vmin.f32 %v6199, 1.0
    %v6201 = vmax.f32 %v6200, -1.0
    %v6202 = vmul.f32 %v5679, %v5679
    %v6203 = vmin.f32 16.0, %v6202
    %v6204 = vmul.f32 %v6203, 2.1237322e-06
    %v6205 = vadd.f32 %v6204, 0.00028619796
    %v6206 = vmul.f32 %v6203, %v6205
    %v6207 = vadd.f32 %v6206, 0.0036580483
    %v6208 = vmul.f32 %v6203, %v6207
    %v6209 = vadd.f32 %v6208, 0.05243302
    %v6210 = vmul.f32 %v6203, %v6209
    %v6211 = vadd.f32 %v6210, 0.18741608
    %v6212 = vmul.f32 %v6203, %v6211
    %v6213 = vadd.f32 %v6212, 1.1283791
    %v6214 = vmul.f32 %v5679, %v6213
    %v6215 = vmul.f32 %v6203, 3.8918573e-05
    %v6216 = vadd.f32 %v6215, 0.001143296
    %v6217 = vmul.f32 %v6203, %v6216
    %v6218 = vadd.f32 %v6217, 0.014752088
    %v6219 = vmul.f32 %v6203, %v6218
    %v6220 = vadd.f32 %v6219, 0.112945676
    %v6221 = vmul.f32 %v6203, %v6220
    %v6222 = vadd.f32 %v6221, 0.4994258
    %v6223 = vmul.f32 %v6203, %v6222
    %v6224 = vadd.f32 %v6223, 1.0
    %v6225 = vrcp.pop %v6224
    %v6226 = vmul.f32 %v6224, %v6225
    %v6227 = vsub.f32 1.0, %v6226
    %v6228 = vmul.f32 %v6225, %v6227
    %v6229 = vadd.f32 %v6225, %v6228
    %vm6230 = vweird.f32 %v6224
    %vm6231 = vweird.f32 %v6225
    %vm6232 = vmor %vm6230, %vm6231
    %v6233 = vsel %vm6232, %v6225, %v6229
    %v6234 = vand.u32 2147483647, %v6224
    %vm6235 = vcmp.eq.f32.partialorder %v6234, 8.507059e+37
    %v6236 = vand.u32 %v6224, 2147483648
    %v6237 = vor.u32 1.1754944e-38, %v6236
    %v6238 = vsel %vm6235, %v6237, %v6233
    %v6239 = vmul.f32 %v6214, %v6238
    %v6240 = vmin.f32 %v6239, 1.0
    %v6241 = vmax.f32 %v6240, -1.0
    %v6242 = vmul.f32 %v5680, %v5680
    %v6243 = vmin.f32 16.0, %v6242
    %v6244 = vmul.f32 %v6243, 2.1237322e-06
    %v6245 = vadd.f32 %v6244, 0.00028619796
    %v6246 = vmul.f32 %v6243, %v6245
    %v6247 = vadd.f32 %v6246, 0.0036580483
    %v6248 = vmul.f32 %v6243, %v6247
    %v6249 = vadd.f32 %v6248, 0.05243302
    %v6250 = vmul.f32 %v6243, %v6249
    %v6251 = vadd.f32 %v6250, 0.18741608
    %v6252 = vmul.f32 %v6243, %v6251
    %v6253 = vadd.f32 %v6252, 1.1283791
    %v6254 = vmul.f32 %v5680, %v6253
    %v6255 = vmul.f32 %v6243, 3.8918573e-05
    %v6256 = vadd.f32 %v6255, 0.001143296
    %v6257 = vmul.f32 %v6243, %v6256
    %v6258 = vadd.f32 %v6257, 0.014752088
    %v6259 = vmul.f32 %v6243, %v6258
    %v6260 = vadd.f32 %v6259, 0.112945676
    %v6261 = vmul.f32 %v6243, %v6260
    %v6262 = vadd.f32 %v6261, 0.4994258
    %v6263 = vmul.f32 %v6243, %v6262
    %v6264 = vadd.f32 %v6263, 1.0
    %v6265 = vrcp.pop %v6264
    %v6266 = vmul.f32 %v6264, %v6265
    %v6267 = vsub.f32 1.0, %v6266
    %v6268 = vmul.f32 %v6265, %v6267
    %v6269 = vadd.f32 %v6265, %v6268
    %vm6270 = vweird.f32 %v6264
    %vm6271 = vweird.f32 %v6265
    %vm6272 = vmor %vm6270, %vm6271
    %v6273 = vsel %vm6272, %v6265, %v6269
    %v6274 = vand.u32 2147483647, %v6264
    %vm6275 = vcmp.eq.f32.partialorder %v6274, 8.507059e+37
    %v6276 = vand.u32 %v6264, 2147483648
    %v6277 = vor.u32 1.1754944e-38, %v6276
    %v6278 = vsel %vm6275, %v6277, %v6273
    %v6279 = vmul.f32 %v6254, %v6278
    %v6280 = vmin.f32 %v6279, 1.0
    %v6281 = vmax.f32 %v6280, -1.0
    %v6282 = vmul.f32 %v5681, %v5681
    %v6283 = vmin.f32 16.0, %v6282
    %v6284 = vmul.f32 %v6283, 2.1237322e-06
    %v6285 = vadd.f32 %v6284, 0.00028619796
    %v6286 = vmul.f32 %v6283, %v6285
    %v6287 = vadd.f32 %v6286, 0.0036580483
    %v6288 = vmul.f32 %v6283, %v6287
    %v6289 = vadd.f32 %v6288, 0.05243302
    %v6290 = vmul.f32 %v6283, %v6289
    %v6291 = vadd.f32 %v6290, 0.18741608
    %v6292 = vmul.f32 %v6283, %v6291
    %v6293 = vadd.f32 %v6292, 1.1283791
    %v6294 = vmul.f32 %v5681, %v6293
    %v6295 = vmul.f32 %v6283, 3.8918573e-05
    %v6296 = vadd.f32 %v6295, 0.001143296
    %v6297 = vmul.f32 %v6283, %v6296
    %v6298 = vadd.f32 %v6297, 0.014752088
    %v6299 = vmul.f32 %v6283, %v6298
    %v6300 = vadd.f32 %v6299, 0.112945676
    %v6301 = vmul.f32 %v6283, %v6300
    %v6302 = vadd.f32 %v6301, 0.4994258
    %v6303 = vmul.f32 %v6283, %v6302
    %v6304 = vadd.f32 %v6303, 1.0
    %v6305 = vrcp.pop %v6304
    %v6306 = vmul.f32 %v6304, %v6305
    %v6307 = vsub.f32 1.0, %v6306
    %v6308 = vmul.f32 %v6305, %v6307
    %v6309 = vadd.f32 %v6305, %v6308
    %vm6310 = vweird.f32 %v6304
    %vm6311 = vweird.f32 %v6305
    %vm6312 = vmor %vm6310, %vm6311
    %v6313 = vsel %vm6312, %v6305, %v6309
    %v6314 = vand.u32 2147483647, %v6304
    %vm6315 = vcmp.eq.f32.partialorder %v6314, 8.507059e+37
    %v6316 = vand.u32 %v6304, 2147483648
    %v6317 = vor.u32 1.1754944e-38, %v6316
    %v6318 = vsel %vm6315, %v6317, %v6313
    %v6319 = vmul.f32 %v6294, %v6318
    %v6320 = vmin.f32 %v6319, 1.0
    %v6321 = vmax.f32 %v6320, -1.0
    %v6322 = vadd.f32 %v5721, 1.0
    %v6323 = vadd.f32 %v5761, 1.0
    %v6324 = vadd.f32 %v5801, 1.0
    %v6325 = vadd.f32 %v5841, 1.0
    %v6326 = vadd.f32 %v5881, 1.0
    %v6327 = vadd.f32 %v5921, 1.0
    %v6328 = vadd.f32 %v5961, 1.0
    %v6329 = vadd.f32 %v6001, 1.0
    %v6330 = vadd.f32 %v6041, 1.0
    %v6331 = vadd.f32 %v6081, 1.0
    %v6332 = vadd.f32 %v6121, 1.0
    %v6333 = vadd.f32 %v6161, 1.0
    %v6334 = vadd.f32 %v6201, 1.0
    %v6335 = vadd.f32 %v6241, 1.0
    %v6336 = vadd.f32 %v6281, 1.0
    %v6337 = vadd.f32 %v6321, 1.0
    %v6338 = vmul.f32 %v5650, %v6322
    %v6339 = vmul.f32 %v5651, %v6323
    %v6340 = vmul.f32 %v5652, %v6324
    %v6341 = vmul.f32 %v5653, %v6325
    %v6342 = vmul.f32 %v5654, %v6326
    %v6343 = vmul.f32 %v5655, %v6327
    %v6344 = vmul.f32 %v5656, %v6328
    %v6345 = vmul.f32 %v5657, %v6329
    %v6346 = vmul.f32 %v5658, %v6330
    %v6347 = vmul.f32 %v5659, %v6331
    %v6348 = vmul.f32 %v5660, %v6332
    %v6349 = vmul.f32 %v5661, %v6333
    %v6350 = vmul.f32 %v5662, %v6334
    %v6351 = vmul.f32 %v5663, %v6335
    %v6352 = vmul.f32 %v5664, %v6336
    %v6353 = vmul.f32 %v5665, %v6337
    %v6354 = vld [vmem:[%s23] sm:$0xff]
    %v6355 = vld [vmem:[%s23 + $0x8] sm:$0xff]
    %v6356 = vld [vmem:[%s23 + $0x10] sm:$0xff]
    %v6357 = vld [vmem:[%s23 + $0x18] sm:$0xff]
    %v6358 = vld [vmem:[%s23 + $0x20] sm:$0xff]
    %v6359 = vld [vmem:[%s23 + $0x28] sm:$0xff]
    %v6360 = vld [vmem:[%s23 + $0x30] sm:$0xff]
    %v6361 = vld [vmem:[%s23 + $0x38] sm:$0xff]
    %v6362 = vld [vmem:[%s23 + $0x40] sm:$0xff]
    %v6363 = vld [vmem:[%s23 + $0x48] sm:$0xff]
    %v6364 = vld [vmem:[%s23 + $0x50] sm:$0xff]
    %v6365 = vld [vmem:[%s23 + $0x58] sm:$0xff]
    %v6366 = vld [vmem:[%s23 + $0x60] sm:$0xff]
    %v6367 = vld [vmem:[%s23 + $0x68] sm:$0xff]
    %v6368 = vld [vmem:[%s23 + $0x70] sm:$0xff]
    %v6369 = vld [vmem:[%s23 + $0x78] sm:$0xff]
    %v6370 = vld [vmem:[%s23 + $0x80] sm:$0xff]
    %v6371 = vld [vmem:[%s23 + $0x88] sm:$0xff]
    %v6372 = vld [vmem:[%s23 + $0x90] sm:$0xff]
    %v6373 = vld [vmem:[%s23 + $0x98] sm:$0xff]
    %v6374 = vld [vmem:[%s23 + $0xa0] sm:$0xff]
    %v6375 = vld [vmem:[%s23 + $0xa8] sm:$0xff]
    %v6376 = vld [vmem:[%s23 + $0xb0] sm:$0xff]
    %v6377 = vld [vmem:[%s23 + $0xb8] sm:$0xff]
    %v6378 = vld [vmem:[%s23 + $0xc0] sm:$0xff]
    %v6379 = vld [vmem:[%s23 + $0xc8] sm:$0xff]
    %v6380 = vld [vmem:[%s23 + $0xd0] sm:$0xff]
    %v6381 = vld [vmem:[%s23 + $0xd8] sm:$0xff]
    %v6382 = vld [vmem:[%s23 + $0xe0] sm:$0xff]
    %v6383 = vld [vmem:[%s23 + $0xe8] sm:$0xff]
    %v6384 = vld [vmem:[%s23 + $0xf0] sm:$0xff]
    %v6385 = vld [vmem:[%s23 + $0xf8] sm:$0xff]
    %v6386 = vld [vmem:[%s23 + $0x100] sm:$0xff]
    %v6387 = vld [vmem:[%s23 + $0x108] sm:$0xff]
    %v6388 = vld [vmem:[%s23 + $0x110] sm:$0xff]
    %v6389 = vld [vmem:[%s23 + $0x118] sm:$0xff]
    %v6390 = vld [vmem:[%s23 + $0x120] sm:$0xff]
    %v6391 = vld [vmem:[%s23 + $0x128] sm:$0xff]
    %v6392 = vld [vmem:[%s23 + $0x130] sm:$0xff]
    %v6393 = vld [vmem:[%s23 + $0x138] sm:$0xff]
    %v6394 = vld [vmem:[%s23 + $0x140] sm:$0xff]
    %v6395 = vld [vmem:[%s23 + $0x148] sm:$0xff]
    %v6396 = vld [vmem:[%s23 + $0x150] sm:$0xff]
    %v6397 = vld [vmem:[%s23 + $0x158] sm:$0xff]
    %v6398 = vld [vmem:[%s23 + $0x160] sm:$0xff]
    %v6399 = vld [vmem:[%s23 + $0x168] sm:$0xff]
    %v6400 = vld [vmem:[%s23 + $0x170] sm:$0xff]
    %v6401 = vld [vmem:[%s23 + $0x178] sm:$0xff]
    %v6402 = vld [vmem:[%s23 + $0x180] sm:$0xff]
    %v6403 = vld [vmem:[%s23 + $0x188] sm:$0xff]
    %v6404 = vld [vmem:[%s23 + $0x190] sm:$0xff]
    %v6405 = vld [vmem:[%s23 + $0x198] sm:$0xff]
    %v6406 = vld [vmem:[%s23 + $0x1a0] sm:$0xff]
    %v6407 = vld [vmem:[%s23 + $0x1a8] sm:$0xff]
    %v6408 = vld [vmem:[%s23 + $0x1b0] sm:$0xff]
    %v6409 = vld [vmem:[%s23 + $0x1b8] sm:$0xff]
    %v6410 = vld [vmem:[%s23 + $0x1c0] sm:$0xff]
    %v6411 = vld [vmem:[%s23 + $0x1c8] sm:$0xff]
    %v6412 = vld [vmem:[%s23 + $0x1d0] sm:$0xff]
    %v6413 = vld [vmem:[%s23 + $0x1d8] sm:$0xff]
    %v6414 = vld [vmem:[%s23 + $0x1e0] sm:$0xff]
    %v6415 = vld [vmem:[%s23 + $0x1e8] sm:$0xff]
    %v6416 = vld [vmem:[%s23 + $0x1f0] sm:$0xff]
    %v6417 = vld [vmem:[%s23 + $0x1f8] sm:$0xff]
    %v6418 = vld [vmem:[%s23 + $0x200] sm:$0xff]
    %v6419 = vld [vmem:[%s23 + $0x208] sm:$0xff]
    %v6420 = vld [vmem:[%s23 + $0x210] sm:$0xff]
    %v6421 = vld [vmem:[%s23 + $0x218] sm:$0xff]
    %v6422 = vld [vmem:[%s23 + $0x220] sm:$0xff]
    %v6423 = vld [vmem:[%s23 + $0x228] sm:$0xff]
    %v6424 = vld [vmem:[%s23 + $0x230] sm:$0xff]
    %v6425 = vld [vmem:[%s23 + $0x238] sm:$0xff]
    %v6426 = vld [vmem:[%s23 + $0x240] sm:$0xff]
    %v6427 = vld [vmem:[%s23 + $0x248] sm:$0xff]
    %v6428 = vld [vmem:[%s23 + $0x250] sm:$0xff]
    %v6429 = vld [vmem:[%s23 + $0x258] sm:$0xff]
    %v6430 = vld [vmem:[%s23 + $0x260] sm:$0xff]
    %v6431 = vld [vmem:[%s23 + $0x268] sm:$0xff]
    %v6432 = vld [vmem:[%s23 + $0x270] sm:$0xff]
    %v6433 = vld [vmem:[%s23 + $0x278] sm:$0xff]
    %v6434 = vld [vmem:[%s23 + $0x280] sm:$0xff]
    %v6435 = vld [vmem:[%s23 + $0x288] sm:$0xff]
    %v6436 = vld [vmem:[%s23 + $0x290] sm:$0xff]
    %v6437 = vld [vmem:[%s23 + $0x298] sm:$0xff]
    %v6438 = vld [vmem:[%s23 + $0x2a0] sm:$0xff]
    %v6439 = vld [vmem:[%s23 + $0x2a8] sm:$0xff]
    %v6440 = vld [vmem:[%s23 + $0x2b0] sm:$0xff]
    %v6441 = vld [vmem:[%s23 + $0x2b8] sm:$0xff]
    %v6442 = vld [vmem:[%s23 + $0x2c0] sm:$0xff]
    %v6443 = vld [vmem:[%s23 + $0x2c8] sm:$0xff]
    %v6444 = vld [vmem:[%s23 + $0x2d0] sm:$0xff]
    %v6445 = vld [vmem:[%s23 + $0x2d8] sm:$0xff]
    %v6446 = vld [vmem:[%s23 + $0x2e0] sm:$0xff]
    %v6447 = vld [vmem:[%s23 + $0x2e8] sm:$0xff]
    %v6448 = vld [vmem:[%s23 + $0x2f0] sm:$0xff]
    %v6449 = vld [vmem:[%s23 + $0x2f8] sm:$0xff]
    %v6450 = vld [vmem:[%s23 + $0x300] sm:$0xff]
    %v6451 = vld [vmem:[%s23 + $0x308] sm:$0xff]
    %v6452 = vld [vmem:[%s23 + $0x310] sm:$0xff]
    %v6453 = vld [vmem:[%s23 + $0x318] sm:$0xff]
    %v6454 = vld [vmem:[%s23 + $0x320] sm:$0xff]
    %v6455 = vld [vmem:[%s23 + $0x328] sm:$0xff]
    %v6456 = vld [vmem:[%s23 + $0x330] sm:$0xff]
    %v6457 = vld [vmem:[%s23 + $0x338] sm:$0xff]
    %v6458 = vld [vmem:[%s23 + $0x340] sm:$0xff]
    %v6459 = vld [vmem:[%s23 + $0x348] sm:$0xff]
    %v6460 = vld [vmem:[%s23 + $0x350] sm:$0xff]
    %v6461 = vld [vmem:[%s23 + $0x358] sm:$0xff]
    %v6462 = vld [vmem:[%s23 + $0x360] sm:$0xff]
    %v6463 = vld [vmem:[%s23 + $0x368] sm:$0xff]
    %v6464 = vld [vmem:[%s23 + $0x370] sm:$0xff]
    %v6465 = vld [vmem:[%s23 + $0x378] sm:$0xff]
    %v6466 = vld [vmem:[%s23 + $0x380] sm:$0xff]
    %v6467 = vld [vmem:[%s23 + $0x388] sm:$0xff]
    %v6468 = vld [vmem:[%s23 + $0x390] sm:$0xff]
    %v6469 = vld [vmem:[%s23 + $0x398] sm:$0xff]
    %v6470 = vld [vmem:[%s23 + $0x3a0] sm:$0xff]
    %v6471 = vld [vmem:[%s23 + $0x3a8] sm:$0xff]
    %v6472 = vld [vmem:[%s23 + $0x3b0] sm:$0xff]
    %v6473 = vld [vmem:[%s23 + $0x3b8] sm:$0xff]
    %v6474 = vld [vmem:[%s23 + $0x3c0] sm:$0xff]
    %v6475 = vld [vmem:[%s23 + $0x3c8] sm:$0xff]
    %v6476 = vld [vmem:[%s23 + $0x3d0] sm:$0xff]
    %v6477 = vld [vmem:[%s23 + $0x3d8] sm:$0xff]
    %v6478 = vld [vmem:[%s23 + $0x3e0] sm:$0xff]
    %v6479 = vld [vmem:[%s23 + $0x3e8] sm:$0xff]
    %v6480 = vld [vmem:[%s23 + $0x3f0] sm:$0xff]
    %v6481 = vld [vmem:[%s23 + $0x3f8] sm:$0xff]
    %v6482 = vld [vmem:[%s23 + $0x400] sm:$0xff]
    %v6483 = vld [vmem:[%s23 + $0x408] sm:$0xff]
    %v6484 = vld [vmem:[%s23 + $0x410] sm:$0xff]
    %v6485 = vld [vmem:[%s23 + $0x418] sm:$0xff]
    %v6486 = vld [vmem:[%s23 + $0x420] sm:$0xff]
    %v6487 = vld [vmem:[%s23 + $0x428] sm:$0xff]
    %v6488 = vld [vmem:[%s23 + $0x430] sm:$0xff]
    %v6489 = vld [vmem:[%s23 + $0x438] sm:$0xff]
    %v6490 = vld [vmem:[%s23 + $0x440] sm:$0xff]
    %v6491 = vld [vmem:[%s23 + $0x448] sm:$0xff]
    %v6492 = vld [vmem:[%s23 + $0x450] sm:$0xff]
    %v6493 = vld [vmem:[%s23 + $0x458] sm:$0xff]
    %v6494 = vld [vmem:[%s23 + $0x460] sm:$0xff]
    %v6495 = vld [vmem:[%s23 + $0x468] sm:$0xff]
    %v6496 = vld [vmem:[%s23 + $0x470] sm:$0xff]
    %v6497 = vld [vmem:[%s23 + $0x478] sm:$0xff]
    %v6498 = vld [vmem:[%s23 + $0x480] sm:$0xff]
    %v6499 = vld [vmem:[%s23 + $0x488] sm:$0xff]
    %v6500 = vld [vmem:[%s23 + $0x490] sm:$0xff]
    %v6501 = vld [vmem:[%s23 + $0x498] sm:$0xff]
    %v6502 = vld [vmem:[%s23 + $0x4a0] sm:$0xff]
    %v6503 = vld [vmem:[%s23 + $0x4a8] sm:$0xff]
    %v6504 = vld [vmem:[%s23 + $0x4b0] sm:$0xff]
    %v6505 = vld [vmem:[%s23 + $0x4b8] sm:$0xff]
    %v6506 = vld [vmem:[%s23 + $0x4c0] sm:$0xff]
    %v6507 = vld [vmem:[%s23 + $0x4c8] sm:$0xff]
    %v6508 = vld [vmem:[%s23 + $0x4d0] sm:$0xff]
    %v6509 = vld [vmem:[%s23 + $0x4d8] sm:$0xff]
    %v6510 = vld [vmem:[%s23 + $0x4e0] sm:$0xff]
    %v6511 = vld [vmem:[%s23 + $0x4e8] sm:$0xff]
    %v6512 = vld [vmem:[%s23 + $0x4f0] sm:$0xff]
    %v6513 = vld [vmem:[%s23 + $0x4f8] sm:$0xff]
    %v6514 = vld [vmem:[%s23 + $0x500] sm:$0xff]
    %v6515 = vld [vmem:[%s23 + $0x508] sm:$0xff]
    %v6516 = vld [vmem:[%s23 + $0x510] sm:$0xff]
    %v6517 = vld [vmem:[%s23 + $0x518] sm:$0xff]
    %v6518 = vld [vmem:[%s23 + $0x520] sm:$0xff]
    %v6519 = vld [vmem:[%s23 + $0x528] sm:$0xff]
    %v6520 = vld [vmem:[%s23 + $0x530] sm:$0xff]
    %v6521 = vld [vmem:[%s23 + $0x538] sm:$0xff]
    %v6522 = vld [vmem:[%s23 + $0x540] sm:$0xff]
    %v6523 = vld [vmem:[%s23 + $0x548] sm:$0xff]
    %v6524 = vld [vmem:[%s23 + $0x550] sm:$0xff]
    %v6525 = vld [vmem:[%s23 + $0x558] sm:$0xff]
    %v6526 = vld [vmem:[%s23 + $0x560] sm:$0xff]
    %v6527 = vld [vmem:[%s23 + $0x568] sm:$0xff]
    %v6528 = vld [vmem:[%s23 + $0x570] sm:$0xff]
    %v6529 = vld [vmem:[%s23 + $0x578] sm:$0xff]
    %v6530 = vld [vmem:[%s23 + $0x580] sm:$0xff]
    %v6531 = vld [vmem:[%s23 + $0x588] sm:$0xff]
    %v6532 = vld [vmem:[%s23 + $0x590] sm:$0xff]
    %v6533 = vld [vmem:[%s23 + $0x598] sm:$0xff]
    %v6534 = vld [vmem:[%s23 + $0x5a0] sm:$0xff]
    %v6535 = vld [vmem:[%s23 + $0x5a8] sm:$0xff]
    %v6536 = vld [vmem:[%s23 + $0x5b0] sm:$0xff]
    %v6537 = vld [vmem:[%s23 + $0x5b8] sm:$0xff]
    %v6538 = vld [vmem:[%s23 + $0x5c0] sm:$0xff]
    %v6539 = vld [vmem:[%s23 + $0x5c8] sm:$0xff]
    %v6540 = vld [vmem:[%s23 + $0x5d0] sm:$0xff]
    %v6541 = vld [vmem:[%s23 + $0x5d8] sm:$0xff]
    %v6542 = vld [vmem:[%s23 + $0x5e0] sm:$0xff]
    %v6543 = vld [vmem:[%s23 + $0x5e8] sm:$0xff]
    %v6544 = vld [vmem:[%s23 + $0x5f0] sm:$0xff]
    %v6545 = vld [vmem:[%s23 + $0x5f8] sm:$0xff]
    %v6546 = vld [vmem:[%s23 + $0x600] sm:$0xff]
    %v6547 = vld [vmem:[%s23 + $0x608] sm:$0xff]
    %v6548 = vld [vmem:[%s23 + $0x610] sm:$0xff]
    %v6549 = vld [vmem:[%s23 + $0x618] sm:$0xff]
    %v6550 = vld [vmem:[%s23 + $0x620] sm:$0xff]
    %v6551 = vld [vmem:[%s23 + $0x628] sm:$0xff]
    %v6552 = vld [vmem:[%s23 + $0x630] sm:$0xff]
    %v6553 = vld [vmem:[%s23 + $0x638] sm:$0xff]
    %v6554 = vld [vmem:[%s23 + $0x640] sm:$0xff]
    %v6555 = vld [vmem:[%s23 + $0x648] sm:$0xff]
    %v6556 = vld [vmem:[%s23 + $0x650] sm:$0xff]
    %v6557 = vld [vmem:[%s23 + $0x658] sm:$0xff]
    %v6558 = vld [vmem:[%s23 + $0x660] sm:$0xff]
    %v6559 = vld [vmem:[%s23 + $0x668] sm:$0xff]
    %v6560 = vld [vmem:[%s23 + $0x670] sm:$0xff]
    %v6561 = vld [vmem:[%s23 + $0x678] sm:$0xff]
    %v6562 = vld [vmem:[%s23 + $0x680] sm:$0xff]
    %v6563 = vld [vmem:[%s23 + $0x688] sm:$0xff]
    %v6564 = vld [vmem:[%s23 + $0x690] sm:$0xff]
    %v6565 = vld [vmem:[%s23 + $0x698] sm:$0xff]
    %v6566 = vld [vmem:[%s23 + $0x6a0] sm:$0xff]
    %v6567 = vld [vmem:[%s23 + $0x6a8] sm:$0xff]
    %v6568 = vld [vmem:[%s23 + $0x6b0] sm:$0xff]
    %v6569 = vld [vmem:[%s23 + $0x6b8] sm:$0xff]
    %v6570 = vld [vmem:[%s23 + $0x6c0] sm:$0xff]
    %v6571 = vld [vmem:[%s23 + $0x6c8] sm:$0xff]
    %v6572 = vld [vmem:[%s23 + $0x6d0] sm:$0xff]
    %v6573 = vld [vmem:[%s23 + $0x6d8] sm:$0xff]
    %v6574 = vld [vmem:[%s23 + $0x6e0] sm:$0xff]
    %v6575 = vld [vmem:[%s23 + $0x6e8] sm:$0xff]
    %v6576 = vld [vmem:[%s23 + $0x6f0] sm:$0xff]
    %v6577 = vld [vmem:[%s23 + $0x6f8] sm:$0xff]
    %v6578 = vld [vmem:[%s23 + $0x700] sm:$0xff]
    %v6579 = vld [vmem:[%s23 + $0x708] sm:$0xff]
    %v6580 = vld [vmem:[%s23 + $0x710] sm:$0xff]
    %v6581 = vld [vmem:[%s23 + $0x718] sm:$0xff]
    %v6582 = vld [vmem:[%s23 + $0x720] sm:$0xff]
    %v6583 = vld [vmem:[%s23 + $0x728] sm:$0xff]
    %v6584 = vld [vmem:[%s23 + $0x730] sm:$0xff]
    %v6585 = vld [vmem:[%s23 + $0x738] sm:$0xff]
    %v6586 = vld [vmem:[%s23 + $0x740] sm:$0xff]
    %v6587 = vld [vmem:[%s23 + $0x748] sm:$0xff]
    %v6588 = vld [vmem:[%s23 + $0x750] sm:$0xff]
    %v6589 = vld [vmem:[%s23 + $0x758] sm:$0xff]
    %v6590 = vld [vmem:[%s23 + $0x760] sm:$0xff]
    %v6591 = vld [vmem:[%s23 + $0x768] sm:$0xff]
    %v6592 = vld [vmem:[%s23 + $0x770] sm:$0xff]
    %v6593 = vld [vmem:[%s23 + $0x778] sm:$0xff]
    %v6594 = vld [vmem:[%s23 + $0x780] sm:$0xff]
    %v6595 = vld [vmem:[%s23 + $0x788] sm:$0xff]
    %v6596 = vld [vmem:[%s23 + $0x790] sm:$0xff]
    %v6597 = vld [vmem:[%s23 + $0x798] sm:$0xff]
    %v6598 = vld [vmem:[%s23 + $0x7a0] sm:$0xff]
    %v6599 = vld [vmem:[%s23 + $0x7a8] sm:$0xff]
    %v6600 = vld [vmem:[%s23 + $0x7b0] sm:$0xff]
    %v6601 = vld [vmem:[%s23 + $0x7b8] sm:$0xff]
    %v6602 = vld [vmem:[%s23 + $0x7c0] sm:$0xff]
    %v6603 = vld [vmem:[%s23 + $0x7c8] sm:$0xff]
    %v6604 = vld [vmem:[%s23 + $0x7d0] sm:$0xff]
    %v6605 = vld [vmem:[%s23 + $0x7d8] sm:$0xff]
    %v6606 = vld [vmem:[%s23 + $0x7e0] sm:$0xff]
    %v6607 = vld [vmem:[%s23 + $0x7e8] sm:$0xff]
    %v6608 = vld [vmem:[%s23 + $0x7f0] sm:$0xff]
    %v6609 = vld [vmem:[%s23 + $0x7f8] sm:$0xff]
    %v6610 = vld [vmem:[%s24] sm:$0x1]
    %v6612 = vperm.slane %v6610, 0
    %6614 = vmatpush.msra.mxu0 %v6369
    %6615 = vmatpush.msra.mxu0 %v6368
    %6616 = vmatpush.msra.mxu0 %v6367
    %6617 = vmatpush.msra.mxu0 %v6366
    %6618 = vmatpush.msra.mxu0 %v6365
    %6619 = vmatpush.msra.mxu0 %v6364
    %6620 = vmatpush.msra.mxu0 %v6363
    %6621 = vmatpush.msra.mxu0 %v6362
    %6622 = vmatpush.msra.mxu0 %v6361
    %6623 = vmatpush.msra.mxu0 %v6360
    %6624 = vmatpush.msra.mxu0 %v6359
    %6625 = vmatpush.msra.mxu0 %v6358
    %6626 = vmatpush.msra.mxu0 %v6357
    %6627 = vmatpush.msra.mxu0 %v6356
    %6628 = vmatpush.msra.mxu0 %v6355
    %6629 = vmatpush.msra.mxu0 %v6354
    %6630 = vmatmul.f32.gmra.mxu0 %v6338
    %v6631 = vpop.f32.mrf.mxu0
    %v6632 = vadd.f32 %v6612, %v6631
    %6633 = vdwg.mxu0
    %6634 = vmatpush.msra.mxu0 %v6385
    %6635 = vmatpush.msra.mxu0 %v6384
    %6636 = vmatpush.msra.mxu0 %v6383
    %6637 = vmatpush.msra.mxu0 %v6382
    %6638 = vmatpush.msra.mxu0 %v6381
    %6639 = vmatpush.msra.mxu0 %v6380
    %6640 = vmatpush.msra.mxu0 %v6379
    %6641 = vmatpush.msra.mxu0 %v6378
    %6642 = vmatpush.msra.mxu0 %v6377
    %6643 = vmatpush.msra.mxu0 %v6376
    %6644 = vmatpush.msra.mxu0 %v6375
    %6645 = vmatpush.msra.mxu0 %v6374
    %6646 = vmatpush.msra.mxu0 %v6373
    %6647 = vmatpush.msra.mxu0 %v6372
    %6648 = vmatpush.msra.mxu0 %v6371
    %6649 = vmatpush.msra.mxu0 %v6370
    %6650 = vmatmul.f32.gmra.mxu0 %v6339
    %v6651 = vpop.f32.mrf.mxu0
    %v6652 = vadd.f32 %v6632, %v6651
    %6653 = vdwg.mxu0
    %6654 = vmatpush.msra.mxu0 %v6401
    %6655 = vmatpush.msra.mxu0 %v6400
    %6656 = vmatpush.msra.mxu0 %v6399
    %6657 = vmatpush.msra.mxu0 %v6398
    %6658 = vmatpush.msra.mxu0 %v6397
    %6659 = vmatpush.msra.mxu0 %v6396
    %6660 = vmatpush.msra.mxu0 %v6395
    %6661 = vmatpush.msra.mxu0 %v6394
    %6662 = vmatpush.msra.mxu0 %v6393
    %6663 = vmatpush.msra.mxu0 %v6392
    %6664 = vmatpush.msra.mxu0 %v6391
    %6665 = vmatpush.msra.mxu0 %v6390
    %6666 = vmatpush.msra.mxu0 %v6389
    %6667 = vmatpush.msra.mxu0 %v6388
    %6668 = vmatpush.msra.mxu0 %v6387
    %6669 = vmatpush.msra.mxu0 %v6386
    %6670 = vmatmul.f32.gmra.mxu0 %v6340
    %v6671 = vpop.f32.mrf.mxu0
    %v6672 = vadd.f32 %v6652, %v6671
    %6673 = vdwg.mxu0
    %6674 = vmatpush.msra.mxu0 %v6417
    %6675 = vmatpush.msra.mxu0 %v6416
    %6676 = vmatpush.msra.mxu0 %v6415
    %6677 = vmatpush.msra.mxu0 %v6414
    %6678 = vmatpush.msra.mxu0 %v6413
    %6679 = vmatpush.msra.mxu0 %v6412
    %6680 = vmatpush.msra.mxu0 %v6411
    %6681 = vmatpush.msra.mxu0 %v6410
    %6682 = vmatpush.msra.mxu0 %v6409
    %6683 = vmatpush.msra.mxu0 %v6408
    %6684 = vmatpush.msra.mxu0 %v6407
    %6685 = vmatpush.msra.mxu0 %v6406
    %6686 = vmatpush.msra.mxu0 %v6405
    %6687 = vmatpush.msra.mxu0 %v6404
    %6688 = vmatpush.msra.mxu0 %v6403
    %6689 = vmatpush.msra.mxu0 %v6402
    %6690 = vmatmul.f32.gmra.mxu0 %v6341
    %v6691 = vpop.f32.mrf.mxu0
    %v6692 = vadd.f32 %v6672, %v6691
    %6693 = vdwg.mxu0
    %6694 = vmatpush.msra.mxu0 %v6433
    %6695 = vmatpush.msra.mxu0 %v6432
    %6696 = vmatpush.msra.mxu0 %v6431
    %6697 = vmatpush.msra.mxu0 %v6430
    %6698 = vmatpush.msra.mxu0 %v6429
    %6699 = vmatpush.msra.mxu0 %v6428
    %6700 = vmatpush.msra.mxu0 %v6427
    %6701 = vmatpush.msra.mxu0 %v6426
    %6702 = vmatpush.msra.mxu0 %v6425
    %6703 = vmatpush.msra.mxu0 %v6424
    %6704 = vmatpush.msra.mxu0 %v6423
    %6705 = vmatpush.msra.mxu0 %v6422
    %6706 = vmatpush.msra.mxu0 %v6421
    %6707 = vmatpush.msra.mxu0 %v6420
    %6708 = vmatpush.msra.mxu0 %v6419
    %6709 = vmatpush.msra.mxu0 %v6418
    %6710 = vmatmul.f32.gmra.mxu0 %v6342
    %v6711 = vpop.f32.mrf.mxu0
    %v6712 = vadd.f32 %v6692, %v6711
    %6713 = vdwg.mxu0
    %6714 = vmatpush.msra.mxu0 %v6449
    %6715 = vmatpush.msra.mxu0 %v6448
    %6716 = vmatpush.msra.mxu0 %v6447
    %6717 = vmatpush.msra.mxu0 %v6446
    %6718 = vmatpush.msra.mxu0 %v6445
    %6719 = vmatpush.msra.mxu0 %v6444
    %6720 = vmatpush.msra.mxu0 %v6443
    %6721 = vmatpush.msra.mxu0 %v6442
    %6722 = vmatpush.msra.mxu0 %v6441
    %6723 = vmatpush.msra.mxu0 %v6440
    %6724 = vmatpush.msra.mxu0 %v6439
    %6725 = vmatpush.msra.mxu0 %v6438
    %6726 = vmatpush.msra.mxu0 %v6437
    %6727 = vmatpush.msra.mxu0 %v6436
    %6728 = vmatpush.msra.mxu0 %v6435
    %6729 = vmatpush.msra.mxu0 %v6434
    %6730 = vmatmul.f32.gmra.mxu0 %v6343
    %v6731 = vpop.f32.mrf.mxu0
    %v6732 = vadd.f32 %v6712, %v6731
    %6733 = vdwg.mxu0
    %6734 = vmatpush.msra.mxu0 %v6465
    %6735 = vmatpush.msra.mxu0 %v6464
    %6736 = vmatpush.msra.mxu0 %v6463
    %6737 = vmatpush.msra.mxu0 %v6462
    %6738 = vmatpush.msra.mxu0 %v6461
    %6739 = vmatpush.msra.mxu0 %v6460
    %6740 = vmatpush.msra.mxu0 %v6459
    %6741 = vmatpush.msra.mxu0 %v6458
    %6742 = vmatpush.msra.mxu0 %v6457
    %6743 = vmatpush.msra.mxu0 %v6456
    %6744 = vmatpush.msra.mxu0 %v6455
    %6745 = vmatpush.msra.mxu0 %v6454
    %6746 = vmatpush.msra.mxu0 %v6453
    %6747 = vmatpush.msra.mxu0 %v6452
    %6748 = vmatpush.msra.mxu0 %v6451
    %6749 = vmatpush.msra.mxu0 %v6450
    %6750 = vmatmul.f32.gmra.mxu0 %v6344
    %v6751 = vpop.f32.mrf.mxu0
    %v6752 = vadd.f32 %v6732, %v6751
    %6753 = vdwg.mxu0
    %6754 = vmatpush.msra.mxu0 %v6481
    %6755 = vmatpush.msra.mxu0 %v6480
    %6756 = vmatpush.msra.mxu0 %v6479
    %6757 = vmatpush.msra.mxu0 %v6478
    %6758 = vmatpush.msra.mxu0 %v6477
    %6759 = vmatpush.msra.mxu0 %v6476
    %6760 = vmatpush.msra.mxu0 %v6475
    %6761 = vmatpush.msra.mxu0 %v6474
    %6762 = vmatpush.msra.mxu0 %v6473
    %6763 = vmatpush.msra.mxu0 %v6472
    %6764 = vmatpush.msra.mxu0 %v6471
    %6765 = vmatpush.msra.mxu0 %v6470
    %6766 = vmatpush.msra.mxu0 %v6469
    %6767 = vmatpush.msra.mxu0 %v6468
    %6768 = vmatpush.msra.mxu0 %v6467
    %6769 = vmatpush.msra.mxu0 %v6466
    %6770 = vmatmul.f32.gmra.mxu0 %v6345
    %v6771 = vpop.f32.mrf.mxu0
    %v6772 = vadd.f32 %v6752, %v6771
    %6773 = vdwg.mxu0
    %6774 = vmatpush.msra.mxu0 %v6497
    %6775 = vmatpush.msra.mxu0 %v6496
    %6776 = vmatpush.msra.mxu0 %v6495
    %6777 = vmatpush.msra.mxu0 %v6494
    %6778 = vmatpush.msra.mxu0 %v6493
    %6779 = vmatpush.msra.mxu0 %v6492
    %6780 = vmatpush.msra.mxu0 %v6491
    %6781 = vmatpush.msra.mxu0 %v6490
    %6782 = vmatpush.msra.mxu0 %v6489
    %6783 = vmatpush.msra.mxu0 %v6488
    %6784 = vmatpush.msra.mxu0 %v6487
    %6785 = vmatpush.msra.mxu0 %v6486
    %6786 = vmatpush.msra.mxu0 %v6485
    %6787 = vmatpush.msra.mxu0 %v6484
    %6788 = vmatpush.msra.mxu0 %v6483
    %6789 = vmatpush.msra.mxu0 %v6482
    %6790 = vmatmul.f32.gmra.mxu0 %v6346
    %v6791 = vpop.f32.mrf.mxu0
    %v6792 = vadd.f32 %v6772, %v6791
    %6793 = vdwg.mxu0
    %6794 = vmatpush.msra.mxu0 %v6513
    %6795 = vmatpush.msra.mxu0 %v6512
    %6796 = vmatpush.msra.mxu0 %v6511
    %6797 = vmatpush.msra.mxu0 %v6510
    %6798 = vmatpush.msra.mxu0 %v6509
    %6799 = vmatpush.msra.mxu0 %v6508
    %6800 = vmatpush.msra.mxu0 %v6507
    %6801 = vmatpush.msra.mxu0 %v6506
    %6802 = vmatpush.msra.mxu0 %v6505
    %6803 = vmatpush.msra.mxu0 %v6504
    %6804 = vmatpush.msra.mxu0 %v6503
    %6805 = vmatpush.msra.mxu0 %v6502
    %6806 = vmatpush.msra.mxu0 %v6501
    %6807 = vmatpush.msra.mxu0 %v6500
    %6808 = vmatpush.msra.mxu0 %v6499
    %6809 = vmatpush.msra.mxu0 %v6498
    %6810 = vmatmul.f32.gmra.mxu0 %v6347
    %v6811 = vpop.f32.mrf.mxu0
    %v6812 = vadd.f32 %v6792, %v6811
    %6813 = vdwg.mxu0
    %6814 = vmatpush.msra.mxu0 %v6529
    %6815 = vmatpush.msra.mxu0 %v6528
    %6816 = vmatpush.msra.mxu0 %v6527
    %6817 = vmatpush.msra.mxu0 %v6526
    %6818 = vmatpush.msra.mxu0 %v6525
    %6819 = vmatpush.msra.mxu0 %v6524
    %6820 = vmatpush.msra.mxu0 %v6523
    %6821 = vmatpush.msra.mxu0 %v6522
    %6822 = vmatpush.msra.mxu0 %v6521
    %6823 = vmatpush.msra.mxu0 %v6520
    %6824 = vmatpush.msra.mxu0 %v6519
    %6825 = vmatpush.msra.mxu0 %v6518
    %6826 = vmatpush.msra.mxu0 %v6517
    %6827 = vmatpush.msra.mxu0 %v6516
    %6828 = vmatpush.msra.mxu0 %v6515
    %6829 = vmatpush.msra.mxu0 %v6514
    %6830 = vmatmul.f32.gmra.mxu0 %v6348
    %v6831 = vpop.f32.mrf.mxu0
    %v6832 = vadd.f32 %v6812, %v6831
    %6833 = vdwg.mxu0
    %6834 = vmatpush.msra.mxu0 %v6545
    %6835 = vmatpush.msra.mxu0 %v6544
    %6836 = vmatpush.msra.mxu0 %v6543
    %6837 = vmatpush.msra.mxu0 %v6542
    %6838 = vmatpush.msra.mxu0 %v6541
    %6839 = vmatpush.msra.mxu0 %v6540
    %6840 = vmatpush.msra.mxu0 %v6539
    %6841 = vmatpush.msra.mxu0 %v6538
    %6842 = vmatpush.msra.mxu0 %v6537
    %6843 = vmatpush.msra.mxu0 %v6536
    %6844 = vmatpush.msra.mxu0 %v6535
    %6845 = vmatpush.msra.mxu0 %v6534
    %6846 = vmatpush.msra.mxu0 %v6533
    %6847 = vmatpush.msra.mxu0 %v6532
    %6848 = vmatpush.msra.mxu0 %v6531
    %6849 = vmatpush.msra.mxu0 %v6530
    %6850 = vmatmul.f32.gmra.mxu0 %v6349
    %v6851 = vpop.f32.mrf.mxu0
    %v6852 = vadd.f32 %v6832, %v6851
    %6853 = vdwg.mxu0
    %6854 = vmatpush.msra.mxu0 %v6561
    %6855 = vmatpush.msra.mxu0 %v6560
    %6856 = vmatpush.msra.mxu0 %v6559
    %6857 = vmatpush.msra.mxu0 %v6558
    %6858 = vmatpush.msra.mxu0 %v6557
    %6859 = vmatpush.msra.mxu0 %v6556
    %6860 = vmatpush.msra.mxu0 %v6555
    %6861 = vmatpush.msra.mxu0 %v6554
    %6862 = vmatpush.msra.mxu0 %v6553
    %6863 = vmatpush.msra.mxu0 %v6552
    %6864 = vmatpush.msra.mxu0 %v6551
    %6865 = vmatpush.msra.mxu0 %v6550
    %6866 = vmatpush.msra.mxu0 %v6549
    %6867 = vmatpush.msra.mxu0 %v6548
    %6868 = vmatpush.msra.mxu0 %v6547
    %6869 = vmatpush.msra.mxu0 %v6546
    %6870 = vmatmul.f32.gmra.mxu0 %v6350
    %v6871 = vpop.f32.mrf.mxu0
    %v6872 = vadd.f32 %v6852, %v6871
    %6873 = vdwg.mxu0
    %6874 = vmatpush.msra.mxu0 %v6577
    %6875 = vmatpush.msra.mxu0 %v6576
    %6876 = vmatpush.msra.mxu0 %v6575
    %6877 = vmatpush.msra.mxu0 %v6574
    %6878 = vmatpush.msra.mxu0 %v6573
    %6879 = vmatpush.msra.mxu0 %v6572
    %6880 = vmatpush.msra.mxu0 %v6571
    %6881 = vmatpush.msra.mxu0 %v6570
    %6882 = vmatpush.msra.mxu0 %v6569
    %6883 = vmatpush.msra.mxu0 %v6568
    %6884 = vmatpush.msra.mxu0 %v6567
    %6885 = vmatpush.msra.mxu0 %v6566
    %6886 = vmatpush.msra.mxu0 %v6565
    %6887 = vmatpush.msra.mxu0 %v6564
    %6888 = vmatpush.msra.mxu0 %v6563
    %6889 = vmatpush.msra.mxu0 %v6562
    %6890 = vmatmul.f32.gmra.mxu0 %v6351
    %v6891 = vpop.f32.mrf.mxu0
    %v6892 = vadd.f32 %v6872, %v6891
    %6893 = vdwg.mxu0
    %6894 = vmatpush.msra.mxu0 %v6593
    %6895 = vmatpush.msra.mxu0 %v6592
    %6896 = vmatpush.msra.mxu0 %v6591
    %6897 = vmatpush.msra.mxu0 %v6590
    %6898 = vmatpush.msra.mxu0 %v6589
    %6899 = vmatpush.msra.mxu0 %v6588
    %6900 = vmatpush.msra.mxu0 %v6587
    %6901 = vmatpush.msra.mxu0 %v6586
    %6902 = vmatpush.msra.mxu0 %v6585
    %6903 = vmatpush.msra.mxu0 %v6584
    %6904 = vmatpush.msra.mxu0 %v6583
    %6905 = vmatpush.msra.mxu0 %v6582
    %6906 = vmatpush.msra.mxu0 %v6581
    %6907 = vmatpush.msra.mxu0 %v6580
    %6908 = vmatpush.msra.mxu0 %v6579
    %6909 = vmatpush.msra.mxu0 %v6578
    %6910 = vmatmul.f32.gmra.mxu0 %v6352
    %v6911 = vpop.f32.mrf.mxu0
    %v6912 = vadd.f32 %v6892, %v6911
    %6913 = vdwg.mxu0
    %6914 = vmatpush.msra.mxu0 %v6609
    %6915 = vmatpush.msra.mxu0 %v6608
    %6916 = vmatpush.msra.mxu0 %v6607
    %6917 = vmatpush.msra.mxu0 %v6606
    %6918 = vmatpush.msra.mxu0 %v6605
    %6919 = vmatpush.msra.mxu0 %v6604
    %6920 = vmatpush.msra.mxu0 %v6603
    %6921 = vmatpush.msra.mxu0 %v6602
    %6922 = vmatpush.msra.mxu0 %v6601
    %6923 = vmatpush.msra.mxu0 %v6600
    %6924 = vmatpush.msra.mxu0 %v6599
    %6925 = vmatpush.msra.mxu0 %v6598
    %6926 = vmatpush.msra.mxu0 %v6597
    %6927 = vmatpush.msra.mxu0 %v6596
    %6928 = vmatpush.msra.mxu0 %v6595
    %6929 = vmatpush.msra.mxu0 %v6594
    %6930 = vmatmul.f32.gmra.mxu0 %v6353
    %v6931 = vpop.f32.mrf.mxu0
    %v6932 = vadd.f32 %v6912, %v6931
    %6933 = vdwg.mxu0
    %v6934 = vadd.f32 %v5226, %v6932
    %v6935 = vsel %vm3860, %v6934, 0.0
    %6936 = vadd.xlane.f32.xlu0 %v6935
    %v6937 = vpop.xlane.xlu0 %6936
    %v6938 = vmul.f32 %v6937, %v3870
    %v6939 = vsub.f32 %v6934, %v6938
    %v6940 = vmul.f32 %v6939, %v6939
    %v6941 = vsel %vm3860, %v6940, 0.0
    %6942 = vadd.xlane.f32.xlu0 %v6941
    %v6943 = vpop.xlane.xlu0 %6942
    %v6944 = vmul.f32 %v6943, %v3870
    %v6945 = vadd.f32 %v6944, 1e-05
    %v6946 = vrsqrt.pop %v6945
    %v6947 = vmul.f32 %v6946, %v6945
    %v6948 = vmul.f32 %v6947, %v6946
    %v6949 = vmul.f32 0.5, %v6948
    %v6950 = vsub.f32 1.5, %v6949
    %v6951 = vmul.f32 %v6946, %v6950
    %vm6952 = vweird.f32 %v6945
    %vm6953 = vweird.f32 %v6946
    %vm6954 = vmor %vm6952, %vm6953
    %v6955 = vsel %vm6954, %v6946, %v6951
    %v6956 = vmul.f32 %v6939, %v6955
    %v6957 = vperm.slane %v85, 2
    %v6958 = vmul.f32 %v6956, %v6957
    %v6959 = vperm.slane %v86, 2
    %v6960 = vadd.f32 %v6958, %v6959
    %v6961 = vadd.f32 %v418, %v6960
    %v6962 = vld [vmem:[%s1] sm:$0xf]
    %vm6963 = vcmp.eq.f32.partialorder %v6962, -1.0
    %v6964 = vsel %vm6963, 1, 0
    %v6965 = vcvt.s32.f32 %v6964
    %vm6966 = vcmp.eq.f32.partialorder %v6962, 0.0
    %v6967 = vsel %vm6966, 1, 0
    %v6968 = vcvt.s32.f32 %v6967
    %vm6969 = vcmp.eq.f32.partialorder %v6962, 1.0
    %v6970 = vsel %vm6969, 1, 0
    %v6971 = vcvt.s32.f32 %v6970
    %v6972 = vsub.f32 1.0, %v6965
    %6974 = vset.pattern.permute.xlu0 0
    %6975 = vperm.xlu0 %6974, %v6972
    %v6976 = vpop.permute.xlu0 %6975
    %v6978 = vmul.f32 %v6976, %v6961
    %6980 = vset.pattern.permute.xlu0 0
    %6981 = vperm.xlu0 %6980, %v6965
    %v6982 = vpop.permute.xlu0 %6981
    %v6984 = vperm.slane %v87, 0
    %v6985 = vmul.f32 %v6982, %v6984
    %v6986 = vadd.f32 %v6978, %v6985
    %6988 = vset.pattern.permute.xlu0 0
    %6989 = vperm.xlu0 %6988, %v6968
    %v6990 = vpop.permute.xlu0 %6989
    %v6992 = vperm.slane %v87, 1
    %v6993 = vmul.f32 %v6990, %v6992
    %v6994 = vadd.f32 %v6986, %v6993
    %6996 = vset.pattern.permute.xlu0 0
    %6997 = vperm.xlu0 %6996, %v6971
    %v6998 = vpop.permute.xlu0 %6997
    %v7000 = vperm.slane %v87, 2
    %v7001 = vmul.f32 %v6998, %v7000
    %v7002 = vadd.f32 %v6994, %v7001
    %7003 = vst.msk [vmem:[#allocation2] sm:$0xf] %vm3860, %v7002
    // Predicated region
    $region106: #{prompt_encoder_forward.3} parent=1 // pred_check
      _
    $region107: #{prompt_encoder_forward.3} parent=1 // pred_check_branch
      %7005 = sbr.rel (0) target = $region109
    $region108: #{prompt_encoder_forward.3} parent=1 // pred_region
      %7007 = vsyncadd [#allocation3], 0
      %s7009 = sshll.u32 [#allocation2], 4
      %s7010 = int_to_ptr.vmem [resolvable:$true] %s7009
      %s7011 = sshll.u32 %s26, 4
      %s7012 = int_to_ptr.hbm [resolvable:$true] %s7011
      %7014 = dma.vmem_to_hbm [thread:$0]  %s7010, 64, %s7012, [#allocation3]
    $region109: #{prompt_encoder_forward.3} parent=1 // pred_fallthru
      _
    // Predicated region
    $region110: #{prompt_encoder_forward.3} parent=1 // pred_check
      _
    $region111: #{prompt_encoder_forward.3} parent=1 // pred_check_branch
      %7016 = sbr.rel (0) target = $region113
    $region112: #{prompt_encoder_forward.3} parent=1 // pred_region
      %7018 = dma.done [#allocation3], 64
    $region113: #{prompt_encoder_forward.3} parent=1 // pred_fallthru
      _
    %7019 = vsyncpa [#allocation3], 1

</llo_original>
